<compile_context>
chip_gen: v7x
topology: tpu7x:2x2x1
jax: 0.10.0
libtpu: 0.0.40
codegen_flags: <defaults>
</compile_context>

<pallas_src>
import math
from functools import partial

import jax
import jax.numpy as jnp
from jax.experimental import pallas as pl
from jax.experimental.pallas import tpu as pltpu


# rows of the packed bias buffer
_B_GRU, _B_GRUN, _B_H2L, _B_ODE1, _B_ODE2, _B_L2H, _B_H2O, _B_LSTM, _B_FC2 = range(9)


def _elu(x):
    # ELU(alpha=1); exp only (no expm1) to stay on well-trodden lowerings
    return jnp.where(x > 0, x, jnp.exp(jnp.minimum(x, 0.0)) - 1.0)


def odevae_kernel(
    # ---- inputs ----
    x_ref,          # (t_enc*B, D_in)  time-major, flattened encoder prefix
    eps_ref,        # (B, L)           reparameterization noise
    gru_wih_ref,    # (D_in, 3He)      gate order [r|z|n]
    gru_whh_ref,    # (He, 3He)
    h2l_w_ref,      # (He, 2L)         columns [mean | logvar]
    ode_w1_ref,     # (L, OH)
    ode_w2_ref,     # (OH, L)
    l2h_w_ref,      # (L, Hd)
    h2o_w_ref,      # (Hd, O)
    lstm_wih_ref,   # (L, 4Hl)         gate order [i|f|g|o]
    lstm_whh_ref,   # (Hl, 4Hl)
    fc2_w_ref,      # (Hl, nc)
    bias_ref,       # (9, maxw)        packed biases (rows per _B_* constants)
    # ---- outputs ----
    xs_ref,         # (T*B, O)   (host reshapes to (T, B, O))
    z_ref, zmean_ref, zlogvar_ref,     # (B, L)
    lstm_out_ref,   # (B, nc)
    # ---- scratch ----
    xg_scr,         # VMEM (B, T+1, 4Hl): LSTM ih-projection, batch-major
    *, dt,
):
    f32 = jnp.float32
    B = eps_ref.shape[0]
    t_enc = x_ref.shape[0] // B
    T = xs_ref.shape[0] // B
    T1 = T + 1
    He = gru_whh_ref.shape[0]
    L = ode_w2_ref.shape[1]
    OH = ode_w1_ref.shape[1]
    Hd = l2h_w_ref.shape[1]
    O = h2o_w_ref.shape[1]
    Hl = lstm_whh_ref.shape[0]
    nc = fc2_w_ref.shape[1]

    def mm(a, b):
        return jnp.dot(a, b, preferred_element_type=jnp.float32)

    # ---------------- RNNEncoder: GRU over the observed prefix ----------------
    # All input-hidden projections in ONE matmul (M = t_enc*B), gate-fused along
    # lanes [r|z|n]; r/z biases (ih+hh) and the n-gate ih-bias already folded.
    xg = mm(x_ref[...], gru_wih_ref[...]) + bias_ref[_B_GRU:_B_GRU + 1, 0:3 * He]
    g_whh = gru_whh_ref[...]                                     # hot: keep resident
    bhh_n = jnp.broadcast_to(bias_ref[_B_GRUN:_B_GRUN + 1, 0:He], (B, He))  # hoisted

    h = jnp.zeros((B, He), f32)
    for tt in range(t_enc):
        xg_t = xg[tt * B:(tt + 1) * B, :]                        # contiguous row block
        hg = mm(h, g_whh)                                        # ONE fused hh matmul/step
        r = jax.nn.sigmoid(xg_t[:, 0:He] + hg[:, 0:He])
        u = jax.nn.sigmoid(xg_t[:, He:2 * He] + hg[:, He:2 * He])
        n = jnp.tanh(xg_t[:, 2 * He:3 * He] + r * (hg[:, 2 * He:3 * He] + bhh_n))
        h = (1.0 - u) * n + u * h

    # hid2lat, fused [mean | logvar]; reparameterize
    zml = mm(h, h2l_w_ref[...]) + bias_ref[_B_H2L:_B_H2L + 1, 0:2 * L]
    z_mean = zml[:, 0:L]
    z_logvar = zml[:, L:2 * L]
    z0 = z_mean + eps_ref[...] * jnp.exp(0.5 * z_logvar)
    zmean_ref[...] = z_mean
    zlogvar_ref[...] = z_logvar
    z_ref[...] = z0

    # ---------------- latent ODE: fixed-step RK4 over linspace(0,1,T) ----------
    # TODO(synk): torchdiffeq's default odeint is adaptive dopri5; approximated
    # here by one fixed-step RK4 update per requested output time.
    w1 = ode_w1_ref[...]
    w2 = ode_w2_ref[...]
    b1 = jnp.broadcast_to(bias_ref[_B_ODE1:_B_ODE1 + 1, 0:OH], (B, OH))
    b2 = jnp.broadcast_to(bias_ref[_B_ODE2:_B_ODE2 + 1, 0:L], (B, L))
    half_dt = 0.5 * dt
    sixth_dt = dt / 6.0

    def f(y):   # ODEFunc: Linear(L, OH) -> ELU -> Linear(OH, L)
        return mm(_elu(mm(y, w1) + b1), w2) + b2

    zs = [z0]                                   # odeint returns y0 at t[0]
    y = z0
    for _ in range(T - 1):
        k1 = f(y)
        k2 = f(y + half_dt * k1)
        k3 = f(y + half_dt * k2)
        k4 = f(y + dt * k3)
        y = y + sixth_dt * (k1 + 2.0 * (k2 + k3) + k4)
        zs.append(y)

    # ---------------- decoder readout xs = h2o(l2h(zs)), batched ----------------
    zs_flat = jnp.concatenate(zs, axis=0)                        # (T*B, L), t-major
    hdec = mm(zs_flat, l2h_w_ref[...]) + bias_ref[_B_L2H:_B_L2H + 1, 0:Hd]
    xs_ref[...] = mm(hdec, h2o_w_ref[...]) + bias_ref[_B_H2O:_B_H2O + 1, 0:O]

    # ---------------- classifier: nn.LSTM exactly as the PyTorch module --------
    # input_lstm = cat((z0[None], zs)).permute(1,0,2); nn.LSTM is seq-first, so
    # the recurrence runs over the batch axis (B steps) with "batch" = T+1 rows.
    # Precompute the whole input-hidden projection in one matmul (bias folded),
    # then transpose it once into a (B, T+1, 4Hl) scratch so every step reads a
    # single contiguous block (no per-step gathers).
    lstm_in = jnp.concatenate([z0] + zs, axis=0)                 # ((T+1)*B, L), t-major
    xg_l = mm(lstm_in, lstm_wih_ref[...]) + bias_ref[_B_LSTM:_B_LSTM + 1, 0:4 * Hl]
    for j in range(T1):                                          # one-time t->b reorder
        xg_scr[:, j, :] = xg_l[j * B:(j + 1) * B, :]

    l_whh = lstm_whh_ref[...]                                    # hot: keep resident
    hs = jnp.zeros((T1, Hl), f32)
    cs = jnp.zeros((T1, Hl), f32)
    feat = []
    for s in range(B):
        g = xg_scr[s] + mm(hs, l_whh)                            # ONE fused hh matmul/step
        gi = jax.nn.sigmoid(g[:, 0:Hl])
        gf = jax.nn.sigmoid(g[:, Hl:2 * Hl])
        gg = jnp.tanh(g[:, 2 * Hl:3 * Hl])
        go = jax.nn.sigmoid(g[:, 3 * Hl:4 * Hl])
        cs = gf * cs + gi * gg
        hs = go * jnp.tanh(cs)
        feat.append(hs[T:T1, :])                                 # lstm_out[s, -1, :]
    feat = jnp.concatenate(feat, axis=0)                         # (B, Hl)

    # fc2 folded into the same kernel
    lstm_out_ref[...] = mm(feat, fc2_w_ref[...]) + bias_ref[_B_FC2:_B_FC2 + 1, 0:nc]


@partial(jax.jit, static_argnames=("t_enc", "MAP"))
def odevae_forward(params, x, *, t_enc, key, MAP=False):
    """ODEVAE.forward(x, t): returns (x_p, z, z_mean, z_log_var, lstm_out)."""
    B, S, D_in = x.shape
    T = S - t_enc
    He = params["gru_whh"].shape[0]
    L = params["ode_w2"].shape[1]
    OH = params["ode_w1"].shape[1]
    Hd = params["l2h_w"].shape[1]
    O = params["h2o_w"].shape[1]
    Hl = params["lstm_whh"].shape[0]
    nc = params["fc2_w"].shape[1]

    # encoder prefix: time-major and pre-flattened so the GRU ih projection is
    # one big matmul in-kernel
    x_enc = jnp.transpose(x[:, :t_enc, :], (1, 0, 2)).reshape(t_enc * B, D_in)
    x_enc = x_enc.astype(jnp.float32)

    if MAP:
        eps = jnp.zeros((B, L), jnp.float32)
    else:
        eps = jax.random.normal(key, (B, L), jnp.float32)

    # time grid is linspace(0, 1, T): the RK4 step is a compile-time constant
    dt = 1.0 / (T - 1) if T > 1 else 0.0

    # ---- bias folding + packing into one buffer (host-side, tiny) ----
    gbih, gbhh = params["gru_bih"], params["gru_bhh"]
    gru_b_fold = jnp.concatenate([gbih[0:He] + gbhh[0:He],
                                  gbih[He:2 * He] + gbhh[He:2 * He],
                                  gbih[2 * He:3 * He]])
    lstm_b = params["lstm_bih"] + params["lstm_bhh"]
    bias_rows = [gru_b_fold,                 # _B_GRU
                 gbhh[2 * He:3 * He],        # _B_GRUN
                 params["h2l_b"],            # _B_H2L
                 params["ode_b1"],           # _B_ODE1
                 params["ode_b2"],           # _B_ODE2
                 params["l2h_b"],            # _B_L2H
                 params["h2o_b"],            # _B_H2O
                 lstm_b,                     # _B_LSTM
                 params["fc2_b"]]            # _B_FC2
    maxw = max(int(r.shape[0]) for r in bias_rows)
    bias_pack = jnp.stack(
        [jnp.pad(r.astype(jnp.float32), (0, maxw - r.shape[0])) for r in bias_rows],
        axis=0)

    operands = (x_enc, eps,
                params["gru_wih"], params["gru_whh"], params["h2l_w"],
                params["ode_w1"], params["ode_w2"],
                params["l2h_w"], params["h2o_w"],
                params["lstm_wih"], params["lstm_whh"], params["fc2_w"],
                bias_pack)

    # advisory cost estimate (lets XLA overlap the host-side transpose/RNG)
    nrk = max(T - 1, 0)
    flops = 2 * (t_enc * B * D_in * 3 * He + t_enc * B * He * 3 * He
                 + B * He * 2 * L
                 + 4 * nrk * (B * L * OH + B * OH * L)
                 + T * B * (L * Hd + Hd * O)
                 + (T + 1) * B * L * 4 * Hl + B * (T + 1) * Hl * 4 * Hl
                 + B * Hl * nc)
    trans = (t_enc * B * 3 * He + B * L + 4 * nrk * B * OH
             + B * (T + 1) * 5 * Hl)
    bytes_acc = 4 * (sum(int(o.size) for o in operands)
                     + T * B * O + 3 * B * L + B * nc)

    vmem = pl.BlockSpec(memory_space=pltpu.MemorySpace.VMEM)

    outs = pl.pallas_call(
        partial(odevae_kernel, dt=float(dt)),
        out_shape=(
            jax.ShapeDtypeStruct((T * B, O), jnp.float32),    # x_p (flat)
            jax.ShapeDtypeStruct((B, L), jnp.float32),        # z
            jax.ShapeDtypeStruct((B, L), jnp.float32),        # z_mean
            jax.ShapeDtypeStruct((B, L), jnp.float32),        # z_log_var
            jax.ShapeDtypeStruct((B, nc), jnp.float32),       # lstm_out
        ),
        in_specs=[vmem] * len(operands),
        out_specs=(vmem, vmem, vmem, vmem, vmem),
        scratch_shapes=[pltpu.VMEM((B, T + 1, 4 * Hl), jnp.float32)],
        cost_estimate=pl.CostEstimate(flops=flops, transcendentals=trans,
                                      bytes_accessed=bytes_acc),
    )(*operands)

    x_p_flat, z, z_mean, z_log_var, lstm_out = outs
    return x_p_flat.reshape(T, B, O), z, z_mean, z_log_var, lstm_out


def _uniform(key, shape, bound):
    return jax.random.uniform(key, shape, jnp.float32, -bound, bound)


def init_params(key, *, output_dim, hidden_dim, latent_dim, nc, ode_hidden=128):
    """Weights pre-transposed to (in, out); gate blocks fused along the lane dim."""
    lstm_hidden = latent_dim // 2
    ks = jax.random.split(key, 20)
    k_enc = 1.0 / math.sqrt(hidden_dim)
    k_lat = 1.0 / math.sqrt(latent_dim)
    k_ode = 1.0 / math.sqrt(ode_hidden)
    k_hid = 1.0 / math.sqrt(hidden_dim)
    k_lstm = 1.0 / math.sqrt(lstm_hidden)
    return {
        # RNNEncoder GRU, gate order [r|z|n]
        "gru_wih": _uniform(ks[0], (output_dim, 3 * hidden_dim), k_enc),
        "gru_whh": _uniform(ks[1], (hidden_dim, 3 * hidden_dim), k_enc),
        "gru_bih": _uniform(ks[2], (3 * hidden_dim,), k_enc),
        "gru_bhh": _uniform(ks[3], (3 * hidden_dim,), k_enc),
        # hid2lat Linear(hidden, 2*latent), columns [mean | logvar]
        "h2l_w": _uniform(ks[4], (hidden_dim, 2 * latent_dim), k_hid),
        "h2l_b": _uniform(ks[5], (2 * latent_dim,), k_hid),
        # ODEFunc: Linear(L,128) -> ELU -> Linear(128,L)
        "ode_w1": _uniform(ks[6], (latent_dim, ode_hidden), k_lat),
        "ode_b1": _uniform(ks[7], (ode_hidden,), k_lat),
        "ode_w2": _uniform(ks[8], (ode_hidden, latent_dim), k_ode),
        "ode_b2": _uniform(ks[9], (latent_dim,), k_ode),
        # decoder readout
        "l2h_w": _uniform(ks[10], (latent_dim, hidden_dim), k_lat),
        "l2h_b": _uniform(ks[11], (hidden_dim,), k_lat),
        "h2o_w": _uniform(ks[12], (hidden_dim, output_dim), k_hid),
        "h2o_b": _uniform(ks[13], (output_dim,), k_hid),
        # LSTM classifier, gate order [i|f|g|o]
        "lstm_wih": _uniform(ks[14], (latent_dim, 4 * lstm_hidden), k_lstm),
        "lstm_whh": _uniform(ks[15], (lstm_hidden, 4 * lstm_hidden), k_lstm),
        "lstm_bih": _uniform(ks[16], (4 * lstm_hidden,), k_lstm),
        "lstm_bhh": _uniform(ks[17], (4 * lstm_hidden,), k_lstm),
        "fc2_w": _uniform(ks[18], (lstm_hidden, nc), k_lstm),
        "fc2_b": _uniform(ks[19], (nc,), k_lstm),
    }


if __name__ == "__main__":
    B, S, t_enc = 4, 16, 8                  # decoder integrates T = S - t_enc = 8 steps
    output_dim, hidden_dim, latent_dim, nc = 8, 32, 32, 4

    root = jax.random.PRNGKey(0)
    k_params, k_x, k_eps = jax.random.split(root, 3)
    params = init_params(k_params, output_dim=output_dim, hidden_dim=hidden_dim,
                         latent_dim=latent_dim, nc=nc)
    x = jax.random.normal(k_x, (B, S, output_dim), jnp.float32)

    outs = odevae_forward(params, x, t_enc=t_enc, key=k_eps, MAP=False)
    jax.block_until_ready(outs)
    x_p, z, z_mean, z_log_var, lstm_out = outs

    T = S - t_enc
    assert x_p.shape == (T, B, output_dim)
    assert z.shape == (B, latent_dim)
    assert z_mean.shape == (B, latent_dim)
    assert z_log_var.shape == (B, latent_dim)
    assert lstm_out.shape == (B, nc)
    assert bool(jnp.isfinite(x_p).all()) and bool(jnp.isfinite(lstm_out).all())
    print("KERNEL_OK")
</pallas_src>

<mosaic_0001>
module attributes {stable_mosaic.version = 11 : i64} {
  func.func @odevae_kernel(%arg0: memref<32x8xf32, #tpu.memory_space<vmem>>, %arg1: memref<4x32xf32, #tpu.memory_space<vmem>>, %arg2: memref<8x96xf32, #tpu.memory_space<vmem>>, %arg3: memref<32x96xf32, #tpu.memory_space<vmem>>, %arg4: memref<32x64xf32, #tpu.memory_space<vmem>>, %arg5: memref<32x128xf32, #tpu.memory_space<vmem>>, %arg6: memref<128x32xf32, #tpu.memory_space<vmem>>, %arg7: memref<32x32xf32, #tpu.memory_space<vmem>>, %arg8: memref<32x8xf32, #tpu.memory_space<vmem>>, %arg9: memref<32x64xf32, #tpu.memory_space<vmem>>, %arg10: memref<16x64xf32, #tpu.memory_space<vmem>>, %arg11: memref<16x4xf32, #tpu.memory_space<vmem>>, %arg12: memref<9x128xf32, #tpu.memory_space<vmem>>, %arg13: memref<32x8xf32, #tpu.memory_space<vmem>>, %arg14: memref<4x32xf32, #tpu.memory_space<vmem>>, %arg15: memref<4x32xf32, #tpu.memory_space<vmem>>, %arg16: memref<4x32xf32, #tpu.memory_space<vmem>>, %arg17: memref<4x4xf32, #tpu.memory_space<vmem>>, %arg18: memref<4x9x64xf32, #tpu.memory_space<vmem>>) attributes {dimension_semantics = [], scalar_prefetch = 0 : i64, scratch_operands = 1 : i64, tpu.core_type = #tpu.core_type<tc>} {
    %c0 = arith.constant 0 : index
    %c0_0 = arith.constant 0 : index
    %0 = vector.load %arg0[%c0, %c0_0] : memref<32x8xf32, #tpu.memory_space<vmem>>, vector<32x8xf32>
    %c0_1 = arith.constant 0 : index
    %c0_2 = arith.constant 0 : index
    %1 = vector.load %arg2[%c0_1, %c0_2] : memref<8x96xf32, #tpu.memory_space<vmem>>, vector<8x96xf32>
    %cst = arith.constant dense<0.000000e+00> : vector<32x96xf32>
    %2 = tpu.matmul %0, %1, %cst {dimension_numbers = #tpu.dot_dimension_numbers<[1], [0], [0], [1], [0, 0, 1, 1], [], []>} : vector<32x8xf32>, vector<8x96xf32>, vector<32x96xf32> -> vector<32x96xf32>
    %c0_3 = arith.constant 0 : index
    %c0_4 = arith.constant 0 : index
    %3 = vector.load %arg12[%c0_3, %c0_4] : memref<9x128xf32, #tpu.memory_space<vmem>>, vector<1x96xf32>
    %4 = vector.broadcast %3 : vector<1x96xf32> to vector<32x96xf32>
    %5 = arith.addf %2, %4 : vector<32x96xf32>
    %c0_5 = arith.constant 0 : index
    %c0_6 = arith.constant 0 : index
    %6 = vector.load %arg3[%c0_5, %c0_6] : memref<32x96xf32, #tpu.memory_space<vmem>>, vector<32x96xf32>
    %c1 = arith.constant 1 : index
    %c0_7 = arith.constant 0 : index
    %7 = vector.load %arg12[%c1, %c0_7] : memref<9x128xf32, #tpu.memory_space<vmem>>, vector<1x32xf32>
    %8 = vector.shape_cast %7 : vector<1x32xf32> to vector<1x32xf32>
    %9 = vector.broadcast %8 : vector<1x32xf32> to vector<4x32xf32>
    %cst_8 = arith.constant 0.000000e+00 : f32
    %10 = vector.broadcast %cst_8 : f32 to vector<4x32xf32>
    %11 = vector.extract_strided_slice %5 {offsets = [0, 0], sizes = [4, 96], strides = [1, 1]} : vector<32x96xf32> to vector<4x96xf32>
    %cst_9 = arith.constant dense<0.000000e+00> : vector<4x96xf32>
    %12 = tpu.matmul %10, %6, %cst_9 {dimension_numbers = #tpu.dot_dimension_numbers<[1], [0], [0], [1], [0, 0, 1, 1], [], []>} : vector<4x32xf32>, vector<32x96xf32>, vector<4x96xf32> -> vector<4x96xf32>
    %13 = vector.extract_strided_slice %11 {offsets = [0, 0], sizes = [4, 32], strides = [1, 1]} : vector<4x96xf32> to vector<4x32xf32>
    %14 = vector.extract_strided_slice %12 {offsets = [0, 0], sizes = [4, 32], strides = [1, 1]} : vector<4x96xf32> to vector<4x32xf32>
    %15 = arith.addf %13, %14 : vector<4x32xf32>
    %16 = arith.negf %15 : vector<4x32xf32>
    %17 = math.exp %16 : vector<4x32xf32>
    %cst_10 = arith.constant 1.000000e+00 : f32
    %18 = vector.broadcast %cst_10 : f32 to vector<4x32xf32>
    %19 = arith.addf %18, %17 : vector<4x32xf32>
    %20 = arith.divf %18, %19 : vector<4x32xf32>
    %21 = vector.extract_strided_slice %11 {offsets = [0, 32], sizes = [4, 32], strides = [1, 1]} : vector<4x96xf32> to vector<4x32xf32>
    %22 = vector.extract_strided_slice %12 {offsets = [0, 32], sizes = [4, 32], strides = [1, 1]} : vector<4x96xf32> to vector<4x32xf32>
    %23 = arith.addf %21, %22 : vector<4x32xf32>
    %24 = arith.negf %23 : vector<4x32xf32>
    %25 = math.exp %24 : vector<4x32xf32>
    %cst_11 = arith.constant 1.000000e+00 : f32
    %26 = vector.broadcast %cst_11 : f32 to vector<4x32xf32>
    %27 = arith.addf %26, %25 : vector<4x32xf32>
    %28 = arith.divf %26, %27 : vector<4x32xf32>
    %29 = vector.extract_strided_slice %11 {offsets = [0, 64], sizes = [4, 32], strides = [1, 1]} : vector<4x96xf32> to vector<4x32xf32>
    %30 = vector.extract_strided_slice %12 {offsets = [0, 64], sizes = [4, 32], strides = [1, 1]} : vector<4x96xf32> to vector<4x32xf32>
    %31 = arith.addf %30, %9 : vector<4x32xf32>
    %32 = arith.mulf %20, %31 : vector<4x32xf32>
    %33 = arith.addf %29, %32 : vector<4x32xf32>
    %34 = math.tanh %33 : vector<4x32xf32>
    %cst_12 = arith.constant 1.000000e+00 : f32
    %35 = vector.broadcast %cst_12 : f32 to vector<4x32xf32>
    %36 = arith.subf %35, %28 : vector<4x32xf32>
    %37 = arith.mulf %36, %34 : vector<4x32xf32>
    %38 = arith.mulf %28, %10 : vector<4x32xf32>
    %39 = arith.addf %37, %38 : vector<4x32xf32>
    %40 = vector.extract_strided_slice %5 {offsets = [4, 0], sizes = [4, 96], strides = [1, 1]} : vector<32x96xf32> to vector<4x96xf32>
    %cst_13 = arith.constant dense<0.000000e+00> : vector<4x96xf32>
    %41 = tpu.matmul %39, %6, %cst_13 {dimension_numbers = #tpu.dot_dimension_numbers<[1], [0], [0], [1], [0, 0, 1, 1], [], []>} : vector<4x32xf32>, vector<32x96xf32>, vector<4x96xf32> -> vector<4x96xf32>
    %42 = vector.extract_strided_slice %40 {offsets = [0, 0], sizes = [4, 32], strides = [1, 1]} : vector<4x96xf32> to vector<4x32xf32>
    %43 = vector.extract_strided_slice %41 {offsets = [0, 0], sizes = [4, 32], strides = [1, 1]} : vector<4x96xf32> to vector<4x32xf32>
    %44 = arith.addf %42, %43 : vector<4x32xf32>
    %45 = arith.negf %44 : vector<4x32xf32>
    %46 = math.exp %45 : vector<4x32xf32>
    %cst_14 = arith.constant 1.000000e+00 : f32
    %47 = vector.broadcast %cst_14 : f32 to vector<4x32xf32>
    %48 = arith.addf %47, %46 : vector<4x32xf32>
    %49 = arith.divf %47, %48 : vector<4x32xf32>
    %50 = vector.extract_strided_slice %40 {offsets = [0, 32], sizes = [4, 32], strides = [1, 1]} : vector<4x96xf32> to vector<4x32xf32>
    %51 = vector.extract_strided_slice %41 {offsets = [0, 32], sizes = [4, 32], strides = [1, 1]} : vector<4x96xf32> to vector<4x32xf32>
    %52 = arith.addf %50, %51 : vector<4x32xf32>
    %53 = arith.negf %52 : vector<4x32xf32>
    %54 = math.exp %53 : vector<4x32xf32>
    %cst_15 = arith.constant 1.000000e+00 : f32
    %55 = vector.broadcast %cst_15 : f32 to vector<4x32xf32>
    %56 = arith.addf %55, %54 : vector<4x32xf32>
    %57 = arith.divf %55, %56 : vector<4x32xf32>
    %58 = vector.extract_strided_slice %40 {offsets = [0, 64], sizes = [4, 32], strides = [1, 1]} : vector<4x96xf32> to vector<4x32xf32>
    %59 = vector.extract_strided_slice %41 {offsets = [0, 64], sizes = [4, 32], strides = [1, 1]} : vector<4x96xf32> to vector<4x32xf32>
    %60 = arith.addf %59, %9 : vector<4x32xf32>
    %61 = arith.mulf %49, %60 : vector<4x32xf32>
    %62 = arith.addf %58, %61 : vector<4x32xf32>
    %63 = math.tanh %62 : vector<4x32xf32>
    %cst_16 = arith.constant 1.000000e+00 : f32
    %64 = vector.broadcast %cst_16 : f32 to vector<4x32xf32>
    %65 = arith.subf %64, %57 : vector<4x32xf32>
    %66 = arith.mulf %65, %63 : vector<4x32xf32>
    %67 = arith.mulf %57, %39 : vector<4x32xf32>
    %68 = arith.addf %66, %67 : vector<4x32xf32>
    %69 = vector.extract_strided_slice %5 {offsets = [8, 0], sizes = [4, 96], strides = [1, 1]} : vector<32x96xf32> to vector<4x96xf32>
    %cst_17 = arith.constant dense<0.000000e+00> : vector<4x96xf32>
    %70 = tpu.matmul %68, %6, %cst_17 {dimension_numbers = #tpu.dot_dimension_numbers<[1], [0], [0], [1], [0, 0, 1, 1], [], []>} : vector<4x32xf32>, vector<32x96xf32>, vector<4x96xf32> -> vector<4x96xf32>
    %71 = vector.extract_strided_slice %69 {offsets = [0, 0], sizes = [4, 32], strides = [1, 1]} : vector<4x96xf32> to vector<4x32xf32>
    %72 = vector.extract_strided_slice %70 {offsets = [0, 0], sizes = [4, 32], strides = [1, 1]} : vector<4x96xf32> to vector<4x32xf32>
    %73 = arith.addf %71, %72 : vector<4x32xf32>
    %74 = arith.negf %73 : vector<4x32xf32>
    %75 = math.exp %74 : vector<4x32xf32>
    %cst_18 = arith.constant 1.000000e+00 : f32
    %76 = vector.broadcast %cst_18 : f32 to vector<4x32xf32>
    %77 = arith.addf %76, %75 : vector<4x32xf32>
    %78 = arith.divf %76, %77 : vector<4x32xf32>
    %79 = vector.extract_strided_slice %69 {offsets = [0, 32], sizes = [4, 32], strides = [1, 1]} : vector<4x96xf32> to vector<4x32xf32>
    %80 = vector.extract_strided_slice %70 {offsets = [0, 32], sizes = [4, 32], strides = [1, 1]} : vector<4x96xf32> to vector<4x32xf32>
    %81 = arith.addf %79, %80 : vector<4x32xf32>
    %82 = arith.negf %81 : vector<4x32xf32>
    %83 = math.exp %82 : vector<4x32xf32>
    %cst_19 = arith.constant 1.000000e+00 : f32
    %84 = vector.broadcast %cst_19 : f32 to vector<4x32xf32>
    %85 = arith.addf %84, %83 : vector<4x32xf32>
    %86 = arith.divf %84, %85 : vector<4x32xf32>
    %87 = vector.extract_strided_slice %69 {offsets = [0, 64], sizes = [4, 32], strides = [1, 1]} : vector<4x96xf32> to vector<4x32xf32>
    %88 = vector.extract_strided_slice %70 {offsets = [0, 64], sizes = [4, 32], strides = [1, 1]} : vector<4x96xf32> to vector<4x32xf32>
    %89 = arith.addf %88, %9 : vector<4x32xf32>
    %90 = arith.mulf %78, %89 : vector<4x32xf32>
    %91 = arith.addf %87, %90 : vector<4x32xf32>
    %92 = math.tanh %91 : vector<4x32xf32>
    %cst_20 = arith.constant 1.000000e+00 : f32
    %93 = vector.broadcast %cst_20 : f32 to vector<4x32xf32>
    %94 = arith.subf %93, %86 : vector<4x32xf32>
    %95 = arith.mulf %94, %92 : vector<4x32xf32>
    %96 = arith.mulf %86, %68 : vector<4x32xf32>
    %97 = arith.addf %95, %96 : vector<4x32xf32>
    %98 = vector.extract_strided_slice %5 {offsets = [12, 0], sizes = [4, 96], strides = [1, 1]} : vector<32x96xf32> to vector<4x96xf32>
    %cst_21 = arith.constant dense<0.000000e+00> : vector<4x96xf32>
    %99 = tpu.matmul %97, %6, %cst_21 {dimension_numbers = #tpu.dot_dimension_numbers<[1], [0], [0], [1], [0, 0, 1, 1], [], []>} : vector<4x32xf32>, vector<32x96xf32>, vector<4x96xf32> -> vector<4x96xf32>
    %100 = vector.extract_strided_slice %98 {offsets = [0, 0], sizes = [4, 32], strides = [1, 1]} : vector<4x96xf32> to vector<4x32xf32>
    %101 = vector.extract_strided_slice %99 {offsets = [0, 0], sizes = [4, 32], strides = [1, 1]} : vector<4x96xf32> to vector<4x32xf32>
    %102 = arith.addf %100, %101 : vector<4x32xf32>
    %103 = arith.negf %102 : vector<4x32xf32>
    %104 = math.exp %103 : vector<4x32xf32>
    %cst_22 = arith.constant 1.000000e+00 : f32
    %105 = vector.broadcast %cst_22 : f32 to vector<4x32xf32>
    %106 = arith.addf %105, %104 : vector<4x32xf32>
    %107 = arith.divf %105, %106 : vector<4x32xf32>
    %108 = vector.extract_strided_slice %98 {offsets = [0, 32], sizes = [4, 32], strides = [1, 1]} : vector<4x96xf32> to vector<4x32xf32>
    %109 = vector.extract_strided_slice %99 {offsets = [0, 32], sizes = [4, 32], strides = [1, 1]} : vector<4x96xf32> to vector<4x32xf32>
    %110 = arith.addf %108, %109 : vector<4x32xf32>
    %111 = arith.negf %110 : vector<4x32xf32>
    %112 = math.exp %111 : vector<4x32xf32>
    %cst_23 = arith.constant 1.000000e+00 : f32
    %113 = vector.broadcast %cst_23 : f32 to vector<4x32xf32>
    %114 = arith.addf %113, %112 : vector<4x32xf32>
    %115 = arith.divf %113, %114 : vector<4x32xf32>
    %116 = vector.extract_strided_slice %98 {offsets = [0, 64], sizes = [4, 32], strides = [1, 1]} : vector<4x96xf32> to vector<4x32xf32>
    %117 = vector.extract_strided_slice %99 {offsets = [0, 64], sizes = [4, 32], strides = [1, 1]} : vector<4x96xf32> to vector<4x32xf32>
    %118 = arith.addf %117, %9 : vector<4x32xf32>
    %119 = arith.mulf %107, %118 : vector<4x32xf32>
    %120 = arith.addf %116, %119 : vector<4x32xf32>
    %121 = math.tanh %120 : vector<4x32xf32>
    %cst_24 = arith.constant 1.000000e+00 : f32
    %122 = vector.broadcast %cst_24 : f32 to vector<4x32xf32>
    %123 = arith.subf %122, %115 : vector<4x32xf32>
    %124 = arith.mulf %123, %121 : vector<4x32xf32>
    %125 = arith.mulf %115, %97 : vector<4x32xf32>
    %126 = arith.addf %124, %125 : vector<4x32xf32>
    %127 = vector.extract_strided_slice %5 {offsets = [16, 0], sizes = [4, 96], strides = [1, 1]} : vector<32x96xf32> to vector<4x96xf32>
    %cst_25 = arith.constant dense<0.000000e+00> : vector<4x96xf32>
    %128 = tpu.matmul %126, %6, %cst_25 {dimension_numbers = #tpu.dot_dimension_numbers<[1], [0], [0], [1], [0, 0, 1, 1], [], []>} : vector<4x32xf32>, vector<32x96xf32>, vector<4x96xf32> -> vector<4x96xf32>
    %129 = vector.extract_strided_slice %127 {offsets = [0, 0], sizes = [4, 32], strides = [1, 1]} : vector<4x96xf32> to vector<4x32xf32>
    %130 = vector.extract_strided_slice %128 {offsets = [0, 0], sizes = [4, 32], strides = [1, 1]} : vector<4x96xf32> to vector<4x32xf32>
    %131 = arith.addf %129, %130 : vector<4x32xf32>
    %132 = arith.negf %131 : vector<4x32xf32>
    %133 = math.exp %132 : vector<4x32xf32>
    %cst_26 = arith.constant 1.000000e+00 : f32
    %134 = vector.broadcast %cst_26 : f32 to vector<4x32xf32>
    %135 = arith.addf %134, %133 : vector<4x32xf32>
    %136 = arith.divf %134, %135 : vector<4x32xf32>
    %137 = vector.extract_strided_slice %127 {offsets = [0, 32], sizes = [4, 32], strides = [1, 1]} : vector<4x96xf32> to vector<4x32xf32>
    %138 = vector.extract_strided_slice %128 {offsets = [0, 32], sizes = [4, 32], strides = [1, 1]} : vector<4x96xf32> to vector<4x32xf32>
    %139 = arith.addf %137, %138 : vector<4x32xf32>
    %140 = arith.negf %139 : vector<4x32xf32>
    %141 = math.exp %140 : vector<4x32xf32>
    %cst_27 = arith.constant 1.000000e+00 : f32
    %142 = vector.broadcast %cst_27 : f32 to vector<4x32xf32>
    %143 = arith.addf %142, %141 : vector<4x32xf32>
    %144 = arith.divf %142, %143 : vector<4x32xf32>
    %145 = vector.extract_strided_slice %127 {offsets = [0, 64], sizes = [4, 32], strides = [1, 1]} : vector<4x96xf32> to vector<4x32xf32>
    %146 = vector.extract_strided_slice %128 {offsets = [0, 64], sizes = [4, 32], strides = [1, 1]} : vector<4x96xf32> to vector<4x32xf32>
    %147 = arith.addf %146, %9 : vector<4x32xf32>
    %148 = arith.mulf %136, %147 : vector<4x32xf32>
    %149 = arith.addf %145, %148 : vector<4x32xf32>
    %150 = math.tanh %149 : vector<4x32xf32>
    %cst_28 = arith.constant 1.000000e+00 : f32
    %151 = vector.broadcast %cst_28 : f32 to vector<4x32xf32>
    %152 = arith.subf %151, %144 : vector<4x32xf32>
    %153 = arith.mulf %152, %150 : vector<4x32xf32>
    %154 = arith.mulf %144, %126 : vector<4x32xf32>
    %155 = arith.addf %153, %154 : vector<4x32xf32>
    %156 = vector.extract_strided_slice %5 {offsets = [20, 0], sizes = [4, 96], strides = [1, 1]} : vector<32x96xf32> to vector<4x96xf32>
    %cst_29 = arith.constant dense<0.000000e+00> : vector<4x96xf32>
    %157 = tpu.matmul %155, %6, %cst_29 {dimension_numbers = #tpu.dot_dimension_numbers<[1], [0], [0], [1], [0, 0, 1, 1], [], []>} : vector<4x32xf32>, vector<32x96xf32>, vector<4x96xf32> -> vector<4x96xf32>
    %158 = vector.extract_strided_slice %156 {offsets = [0, 0], sizes = [4, 32], strides = [1, 1]} : vector<4x96xf32> to vector<4x32xf32>
    %159 = vector.extract_strided_slice %157 {offsets = [0, 0], sizes = [4, 32], strides = [1, 1]} : vector<4x96xf32> to vector<4x32xf32>
    %160 = arith.addf %158, %159 : vector<4x32xf32>
    %161 = arith.negf %160 : vector<4x32xf32>
    %162 = math.exp %161 : vector<4x32xf32>
    %cst_30 = arith.constant 1.000000e+00 : f32
    %163 = vector.broadcast %cst_30 : f32 to vector<4x32xf32>
    %164 = arith.addf %163, %162 : vector<4x32xf32>
    %165 = arith.divf %163, %164 : vector<4x32xf32>
    %166 = vector.extract_strided_slice %156 {offsets = [0, 32], sizes = [4, 32], strides = [1, 1]} : vector<4x96xf32> to vector<4x32xf32>
    %167 = vector.extract_strided_slice %157 {offsets = [0, 32], sizes = [4, 32], strides = [1, 1]} : vector<4x96xf32> to vector<4x32xf32>
    %168 = arith.addf %166, %167 : vector<4x32xf32>
    %169 = arith.negf %168 : vector<4x32xf32>
    %170 = math.exp %169 : vector<4x32xf32>
    %cst_31 = arith.constant 1.000000e+00 : f32
    %171 = vector.broadcast %cst_31 : f32 to vector<4x32xf32>
    %172 = arith.addf %171, %170 : vector<4x32xf32>
    %173 = arith.divf %171, %172 : vector<4x32xf32>
    %174 = vector.extract_strided_slice %156 {offsets = [0, 64], sizes = [4, 32], strides = [1, 1]} : vector<4x96xf32> to vector<4x32xf32>
    %175 = vector.extract_strided_slice %157 {offsets = [0, 64], sizes = [4, 32], strides = [1, 1]} : vector<4x96xf32> to vector<4x32xf32>
    %176 = arith.addf %175, %9 : vector<4x32xf32>
    %177 = arith.mulf %165, %176 : vector<4x32xf32>
    %178 = arith.addf %174, %177 : vector<4x32xf32>
    %179 = math.tanh %178 : vector<4x32xf32>
    %cst_32 = arith.constant 1.000000e+00 : f32
    %180 = vector.broadcast %cst_32 : f32 to vector<4x32xf32>
    %181 = arith.subf %180, %173 : vector<4x32xf32>
    %182 = arith.mulf %181, %179 : vector<4x32xf32>
    %183 = arith.mulf %173, %155 : vector<4x32xf32>
    %184 = arith.addf %182, %183 : vector<4x32xf32>
    %185 = vector.extract_strided_slice %5 {offsets = [24, 0], sizes = [4, 96], strides = [1, 1]} : vector<32x96xf32> to vector<4x96xf32>
    %cst_33 = arith.constant dense<0.000000e+00> : vector<4x96xf32>
    %186 = tpu.matmul %184, %6, %cst_33 {dimension_numbers = #tpu.dot_dimension_numbers<[1], [0], [0], [1], [0, 0, 1, 1], [], []>} : vector<4x32xf32>, vector<32x96xf32>, vector<4x96xf32> -> vector<4x96xf32>
    %187 = vector.extract_strided_slice %185 {offsets = [0, 0], sizes = [4, 32], strides = [1, 1]} : vector<4x96xf32> to vector<4x32xf32>
    %188 = vector.extract_strided_slice %186 {offsets = [0, 0], sizes = [4, 32], strides = [1, 1]} : vector<4x96xf32> to vector<4x32xf32>
    %189 = arith.addf %187, %188 : vector<4x32xf32>
    %190 = arith.negf %189 : vector<4x32xf32>
    %191 = math.exp %190 : vector<4x32xf32>
    %cst_34 = arith.constant 1.000000e+00 : f32
    %192 = vector.broadcast %cst_34 : f32 to vector<4x32xf32>
    %193 = arith.addf %192, %191 : vector<4x32xf32>
    %194 = arith.divf %192, %193 : vector<4x32xf32>
    %195 = vector.extract_strided_slice %185 {offsets = [0, 32], sizes = [4, 32], strides = [1, 1]} : vector<4x96xf32> to vector<4x32xf32>
    %196 = vector.extract_strided_slice %186 {offsets = [0, 32], sizes = [4, 32], strides = [1, 1]} : vector<4x96xf32> to vector<4x32xf32>
    %197 = arith.addf %195, %196 : vector<4x32xf32>
    %198 = arith.negf %197 : vector<4x32xf32>
    %199 = math.exp %198 : vector<4x32xf32>
    %cst_35 = arith.constant 1.000000e+00 : f32
    %200 = vector.broadcast %cst_35 : f32 to vector<4x32xf32>
    %201 = arith.addf %200, %199 : vector<4x32xf32>
    %202 = arith.divf %200, %201 : vector<4x32xf32>
    %203 = vector.extract_strided_slice %185 {offsets = [0, 64], sizes = [4, 32], strides = [1, 1]} : vector<4x96xf32> to vector<4x32xf32>
    %204 = vector.extract_strided_slice %186 {offsets = [0, 64], sizes = [4, 32], strides = [1, 1]} : vector<4x96xf32> to vector<4x32xf32>
    %205 = arith.addf %204, %9 : vector<4x32xf32>
    %206 = arith.mulf %194, %205 : vector<4x32xf32>
    %207 = arith.addf %203, %206 : vector<4x32xf32>
    %208 = math.tanh %207 : vector<4x32xf32>
    %cst_36 = arith.constant 1.000000e+00 : f32
    %209 = vector.broadcast %cst_36 : f32 to vector<4x32xf32>
    %210 = arith.subf %209, %202 : vector<4x32xf32>
    %211 = arith.mulf %210, %208 : vector<4x32xf32>
    %212 = arith.mulf %202, %184 : vector<4x32xf32>
    %213 = arith.addf %211, %212 : vector<4x32xf32>
    %214 = vector.extract_strided_slice %5 {offsets = [28, 0], sizes = [4, 96], strides = [1, 1]} : vector<32x96xf32> to vector<4x96xf32>
    %cst_37 = arith.constant dense<0.000000e+00> : vector<4x96xf32>
    %215 = tpu.matmul %213, %6, %cst_37 {dimension_numbers = #tpu.dot_dimension_numbers<[1], [0], [0], [1], [0, 0, 1, 1], [], []>} : vector<4x32xf32>, vector<32x96xf32>, vector<4x96xf32> -> vector<4x96xf32>
    %216 = vector.extract_strided_slice %214 {offsets = [0, 0], sizes = [4, 32], strides = [1, 1]} : vector<4x96xf32> to vector<4x32xf32>
    %217 = vector.extract_strided_slice %215 {offsets = [0, 0], sizes = [4, 32], strides = [1, 1]} : vector<4x96xf32> to vector<4x32xf32>
    %218 = arith.addf %216, %217 : vector<4x32xf32>
    %219 = arith.negf %218 : vector<4x32xf32>
    %220 = math.exp %219 : vector<4x32xf32>
    %cst_38 = arith.constant 1.000000e+00 : f32
    %221 = vector.broadcast %cst_38 : f32 to vector<4x32xf32>
    %222 = arith.addf %221, %220 : vector<4x32xf32>
    %223 = arith.divf %221, %222 : vector<4x32xf32>
    %224 = vector.extract_strided_slice %214 {offsets = [0, 32], sizes = [4, 32], strides = [1, 1]} : vector<4x96xf32> to vector<4x32xf32>
    %225 = vector.extract_strided_slice %215 {offsets = [0, 32], sizes = [4, 32], strides = [1, 1]} : vector<4x96xf32> to vector<4x32xf32>
    %226 = arith.addf %224, %225 : vector<4x32xf32>
    %227 = arith.negf %226 : vector<4x32xf32>
    %228 = math.exp %227 : vector<4x32xf32>
    %cst_39 = arith.constant 1.000000e+00 : f32
    %229 = vector.broadcast %cst_39 : f32 to vector<4x32xf32>
    %230 = arith.addf %229, %228 : vector<4x32xf32>
    %231 = arith.divf %229, %230 : vector<4x32xf32>
    %232 = vector.extract_strided_slice %214 {offsets = [0, 64], sizes = [4, 32], strides = [1, 1]} : vector<4x96xf32> to vector<4x32xf32>
    %233 = vector.extract_strided_slice %215 {offsets = [0, 64], sizes = [4, 32], strides = [1, 1]} : vector<4x96xf32> to vector<4x32xf32>
    %234 = arith.addf %233, %9 : vector<4x32xf32>
    %235 = arith.mulf %223, %234 : vector<4x32xf32>
    %236 = arith.addf %232, %235 : vector<4x32xf32>
    %237 = math.tanh %236 : vector<4x32xf32>
    %cst_40 = arith.constant 1.000000e+00 : f32
    %238 = vector.broadcast %cst_40 : f32 to vector<4x32xf32>
    %239 = arith.subf %238, %231 : vector<4x32xf32>
    %240 = arith.mulf %239, %237 : vector<4x32xf32>
    %241 = arith.mulf %231, %213 : vector<4x32xf32>
    %242 = arith.addf %240, %241 : vector<4x32xf32>
    %c0_41 = arith.constant 0 : index
    %c0_42 = arith.constant 0 : index
    %243 = vector.load %arg4[%c0_41, %c0_42] : memref<32x64xf32, #tpu.memory_space<vmem>>, vector<32x64xf32>
    %cst_43 = arith.constant dense<0.000000e+00> : vector<4x64xf32>
    %244 = tpu.matmul %242, %243, %cst_43 {dimension_numbers = #tpu.dot_dimension_numbers<[1], [0], [0], [1], [0, 0, 1, 1], [], []>} : vector<4x32xf32>, vector<32x64xf32>, vector<4x64xf32> -> vector<4x64xf32>
    %c2 = arith.constant 2 : index
    %c0_44 = arith.constant 0 : index
    %245 = vector.load %arg12[%c2, %c0_44] : memref<9x128xf32, #tpu.memory_space<vmem>>, vector<1x64xf32>
    %246 = vector.broadcast %245 : vector<1x64xf32> to vector<4x64xf32>
    %247 = arith.addf %244, %246 : vector<4x64xf32>
    %248 = vector.extract_strided_slice %247 {offsets = [0, 0], sizes = [4, 32], strides = [1, 1]} : vector<4x64xf32> to vector<4x32xf32>
    %249 = vector.extract_strided_slice %247 {offsets = [0, 32], sizes = [4, 32], strides = [1, 1]} : vector<4x64xf32> to vector<4x32xf32>
    %c0_45 = arith.constant 0 : index
    %c0_46 = arith.constant 0 : index
    %250 = vector.load %arg1[%c0_45, %c0_46] : memref<4x32xf32, #tpu.memory_space<vmem>>, vector<4x32xf32>
    %cst_47 = arith.constant 5.000000e-01 : f32
    %251 = vector.broadcast %cst_47 : f32 to vector<4x32xf32>
    %252 = arith.mulf %251, %249 : vector<4x32xf32>
    %253 = math.exp %252 : vector<4x32xf32>
    %254 = arith.mulf %250, %253 : vector<4x32xf32>
    %255 = arith.addf %248, %254 : vector<4x32xf32>
    %c0_48 = arith.constant 0 : index
    %c0_49 = arith.constant 0 : index
    %256 = vector.load %arg15[%c0_48, %c0_49] : memref<4x32xf32, #tpu.memory_space<vmem>>, vector<4x32xf32>
    tpu.vector_store %arg15[%c0_48, %c0_49], %248 {strides = array<i32>} : memref<4x32xf32, #tpu.memory_space<vmem>>, vector<4x32xf32>,
    %c0_50 = arith.constant 0 : index
    %c0_51 = arith.constant 0 : index
    %257 = vector.load %arg16[%c0_50, %c0_51] : memref<4x32xf32, #tpu.memory_space<vmem>>, vector<4x32xf32>
    tpu.vector_store %arg16[%c0_50, %c0_51], %249 {strides = array<i32>} : memref<4x32xf32, #tpu.memory_space<vmem>>, vector<4x32xf32>,
    %c0_52 = arith.constant 0 : index
    %c0_53 = arith.constant 0 : index
    %258 = vector.load %arg14[%c0_52, %c0_53] : memref<4x32xf32, #tpu.memory_space<vmem>>, vector<4x32xf32>
    tpu.vector_store %arg14[%c0_52, %c0_53], %255 {strides = array<i32>} : memref<4x32xf32, #tpu.memory_space<vmem>>, vector<4x32xf32>,
    %c0_54 = arith.constant 0 : index
    %c0_55 = arith.constant 0 : index
    %259 = vector.load %arg5[%c0_54, %c0_55] : memref<32x128xf32, #tpu.memory_space<vmem>>, vector<32x128xf32>
    %c0_56 = arith.constant 0 : index
    %c0_57 = arith.constant 0 : index
    %260 = vector.load %arg6[%c0_56, %c0_57] : memref<128x32xf32, #tpu.memory_space<vmem>>, vector<128x32xf32>
    %c3 = arith.constant 3 : index
    %c0_58 = arith.constant 0 : index
    %261 = vector.load %arg12[%c3, %c0_58] : memref<9x128xf32, #tpu.memory_space<vmem>>, vector<1x128xf32>
    %262 = vector.shape_cast %261 : vector<1x128xf32> to vector<1x128xf32>
    %263 = vector.broadcast %262 : vector<1x128xf32> to vector<4x128xf32>
    %c4 = arith.constant 4 : index
    %c0_59 = arith.constant 0 : index
    %264 = vector.load %arg12[%c4, %c0_59] : memref<9x128xf32, #tpu.memory_space<vmem>>, vector<1x32xf32>
    %265 = vector.shape_cast %264 : vector<1x32xf32> to vector<1x32xf32>
    %266 = vector.broadcast %265 : vector<1x32xf32> to vector<4x32xf32>
    %cst_60 = arith.constant dense<0.000000e+00> : vector<4x128xf32>
    %267 = tpu.matmul %255, %259, %cst_60 {dimension_numbers = #tpu.dot_dimension_numbers<[1], [0], [0], [1], [0, 0, 1, 1], [], []>} : vector<4x32xf32>, vector<32x128xf32>, vector<4x128xf32> -> vector<4x128xf32>
    %268 = arith.addf %267, %263 : vector<4x128xf32>
    %cst_61 = arith.constant 0.000000e+00 : f32
    %269 = vector.broadcast %cst_61 : f32 to vector<4x128xf32>
    %270 = arith.cmpf ogt, %268, %269 : vector<4x128xf32>
    %cst_62 = arith.constant 0.000000e+00 : f32
    %271 = vector.broadcast %cst_62 : f32 to vector<4x128xf32>
    %272 = arith.minimumf %268, %271 : vector<4x128xf32>
    %273 = math.exp %272 : vector<4x128xf32>
    %cst_63 = arith.constant 1.000000e+00 : f32
    %274 = vector.broadcast %cst_63 : f32 to vector<4x128xf32>
    %275 = arith.subf %273, %274 : vector<4x128xf32>
    %276 = arith.select %270, %268, %275 : vector<4x128xi1>, vector<4x128xf32>
    %cst_64 = arith.constant dense<0.000000e+00> : vector<4x32xf32>
    %277 = tpu.matmul %276, %260, %cst_64 {dimension_numbers = #tpu.dot_dimension_numbers<[1], [0], [0], [1], [0, 0, 1, 1], [], []>} : vector<4x128xf32>, vector<128x32xf32>, vector<4x32xf32> -> vector<4x32xf32>
    %278 = arith.addf %277, %266 : vector<4x32xf32>
    %cst_65 = arith.constant 0.0714285746 : f32
    %279 = vector.broadcast %cst_65 : f32 to vector<4x32xf32>
    %280 = arith.mulf %279, %278 : vector<4x32xf32>
    %281 = arith.addf %255, %280 : vector<4x32xf32>
    %cst_66 = arith.constant dense<0.000000e+00> : vector<4x128xf32>
    %282 = tpu.matmul %281, %259, %cst_66 {dimension_numbers = #tpu.dot_dimension_numbers<[1], [0], [0], [1], [0, 0, 1, 1], [], []>} : vector<4x32xf32>, vector<32x128xf32>, vector<4x128xf32> -> vector<4x128xf32>
    %283 = arith.addf %282, %263 : vector<4x128xf32>
    %cst_67 = arith.constant 0.000000e+00 : f32
    %284 = vector.broadcast %cst_67 : f32 to vector<4x128xf32>
    %285 = arith.cmpf ogt, %283, %284 : vector<4x128xf32>
    %cst_68 = arith.constant 0.000000e+00 : f32
    %286 = vector.broadcast %cst_68 : f32 to vector<4x128xf32>
    %287 = arith.minimumf %283, %286 : vector<4x128xf32>
    %288 = math.exp %287 : vector<4x128xf32>
    %cst_69 = arith.constant 1.000000e+00 : f32
    %289 = vector.broadcast %cst_69 : f32 to vector<4x128xf32>
    %290 = arith.subf %288, %289 : vector<4x128xf32>
    %291 = arith.select %285, %283, %290 : vector<4x128xi1>, vector<4x128xf32>
    %cst_70 = arith.constant dense<0.000000e+00> : vector<4x32xf32>
    %292 = tpu.matmul %291, %260, %cst_70 {dimension_numbers = #tpu.dot_dimension_numbers<[1], [0], [0], [1], [0, 0, 1, 1], [], []>} : vector<4x128xf32>, vector<128x32xf32>, vector<4x32xf32> -> vector<4x32xf32>
    %293 = arith.addf %292, %266 : vector<4x32xf32>
    %cst_71 = arith.constant 0.0714285746 : f32
    %294 = vector.broadcast %cst_71 : f32 to vector<4x32xf32>
    %295 = arith.mulf %294, %293 : vector<4x32xf32>
    %296 = arith.addf %255, %295 : vector<4x32xf32>
    %cst_72 = arith.constant dense<0.000000e+00> : vector<4x128xf32>
    %297 = tpu.matmul %296, %259, %cst_72 {dimension_numbers = #tpu.dot_dimension_numbers<[1], [0], [0], [1], [0, 0, 1, 1], [], []>} : vector<4x32xf32>, vector<32x128xf32>, vector<4x128xf32> -> vector<4x128xf32>
    %298 = arith.addf %297, %263 : vector<4x128xf32>
    %cst_73 = arith.constant 0.000000e+00 : f32
    %299 = vector.broadcast %cst_73 : f32 to vector<4x128xf32>
    %300 = arith.cmpf ogt, %298, %299 : vector<4x128xf32>
    %cst_74 = arith.constant 0.000000e+00 : f32
    %301 = vector.broadcast %cst_74 : f32 to vector<4x128xf32>
    %302 = arith.minimumf %298, %301 : vector<4x128xf32>
    %303 = math.exp %302 : vector<4x128xf32>
    %cst_75 = arith.constant 1.000000e+00 : f32
    %304 = vector.broadcast %cst_75 : f32 to vector<4x128xf32>
    %305 = arith.subf %303, %304 : vector<4x128xf32>
    %306 = arith.select %300, %298, %305 : vector<4x128xi1>, vector<4x128xf32>
    %cst_76 = arith.constant dense<0.000000e+00> : vector<4x32xf32>
    %307 = tpu.matmul %306, %260, %cst_76 {dimension_numbers = #tpu.dot_dimension_numbers<[1], [0], [0], [1], [0, 0, 1, 1], [], []>} : vector<4x128xf32>, vector<128x32xf32>, vector<4x32xf32> -> vector<4x32xf32>
    %308 = arith.addf %307, %266 : vector<4x32xf32>
    %cst_77 = arith.constant 0.142857149 : f32
    %309 = vector.broadcast %cst_77 : f32 to vector<4x32xf32>
    %310 = arith.mulf %309, %308 : vector<4x32xf32>
    %311 = arith.addf %255, %310 : vector<4x32xf32>
    %cst_78 = arith.constant dense<0.000000e+00> : vector<4x128xf32>
    %312 = tpu.matmul %311, %259, %cst_78 {dimension_numbers = #tpu.dot_dimension_numbers<[1], [0], [0], [1], [0, 0, 1, 1], [], []>} : vector<4x32xf32>, vector<32x128xf32>, vector<4x128xf32> -> vector<4x128xf32>
    %313 = arith.addf %312, %263 : vector<4x128xf32>
    %cst_79 = arith.constant 0.000000e+00 : f32
    %314 = vector.broadcast %cst_79 : f32 to vector<4x128xf32>
    %315 = arith.cmpf ogt, %313, %314 : vector<4x128xf32>
    %cst_80 = arith.constant 0.000000e+00 : f32
    %316 = vector.broadcast %cst_80 : f32 to vector<4x128xf32>
    %317 = arith.minimumf %313, %316 : vector<4x128xf32>
    %318 = math.exp %317 : vector<4x128xf32>
    %cst_81 = arith.constant 1.000000e+00 : f32
    %319 = vector.broadcast %cst_81 : f32 to vector<4x128xf32>
    %320 = arith.subf %318, %319 : vector<4x128xf32>
    %321 = arith.select %315, %313, %320 : vector<4x128xi1>, vector<4x128xf32>
    %cst_82 = arith.constant dense<0.000000e+00> : vector<4x32xf32>
    %322 = tpu.matmul %321, %260, %cst_82 {dimension_numbers = #tpu.dot_dimension_numbers<[1], [0], [0], [1], [0, 0, 1, 1], [], []>} : vector<4x128xf32>, vector<128x32xf32>, vector<4x32xf32> -> vector<4x32xf32>
    %323 = arith.addf %322, %266 : vector<4x32xf32>
    %324 = arith.addf %293, %308 : vector<4x32xf32>
    %cst_83 = arith.constant 2.000000e+00 : f32
    %325 = vector.broadcast %cst_83 : f32 to vector<4x32xf32>
    %326 = arith.mulf %325, %324 : vector<4x32xf32>
    %327 = arith.addf %278, %326 : vector<4x32xf32>
    %328 = arith.addf %327, %323 : vector<4x32xf32>
    %cst_84 = arith.constant 0.0238095243 : f32
    %329 = vector.broadcast %cst_84 : f32 to vector<4x32xf32>
    %330 = arith.mulf %329, %328 : vector<4x32xf32>
    %331 = arith.addf %255, %330 : vector<4x32xf32>
    %cst_85 = arith.constant dense<0.000000e+00> : vector<4x128xf32>
    %332 = tpu.matmul %331, %259, %cst_85 {dimension_numbers = #tpu.dot_dimension_numbers<[1], [0], [0], [1], [0, 0, 1, 1], [], []>} : vector<4x32xf32>, vector<32x128xf32>, vector<4x128xf32> -> vector<4x128xf32>
    %333 = arith.addf %332, %263 : vector<4x128xf32>
    %cst_86 = arith.constant 0.000000e+00 : f32
    %334 = vector.broadcast %cst_86 : f32 to vector<4x128xf32>
    %335 = arith.cmpf ogt, %333, %334 : vector<4x128xf32>
    %cst_87 = arith.constant 0.000000e+00 : f32
    %336 = vector.broadcast %cst_87 : f32 to vector<4x128xf32>
    %337 = arith.minimumf %333, %336 : vector<4x128xf32>
    %338 = math.exp %337 : vector<4x128xf32>
    %cst_88 = arith.constant 1.000000e+00 : f32
    %339 = vector.broadcast %cst_88 : f32 to vector<4x128xf32>
    %340 = arith.subf %338, %339 : vector<4x128xf32>
    %341 = arith.select %335, %333, %340 : vector<4x128xi1>, vector<4x128xf32>
    %cst_89 = arith.constant dense<0.000000e+00> : vector<4x32xf32>
    %342 = tpu.matmul %341, %260, %cst_89 {dimension_numbers = #tpu.dot_dimension_numbers<[1], [0], [0], [1], [0, 0, 1, 1], [], []>} : vector<4x128xf32>, vector<128x32xf32>, vector<4x32xf32> -> vector<4x32xf32>
    %343 = arith.addf %342, %266 : vector<4x32xf32>
    %cst_90 = arith.constant 0.0714285746 : f32
    %344 = vector.broadcast %cst_90 : f32 to vector<4x32xf32>
    %345 = arith.mulf %344, %343 : vector<4x32xf32>
    %346 = arith.addf %331, %345 : vector<4x32xf32>
    %cst_91 = arith.constant dense<0.000000e+00> : vector<4x128xf32>
    %347 = tpu.matmul %346, %259, %cst_91 {dimension_numbers = #tpu.dot_dimension_numbers<[1], [0], [0], [1], [0, 0, 1, 1], [], []>} : vector<4x32xf32>, vector<32x128xf32>, vector<4x128xf32> -> vector<4x128xf32>
    %348 = arith.addf %347, %263 : vector<4x128xf32>
    %cst_92 = arith.constant 0.000000e+00 : f32
    %349 = vector.broadcast %cst_92 : f32 to vector<4x128xf32>
    %350 = arith.cmpf ogt, %348, %349 : vector<4x128xf32>
    %cst_93 = arith.constant 0.000000e+00 : f32
    %351 = vector.broadcast %cst_93 : f32 to vector<4x128xf32>
    %352 = arith.minimumf %348, %351 : vector<4x128xf32>
    %353 = math.exp %352 : vector<4x128xf32>
    %cst_94 = arith.constant 1.000000e+00 : f32
    %354 = vector.broadcast %cst_94 : f32 to vector<4x128xf32>
    %355 = arith.subf %353, %354 : vector<4x128xf32>
    %356 = arith.select %350, %348, %355 : vector<4x128xi1>, vector<4x128xf32>
    %cst_95 = arith.constant dense<0.000000e+00> : vector<4x32xf32>
    %357 = tpu.matmul %356, %260, %cst_95 {dimension_numbers = #tpu.dot_dimension_numbers<[1], [0], [0], [1], [0, 0, 1, 1], [], []>} : vector<4x128xf32>, vector<128x32xf32>, vector<4x32xf32> -> vector<4x32xf32>
    %358 = arith.addf %357, %266 : vector<4x32xf32>
    %cst_96 = arith.constant 0.0714285746 : f32
    %359 = vector.broadcast %cst_96 : f32 to vector<4x32xf32>
    %360 = arith.mulf %359, %358 : vector<4x32xf32>
    %361 = arith.addf %331, %360 : vector<4x32xf32>
    %cst_97 = arith.constant dense<0.000000e+00> : vector<4x128xf32>
    %362 = tpu.matmul %361, %259, %cst_97 {dimension_numbers = #tpu.dot_dimension_numbers<[1], [0], [0], [1], [0, 0, 1, 1], [], []>} : vector<4x32xf32>, vector<32x128xf32>, vector<4x128xf32> -> vector<4x128xf32>
    %363 = arith.addf %362, %263 : vector<4x128xf32>
    %cst_98 = arith.constant 0.000000e+00 : f32
    %364 = vector.broadcast %cst_98 : f32 to vector<4x128xf32>
    %365 = arith.cmpf ogt, %363, %364 : vector<4x128xf32>
    %cst_99 = arith.constant 0.000000e+00 : f32
    %366 = vector.broadcast %cst_99 : f32 to vector<4x128xf32>
    %367 = arith.minimumf %363, %366 : vector<4x128xf32>
    %368 = math.exp %367 : vector<4x128xf32>
    %cst_100 = arith.constant 1.000000e+00 : f32
    %369 = vector.broadcast %cst_100 : f32 to vector<4x128xf32>
    %370 = arith.subf %368, %369 : vector<4x128xf32>
    %371 = arith.select %365, %363, %370 : vector<4x128xi1>, vector<4x128xf32>
    %cst_101 = arith.constant dense<0.000000e+00> : vector<4x32xf32>
    %372 = tpu.matmul %371, %260, %cst_101 {dimension_numbers = #tpu.dot_dimension_numbers<[1], [0], [0], [1], [0, 0, 1, 1], [], []>} : vector<4x128xf32>, vector<128x32xf32>, vector<4x32xf32> -> vector<4x32xf32>
    %373 = arith.addf %372, %266 : vector<4x32xf32>
    %cst_102 = arith.constant 0.142857149 : f32
    %374 = vector.broadcast %cst_102 : f32 to vector<4x32xf32>
    %375 = arith.mulf %374, %373 : vector<4x32xf32>
    %376 = arith.addf %331, %375 : vector<4x32xf32>
    %cst_103 = arith.constant dense<0.000000e+00> : vector<4x128xf32>
    %377 = tpu.matmul %376, %259, %cst_103 {dimension_numbers = #tpu.dot_dimension_numbers<[1], [0], [0], [1], [0, 0, 1, 1], [], []>} : vector<4x32xf32>, vector<32x128xf32>, vector<4x128xf32> -> vector<4x128xf32>
    %378 = arith.addf %377, %263 : vector<4x128xf32>
    %cst_104 = arith.constant 0.000000e+00 : f32
    %379 = vector.broadcast %cst_104 : f32 to vector<4x128xf32>
    %380 = arith.cmpf ogt, %378, %379 : vector<4x128xf32>
    %cst_105 = arith.constant 0.000000e+00 : f32
    %381 = vector.broadcast %cst_105 : f32 to vector<4x128xf32>
    %382 = arith.minimumf %378, %381 : vector<4x128xf32>
    %383 = math.exp %382 : vector<4x128xf32>
    %cst_106 = arith.constant 1.000000e+00 : f32
    %384 = vector.broadcast %cst_106 : f32 to vector<4x128xf32>
    %385 = arith.subf %383, %384 : vector<4x128xf32>
    %386 = arith.select %380, %378, %385 : vector<4x128xi1>, vector<4x128xf32>
    %cst_107 = arith.constant dense<0.000000e+00> : vector<4x32xf32>
    %387 = tpu.matmul %386, %260, %cst_107 {dimension_numbers = #tpu.dot_dimension_numbers<[1], [0], [0], [1], [0, 0, 1, 1], [], []>} : vector<4x128xf32>, vector<128x32xf32>, vector<4x32xf32> -> vector<4x32xf32>
    %388 = arith.addf %387, %266 : vector<4x32xf32>
    %389 = arith.addf %358, %373 : vector<4x32xf32>
    %cst_108 = arith.constant 2.000000e+00 : f32
    %390 = vector.broadcast %cst_108 : f32 to vector<4x32xf32>
    %391 = arith.mulf %390, %389 : vector<4x32xf32>
    %392 = arith.addf %343, %391 : vector<4x32xf32>
    %393 = arith.addf %392, %388 : vector<4x32xf32>
    %cst_109 = arith.constant 0.0238095243 : f32
    %394 = vector.broadcast %cst_109 : f32 to vector<4x32xf32>
    %395 = arith.mulf %394, %393 : vector<4x32xf32>
    %396 = arith.addf %331, %395 : vector<4x32xf32>
    %cst_110 = arith.constant dense<0.000000e+00> : vector<4x128xf32>
    %397 = tpu.matmul %396, %259, %cst_110 {dimension_numbers = #tpu.dot_dimension_numbers<[1], [0], [0], [1], [0, 0, 1, 1], [], []>} : vector<4x32xf32>, vector<32x128xf32>, vector<4x128xf32> -> vector<4x128xf32>
    %398 = arith.addf %397, %263 : vector<4x128xf32>
    %cst_111 = arith.constant 0.000000e+00 : f32
    %399 = vector.broadcast %cst_111 : f32 to vector<4x128xf32>
    %400 = arith.cmpf ogt, %398, %399 : vector<4x128xf32>
    %cst_112 = arith.constant 0.000000e+00 : f32
    %401 = vector.broadcast %cst_112 : f32 to vector<4x128xf32>
    %402 = arith.minimumf %398, %401 : vector<4x128xf32>
    %403 = math.exp %402 : vector<4x128xf32>
    %cst_113 = arith.constant 1.000000e+00 : f32
    %404 = vector.broadcast %cst_113 : f32 to vector<4x128xf32>
    %405 = arith.subf %403, %404 : vector<4x128xf32>
    %406 = arith.select %400, %398, %405 : vector<4x128xi1>, vector<4x128xf32>
    %cst_114 = arith.constant dense<0.000000e+00> : vector<4x32xf32>
    %407 = tpu.matmul %406, %260, %cst_114 {dimension_numbers = #tpu.dot_dimension_numbers<[1], [0], [0], [1], [0, 0, 1, 1], [], []>} : vector<4x128xf32>, vector<128x32xf32>, vector<4x32xf32> -> vector<4x32xf32>
    %408 = arith.addf %407, %266 : vector<4x32xf32>
    %cst_115 = arith.constant 0.0714285746 : f32
    %409 = vector.broadcast %cst_115 : f32 to vector<4x32xf32>
    %410 = arith.mulf %409, %408 : vector<4x32xf32>
    %411 = arith.addf %396, %410 : vector<4x32xf32>
    %cst_116 = arith.constant dense<0.000000e+00> : vector<4x128xf32>
    %412 = tpu.matmul %411, %259, %cst_116 {dimension_numbers = #tpu.dot_dimension_numbers<[1], [0], [0], [1], [0, 0, 1, 1], [], []>} : vector<4x32xf32>, vector<32x128xf32>, vector<4x128xf32> -> vector<4x128xf32>
    %413 = arith.addf %412, %263 : vector<4x128xf32>
    %cst_117 = arith.constant 0.000000e+00 : f32
    %414 = vector.broadcast %cst_117 : f32 to vector<4x128xf32>
    %415 = arith.cmpf ogt, %413, %414 : vector<4x128xf32>
    %cst_118 = arith.constant 0.000000e+00 : f32
    %416 = vector.broadcast %cst_118 : f32 to vector<4x128xf32>
    %417 = arith.minimumf %413, %416 : vector<4x128xf32>
    %418 = math.exp %417 : vector<4x128xf32>
    %cst_119 = arith.constant 1.000000e+00 : f32
    %419 = vector.broadcast %cst_119 : f32 to vector<4x128xf32>
    %420 = arith.subf %418, %419 : vector<4x128xf32>
    %421 = arith.select %415, %413, %420 : vector<4x128xi1>, vector<4x128xf32>
    %cst_120 = arith.constant dense<0.000000e+00> : vector<4x32xf32>
    %422 = tpu.matmul %421, %260, %cst_120 {dimension_numbers = #tpu.dot_dimension_numbers<[1], [0], [0], [1], [0, 0, 1, 1], [], []>} : vector<4x128xf32>, vector<128x32xf32>, vector<4x32xf32> -> vector<4x32xf32>
    %423 = arith.addf %422, %266 : vector<4x32xf32>
    %cst_121 = arith.constant 0.0714285746 : f32
    %424 = vector.broadcast %cst_121 : f32 to vector<4x32xf32>
    %425 = arith.mulf %424, %423 : vector<4x32xf32>
    %426 = arith.addf %396, %425 : vector<4x32xf32>
    %cst_122 = arith.constant dense<0.000000e+00> : vector<4x128xf32>
    %427 = tpu.matmul %426, %259, %cst_122 {dimension_numbers = #tpu.dot_dimension_numbers<[1], [0], [0], [1], [0, 0, 1, 1], [], []>} : vector<4x32xf32>, vector<32x128xf32>, vector<4x128xf32> -> vector<4x128xf32>
    %428 = arith.addf %427, %263 : vector<4x128xf32>
    %cst_123 = arith.constant 0.000000e+00 : f32
    %429 = vector.broadcast %cst_123 : f32 to vector<4x128xf32>
    %430 = arith.cmpf ogt, %428, %429 : vector<4x128xf32>
    %cst_124 = arith.constant 0.000000e+00 : f32
    %431 = vector.broadcast %cst_124 : f32 to vector<4x128xf32>
    %432 = arith.minimumf %428, %431 : vector<4x128xf32>
    %433 = math.exp %432 : vector<4x128xf32>
    %cst_125 = arith.constant 1.000000e+00 : f32
    %434 = vector.broadcast %cst_125 : f32 to vector<4x128xf32>
    %435 = arith.subf %433, %434 : vector<4x128xf32>
    %436 = arith.select %430, %428, %435 : vector<4x128xi1>, vector<4x128xf32>
    %cst_126 = arith.constant dense<0.000000e+00> : vector<4x32xf32>
    %437 = tpu.matmul %436, %260, %cst_126 {dimension_numbers = #tpu.dot_dimension_numbers<[1], [0], [0], [1], [0, 0, 1, 1], [], []>} : vector<4x128xf32>, vector<128x32xf32>, vector<4x32xf32> -> vector<4x32xf32>
    %438 = arith.addf %437, %266 : vector<4x32xf32>
    %cst_127 = arith.constant 0.142857149 : f32
    %439 = vector.broadcast %cst_127 : f32 to vector<4x32xf32>
    %440 = arith.mulf %439, %438 : vector<4x32xf32>
    %441 = arith.addf %396, %440 : vector<4x32xf32>
    %cst_128 = arith.constant dense<0.000000e+00> : vector<4x128xf32>
    %442 = tpu.matmul %441, %259, %cst_128 {dimension_numbers = #tpu.dot_dimension_numbers<[1], [0], [0], [1], [0, 0, 1, 1], [], []>} : vector<4x32xf32>, vector<32x128xf32>, vector<4x128xf32> -> vector<4x128xf32>
    %443 = arith.addf %442, %263 : vector<4x128xf32>
    %cst_129 = arith.constant 0.000000e+00 : f32
    %444 = vector.broadcast %cst_129 : f32 to vector<4x128xf32>
    %445 = arith.cmpf ogt, %443, %444 : vector<4x128xf32>
    %cst_130 = arith.constant 0.000000e+00 : f32
    %446 = vector.broadcast %cst_130 : f32 to vector<4x128xf32>
    %447 = arith.minimumf %443, %446 : vector<4x128xf32>
    %448 = math.exp %447 : vector<4x128xf32>
    %cst_131 = arith.constant 1.000000e+00 : f32
    %449 = vector.broadcast %cst_131 : f32 to vector<4x128xf32>
    %450 = arith.subf %448, %449 : vector<4x128xf32>
    %451 = arith.select %445, %443, %450 : vector<4x128xi1>, vector<4x128xf32>
    %cst_132 = arith.constant dense<0.000000e+00> : vector<4x32xf32>
    %452 = tpu.matmul %451, %260, %cst_132 {dimension_numbers = #tpu.dot_dimension_numbers<[1], [0], [0], [1], [0, 0, 1, 1], [], []>} : vector<4x128xf32>, vector<128x32xf32>, vector<4x32xf32> -> vector<4x32xf32>
    %453 = arith.addf %452, %266 : vector<4x32xf32>
    %454 = arith.addf %423, %438 : vector<4x32xf32>
    %cst_133 = arith.constant 2.000000e+00 : f32
    %455 = vector.broadcast %cst_133 : f32 to vector<4x32xf32>
    %456 = arith.mulf %455, %454 : vector<4x32xf32>
    %457 = arith.addf %408, %456 : vector<4x32xf32>
    %458 = arith.addf %457, %453 : vector<4x32xf32>
    %cst_134 = arith.constant 0.0238095243 : f32
    %459 = vector.broadcast %cst_134 : f32 to vector<4x32xf32>
    %460 = arith.mulf %459, %458 : vector<4x32xf32>
    %461 = arith.addf %396, %460 : vector<4x32xf32>
    %cst_135 = arith.constant dense<0.000000e+00> : vector<4x128xf32>
    %462 = tpu.matmul %461, %259, %cst_135 {dimension_numbers = #tpu.dot_dimension_numbers<[1], [0], [0], [1], [0, 0, 1, 1], [], []>} : vector<4x32xf32>, vector<32x128xf32>, vector<4x128xf32> -> vector<4x128xf32>
    %463 = arith.addf %462, %263 : vector<4x128xf32>
    %cst_136 = arith.constant 0.000000e+00 : f32
    %464 = vector.broadcast %cst_136 : f32 to vector<4x128xf32>
    %465 = arith.cmpf ogt, %463, %464 : vector<4x128xf32>
    %cst_137 = arith.constant 0.000000e+00 : f32
    %466 = vector.broadcast %cst_137 : f32 to vector<4x128xf32>
    %467 = arith.minimumf %463, %466 : vector<4x128xf32>
    %468 = math.exp %467 : vector<4x128xf32>
    %cst_138 = arith.constant 1.000000e+00 : f32
    %469 = vector.broadcast %cst_138 : f32 to vector<4x128xf32>
    %470 = arith.subf %468, %469 : vector<4x128xf32>
    %471 = arith.select %465, %463, %470 : vector<4x128xi1>, vector<4x128xf32>
    %cst_139 = arith.constant dense<0.000000e+00> : vector<4x32xf32>
    %472 = tpu.matmul %471, %260, %cst_139 {dimension_numbers = #tpu.dot_dimension_numbers<[1], [0], [0], [1], [0, 0, 1, 1], [], []>} : vector<4x128xf32>, vector<128x32xf32>, vector<4x32xf32> -> vector<4x32xf32>
    %473 = arith.addf %472, %266 : vector<4x32xf32>
    %cst_140 = arith.constant 0.0714285746 : f32
    %474 = vector.broadcast %cst_140 : f32 to vector<4x32xf32>
    %475 = arith.mulf %474, %473 : vector<4x32xf32>
    %476 = arith.addf %461, %475 : vector<4x32xf32>
    %cst_141 = arith.constant dense<0.000000e+00> : vector<4x128xf32>
    %477 = tpu.matmul %476, %259, %cst_141 {dimension_numbers = #tpu.dot_dimension_numbers<[1], [0], [0], [1], [0, 0, 1, 1], [], []>} : vector<4x32xf32>, vector<32x128xf32>, vector<4x128xf32> -> vector<4x128xf32>
    %478 = arith.addf %477, %263 : vector<4x128xf32>
    %cst_142 = arith.constant 0.000000e+00 : f32
    %479 = vector.broadcast %cst_142 : f32 to vector<4x128xf32>
    %480 = arith.cmpf ogt, %478, %479 : vector<4x128xf32>
    %cst_143 = arith.constant 0.000000e+00 : f32
    %481 = vector.broadcast %cst_143 : f32 to vector<4x128xf32>
    %482 = arith.minimumf %478, %481 : vector<4x128xf32>
    %483 = math.exp %482 : vector<4x128xf32>
    %cst_144 = arith.constant 1.000000e+00 : f32
    %484 = vector.broadcast %cst_144 : f32 to vector<4x128xf32>
    %485 = arith.subf %483, %484 : vector<4x128xf32>
    %486 = arith.select %480, %478, %485 : vector<4x128xi1>, vector<4x128xf32>
    %cst_145 = arith.constant dense<0.000000e+00> : vector<4x32xf32>
    %487 = tpu.matmul %486, %260, %cst_145 {dimension_numbers = #tpu.dot_dimension_numbers<[1], [0], [0], [1], [0, 0, 1, 1], [], []>} : vector<4x128xf32>, vector<128x32xf32>, vector<4x32xf32> -> vector<4x32xf32>
    %488 = arith.addf %487, %266 : vector<4x32xf32>
    %cst_146 = arith.constant 0.0714285746 : f32
    %489 = vector.broadcast %cst_146 : f32 to vector<4x32xf32>
    %490 = arith.mulf %489, %488 : vector<4x32xf32>
    %491 = arith.addf %461, %490 : vector<4x32xf32>
    %cst_147 = arith.constant dense<0.000000e+00> : vector<4x128xf32>
    %492 = tpu.matmul %491, %259, %cst_147 {dimension_numbers = #tpu.dot_dimension_numbers<[1], [0], [0], [1], [0, 0, 1, 1], [], []>} : vector<4x32xf32>, vector<32x128xf32>, vector<4x128xf32> -> vector<4x128xf32>
    %493 = arith.addf %492, %263 : vector<4x128xf32>
    %cst_148 = arith.constant 0.000000e+00 : f32
    %494 = vector.broadcast %cst_148 : f32 to vector<4x128xf32>
    %495 = arith.cmpf ogt, %493, %494 : vector<4x128xf32>
    %cst_149 = arith.constant 0.000000e+00 : f32
    %496 = vector.broadcast %cst_149 : f32 to vector<4x128xf32>
    %497 = arith.minimumf %493, %496 : vector<4x128xf32>
    %498 = math.exp %497 : vector<4x128xf32>
    %cst_150 = arith.constant 1.000000e+00 : f32
    %499 = vector.broadcast %cst_150 : f32 to vector<4x128xf32>
    %500 = arith.subf %498, %499 : vector<4x128xf32>
    %501 = arith.select %495, %493, %500 : vector<4x128xi1>, vector<4x128xf32>
    %cst_151 = arith.constant dense<0.000000e+00> : vector<4x32xf32>
    %502 = tpu.matmul %501, %260, %cst_151 {dimension_numbers = #tpu.dot_dimension_numbers<[1], [0], [0], [1], [0, 0, 1, 1], [], []>} : vector<4x128xf32>, vector<128x32xf32>, vector<4x32xf32> -> vector<4x32xf32>
    %503 = arith.addf %502, %266 : vector<4x32xf32>
    %cst_152 = arith.constant 0.142857149 : f32
    %504 = vector.broadcast %cst_152 : f32 to vector<4x32xf32>
    %505 = arith.mulf %504, %503 : vector<4x32xf32>
    %506 = arith.addf %461, %505 : vector<4x32xf32>
    %cst_153 = arith.constant dense<0.000000e+00> : vector<4x128xf32>
    %507 = tpu.matmul %506, %259, %cst_153 {dimension_numbers = #tpu.dot_dimension_numbers<[1], [0], [0], [1], [0, 0, 1, 1], [], []>} : vector<4x32xf32>, vector<32x128xf32>, vector<4x128xf32> -> vector<4x128xf32>
    %508 = arith.addf %507, %263 : vector<4x128xf32>
    %cst_154 = arith.constant 0.000000e+00 : f32
    %509 = vector.broadcast %cst_154 : f32 to vector<4x128xf32>
    %510 = arith.cmpf ogt, %508, %509 : vector<4x128xf32>
    %cst_155 = arith.constant 0.000000e+00 : f32
    %511 = vector.broadcast %cst_155 : f32 to vector<4x128xf32>
    %512 = arith.minimumf %508, %511 : vector<4x128xf32>
    %513 = math.exp %512 : vector<4x128xf32>
    %cst_156 = arith.constant 1.000000e+00 : f32
    %514 = vector.broadcast %cst_156 : f32 to vector<4x128xf32>
    %515 = arith.subf %513, %514 : vector<4x128xf32>
    %516 = arith.select %510, %508, %515 : vector<4x128xi1>, vector<4x128xf32>
    %cst_157 = arith.constant dense<0.000000e+00> : vector<4x32xf32>
    %517 = tpu.matmul %516, %260, %cst_157 {dimension_numbers = #tpu.dot_dimension_numbers<[1], [0], [0], [1], [0, 0, 1, 1], [], []>} : vector<4x128xf32>, vector<128x32xf32>, vector<4x32xf32> -> vector<4x32xf32>
    %518 = arith.addf %517, %266 : vector<4x32xf32>
    %519 = arith.addf %488, %503 : vector<4x32xf32>
    %cst_158 = arith.constant 2.000000e+00 : f32
    %520 = vector.broadcast %cst_158 : f32 to vector<4x32xf32>
    %521 = arith.mulf %520, %519 : vector<4x32xf32>
    %522 = arith.addf %473, %521 : vector<4x32xf32>
    %523 = arith.addf %522, %518 : vector<4x32xf32>
    %cst_159 = arith.constant 0.0238095243 : f32
    %524 = vector.broadcast %cst_159 : f32 to vector<4x32xf32>
    %525 = arith.mulf %524, %523 : vector<4x32xf32>
    %526 = arith.addf %461, %525 : vector<4x32xf32>
    %cst_160 = arith.constant dense<0.000000e+00> : vector<4x128xf32>
    %527 = tpu.matmul %526, %259, %cst_160 {dimension_numbers = #tpu.dot_dimension_numbers<[1], [0], [0], [1], [0, 0, 1, 1], [], []>} : vector<4x32xf32>, vector<32x128xf32>, vector<4x128xf32> -> vector<4x128xf32>
    %528 = arith.addf %527, %263 : vector<4x128xf32>
    %cst_161 = arith.constant 0.000000e+00 : f32
    %529 = vector.broadcast %cst_161 : f32 to vector<4x128xf32>
    %530 = arith.cmpf ogt, %528, %529 : vector<4x128xf32>
    %cst_162 = arith.constant 0.000000e+00 : f32
    %531 = vector.broadcast %cst_162 : f32 to vector<4x128xf32>
    %532 = arith.minimumf %528, %531 : vector<4x128xf32>
    %533 = math.exp %532 : vector<4x128xf32>
    %cst_163 = arith.constant 1.000000e+00 : f32
    %534 = vector.broadcast %cst_163 : f32 to vector<4x128xf32>
    %535 = arith.subf %533, %534 : vector<4x128xf32>
    %536 = arith.select %530, %528, %535 : vector<4x128xi1>, vector<4x128xf32>
    %cst_164 = arith.constant dense<0.000000e+00> : vector<4x32xf32>
    %537 = tpu.matmul %536, %260, %cst_164 {dimension_numbers = #tpu.dot_dimension_numbers<[1], [0], [0], [1], [0, 0, 1, 1], [], []>} : vector<4x128xf32>, vector<128x32xf32>, vector<4x32xf32> -> vector<4x32xf32>
    %538 = arith.addf %537, %266 : vector<4x32xf32>
    %cst_165 = arith.constant 0.0714285746 : f32
    %539 = vector.broadcast %cst_165 : f32 to vector<4x32xf32>
    %540 = arith.mulf %539, %538 : vector<4x32xf32>
    %541 = arith.addf %526, %540 : vector<4x32xf32>
    %cst_166 = arith.constant dense<0.000000e+00> : vector<4x128xf32>
    %542 = tpu.matmul %541, %259, %cst_166 {dimension_numbers = #tpu.dot_dimension_numbers<[1], [0], [0], [1], [0, 0, 1, 1], [], []>} : vector<4x32xf32>, vector<32x128xf32>, vector<4x128xf32> -> vector<4x128xf32>
    %543 = arith.addf %542, %263 : vector<4x128xf32>
    %cst_167 = arith.constant 0.000000e+00 : f32
    %544 = vector.broadcast %cst_167 : f32 to vector<4x128xf32>
    %545 = arith.cmpf ogt, %543, %544 : vector<4x128xf32>
    %cst_168 = arith.constant 0.000000e+00 : f32
    %546 = vector.broadcast %cst_168 : f32 to vector<4x128xf32>
    %547 = arith.minimumf %543, %546 : vector<4x128xf32>
    %548 = math.exp %547 : vector<4x128xf32>
    %cst_169 = arith.constant 1.000000e+00 : f32
    %549 = vector.broadcast %cst_169 : f32 to vector<4x128xf32>
    %550 = arith.subf %548, %549 : vector<4x128xf32>
    %551 = arith.select %545, %543, %550 : vector<4x128xi1>, vector<4x128xf32>
    %cst_170 = arith.constant dense<0.000000e+00> : vector<4x32xf32>
    %552 = tpu.matmul %551, %260, %cst_170 {dimension_numbers = #tpu.dot_dimension_numbers<[1], [0], [0], [1], [0, 0, 1, 1], [], []>} : vector<4x128xf32>, vector<128x32xf32>, vector<4x32xf32> -> vector<4x32xf32>
    %553 = arith.addf %552, %266 : vector<4x32xf32>
    %cst_171 = arith.constant 0.0714285746 : f32
    %554 = vector.broadcast %cst_171 : f32 to vector<4x32xf32>
    %555 = arith.mulf %554, %553 : vector<4x32xf32>
    %556 = arith.addf %526, %555 : vector<4x32xf32>
    %cst_172 = arith.constant dense<0.000000e+00> : vector<4x128xf32>
    %557 = tpu.matmul %556, %259, %cst_172 {dimension_numbers = #tpu.dot_dimension_numbers<[1], [0], [0], [1], [0, 0, 1, 1], [], []>} : vector<4x32xf32>, vector<32x128xf32>, vector<4x128xf32> -> vector<4x128xf32>
    %558 = arith.addf %557, %263 : vector<4x128xf32>
    %cst_173 = arith.constant 0.000000e+00 : f32
    %559 = vector.broadcast %cst_173 : f32 to vector<4x128xf32>
    %560 = arith.cmpf ogt, %558, %559 : vector<4x128xf32>
    %cst_174 = arith.constant 0.000000e+00 : f32
    %561 = vector.broadcast %cst_174 : f32 to vector<4x128xf32>
    %562 = arith.minimumf %558, %561 : vector<4x128xf32>
    %563 = math.exp %562 : vector<4x128xf32>
    %cst_175 = arith.constant 1.000000e+00 : f32
    %564 = vector.broadcast %cst_175 : f32 to vector<4x128xf32>
    %565 = arith.subf %563, %564 : vector<4x128xf32>
    %566 = arith.select %560, %558, %565 : vector<4x128xi1>, vector<4x128xf32>
    %cst_176 = arith.constant dense<0.000000e+00> : vector<4x32xf32>
    %567 = tpu.matmul %566, %260, %cst_176 {dimension_numbers = #tpu.dot_dimension_numbers<[1], [0], [0], [1], [0, 0, 1, 1], [], []>} : vector<4x128xf32>, vector<128x32xf32>, vector<4x32xf32> -> vector<4x32xf32>
    %568 = arith.addf %567, %266 : vector<4x32xf32>
    %cst_177 = arith.constant 0.142857149 : f32
    %569 = vector.broadcast %cst_177 : f32 to vector<4x32xf32>
    %570 = arith.mulf %569, %568 : vector<4x32xf32>
    %571 = arith.addf %526, %570 : vector<4x32xf32>
    %cst_178 = arith.constant dense<0.000000e+00> : vector<4x128xf32>
    %572 = tpu.matmul %571, %259, %cst_178 {dimension_numbers = #tpu.dot_dimension_numbers<[1], [0], [0], [1], [0, 0, 1, 1], [], []>} : vector<4x32xf32>, vector<32x128xf32>, vector<4x128xf32> -> vector<4x128xf32>
    %573 = arith.addf %572, %263 : vector<4x128xf32>
    %cst_179 = arith.constant 0.000000e+00 : f32
    %574 = vector.broadcast %cst_179 : f32 to vector<4x128xf32>
    %575 = arith.cmpf ogt, %573, %574 : vector<4x128xf32>
    %cst_180 = arith.constant 0.000000e+00 : f32
    %576 = vector.broadcast %cst_180 : f32 to vector<4x128xf32>
    %577 = arith.minimumf %573, %576 : vector<4x128xf32>
    %578 = math.exp %577 : vector<4x128xf32>
    %cst_181 = arith.constant 1.000000e+00 : f32
    %579 = vector.broadcast %cst_181 : f32 to vector<4x128xf32>
    %580 = arith.subf %578, %579 : vector<4x128xf32>
    %581 = arith.select %575, %573, %580 : vector<4x128xi1>, vector<4x128xf32>
    %cst_182 = arith.constant dense<0.000000e+00> : vector<4x32xf32>
    %582 = tpu.matmul %581, %260, %cst_182 {dimension_numbers = #tpu.dot_dimension_numbers<[1], [0], [0], [1], [0, 0, 1, 1], [], []>} : vector<4x128xf32>, vector<128x32xf32>, vector<4x32xf32> -> vector<4x32xf32>
    %583 = arith.addf %582, %266 : vector<4x32xf32>
    %584 = arith.addf %553, %568 : vector<4x32xf32>
    %cst_183 = arith.constant 2.000000e+00 : f32
    %585 = vector.broadcast %cst_183 : f32 to vector<4x32xf32>
    %586 = arith.mulf %585, %584 : vector<4x32xf32>
    %587 = arith.addf %538, %586 : vector<4x32xf32>
    %588 = arith.addf %587, %583 : vector<4x32xf32>
    %cst_184 = arith.constant 0.0238095243 : f32
    %589 = vector.broadcast %cst_184 : f32 to vector<4x32xf32>
    %590 = arith.mulf %589, %588 : vector<4x32xf32>
    %591 = arith.addf %526, %590 : vector<4x32xf32>
    %cst_185 = arith.constant dense<0.000000e+00> : vector<4x128xf32>
    %592 = tpu.matmul %591, %259, %cst_185 {dimension_numbers = #tpu.dot_dimension_numbers<[1], [0], [0], [1], [0, 0, 1, 1], [], []>} : vector<4x32xf32>, vector<32x128xf32>, vector<4x128xf32> -> vector<4x128xf32>
    %593 = arith.addf %592, %263 : vector<4x128xf32>
    %cst_186 = arith.constant 0.000000e+00 : f32
    %594 = vector.broadcast %cst_186 : f32 to vector<4x128xf32>
    %595 = arith.cmpf ogt, %593, %594 : vector<4x128xf32>
    %cst_187 = arith.constant 0.000000e+00 : f32
    %596 = vector.broadcast %cst_187 : f32 to vector<4x128xf32>
    %597 = arith.minimumf %593, %596 : vector<4x128xf32>
    %598 = math.exp %597 : vector<4x128xf32>
    %cst_188 = arith.constant 1.000000e+00 : f32
    %599 = vector.broadcast %cst_188 : f32 to vector<4x128xf32>
    %600 = arith.subf %598, %599 : vector<4x128xf32>
    %601 = arith.select %595, %593, %600 : vector<4x128xi1>, vector<4x128xf32>
    %cst_189 = arith.constant dense<0.000000e+00> : vector<4x32xf32>
    %602 = tpu.matmul %601, %260, %cst_189 {dimension_numbers = #tpu.dot_dimension_numbers<[1], [0], [0], [1], [0, 0, 1, 1], [], []>} : vector<4x128xf32>, vector<128x32xf32>, vector<4x32xf32> -> vector<4x32xf32>
    %603 = arith.addf %602, %266 : vector<4x32xf32>
    %cst_190 = arith.constant 0.0714285746 : f32
    %604 = vector.broadcast %cst_190 : f32 to vector<4x32xf32>
    %605 = arith.mulf %604, %603 : vector<4x32xf32>
    %606 = arith.addf %591, %605 : vector<4x32xf32>
    %cst_191 = arith.constant dense<0.000000e+00> : vector<4x128xf32>
    %607 = tpu.matmul %606, %259, %cst_191 {dimension_numbers = #tpu.dot_dimension_numbers<[1], [0], [0], [1], [0, 0, 1, 1], [], []>} : vector<4x32xf32>, vector<32x128xf32>, vector<4x128xf32> -> vector<4x128xf32>
    %608 = arith.addf %607, %263 : vector<4x128xf32>
    %cst_192 = arith.constant 0.000000e+00 : f32
    %609 = vector.broadcast %cst_192 : f32 to vector<4x128xf32>
    %610 = arith.cmpf ogt, %608, %609 : vector<4x128xf32>
    %cst_193 = arith.constant 0.000000e+00 : f32
    %611 = vector.broadcast %cst_193 : f32 to vector<4x128xf32>
    %612 = arith.minimumf %608, %611 : vector<4x128xf32>
    %613 = math.exp %612 : vector<4x128xf32>
    %cst_194 = arith.constant 1.000000e+00 : f32
    %614 = vector.broadcast %cst_194 : f32 to vector<4x128xf32>
    %615 = arith.subf %613, %614 : vector<4x128xf32>
    %616 = arith.select %610, %608, %615 : vector<4x128xi1>, vector<4x128xf32>
    %cst_195 = arith.constant dense<0.000000e+00> : vector<4x32xf32>
    %617 = tpu.matmul %616, %260, %cst_195 {dimension_numbers = #tpu.dot_dimension_numbers<[1], [0], [0], [1], [0, 0, 1, 1], [], []>} : vector<4x128xf32>, vector<128x32xf32>, vector<4x32xf32> -> vector<4x32xf32>
    %618 = arith.addf %617, %266 : vector<4x32xf32>
    %cst_196 = arith.constant 0.0714285746 : f32
    %619 = vector.broadcast %cst_196 : f32 to vector<4x32xf32>
    %620 = arith.mulf %619, %618 : vector<4x32xf32>
    %621 = arith.addf %591, %620 : vector<4x32xf32>
    %cst_197 = arith.constant dense<0.000000e+00> : vector<4x128xf32>
    %622 = tpu.matmul %621, %259, %cst_197 {dimension_numbers = #tpu.dot_dimension_numbers<[1], [0], [0], [1], [0, 0, 1, 1], [], []>} : vector<4x32xf32>, vector<32x128xf32>, vector<4x128xf32> -> vector<4x128xf32>
    %623 = arith.addf %622, %263 : vector<4x128xf32>
    %cst_198 = arith.constant 0.000000e+00 : f32
    %624 = vector.broadcast %cst_198 : f32 to vector<4x128xf32>
    %625 = arith.cmpf ogt, %623, %624 : vector<4x128xf32>
    %cst_199 = arith.constant 0.000000e+00 : f32
    %626 = vector.broadcast %cst_199 : f32 to vector<4x128xf32>
    %627 = arith.minimumf %623, %626 : vector<4x128xf32>
    %628 = math.exp %627 : vector<4x128xf32>
    %cst_200 = arith.constant 1.000000e+00 : f32
    %629 = vector.broadcast %cst_200 : f32 to vector<4x128xf32>
    %630 = arith.subf %628, %629 : vector<4x128xf32>
    %631 = arith.select %625, %623, %630 : vector<4x128xi1>, vector<4x128xf32>
    %cst_201 = arith.constant dense<0.000000e+00> : vector<4x32xf32>
    %632 = tpu.matmul %631, %260, %cst_201 {dimension_numbers = #tpu.dot_dimension_numbers<[1], [0], [0], [1], [0, 0, 1, 1], [], []>} : vector<4x128xf32>, vector<128x32xf32>, vector<4x32xf32> -> vector<4x32xf32>
    %633 = arith.addf %632, %266 : vector<4x32xf32>
    %cst_202 = arith.constant 0.142857149 : f32
    %634 = vector.broadcast %cst_202 : f32 to vector<4x32xf32>
    %635 = arith.mulf %634, %633 : vector<4x32xf32>
    %636 = arith.addf %591, %635 : vector<4x32xf32>
    %cst_203 = arith.constant dense<0.000000e+00> : vector<4x128xf32>
    %637 = tpu.matmul %636, %259, %cst_203 {dimension_numbers = #tpu.dot_dimension_numbers<[1], [0], [0], [1], [0, 0, 1, 1], [], []>} : vector<4x32xf32>, vector<32x128xf32>, vector<4x128xf32> -> vector<4x128xf32>
    %638 = arith.addf %637, %263 : vector<4x128xf32>
    %cst_204 = arith.constant 0.000000e+00 : f32
    %639 = vector.broadcast %cst_204 : f32 to vector<4x128xf32>
    %640 = arith.cmpf ogt, %638, %639 : vector<4x128xf32>
    %cst_205 = arith.constant 0.000000e+00 : f32
    %641 = vector.broadcast %cst_205 : f32 to vector<4x128xf32>
    %642 = arith.minimumf %638, %641 : vector<4x128xf32>
    %643 = math.exp %642 : vector<4x128xf32>
    %cst_206 = arith.constant 1.000000e+00 : f32
    %644 = vector.broadcast %cst_206 : f32 to vector<4x128xf32>
    %645 = arith.subf %643, %644 : vector<4x128xf32>
    %646 = arith.select %640, %638, %645 : vector<4x128xi1>, vector<4x128xf32>
    %cst_207 = arith.constant dense<0.000000e+00> : vector<4x32xf32>
    %647 = tpu.matmul %646, %260, %cst_207 {dimension_numbers = #tpu.dot_dimension_numbers<[1], [0], [0], [1], [0, 0, 1, 1], [], []>} : vector<4x128xf32>, vector<128x32xf32>, vector<4x32xf32> -> vector<4x32xf32>
    %648 = arith.addf %647, %266 : vector<4x32xf32>
    %649 = arith.addf %618, %633 : vector<4x32xf32>
    %cst_208 = arith.constant 2.000000e+00 : f32
    %650 = vector.broadcast %cst_208 : f32 to vector<4x32xf32>
    %651 = arith.mulf %650, %649 : vector<4x32xf32>
    %652 = arith.addf %603, %651 : vector<4x32xf32>
    %653 = arith.addf %652, %648 : vector<4x32xf32>
    %cst_209 = arith.constant 0.0238095243 : f32
    %654 = vector.broadcast %cst_209 : f32 to vector<4x32xf32>
    %655 = arith.mulf %654, %653 : vector<4x32xf32>
    %656 = arith.addf %591, %655 : vector<4x32xf32>
    %cst_210 = arith.constant dense<0.000000e+00> : vector<4x128xf32>
    %657 = tpu.matmul %656, %259, %cst_210 {dimension_numbers = #tpu.dot_dimension_numbers<[1], [0], [0], [1], [0, 0, 1, 1], [], []>} : vector<4x32xf32>, vector<32x128xf32>, vector<4x128xf32> -> vector<4x128xf32>
    %658 = arith.addf %657, %263 : vector<4x128xf32>
    %cst_211 = arith.constant 0.000000e+00 : f32
    %659 = vector.broadcast %cst_211 : f32 to vector<4x128xf32>
    %660 = arith.cmpf ogt, %658, %659 : vector<4x128xf32>
    %cst_212 = arith.constant 0.000000e+00 : f32
    %661 = vector.broadcast %cst_212 : f32 to vector<4x128xf32>
    %662 = arith.minimumf %658, %661 : vector<4x128xf32>
    %663 = math.exp %662 : vector<4x128xf32>
    %cst_213 = arith.constant 1.000000e+00 : f32
    %664 = vector.broadcast %cst_213 : f32 to vector<4x128xf32>
    %665 = arith.subf %663, %664 : vector<4x128xf32>
    %666 = arith.select %660, %658, %665 : vector<4x128xi1>, vector<4x128xf32>
    %cst_214 = arith.constant dense<0.000000e+00> : vector<4x32xf32>
    %667 = tpu.matmul %666, %260, %cst_214 {dimension_numbers = #tpu.dot_dimension_numbers<[1], [0], [0], [1], [0, 0, 1, 1], [], []>} : vector<4x128xf32>, vector<128x32xf32>, vector<4x32xf32> -> vector<4x32xf32>
    %668 = arith.addf %667, %266 : vector<4x32xf32>
    %cst_215 = arith.constant 0.0714285746 : f32
    %669 = vector.broadcast %cst_215 : f32 to vector<4x32xf32>
    %670 = arith.mulf %669, %668 : vector<4x32xf32>
    %671 = arith.addf %656, %670 : vector<4x32xf32>
    %cst_216 = arith.constant dense<0.000000e+00> : vector<4x128xf32>
    %672 = tpu.matmul %671, %259, %cst_216 {dimension_numbers = #tpu.dot_dimension_numbers<[1], [0], [0], [1], [0, 0, 1, 1], [], []>} : vector<4x32xf32>, vector<32x128xf32>, vector<4x128xf32> -> vector<4x128xf32>
    %673 = arith.addf %672, %263 : vector<4x128xf32>
    %cst_217 = arith.constant 0.000000e+00 : f32
    %674 = vector.broadcast %cst_217 : f32 to vector<4x128xf32>
    %675 = arith.cmpf ogt, %673, %674 : vector<4x128xf32>
    %cst_218 = arith.constant 0.000000e+00 : f32
    %676 = vector.broadcast %cst_218 : f32 to vector<4x128xf32>
    %677 = arith.minimumf %673, %676 : vector<4x128xf32>
    %678 = math.exp %677 : vector<4x128xf32>
    %cst_219 = arith.constant 1.000000e+00 : f32
    %679 = vector.broadcast %cst_219 : f32 to vector<4x128xf32>
    %680 = arith.subf %678, %679 : vector<4x128xf32>
    %681 = arith.select %675, %673, %680 : vector<4x128xi1>, vector<4x128xf32>
    %cst_220 = arith.constant dense<0.000000e+00> : vector<4x32xf32>
    %682 = tpu.matmul %681, %260, %cst_220 {dimension_numbers = #tpu.dot_dimension_numbers<[1], [0], [0], [1], [0, 0, 1, 1], [], []>} : vector<4x128xf32>, vector<128x32xf32>, vector<4x32xf32> -> vector<4x32xf32>
    %683 = arith.addf %682, %266 : vector<4x32xf32>
    %cst_221 = arith.constant 0.0714285746 : f32
    %684 = vector.broadcast %cst_221 : f32 to vector<4x32xf32>
    %685 = arith.mulf %684, %683 : vector<4x32xf32>
    %686 = arith.addf %656, %685 : vector<4x32xf32>
    %cst_222 = arith.constant dense<0.000000e+00> : vector<4x128xf32>
    %687 = tpu.matmul %686, %259, %cst_222 {dimension_numbers = #tpu.dot_dimension_numbers<[1], [0], [0], [1], [0, 0, 1, 1], [], []>} : vector<4x32xf32>, vector<32x128xf32>, vector<4x128xf32> -> vector<4x128xf32>
    %688 = arith.addf %687, %263 : vector<4x128xf32>
    %cst_223 = arith.constant 0.000000e+00 : f32
    %689 = vector.broadcast %cst_223 : f32 to vector<4x128xf32>
    %690 = arith.cmpf ogt, %688, %689 : vector<4x128xf32>
    %cst_224 = arith.constant 0.000000e+00 : f32
    %691 = vector.broadcast %cst_224 : f32 to vector<4x128xf32>
    %692 = arith.minimumf %688, %691 : vector<4x128xf32>
    %693 = math.exp %692 : vector<4x128xf32>
    %cst_225 = arith.constant 1.000000e+00 : f32
    %694 = vector.broadcast %cst_225 : f32 to vector<4x128xf32>
    %695 = arith.subf %693, %694 : vector<4x128xf32>
    %696 = arith.select %690, %688, %695 : vector<4x128xi1>, vector<4x128xf32>
    %cst_226 = arith.constant dense<0.000000e+00> : vector<4x32xf32>
    %697 = tpu.matmul %696, %260, %cst_226 {dimension_numbers = #tpu.dot_dimension_numbers<[1], [0], [0], [1], [0, 0, 1, 1], [], []>} : vector<4x128xf32>, vector<128x32xf32>, vector<4x32xf32> -> vector<4x32xf32>
    %698 = arith.addf %697, %266 : vector<4x32xf32>
    %cst_227 = arith.constant 0.142857149 : f32
    %699 = vector.broadcast %cst_227 : f32 to vector<4x32xf32>
    %700 = arith.mulf %699, %698 : vector<4x32xf32>
    %701 = arith.addf %656, %700 : vector<4x32xf32>
    %cst_228 = arith.constant dense<0.000000e+00> : vector<4x128xf32>
    %702 = tpu.matmul %701, %259, %cst_228 {dimension_numbers = #tpu.dot_dimension_numbers<[1], [0], [0], [1], [0, 0, 1, 1], [], []>} : vector<4x32xf32>, vector<32x128xf32>, vector<4x128xf32> -> vector<4x128xf32>
    %703 = arith.addf %702, %263 : vector<4x128xf32>
    %cst_229 = arith.constant 0.000000e+00 : f32
    %704 = vector.broadcast %cst_229 : f32 to vector<4x128xf32>
    %705 = arith.cmpf ogt, %703, %704 : vector<4x128xf32>
    %cst_230 = arith.constant 0.000000e+00 : f32
    %706 = vector.broadcast %cst_230 : f32 to vector<4x128xf32>
    %707 = arith.minimumf %703, %706 : vector<4x128xf32>
    %708 = math.exp %707 : vector<4x128xf32>
    %cst_231 = arith.constant 1.000000e+00 : f32
    %709 = vector.broadcast %cst_231 : f32 to vector<4x128xf32>
    %710 = arith.subf %708, %709 : vector<4x128xf32>
    %711 = arith.select %705, %703, %710 : vector<4x128xi1>, vector<4x128xf32>
    %cst_232 = arith.constant dense<0.000000e+00> : vector<4x32xf32>
    %712 = tpu.matmul %711, %260, %cst_232 {dimension_numbers = #tpu.dot_dimension_numbers<[1], [0], [0], [1], [0, 0, 1, 1], [], []>} : vector<4x128xf32>, vector<128x32xf32>, vector<4x32xf32> -> vector<4x32xf32>
    %713 = arith.addf %712, %266 : vector<4x32xf32>
    %714 = arith.addf %683, %698 : vector<4x32xf32>
    %cst_233 = arith.constant 2.000000e+00 : f32
    %715 = vector.broadcast %cst_233 : f32 to vector<4x32xf32>
    %716 = arith.mulf %715, %714 : vector<4x32xf32>
    %717 = arith.addf %668, %716 : vector<4x32xf32>
    %718 = arith.addf %717, %713 : vector<4x32xf32>
    %cst_234 = arith.constant 0.0238095243 : f32
    %719 = vector.broadcast %cst_234 : f32 to vector<4x32xf32>
    %720 = arith.mulf %719, %718 : vector<4x32xf32>
    %721 = arith.addf %656, %720 : vector<4x32xf32>
    %722 = tpu.concatenate %255, %331, %396, %461, %526, %591, %656, %721 in 0 : vector<4x32xf32>, vector<4x32xf32>, vector<4x32xf32>, vector<4x32xf32>, vector<4x32xf32>, vector<4x32xf32>, vector<4x32xf32>, vector<4x32xf32> -> vector<32x32xf32>
    %c0_235 = arith.constant 0 : index
    %c0_236 = arith.constant 0 : index
    %723 = vector.load %arg7[%c0_235, %c0_236] : memref<32x32xf32, #tpu.memory_space<vmem>>, vector<32x32xf32>
    %cst_237 = arith.constant dense<0.000000e+00> : vector<32x32xf32>
    %724 = tpu.matmul %722, %723, %cst_237 {dimension_numbers = #tpu.dot_dimension_numbers<[1], [0], [0], [1], [0, 0, 1, 1], [], []>} : vector<32x32xf32>, vector<32x32xf32>, vector<32x32xf32> -> vector<32x32xf32>
    %c5 = arith.constant 5 : index
    %c0_238 = arith.constant 0 : index
    %725 = vector.load %arg12[%c5, %c0_238] : memref<9x128xf32, #tpu.memory_space<vmem>>, vector<1x32xf32>
    %726 = vector.broadcast %725 : vector<1x32xf32> to vector<32x32xf32>
    %727 = arith.addf %724, %726 : vector<32x32xf32>
    %c0_239 = arith.constant 0 : index
    %c0_240 = arith.constant 0 : index
    %728 = vector.load %arg8[%c0_239, %c0_240] : memref<32x8xf32, #tpu.memory_space<vmem>>, vector<32x8xf32>
    %cst_241 = arith.constant dense<0.000000e+00> : vector<32x8xf32>
    %729 = tpu.matmul %727, %728, %cst_241 {dimension_numbers = #tpu.dot_dimension_numbers<[1], [0], [0], [1], [0, 0, 1, 1], [], []>} : vector<32x32xf32>, vector<32x8xf32>, vector<32x8xf32> -> vector<32x8xf32>
    %c6 = arith.constant 6 : index
    %c0_242 = arith.constant 0 : index
    %730 = vector.load %arg12[%c6, %c0_242] : memref<9x128xf32, #tpu.memory_space<vmem>>, vector<1x8xf32>
    %731 = vector.broadcast %730 : vector<1x8xf32> to vector<32x8xf32>
    %732 = arith.addf %729, %731 : vector<32x8xf32>
    %c0_243 = arith.constant 0 : index
    %c0_244 = arith.constant 0 : index
    %733 = vector.load %arg13[%c0_243, %c0_244] : memref<32x8xf32, #tpu.memory_space<vmem>>, vector<32x8xf32>
    tpu.vector_store %arg13[%c0_243, %c0_244], %732 {strides = array<i32>} : memref<32x8xf32, #tpu.memory_space<vmem>>, vector<32x8xf32>,
    %734 = tpu.concatenate %255, %255, %331, %396, %461, %526, %591, %656, %721 in 0 : vector<4x32xf32>, vector<4x32xf32>, vector<4x32xf32>, vector<4x32xf32>, vector<4x32xf32>, vector<4x32xf32>, vector<4x32xf32>, vector<4x32xf32>, vector<4x32xf32> -> vector<36x32xf32>
    %c0_245 = arith.constant 0 : index
    %c0_246 = arith.constant 0 : index
    %735 = vector.load %arg9[%c0_245, %c0_246] : memref<32x64xf32, #tpu.memory_space<vmem>>, vector<32x64xf32>
    %cst_247 = arith.constant dense<0.000000e+00> : vector<36x64xf32>
    %736 = tpu.matmul %734, %735, %cst_247 {dimension_numbers = #tpu.dot_dimension_numbers<[1], [0], [0], [1], [0, 0, 1, 1], [], []>} : vector<36x32xf32>, vector<32x64xf32>, vector<36x64xf32> -> vector<36x64xf32>
    %c7 = arith.constant 7 : index
    %c0_248 = arith.constant 0 : index
    %737 = vector.load %arg12[%c7, %c0_248] : memref<9x128xf32, #tpu.memory_space<vmem>>, vector<1x64xf32>
    %738 = vector.broadcast %737 : vector<1x64xf32> to vector<36x64xf32>
    %739 = arith.addf %736, %738 : vector<36x64xf32>
    %740 = vector.extract_strided_slice %739 {offsets = [0, 0], sizes = [4, 64], strides = [1, 1]} : vector<36x64xf32> to vector<4x64xf32>
    %c0_249 = arith.constant 0 : index
    %c0_250 = arith.constant 0 : index
    %c0_251 = arith.constant 0 : index
    %741 = vector.load %arg18[%c0_249, %c0_250, %c0_251] : memref<4x9x64xf32, #tpu.memory_space<vmem>>, vector<4x1x64xf32>
    %742 = vector.shape_cast %741 : vector<4x1x64xf32> to vector<4x64xf32>
    %743 = vector.shape_cast %740 : vector<4x64xf32> to vector<4x1x64xf32>
    tpu.vector_store %arg18[%c0_249, %c0_250, %c0_251], %743 {strides = array<i32>} : memref<4x9x64xf32, #tpu.memory_space<vmem>>, vector<4x1x64xf32>,
    %744 = vector.extract_strided_slice %739 {offsets = [4, 0], sizes = [4, 64], strides = [1, 1]} : vector<36x64xf32> to vector<4x64xf32>
    %c0_252 = arith.constant 0 : index
    %c1_253 = arith.constant 1 : index
    %c0_254 = arith.constant 0 : index
    %745 = vector.load %arg18[%c0_252, %c1_253, %c0_254] : memref<4x9x64xf32, #tpu.memory_space<vmem>>, vector<4x1x64xf32>
    %746 = vector.shape_cast %745 : vector<4x1x64xf32> to vector<4x64xf32>
    %747 = vector.shape_cast %744 : vector<4x64xf32> to vector<4x1x64xf32>
    tpu.vector_store %arg18[%c0_252, %c1_253, %c0_254], %747 {strides = array<i32>} : memref<4x9x64xf32, #tpu.memory_space<vmem>>, vector<4x1x64xf32>,
    %748 = vector.extract_strided_slice %739 {offsets = [8, 0], sizes = [4, 64], strides = [1, 1]} : vector<36x64xf32> to vector<4x64xf32>
    %c0_255 = arith.constant 0 : index
    %c2_256 = arith.constant 2 : index
    %c0_257 = arith.constant 0 : index
    %749 = vector.load %arg18[%c0_255, %c2_256, %c0_257] : memref<4x9x64xf32, #tpu.memory_space<vmem>>, vector<4x1x64xf32>
    %750 = vector.shape_cast %749 : vector<4x1x64xf32> to vector<4x64xf32>
    %751 = vector.shape_cast %748 : vector<4x64xf32> to vector<4x1x64xf32>
    tpu.vector_store %arg18[%c0_255, %c2_256, %c0_257], %751 {strides = array<i32>} : memref<4x9x64xf32, #tpu.memory_space<vmem>>, vector<4x1x64xf32>,
    %752 = vector.extract_strided_slice %739 {offsets = [12, 0], sizes = [4, 64], strides = [1, 1]} : vector<36x64xf32> to vector<4x64xf32>
    %c0_258 = arith.constant 0 : index
    %c3_259 = arith.constant 3 : index
    %c0_260 = arith.constant 0 : index
    %753 = vector.load %arg18[%c0_258, %c3_259, %c0_260] : memref<4x9x64xf32, #tpu.memory_space<vmem>>, vector<4x1x64xf32>
    %754 = vector.shape_cast %753 : vector<4x1x64xf32> to vector<4x64xf32>
    %755 = vector.shape_cast %752 : vector<4x64xf32> to vector<4x1x64xf32>
    tpu.vector_store %arg18[%c0_258, %c3_259, %c0_260], %755 {strides = array<i32>} : memref<4x9x64xf32, #tpu.memory_space<vmem>>, vector<4x1x64xf32>,
    %756 = vector.extract_strided_slice %739 {offsets = [16, 0], sizes = [4, 64], strides = [1, 1]} : vector<36x64xf32> to vector<4x64xf32>
    %c0_261 = arith.constant 0 : index
    %c4_262 = arith.constant 4 : index
    %c0_263 = arith.constant 0 : index
    %757 = vector.load %arg18[%c0_261, %c4_262, %c0_263] : memref<4x9x64xf32, #tpu.memory_space<vmem>>, vector<4x1x64xf32>
    %758 = vector.shape_cast %757 : vector<4x1x64xf32> to vector<4x64xf32>
    %759 = vector.shape_cast %756 : vector<4x64xf32> to vector<4x1x64xf32>
    tpu.vector_store %arg18[%c0_261, %c4_262, %c0_263], %759 {strides = array<i32>} : memref<4x9x64xf32, #tpu.memory_space<vmem>>, vector<4x1x64xf32>,
    %760 = vector.extract_strided_slice %739 {offsets = [20, 0], sizes = [4, 64], strides = [1, 1]} : vector<36x64xf32> to vector<4x64xf32>
    %c0_264 = arith.constant 0 : index
    %c5_265 = arith.constant 5 : index
    %c0_266 = arith.constant 0 : index
    %761 = vector.load %arg18[%c0_264, %c5_265, %c0_266] : memref<4x9x64xf32, #tpu.memory_space<vmem>>, vector<4x1x64xf32>
    %762 = vector.shape_cast %761 : vector<4x1x64xf32> to vector<4x64xf32>
    %763 = vector.shape_cast %760 : vector<4x64xf32> to vector<4x1x64xf32>
    tpu.vector_store %arg18[%c0_264, %c5_265, %c0_266], %763 {strides = array<i32>} : memref<4x9x64xf32, #tpu.memory_space<vmem>>, vector<4x1x64xf32>,
    %764 = vector.extract_strided_slice %739 {offsets = [24, 0], sizes = [4, 64], strides = [1, 1]} : vector<36x64xf32> to vector<4x64xf32>
    %c0_267 = arith.constant 0 : index
    %c6_268 = arith.constant 6 : index
    %c0_269 = arith.constant 0 : index
    %765 = vector.load %arg18[%c0_267, %c6_268, %c0_269] : memref<4x9x64xf32, #tpu.memory_space<vmem>>, vector<4x1x64xf32>
    %766 = vector.shape_cast %765 : vector<4x1x64xf32> to vector<4x64xf32>
    %767 = vector.shape_cast %764 : vector<4x64xf32> to vector<4x1x64xf32>
    tpu.vector_store %arg18[%c0_267, %c6_268, %c0_269], %767 {strides = array<i32>} : memref<4x9x64xf32, #tpu.memory_space<vmem>>, vector<4x1x64xf32>,
    %768 = vector.extract_strided_slice %739 {offsets = [28, 0], sizes = [4, 64], strides = [1, 1]} : vector<36x64xf32> to vector<4x64xf32>
    %c0_270 = arith.constant 0 : index
    %c7_271 = arith.constant 7 : index
    %c0_272 = arith.constant 0 : index
    %769 = vector.load %arg18[%c0_270, %c7_271, %c0_272] : memref<4x9x64xf32, #tpu.memory_space<vmem>>, vector<4x1x64xf32>
    %770 = vector.shape_cast %769 : vector<4x1x64xf32> to vector<4x64xf32>
    %771 = vector.shape_cast %768 : vector<4x64xf32> to vector<4x1x64xf32>
    tpu.vector_store %arg18[%c0_270, %c7_271, %c0_272], %771 {strides = array<i32>} : memref<4x9x64xf32, #tpu.memory_space<vmem>>, vector<4x1x64xf32>,
    %772 = vector.extract_strided_slice %739 {offsets = [32, 0], sizes = [4, 64], strides = [1, 1]} : vector<36x64xf32> to vector<4x64xf32>
    %c0_273 = arith.constant 0 : index
    %c8 = arith.constant 8 : index
    %c0_274 = arith.constant 0 : index
    %773 = vector.load %arg18[%c0_273, %c8, %c0_274] : memref<4x9x64xf32, #tpu.memory_space<vmem>>, vector<4x1x64xf32>
    %774 = vector.shape_cast %773 : vector<4x1x64xf32> to vector<4x64xf32>
    %775 = vector.shape_cast %772 : vector<4x64xf32> to vector<4x1x64xf32>
    tpu.vector_store %arg18[%c0_273, %c8, %c0_274], %775 {strides = array<i32>} : memref<4x9x64xf32, #tpu.memory_space<vmem>>, vector<4x1x64xf32>,
    %c0_275 = arith.constant 0 : index
    %c0_276 = arith.constant 0 : index
    %776 = vector.load %arg10[%c0_275, %c0_276] : memref<16x64xf32, #tpu.memory_space<vmem>>, vector<16x64xf32>
    %cst_277 = arith.constant 0.000000e+00 : f32
    %777 = vector.broadcast %cst_277 : f32 to vector<9x16xf32>
    %cst_278 = arith.constant 0.000000e+00 : f32
    %778 = vector.broadcast %cst_278 : f32 to vector<9x16xf32>
    %c0_279 = arith.constant 0 : index
    %c0_280 = arith.constant 0 : index
    %c0_281 = arith.constant 0 : index
    %779 = vector.load %arg18[%c0_279, %c0_280, %c0_281] : memref<4x9x64xf32, #tpu.memory_space<vmem>>, vector<1x9x64xf32>
    %780 = vector.shape_cast %779 : vector<1x9x64xf32> to vector<9x64xf32>
    %cst_282 = arith.constant dense<0.000000e+00> : vector<9x64xf32>
    %781 = tpu.matmul %777, %776, %cst_282 {dimension_numbers = #tpu.dot_dimension_numbers<[1], [0], [0], [1], [0, 0, 1, 1], [], []>} : vector<9x16xf32>, vector<16x64xf32>, vector<9x64xf32> -> vector<9x64xf32>
    %782 = arith.addf %780, %781 : vector<9x64xf32>
    %783 = vector.extract_strided_slice %782 {offsets = [0, 0], sizes = [9, 16], strides = [1, 1]} : vector<9x64xf32> to vector<9x16xf32>
    %784 = arith.negf %783 : vector<9x16xf32>
    %785 = math.exp %784 : vector<9x16xf32>
    %cst_283 = arith.constant 1.000000e+00 : f32
    %786 = vector.broadcast %cst_283 : f32 to vector<9x16xf32>
    %787 = arith.addf %786, %785 : vector<9x16xf32>
    %788 = arith.divf %786, %787 : vector<9x16xf32>
    %789 = vector.extract_strided_slice %782 {offsets = [0, 16], sizes = [9, 16], strides = [1, 1]} : vector<9x64xf32> to vector<9x16xf32>
    %790 = arith.negf %789 : vector<9x16xf32>
    %791 = math.exp %790 : vector<9x16xf32>
    %cst_284 = arith.constant 1.000000e+00 : f32
    %792 = vector.broadcast %cst_284 : f32 to vector<9x16xf32>
    %793 = arith.addf %792, %791 : vector<9x16xf32>
    %794 = arith.divf %792, %793 : vector<9x16xf32>
    %795 = vector.extract_strided_slice %782 {offsets = [0, 32], sizes = [9, 16], strides = [1, 1]} : vector<9x64xf32> to vector<9x16xf32>
    %796 = math.tanh %795 : vector<9x16xf32>
    %797 = vector.extract_strided_slice %782 {offsets = [0, 48], sizes = [9, 16], strides = [1, 1]} : vector<9x64xf32> to vector<9x16xf32>
    %798 = arith.negf %797 : vector<9x16xf32>
    %799 = math.exp %798 : vector<9x16xf32>
    %cst_285 = arith.constant 1.000000e+00 : f32
    %800 = vector.broadcast %cst_285 : f32 to vector<9x16xf32>
    %801 = arith.addf %800, %799 : vector<9x16xf32>
    %802 = arith.divf %800, %801 : vector<9x16xf32>
    %803 = arith.mulf %794, %778 : vector<9x16xf32>
    %804 = arith.mulf %788, %796 : vector<9x16xf32>
    %805 = arith.addf %803, %804 : vector<9x16xf32>
    %806 = math.tanh %805 : vector<9x16xf32>
    %807 = arith.mulf %802, %806 : vector<9x16xf32>
    %808 = vector.extract_strided_slice %807 {offsets = [8, 0], sizes = [1, 16], strides = [1, 1]} : vector<9x16xf32> to vector<1x16xf32>
    %c1_286 = arith.constant 1 : index
    %c0_287 = arith.constant 0 : index
    %c0_288 = arith.constant 0 : index
    %809 = vector.load %arg18[%c1_286, %c0_287, %c0_288] : memref<4x9x64xf32, #tpu.memory_space<vmem>>, vector<1x9x64xf32>
    %810 = vector.shape_cast %809 : vector<1x9x64xf32> to vector<9x64xf32>
    %cst_289 = arith.constant dense<0.000000e+00> : vector<9x64xf32>
    %811 = tpu.matmul %807, %776, %cst_289 {dimension_numbers = #tpu.dot_dimension_numbers<[1], [0], [0], [1], [0, 0, 1, 1], [], []>} : vector<9x16xf32>, vector<16x64xf32>, vector<9x64xf32> -> vector<9x64xf32>
    %812 = arith.addf %810, %811 : vector<9x64xf32>
    %813 = vector.extract_strided_slice %812 {offsets = [0, 0], sizes = [9, 16], strides = [1, 1]} : vector<9x64xf32> to vector<9x16xf32>
    %814 = arith.negf %813 : vector<9x16xf32>
    %815 = math.exp %814 : vector<9x16xf32>
    %cst_290 = arith.constant 1.000000e+00 : f32
    %816 = vector.broadcast %cst_290 : f32 to vector<9x16xf32>
    %817 = arith.addf %816, %815 : vector<9x16xf32>
    %818 = arith.divf %816, %817 : vector<9x16xf32>
    %819 = vector.extract_strided_slice %812 {offsets = [0, 16], sizes = [9, 16], strides = [1, 1]} : vector<9x64xf32> to vector<9x16xf32>
    %820 = arith.negf %819 : vector<9x16xf32>
    %821 = math.exp %820 : vector<9x16xf32>
    %cst_291 = arith.constant 1.000000e+00 : f32
    %822 = vector.broadcast %cst_291 : f32 to vector<9x16xf32>
    %823 = arith.addf %822, %821 : vector<9x16xf32>
    %824 = arith.divf %822, %823 : vector<9x16xf32>
    %825 = vector.extract_strided_slice %812 {offsets = [0, 32], sizes = [9, 16], strides = [1, 1]} : vector<9x64xf32> to vector<9x16xf32>
    %826 = math.tanh %825 : vector<9x16xf32>
    %827 = vector.extract_strided_slice %812 {offsets = [0, 48], sizes = [9, 16], strides = [1, 1]} : vector<9x64xf32> to vector<9x16xf32>
    %828 = arith.negf %827 : vector<9x16xf32>
    %829 = math.exp %828 : vector<9x16xf32>
    %cst_292 = arith.constant 1.000000e+00 : f32
    %830 = vector.broadcast %cst_292 : f32 to vector<9x16xf32>
    %831 = arith.addf %830, %829 : vector<9x16xf32>
    %832 = arith.divf %830, %831 : vector<9x16xf32>
    %833 = arith.mulf %824, %805 : vector<9x16xf32>
    %834 = arith.mulf %818, %826 : vector<9x16xf32>
    %835 = arith.addf %833, %834 : vector<9x16xf32>
    %836 = math.tanh %835 : vector<9x16xf32>
    %837 = arith.mulf %832, %836 : vector<9x16xf32>
    %838 = vector.extract_strided_slice %837 {offsets = [8, 0], sizes = [1, 16], strides = [1, 1]} : vector<9x16xf32> to vector<1x16xf32>
    %c2_293 = arith.constant 2 : index
    %c0_294 = arith.constant 0 : index
    %c0_295 = arith.constant 0 : index
    %839 = vector.load %arg18[%c2_293, %c0_294, %c0_295] : memref<4x9x64xf32, #tpu.memory_space<vmem>>, vector<1x9x64xf32>
    %840 = vector.shape_cast %839 : vector<1x9x64xf32> to vector<9x64xf32>
    %cst_296 = arith.constant dense<0.000000e+00> : vector<9x64xf32>
    %841 = tpu.matmul %837, %776, %cst_296 {dimension_numbers = #tpu.dot_dimension_numbers<[1], [0], [0], [1], [0, 0, 1, 1], [], []>} : vector<9x16xf32>, vector<16x64xf32>, vector<9x64xf32> -> vector<9x64xf32>
    %842 = arith.addf %840, %841 : vector<9x64xf32>
    %843 = vector.extract_strided_slice %842 {offsets = [0, 0], sizes = [9, 16], strides = [1, 1]} : vector<9x64xf32> to vector<9x16xf32>
    %844 = arith.negf %843 : vector<9x16xf32>
    %845 = math.exp %844 : vector<9x16xf32>
    %cst_297 = arith.constant 1.000000e+00 : f32
    %846 = vector.broadcast %cst_297 : f32 to vector<9x16xf32>
    %847 = arith.addf %846, %845 : vector<9x16xf32>
    %848 = arith.divf %846, %847 : vector<9x16xf32>
    %849 = vector.extract_strided_slice %842 {offsets = [0, 16], sizes = [9, 16], strides = [1, 1]} : vector<9x64xf32> to vector<9x16xf32>
    %850 = arith.negf %849 : vector<9x16xf32>
    %851 = math.exp %850 : vector<9x16xf32>
    %cst_298 = arith.constant 1.000000e+00 : f32
    %852 = vector.broadcast %cst_298 : f32 to vector<9x16xf32>
    %853 = arith.addf %852, %851 : vector<9x16xf32>
    %854 = arith.divf %852, %853 : vector<9x16xf32>
    %855 = vector.extract_strided_slice %842 {offsets = [0, 32], sizes = [9, 16], strides = [1, 1]} : vector<9x64xf32> to vector<9x16xf32>
    %856 = math.tanh %855 : vector<9x16xf32>
    %857 = vector.extract_strided_slice %842 {offsets = [0, 48], sizes = [9, 16], strides = [1, 1]} : vector<9x64xf32> to vector<9x16xf32>
    %858 = arith.negf %857 : vector<9x16xf32>
    %859 = math.exp %858 : vector<9x16xf32>
    %cst_299 = arith.constant 1.000000e+00 : f32
    %860 = vector.broadcast %cst_299 : f32 to vector<9x16xf32>
    %861 = arith.addf %860, %859 : vector<9x16xf32>
    %862 = arith.divf %860, %861 : vector<9x16xf32>
    %863 = arith.mulf %854, %835 : vector<9x16xf32>
    %864 = arith.mulf %848, %856 : vector<9x16xf32>
    %865 = arith.addf %863, %864 : vector<9x16xf32>
    %866 = math.tanh %865 : vector<9x16xf32>
    %867 = arith.mulf %862, %866 : vector<9x16xf32>
    %868 = vector.extract_strided_slice %867 {offsets = [8, 0], sizes = [1, 16], strides = [1, 1]} : vector<9x16xf32> to vector<1x16xf32>
    %c3_300 = arith.constant 3 : index
    %c0_301 = arith.constant 0 : index
    %c0_302 = arith.constant 0 : index
    %869 = vector.load %arg18[%c3_300, %c0_301, %c0_302] : memref<4x9x64xf32, #tpu.memory_space<vmem>>, vector<1x9x64xf32>
    %870 = vector.shape_cast %869 : vector<1x9x64xf32> to vector<9x64xf32>
    %cst_303 = arith.constant dense<0.000000e+00> : vector<9x64xf32>
    %871 = tpu.matmul %867, %776, %cst_303 {dimension_numbers = #tpu.dot_dimension_numbers<[1], [0], [0], [1], [0, 0, 1, 1], [], []>} : vector<9x16xf32>, vector<16x64xf32>, vector<9x64xf32> -> vector<9x64xf32>
    %872 = arith.addf %870, %871 : vector<9x64xf32>
    %873 = vector.extract_strided_slice %872 {offsets = [0, 0], sizes = [9, 16], strides = [1, 1]} : vector<9x64xf32> to vector<9x16xf32>
    %874 = arith.negf %873 : vector<9x16xf32>
    %875 = math.exp %874 : vector<9x16xf32>
    %cst_304 = arith.constant 1.000000e+00 : f32
    %876 = vector.broadcast %cst_304 : f32 to vector<9x16xf32>
    %877 = arith.addf %876, %875 : vector<9x16xf32>
    %878 = arith.divf %876, %877 : vector<9x16xf32>
    %879 = vector.extract_strided_slice %872 {offsets = [0, 16], sizes = [9, 16], strides = [1, 1]} : vector<9x64xf32> to vector<9x16xf32>
    %880 = arith.negf %879 : vector<9x16xf32>
    %881 = math.exp %880 : vector<9x16xf32>
    %cst_305 = arith.constant 1.000000e+00 : f32
    %882 = vector.broadcast %cst_305 : f32 to vector<9x16xf32>
    %883 = arith.addf %882, %881 : vector<9x16xf32>
    %884 = arith.divf %882, %883 : vector<9x16xf32>
    %885 = vector.extract_strided_slice %872 {offsets = [0, 32], sizes = [9, 16], strides = [1, 1]} : vector<9x64xf32> to vector<9x16xf32>
    %886 = math.tanh %885 : vector<9x16xf32>
    %887 = vector.extract_strided_slice %872 {offsets = [0, 48], sizes = [9, 16], strides = [1, 1]} : vector<9x64xf32> to vector<9x16xf32>
    %888 = arith.negf %887 : vector<9x16xf32>
    %889 = math.exp %888 : vector<9x16xf32>
    %cst_306 = arith.constant 1.000000e+00 : f32
    %890 = vector.broadcast %cst_306 : f32 to vector<9x16xf32>
    %891 = arith.addf %890, %889 : vector<9x16xf32>
    %892 = arith.divf %890, %891 : vector<9x16xf32>
    %893 = arith.mulf %884, %865 : vector<9x16xf32>
    %894 = arith.mulf %878, %886 : vector<9x16xf32>
    %895 = arith.addf %893, %894 : vector<9x16xf32>
    %896 = math.tanh %895 : vector<9x16xf32>
    %897 = arith.mulf %892, %896 : vector<9x16xf32>
    %898 = vector.extract_strided_slice %897 {offsets = [8, 0], sizes = [1, 16], strides = [1, 1]} : vector<9x16xf32> to vector<1x16xf32>
    %899 = tpu.concatenate %808, %838, %868, %898 in 0 : vector<1x16xf32>, vector<1x16xf32>, vector<1x16xf32>, vector<1x16xf32> -> vector<4x16xf32>
    %c0_307 = arith.constant 0 : index
    %c0_308 = arith.constant 0 : index
    %900 = vector.load %arg11[%c0_307, %c0_308] : memref<16x4xf32, #tpu.memory_space<vmem>>, vector<16x4xf32>
    %cst_309 = arith.constant dense<0.000000e+00> : vector<4x4xf32>
    %901 = tpu.matmul %899, %900, %cst_309 {dimension_numbers = #tpu.dot_dimension_numbers<[1], [0], [0], [1], [0, 0, 1, 1], [], []>} : vector<4x16xf32>, vector<16x4xf32>, vector<4x4xf32> -> vector<4x4xf32>
    %c8_310 = arith.constant 8 : index
    %c0_311 = arith.constant 0 : index
    %902 = vector.load %arg12[%c8_310, %c0_311] : memref<9x128xf32, #tpu.memory_space<vmem>>, vector<1x4xf32>
    %903 = vector.broadcast %902 : vector<1x4xf32> to vector<4x4xf32>
    %904 = arith.addf %901, %903 : vector<4x4xf32>
    %c0_312 = arith.constant 0 : index
    %c0_313 = arith.constant 0 : index
    %905 = vector.load %arg17[%c0_312, %c0_313] : memref<4x4xf32, #tpu.memory_space<vmem>>, vector<4x4xf32>
    tpu.vector_store %arg17[%c0_312, %c0_313], %904 {strides = array<i32>} : memref<4x4xf32, #tpu.memory_space<vmem>>, vector<4x4xf32>,
    return
  }
}

</mosaic_0001>

<llo_original>
// kernel: odevae_forward.1
$region0: #{odevae_forward.1}
  #allocation0 [shape = 'u32[]', space=smem, size = 0x4, offset = 0x4, fixed_abs, tag = 'smem constant byte address 0x4 - core index']
  #allocation1 [shape = 'u32[144,128]{1,0:T(1,128)}', space=vmem, size = 0x12000, scoped, tag = 'internal scratch']
  #allocation2 [shape = 'f32[4,9,64]{2,1,0:T(8,128)}', space=vmem, size = 0x8000, scoped, tag = 'scratch operand']
  %s0 = inlined_call_operand.vmem [shape: f32[32,8], index: 0, kind: input, shape index: {}]
  %s1 = inlined_call_operand.vmem [shape: f32[4,32], index: 1, kind: input, shape index: {}]
  %s2 = inlined_call_operand.vmem [shape: f32[8,96], index: 2, kind: input, shape index: {}]
  %s3 = inlined_call_operand.vmem [shape: f32[32,96], index: 3, kind: input, shape index: {}]
  %s4 = inlined_call_operand.vmem [shape: f32[32,64], index: 4, kind: input, shape index: {}]
  %s5 = inlined_call_operand.vmem [shape: f32[32,128], index: 5, kind: input, shape index: {}]
  %s6 = inlined_call_operand.vmem [shape: f32[128,32], index: 6, kind: input, shape index: {}]
  %s7 = inlined_call_operand.vmem [shape: f32[32,32], index: 7, kind: input, shape index: {}]
  %s8 = inlined_call_operand.vmem [shape: f32[32,8], index: 8, kind: input, shape index: {}]
  %s9 = inlined_call_operand.vmem [shape: f32[32,64], index: 9, kind: input, shape index: {}]
  %s10 = inlined_call_operand.vmem [shape: f32[16,64], index: 10, kind: input, shape index: {}]
  %s11 = inlined_call_operand.vmem [shape: f32[16,4], index: 11, kind: input, shape index: {}]
  %s12 = inlined_call_operand.vmem [shape: f32[9,128], index: 12, kind: input, shape index: {}]
  %s13 = inlined_call_operand.hbm [shape: f32[32,8], index: 13, kind: output, shape index: {0}]
  %s14 = inlined_call_operand.hbm [shape: f32[4,32], index: 14, kind: output, shape index: {1}]
  %s15 = inlined_call_operand.hbm [shape: f32[4,32], index: 15, kind: output, shape index: {2}]
  %s16 = inlined_call_operand.hbm [shape: f32[4,32], index: 16, kind: output, shape index: {3}]
  %s17 = inlined_call_operand.hbm [shape: f32[4,4], index: 17, kind: output, shape index: {4}]
  %18 = xla_tuple %s13, %s14, %s15, %s16, %s17
  %s19 = sld [smem:[#allocation0]]
  $region94: #{odevae_forward.1} parent=0
    _
  %s21 = ssub.s32 1, %s19
  %s22 = scalar_select 0, %s21, %s19
  $region1: #{odevae_forward.1} parent=0
    #allocation3 [shape = 'u8[16384]{0}', space=vmem, size = 0x4000, scoped, tag = 'output window, operand 0, single buffered']
    #allocation4 [shape = 's32[1]{0}', space=sflag, size = 0x4, scoped, tag = 'scoped memory for odevae_forward.1']
    #allocation5 [shape = 'u8[2048]{0}', space=vmem, size = 0x800, scoped, tag = 'output window, operand 1, single buffered']
    #allocation6 [shape = 's32[1]{0}', space=sflag, size = 0x4, scoped, tag = 'scoped memory for odevae_forward.1']
    #allocation7 [shape = 'u8[2048]{0}', space=vmem, size = 0x800, scoped, tag = 'output window, operand 2, single buffered']
    #allocation8 [shape = 'u8[2048]{0}', space=vmem, size = 0x800, scoped, tag = 'output window, operand 3, single buffered']
    #allocation9 [shape = 's32[1]{0}', space=sflag, size = 0x4, scoped, tag = 'scoped memory for odevae_forward.1']
    #allocation10 [shape = 'u8[2048]{0}', space=vmem, size = 0x800, scoped, tag = 'output window, operand 4, single buffered']
    %23 = vsyncpa [#allocation4], 0
    %24 = vsyncpa [#allocation6], 0
    %25 = vsyncpa [#allocation9], 0
    // Predicated region
    $region2: #{odevae_forward.1} parent=1 // pred_check
      _
    $region3: #{odevae_forward.1} parent=1 // pred_check_branch
      %27 = sbr.rel (0) target = $region5
    $region4: #{odevae_forward.1} parent=1 // pred_region
      _
    $region5: #{odevae_forward.1} parent=1 // pred_fallthru
      _
    // Predicated region
    $region6: #{odevae_forward.1} parent=1 // pred_check
      _
    $region7: #{odevae_forward.1} parent=1 // pred_check_branch
      %29 = sbr.rel (0) target = $region9
    $region8: #{odevae_forward.1} parent=1 // pred_region
      _
    $region9: #{odevae_forward.1} parent=1 // pred_fallthru
      _
    // Predicated region
    $region10: #{odevae_forward.1} parent=1 // pred_check
      _
    $region11: #{odevae_forward.1} parent=1 // pred_check_branch
      %31 = sbr.rel (0) target = $region13
    $region12: #{odevae_forward.1} parent=1 // pred_region
      _
    $region13: #{odevae_forward.1} parent=1 // pred_fallthru
      _
    // Predicated region
    $region14: #{odevae_forward.1} parent=1 // pred_check
      _
    $region15: #{odevae_forward.1} parent=1 // pred_check_branch
      %33 = sbr.rel (0) target = $region17
    $region16: #{odevae_forward.1} parent=1 // pred_region
      _
    $region17: #{odevae_forward.1} parent=1 // pred_fallthru
      _
    // Predicated region
    $region18: #{odevae_forward.1} parent=1 // pred_check
      _
    $region19: #{odevae_forward.1} parent=1 // pred_check_branch
      %35 = sbr.rel (0) target = $region21
    $region20: #{odevae_forward.1} parent=1 // pred_region
      _
    $region21: #{odevae_forward.1} parent=1 // pred_fallthru
      _
    // Predicated region
    $region22: #{odevae_forward.1} parent=1 // pred_check
      _
    $region23: #{odevae_forward.1} parent=1 // pred_check_branch
      %37 = sbr.rel (0) target = $region25
    $region24: #{odevae_forward.1} parent=1 // pred_region
      _
    $region25: #{odevae_forward.1} parent=1 // pred_fallthru
      _
    // Predicated region
    $region26: #{odevae_forward.1} parent=1 // pred_check
      _
    $region27: #{odevae_forward.1} parent=1 // pred_check_branch
      %39 = sbr.rel (0) target = $region29
    $region28: #{odevae_forward.1} parent=1 // pred_region
      _
    $region29: #{odevae_forward.1} parent=1 // pred_fallthru
      _
    // Predicated region
    $region30: #{odevae_forward.1} parent=1 // pred_check
      _
    $region31: #{odevae_forward.1} parent=1 // pred_check_branch
      %41 = sbr.rel (0) target = $region33
    $region32: #{odevae_forward.1} parent=1 // pred_region
      _
    $region33: #{odevae_forward.1} parent=1 // pred_fallthru
      _
    // Predicated region
    $region34: #{odevae_forward.1} parent=1 // pred_check
      _
    $region35: #{odevae_forward.1} parent=1 // pred_check_branch
      %43 = sbr.rel (0) target = $region37
    $region36: #{odevae_forward.1} parent=1 // pred_region
      _
    $region37: #{odevae_forward.1} parent=1 // pred_fallthru
      _
    // Predicated region
    $region38: #{odevae_forward.1} parent=1 // pred_check
      _
    $region39: #{odevae_forward.1} parent=1 // pred_check_branch
      %45 = sbr.rel (0) target = $region41
    $region40: #{odevae_forward.1} parent=1 // pred_region
      _
    $region41: #{odevae_forward.1} parent=1 // pred_fallthru
      _
    // Predicated region
    $region42: #{odevae_forward.1} parent=1 // pred_check
      _
    $region43: #{odevae_forward.1} parent=1 // pred_check_branch
      %47 = sbr.rel (0) target = $region45
    $region44: #{odevae_forward.1} parent=1 // pred_region
      _
    $region45: #{odevae_forward.1} parent=1 // pred_fallthru
      _
    // Predicated region
    $region46: #{odevae_forward.1} parent=1 // pred_check
      _
    $region47: #{odevae_forward.1} parent=1 // pred_check_branch
      %49 = sbr.rel (0) target = $region49
    $region48: #{odevae_forward.1} parent=1 // pred_region
      _
    $region49: #{odevae_forward.1} parent=1 // pred_fallthru
      _
    // Predicated region
    $region50: #{odevae_forward.1} parent=1 // pred_check
      _
    $region51: #{odevae_forward.1} parent=1 // pred_check_branch
      %51 = sbr.rel (0) target = $region53
    $region52: #{odevae_forward.1} parent=1 // pred_region
      _
    $region53: #{odevae_forward.1} parent=1 // pred_fallthru
      _
    %v52 = vld [vmem:[%s0] sm:$0xff]
    %v53 = vld [vmem:[%s0 + $0x8] sm:$0xff]
    %v54 = vld [vmem:[%s0 + $0x10] sm:$0xff]
    %v55 = vld [vmem:[%s0 + $0x18] sm:$0xff]
    %v56 = vld [vmem:[%s2] sm:$0xff]
    %v57 = vld [vmem:[%s12] sm:$0x1]
    %v58 = vlaneseq
    %v59 = vshrl.u32 %v58, 7
    %v60 = vsub.s32 0, %v59
    %v61 = vrot.slane %v57, %v60
    %vm62 = vcmask 64512
    %v64 = vsel %vm62, %v52, 0
    %v67 = vsel %vm62, %v53, 0
    %v70 = vsel %vm62, %v54, 0
    %v73 = vsel %vm62, %v55, 0
    %75 = vmatprep.subr.mxu0 0.0
    %76 = vmatpush1.msra.mxu0 %v56
    %77 = vmatprep.subr.mxu0 0.0
    %78 = vmatpush1.msra.mxu0 0.0
    %79 = vmatprep.subr.mxu0 0.0
    %80 = vmatpush1.msra.mxu0 0.0
    %81 = vmatprep.subr.mxu0 0.0
    %82 = vmatpush1.msra.mxu0 0.0
    %83 = vmatprep.subr.mxu0 0.0
    %84 = vmatpush1.msra.mxu0 0.0
    %85 = vmatprep.subr.mxu0 0.0
    %86 = vmatpush1.msra.mxu0 0.0
    %87 = vmatprep.subr.mxu0 0.0
    %88 = vmatpush1.msra.mxu0 0.0
    %89 = vmatprep.subr.mxu0 0.0
    %90 = vmatpush1.msra.mxu0 0.0
    %91 = vmatprep.subr.mxu0 0.0
    %92 = vmatpush1.msra.mxu0 0.0
    %93 = vmatprep.subr.mxu0 0.0
    %94 = vmatpush1.msra.mxu0 0.0
    %95 = vmatprep.subr.mxu0 0.0
    %96 = vmatpush1.msra.mxu0 0.0
    %97 = vmatprep.subr.mxu0 0.0
    %98 = vmatpush1.msra.mxu0 0.0
    %99 = vmatprep.subr.mxu0 0.0
    %100 = vmatpush1.msra.mxu0 0.0
    %101 = vmatprep.subr.mxu0 0.0
    %102 = vmatpush1.msra.mxu0 0.0
    %103 = vmatprep.subr.mxu0 0.0
    %104 = vmatpush1.msra.mxu0 0.0
    %105 = vmatprep.subr.mxu0 0.0
    %106 = vmatpush1.msra.mxu0 0.0
    %107 = vmatprep.subr.mxu0 0.0
    %108 = vmatpush1.msra.mxu0 0.0
    %109 = vmatprep.subr.mxu0 0.0
    %110 = vmatpush1.msra.mxu0 0.0
    %111 = vmatprep.subr.mxu0 0.0
    %112 = vmatpush1.msra.mxu0 0.0
    %113 = vmatprep.subr.mxu0 0.0
    %114 = vmatpush1.msra.mxu0 0.0
    %115 = vmatprep.subr.mxu0 0.0
    %116 = vmatpush1.msra.mxu0 0.0
    %117 = vmatprep.subr.mxu0 0.0
    %118 = vmatpush1.msra.mxu0 0.0
    %119 = vmatprep.subr.mxu0 0.0
    %120 = vmatpush1.msra.mxu0 0.0
    %121 = vmatprep.subr.mxu0 0.0
    %122 = vmatpush1.msra.mxu0 0.0
    %123 = vmatprep.subr.mxu0 0.0
    %124 = vmatpush1.msra.mxu0 0.0
    %125 = vmatprep.subr.mxu0 0.0
    %126 = vmatpush1.msra.mxu0 0.0
    %127 = vmatprep.subr.mxu0 0.0
    %128 = vmatpush1.msra.mxu0 0.0
    %129 = vmatprep.subr.mxu0 0.0
    %130 = vmatpush1.msra.mxu0 0.0
    %131 = vmatprep.subr.mxu0 0.0
    %132 = vmatpush1.msra.mxu0 0.0
    %133 = vmatprep.subr.mxu0 0.0
    %134 = vmatpush1.msra.mxu0 0.0
    %135 = vmatprep.subr.mxu0 0.0
    %136 = vmatpush1.msra.mxu0 0.0
    %137 = vmatprep.subr.mxu0 0.0
    %138 = vmatpush1.msra.mxu0 0.0
    %139 = vmatprep.mubr.f32.mxu0 0.0
    %140 = vmatmul.mubr.f32.gmra.mrb[0].mxu0 %v64
    %v141 = vpop.f32.mrb[0].mxu0
    %v142 = vadd.f32 %v61, %v141
    %v143 = vpop.f32.mrb[0].mxu0
    %144 = vmatprep.mubr.f32.mxu0 0.0
    %145 = vmatmul.mubr.f32.gmra.mrb[0].mxu0 %v67
    %v146 = vpop.f32.mrb[0].mxu0
    %v147 = vadd.f32 %v61, %v146
    %v148 = vpop.f32.mrb[0].mxu0
    %149 = vmatprep.mubr.f32.mxu0 0.0
    %150 = vmatmul.mubr.f32.gmra.mrb[0].mxu0 %v70
    %v151 = vpop.f32.mrb[0].mxu0
    %v152 = vadd.f32 %v61, %v151
    %v153 = vpop.f32.mrb[0].mxu0
    %154 = vmatprep.mubr.f32.mxu0 0.0
    %155 = vmatmul.mubr.f32.gmra.mrb[0].mxu0 %v73
    %v156 = vpop.f32.mrb[0].mxu0
    %v157 = vadd.f32 %v61, %v156
    %v158 = vpop.f32.mrb[0].mxu0
    %159 = vdwg.mxu0
    %v160 = vld [vmem:[%s3] sm:$0xff]
    %v161 = vld [vmem:[%s3 + $0x8] sm:$0xff]
    %v162 = vld [vmem:[%s3 + $0x10] sm:$0xff]
    %v163 = vld [vmem:[%s3 + $0x18] sm:$0xff]
    %v164 = vld [vmem:[%s12 + $0x1] sm:$0x1]
    %v165 = vlaneseq
    %v166 = vshrl.u32 %v165, 7
    %v167 = vsub.s32 0, %v166
    %v168 = vrot.slane %v164, %v167
    %vm169 = vcmask 261120
    %v171 = vsel %vm169, 0.0, 0
    %173 = vmatprep.subr.mxu0 0.0
    %174 = vmatpush1.msra.mxu0 %v160
    %175 = vmatprep.subr.mxu0 0.0
    %176 = vmatpush1.msra.mxu0 %v161
    %177 = vmatprep.subr.mxu0 0.0
    %178 = vmatpush1.msra.mxu0 %v162
    %179 = vmatprep.subr.mxu0 0.0
    %180 = vmatpush1.msra.mxu0 %v163
    %181 = vmatprep.subr.mxu0 0.0
    %182 = vmatpush1.msra.mxu0 0.0
    %183 = vmatprep.subr.mxu0 0.0
    %184 = vmatpush1.msra.mxu0 0.0
    %185 = vmatprep.subr.mxu0 0.0
    %186 = vmatpush1.msra.mxu0 0.0
    %187 = vmatprep.subr.mxu0 0.0
    %188 = vmatpush1.msra.mxu0 0.0
    %189 = vmatprep.subr.mxu0 0.0
    %190 = vmatpush1.msra.mxu0 0.0
    %191 = vmatprep.subr.mxu0 0.0
    %192 = vmatpush1.msra.mxu0 0.0
    %193 = vmatprep.subr.mxu0 0.0
    %194 = vmatpush1.msra.mxu0 0.0
    %195 = vmatprep.subr.mxu0 0.0
    %196 = vmatpush1.msra.mxu0 0.0
    %197 = vmatprep.subr.mxu0 0.0
    %198 = vmatpush1.msra.mxu0 0.0
    %199 = vmatprep.subr.mxu0 0.0
    %200 = vmatpush1.msra.mxu0 0.0
    %201 = vmatprep.subr.mxu0 0.0
    %202 = vmatpush1.msra.mxu0 0.0
    %203 = vmatprep.subr.mxu0 0.0
    %204 = vmatpush1.msra.mxu0 0.0
    %205 = vmatprep.subr.mxu0 0.0
    %206 = vmatpush1.msra.mxu0 0.0
    %207 = vmatprep.subr.mxu0 0.0
    %208 = vmatpush1.msra.mxu0 0.0
    %209 = vmatprep.subr.mxu0 0.0
    %210 = vmatpush1.msra.mxu0 0.0
    %211 = vmatprep.subr.mxu0 0.0
    %212 = vmatpush1.msra.mxu0 0.0
    %213 = vmatprep.subr.mxu0 0.0
    %214 = vmatpush1.msra.mxu0 0.0
    %215 = vmatprep.subr.mxu0 0.0
    %216 = vmatpush1.msra.mxu0 0.0
    %217 = vmatprep.subr.mxu0 0.0
    %218 = vmatpush1.msra.mxu0 0.0
    %219 = vmatprep.subr.mxu0 0.0
    %220 = vmatpush1.msra.mxu0 0.0
    %221 = vmatprep.subr.mxu0 0.0
    %222 = vmatpush1.msra.mxu0 0.0
    %223 = vmatprep.subr.mxu0 0.0
    %224 = vmatpush1.msra.mxu0 0.0
    %225 = vmatprep.subr.mxu0 0.0
    %226 = vmatpush1.msra.mxu0 0.0
    %227 = vmatprep.subr.mxu0 0.0
    %228 = vmatpush1.msra.mxu0 0.0
    %229 = vmatprep.subr.mxu0 0.0
    %230 = vmatpush1.msra.mxu0 0.0
    %231 = vmatprep.subr.mxu0 0.0
    %232 = vmatpush1.msra.mxu0 0.0
    %233 = vmatprep.subr.mxu0 0.0
    %234 = vmatpush1.msra.mxu0 0.0
    %235 = vmatprep.subr.mxu0 0.0
    %236 = vmatpush1.msra.mxu0 0.0
    %237 = vmatprep.mubr.f32.mxu0 0.0
    %238 = vmatmul.mubr.f32.gmra.mrb[0].mxu0 %v171
    %v239 = vpop.f32.mrb[0].mxu0
    %v240 = vadd.f32 0.0, %v239
    %v241 = vpop.f32.mrb[0].mxu0
    %242 = vdwg.mxu0
    %v243 = vadd.f32 %v142, %v240
    %v244 = vxor.u32 %v243, 2147483648
    %v245 = vmul.f32 %v244, 1.442695
    %v246 = vpow.pop %v245
    %v247 = vadd.f32 %v246, 1.0
    %v248 = vrcp.pop %v247
    %v249 = vmul.f32 1.0, %v248
    %251 = vrot.lane.b32.xlu0 %v168, 64
    %v252 = vpop.permute.xlu0 %251
    %v254 = vadd.f32 %v240, %v252
    %256 = vrot.lane.b32.xlu0 %v254, 64
    %v257 = vpop.permute.xlu0 %256
    %v259 = vmul.f32 %v249, %v257
    %261 = vrot.lane.b32.xlu0 %v259, 64
    %v262 = vpop.permute.xlu0 %261
    %v264 = vadd.f32 %v142, %v262
    %v265 = vtanh.pop %v264
    %v266 = vsub.f32 1.0, %v249
    %268 = vrot.lane.b32.xlu0 %v265, 96
    %v269 = vpop.permute.xlu0 %268
    %v271 = vmul.f32 %v266, %v269
    %v272 = vmul.f32 %v249, 0.0
    %v273 = vadd.f32 %v271, %v272
    %275 = vrot.lane.b32.xlu0 %v273, 96
    %v276 = vpop.permute.xlu0 %275
    %v277 = vsel %vm169, %v276, 0
    %279 = vmatprep.subr.mxu0 0.0
    %280 = vmatpush1.msra.mxu0 %v160
    %281 = vmatprep.subr.mxu0 0.0
    %282 = vmatpush1.msra.mxu0 %v161
    %283 = vmatprep.subr.mxu0 0.0
    %284 = vmatpush1.msra.mxu0 %v162
    %285 = vmatprep.subr.mxu0 0.0
    %286 = vmatpush1.msra.mxu0 %v163
    %287 = vmatprep.subr.mxu0 0.0
    %288 = vmatpush1.msra.mxu0 0.0
    %289 = vmatprep.subr.mxu0 0.0
    %290 = vmatpush1.msra.mxu0 0.0
    %291 = vmatprep.subr.mxu0 0.0
    %292 = vmatpush1.msra.mxu0 0.0
    %293 = vmatprep.subr.mxu0 0.0
    %294 = vmatpush1.msra.mxu0 0.0
    %295 = vmatprep.subr.mxu0 0.0
    %296 = vmatpush1.msra.mxu0 0.0
    %297 = vmatprep.subr.mxu0 0.0
    %298 = vmatpush1.msra.mxu0 0.0
    %299 = vmatprep.subr.mxu0 0.0
    %300 = vmatpush1.msra.mxu0 0.0
    %301 = vmatprep.subr.mxu0 0.0
    %302 = vmatpush1.msra.mxu0 0.0
    %303 = vmatprep.subr.mxu0 0.0
    %304 = vmatpush1.msra.mxu0 0.0
    %305 = vmatprep.subr.mxu0 0.0
    %306 = vmatpush1.msra.mxu0 0.0
    %307 = vmatprep.subr.mxu0 0.0
    %308 = vmatpush1.msra.mxu0 0.0
    %309 = vmatprep.subr.mxu0 0.0
    %310 = vmatpush1.msra.mxu0 0.0
    %311 = vmatprep.subr.mxu0 0.0
    %312 = vmatpush1.msra.mxu0 0.0
    %313 = vmatprep.subr.mxu0 0.0
    %314 = vmatpush1.msra.mxu0 0.0
    %315 = vmatprep.subr.mxu0 0.0
    %316 = vmatpush1.msra.mxu0 0.0
    %317 = vmatprep.subr.mxu0 0.0
    %318 = vmatpush1.msra.mxu0 0.0
    %319 = vmatprep.subr.mxu0 0.0
    %320 = vmatpush1.msra.mxu0 0.0
    %321 = vmatprep.subr.mxu0 0.0
    %322 = vmatpush1.msra.mxu0 0.0
    %323 = vmatprep.subr.mxu0 0.0
    %324 = vmatpush1.msra.mxu0 0.0
    %325 = vmatprep.subr.mxu0 0.0
    %326 = vmatpush1.msra.mxu0 0.0
    %327 = vmatprep.subr.mxu0 0.0
    %328 = vmatpush1.msra.mxu0 0.0
    %329 = vmatprep.subr.mxu0 0.0
    %330 = vmatpush1.msra.mxu0 0.0
    %331 = vmatprep.subr.mxu0 0.0
    %332 = vmatpush1.msra.mxu0 0.0
    %333 = vmatprep.subr.mxu0 0.0
    %334 = vmatpush1.msra.mxu0 0.0
    %335 = vmatprep.subr.mxu0 0.0
    %336 = vmatpush1.msra.mxu0 0.0
    %337 = vmatprep.subr.mxu0 0.0
    %338 = vmatpush1.msra.mxu0 0.0
    %339 = vmatprep.subr.mxu0 0.0
    %340 = vmatpush1.msra.mxu0 0.0
    %341 = vmatprep.subr.mxu0 0.0
    %342 = vmatpush1.msra.mxu0 0.0
    %343 = vmatprep.mubr.f32.mxu0 0.0
    %344 = vmatmul.mubr.f32.gmra.mrb[0].mxu0 %v277
    %v345 = vpop.f32.mrb[0].mxu0
    %v346 = vadd.f32 0.0, %v345
    %v347 = vpop.f32.mrb[0].mxu0
    %348 = vdwg.mxu0
    %v350 = vrot.slane %v346, 4
    %v352 = vadd.f32 %v142, %v350
    %v353 = vxor.u32 %v352, 2147483648
    %v354 = vmul.f32 %v353, 1.442695
    %v355 = vpow.pop %v354
    %v356 = vadd.f32 %v355, 1.0
    %v357 = vrcp.pop %v356
    %v358 = vmul.f32 1.0, %v357
    %v359 = vadd.f32 %v346, %v252
    %v361 = vrot.slane %v359, 4
    %362 = vrot.lane.b32.xlu0 %v361, 64
    %v363 = vpop.permute.xlu0 %362
    %v365 = vmul.f32 %v358, %v363
    %367 = vrot.lane.b32.xlu0 %v365, 64
    %v368 = vpop.permute.xlu0 %367
    %v370 = vadd.f32 %v142, %v368
    %v371 = vtanh.pop %v370
    %v372 = vsub.f32 1.0, %v358
    %374 = vrot.lane.b32.xlu0 %v371, 96
    %v375 = vpop.permute.xlu0 %374
    %v377 = vmul.f32 %v372, %v375
    %v378 = vrot.slane %v273, 4
    %v380 = vmul.f32 %v358, %v378
    %v381 = vadd.f32 %v377, %v380
    %v383 = vrot.slane %v381, 4
    %384 = vrot.lane.b32.xlu0 %v383, 96
    %v385 = vpop.permute.xlu0 %384
    %v386 = vsel %vm169, %v385, 0
    %388 = vmatprep.subr.mxu0 0.0
    %389 = vmatpush1.msra.mxu0 %v160
    %390 = vmatprep.subr.mxu0 0.0
    %391 = vmatpush1.msra.mxu0 %v161
    %392 = vmatprep.subr.mxu0 0.0
    %393 = vmatpush1.msra.mxu0 %v162
    %394 = vmatprep.subr.mxu0 0.0
    %395 = vmatpush1.msra.mxu0 %v163
    %396 = vmatprep.subr.mxu0 0.0
    %397 = vmatpush1.msra.mxu0 0.0
    %398 = vmatprep.subr.mxu0 0.0
    %399 = vmatpush1.msra.mxu0 0.0
    %400 = vmatprep.subr.mxu0 0.0
    %401 = vmatpush1.msra.mxu0 0.0
    %402 = vmatprep.subr.mxu0 0.0
    %403 = vmatpush1.msra.mxu0 0.0
    %404 = vmatprep.subr.mxu0 0.0
    %405 = vmatpush1.msra.mxu0 0.0
    %406 = vmatprep.subr.mxu0 0.0
    %407 = vmatpush1.msra.mxu0 0.0
    %408 = vmatprep.subr.mxu0 0.0
    %409 = vmatpush1.msra.mxu0 0.0
    %410 = vmatprep.subr.mxu0 0.0
    %411 = vmatpush1.msra.mxu0 0.0
    %412 = vmatprep.subr.mxu0 0.0
    %413 = vmatpush1.msra.mxu0 0.0
    %414 = vmatprep.subr.mxu0 0.0
    %415 = vmatpush1.msra.mxu0 0.0
    %416 = vmatprep.subr.mxu0 0.0
    %417 = vmatpush1.msra.mxu0 0.0
    %418 = vmatprep.subr.mxu0 0.0
    %419 = vmatpush1.msra.mxu0 0.0
    %420 = vmatprep.subr.mxu0 0.0
    %421 = vmatpush1.msra.mxu0 0.0
    %422 = vmatprep.subr.mxu0 0.0
    %423 = vmatpush1.msra.mxu0 0.0
    %424 = vmatprep.subr.mxu0 0.0
    %425 = vmatpush1.msra.mxu0 0.0
    %426 = vmatprep.subr.mxu0 0.0
    %427 = vmatpush1.msra.mxu0 0.0
    %428 = vmatprep.subr.mxu0 0.0
    %429 = vmatpush1.msra.mxu0 0.0
    %430 = vmatprep.subr.mxu0 0.0
    %431 = vmatpush1.msra.mxu0 0.0
    %432 = vmatprep.subr.mxu0 0.0
    %433 = vmatpush1.msra.mxu0 0.0
    %434 = vmatprep.subr.mxu0 0.0
    %435 = vmatpush1.msra.mxu0 0.0
    %436 = vmatprep.subr.mxu0 0.0
    %437 = vmatpush1.msra.mxu0 0.0
    %438 = vmatprep.subr.mxu0 0.0
    %439 = vmatpush1.msra.mxu0 0.0
    %440 = vmatprep.subr.mxu0 0.0
    %441 = vmatpush1.msra.mxu0 0.0
    %442 = vmatprep.subr.mxu0 0.0
    %443 = vmatpush1.msra.mxu0 0.0
    %444 = vmatprep.subr.mxu0 0.0
    %445 = vmatpush1.msra.mxu0 0.0
    %446 = vmatprep.subr.mxu0 0.0
    %447 = vmatpush1.msra.mxu0 0.0
    %448 = vmatprep.subr.mxu0 0.0
    %449 = vmatpush1.msra.mxu0 0.0
    %450 = vmatprep.subr.mxu0 0.0
    %451 = vmatpush1.msra.mxu0 0.0
    %452 = vmatprep.mubr.f32.mxu0 0.0
    %453 = vmatmul.mubr.f32.gmra.mrb[0].mxu0 %v386
    %v454 = vpop.f32.mrb[0].mxu0
    %v455 = vadd.f32 0.0, %v454
    %v456 = vpop.f32.mrb[0].mxu0
    %457 = vdwg.mxu0
    %v458 = vadd.f32 %v147, %v455
    %v459 = vxor.u32 %v458, 2147483648
    %v460 = vmul.f32 %v459, 1.442695
    %v461 = vpow.pop %v460
    %v462 = vadd.f32 %v461, 1.0
    %v463 = vrcp.pop %v462
    %v464 = vmul.f32 1.0, %v463
    %v465 = vadd.f32 %v455, %v252
    %467 = vrot.lane.b32.xlu0 %v465, 64
    %v468 = vpop.permute.xlu0 %467
    %v470 = vmul.f32 %v464, %v468
    %472 = vrot.lane.b32.xlu0 %v470, 64
    %v473 = vpop.permute.xlu0 %472
    %v475 = vadd.f32 %v147, %v473
    %v476 = vtanh.pop %v475
    %v477 = vsub.f32 1.0, %v464
    %479 = vrot.lane.b32.xlu0 %v476, 96
    %v480 = vpop.permute.xlu0 %479
    %v482 = vmul.f32 %v477, %v480
    %v484 = vmul.f32 %v464, %v383
    %v485 = vadd.f32 %v482, %v484
    %487 = vrot.lane.b32.xlu0 %v485, 96
    %v488 = vpop.permute.xlu0 %487
    %v489 = vsel %vm169, %v488, 0
    %491 = vmatprep.subr.mxu0 0.0
    %492 = vmatpush1.msra.mxu0 %v160
    %493 = vmatprep.subr.mxu0 0.0
    %494 = vmatpush1.msra.mxu0 %v161
    %495 = vmatprep.subr.mxu0 0.0
    %496 = vmatpush1.msra.mxu0 %v162
    %497 = vmatprep.subr.mxu0 0.0
    %498 = vmatpush1.msra.mxu0 %v163
    %499 = vmatprep.subr.mxu0 0.0
    %500 = vmatpush1.msra.mxu0 0.0
    %501 = vmatprep.subr.mxu0 0.0
    %502 = vmatpush1.msra.mxu0 0.0
    %503 = vmatprep.subr.mxu0 0.0
    %504 = vmatpush1.msra.mxu0 0.0
    %505 = vmatprep.subr.mxu0 0.0
    %506 = vmatpush1.msra.mxu0 0.0
    %507 = vmatprep.subr.mxu0 0.0
    %508 = vmatpush1.msra.mxu0 0.0
    %509 = vmatprep.subr.mxu0 0.0
    %510 = vmatpush1.msra.mxu0 0.0
    %511 = vmatprep.subr.mxu0 0.0
    %512 = vmatpush1.msra.mxu0 0.0
    %513 = vmatprep.subr.mxu0 0.0
    %514 = vmatpush1.msra.mxu0 0.0
    %515 = vmatprep.subr.mxu0 0.0
    %516 = vmatpush1.msra.mxu0 0.0
    %517 = vmatprep.subr.mxu0 0.0
    %518 = vmatpush1.msra.mxu0 0.0
    %519 = vmatprep.subr.mxu0 0.0
    %520 = vmatpush1.msra.mxu0 0.0
    %521 = vmatprep.subr.mxu0 0.0
    %522 = vmatpush1.msra.mxu0 0.0
    %523 = vmatprep.subr.mxu0 0.0
    %524 = vmatpush1.msra.mxu0 0.0
    %525 = vmatprep.subr.mxu0 0.0
    %526 = vmatpush1.msra.mxu0 0.0
    %527 = vmatprep.subr.mxu0 0.0
    %528 = vmatpush1.msra.mxu0 0.0
    %529 = vmatprep.subr.mxu0 0.0
    %530 = vmatpush1.msra.mxu0 0.0
    %531 = vmatprep.subr.mxu0 0.0
    %532 = vmatpush1.msra.mxu0 0.0
    %533 = vmatprep.subr.mxu0 0.0
    %534 = vmatpush1.msra.mxu0 0.0
    %535 = vmatprep.subr.mxu0 0.0
    %536 = vmatpush1.msra.mxu0 0.0
    %537 = vmatprep.subr.mxu0 0.0
    %538 = vmatpush1.msra.mxu0 0.0
    %539 = vmatprep.subr.mxu0 0.0
    %540 = vmatpush1.msra.mxu0 0.0
    %541 = vmatprep.subr.mxu0 0.0
    %542 = vmatpush1.msra.mxu0 0.0
    %543 = vmatprep.subr.mxu0 0.0
    %544 = vmatpush1.msra.mxu0 0.0
    %545 = vmatprep.subr.mxu0 0.0
    %546 = vmatpush1.msra.mxu0 0.0
    %547 = vmatprep.subr.mxu0 0.0
    %548 = vmatpush1.msra.mxu0 0.0
    %549 = vmatprep.subr.mxu0 0.0
    %550 = vmatpush1.msra.mxu0 0.0
    %551 = vmatprep.subr.mxu0 0.0
    %552 = vmatpush1.msra.mxu0 0.0
    %553 = vmatprep.subr.mxu0 0.0
    %554 = vmatpush1.msra.mxu0 0.0
    %555 = vmatprep.mubr.f32.mxu0 0.0
    %556 = vmatmul.mubr.f32.gmra.mrb[0].mxu0 %v489
    %v557 = vpop.f32.mrb[0].mxu0
    %v558 = vadd.f32 0.0, %v557
    %v559 = vpop.f32.mrb[0].mxu0
    %560 = vdwg.mxu0
    %v562 = vrot.slane %v558, 4
    %v564 = vadd.f32 %v147, %v562
    %v565 = vxor.u32 %v564, 2147483648
    %v566 = vmul.f32 %v565, 1.442695
    %v567 = vpow.pop %v566
    %v568 = vadd.f32 %v567, 1.0
    %v569 = vrcp.pop %v568
    %v570 = vmul.f32 1.0, %v569
    %v571 = vadd.f32 %v558, %v252
    %v573 = vrot.slane %v571, 4
    %574 = vrot.lane.b32.xlu0 %v573, 64
    %v575 = vpop.permute.xlu0 %574
    %v577 = vmul.f32 %v570, %v575
    %579 = vrot.lane.b32.xlu0 %v577, 64
    %v580 = vpop.permute.xlu0 %579
    %v582 = vadd.f32 %v147, %v580
    %v583 = vtanh.pop %v582
    %v584 = vsub.f32 1.0, %v570
    %586 = vrot.lane.b32.xlu0 %v583, 96
    %v587 = vpop.permute.xlu0 %586
    %v589 = vmul.f32 %v584, %v587
    %v590 = vrot.slane %v485, 4
    %v592 = vmul.f32 %v570, %v590
    %v593 = vadd.f32 %v589, %v592
    %v595 = vrot.slane %v593, 4
    %596 = vrot.lane.b32.xlu0 %v595, 96
    %v597 = vpop.permute.xlu0 %596
    %v598 = vsel %vm169, %v597, 0
    %600 = vmatprep.subr.mxu0 0.0
    %601 = vmatpush1.msra.mxu0 %v160
    %602 = vmatprep.subr.mxu0 0.0
    %603 = vmatpush1.msra.mxu0 %v161
    %604 = vmatprep.subr.mxu0 0.0
    %605 = vmatpush1.msra.mxu0 %v162
    %606 = vmatprep.subr.mxu0 0.0
    %607 = vmatpush1.msra.mxu0 %v163
    %608 = vmatprep.subr.mxu0 0.0
    %609 = vmatpush1.msra.mxu0 0.0
    %610 = vmatprep.subr.mxu0 0.0
    %611 = vmatpush1.msra.mxu0 0.0
    %612 = vmatprep.subr.mxu0 0.0
    %613 = vmatpush1.msra.mxu0 0.0
    %614 = vmatprep.subr.mxu0 0.0
    %615 = vmatpush1.msra.mxu0 0.0
    %616 = vmatprep.subr.mxu0 0.0
    %617 = vmatpush1.msra.mxu0 0.0
    %618 = vmatprep.subr.mxu0 0.0
    %619 = vmatpush1.msra.mxu0 0.0
    %620 = vmatprep.subr.mxu0 0.0
    %621 = vmatpush1.msra.mxu0 0.0
    %622 = vmatprep.subr.mxu0 0.0
    %623 = vmatpush1.msra.mxu0 0.0
    %624 = vmatprep.subr.mxu0 0.0
    %625 = vmatpush1.msra.mxu0 0.0
    %626 = vmatprep.subr.mxu0 0.0
    %627 = vmatpush1.msra.mxu0 0.0
    %628 = vmatprep.subr.mxu0 0.0
    %629 = vmatpush1.msra.mxu0 0.0
    %630 = vmatprep.subr.mxu0 0.0
    %631 = vmatpush1.msra.mxu0 0.0
    %632 = vmatprep.subr.mxu0 0.0
    %633 = vmatpush1.msra.mxu0 0.0
    %634 = vmatprep.subr.mxu0 0.0
    %635 = vmatpush1.msra.mxu0 0.0
    %636 = vmatprep.subr.mxu0 0.0
    %637 = vmatpush1.msra.mxu0 0.0
    %638 = vmatprep.subr.mxu0 0.0
    %639 = vmatpush1.msra.mxu0 0.0
    %640 = vmatprep.subr.mxu0 0.0
    %641 = vmatpush1.msra.mxu0 0.0
    %642 = vmatprep.subr.mxu0 0.0
    %643 = vmatpush1.msra.mxu0 0.0
    %644 = vmatprep.subr.mxu0 0.0
    %645 = vmatpush1.msra.mxu0 0.0
    %646 = vmatprep.subr.mxu0 0.0
    %647 = vmatpush1.msra.mxu0 0.0
    %648 = vmatprep.subr.mxu0 0.0
    %649 = vmatpush1.msra.mxu0 0.0
    %650 = vmatprep.subr.mxu0 0.0
    %651 = vmatpush1.msra.mxu0 0.0
    %652 = vmatprep.subr.mxu0 0.0
    %653 = vmatpush1.msra.mxu0 0.0
    %654 = vmatprep.subr.mxu0 0.0
    %655 = vmatpush1.msra.mxu0 0.0
    %656 = vmatprep.subr.mxu0 0.0
    %657 = vmatpush1.msra.mxu0 0.0
    %658 = vmatprep.subr.mxu0 0.0
    %659 = vmatpush1.msra.mxu0 0.0
    %660 = vmatprep.subr.mxu0 0.0
    %661 = vmatpush1.msra.mxu0 0.0
    %662 = vmatprep.subr.mxu0 0.0
    %663 = vmatpush1.msra.mxu0 0.0
    %664 = vmatprep.mubr.f32.mxu0 0.0
    %665 = vmatmul.mubr.f32.gmra.mrb[0].mxu0 %v598
    %v666 = vpop.f32.mrb[0].mxu0
    %v667 = vadd.f32 0.0, %v666
    %v668 = vpop.f32.mrb[0].mxu0
    %669 = vdwg.mxu0
    %v670 = vadd.f32 %v152, %v667
    %v671 = vxor.u32 %v670, 2147483648
    %v672 = vmul.f32 %v671, 1.442695
    %v673 = vpow.pop %v672
    %v674 = vadd.f32 %v673, 1.0
    %v675 = vrcp.pop %v674
    %v676 = vmul.f32 1.0, %v675
    %v677 = vadd.f32 %v667, %v252
    %679 = vrot.lane.b32.xlu0 %v677, 64
    %v680 = vpop.permute.xlu0 %679
    %v682 = vmul.f32 %v676, %v680
    %684 = vrot.lane.b32.xlu0 %v682, 64
    %v685 = vpop.permute.xlu0 %684
    %v687 = vadd.f32 %v152, %v685
    %v688 = vtanh.pop %v687
    %v689 = vsub.f32 1.0, %v676
    %691 = vrot.lane.b32.xlu0 %v688, 96
    %v692 = vpop.permute.xlu0 %691
    %v694 = vmul.f32 %v689, %v692
    %v696 = vmul.f32 %v676, %v595
    %v697 = vadd.f32 %v694, %v696
    %699 = vrot.lane.b32.xlu0 %v697, 96
    %v700 = vpop.permute.xlu0 %699
    %v701 = vsel %vm169, %v700, 0
    %703 = vmatprep.subr.mxu0 0.0
    %704 = vmatpush1.msra.mxu0 %v160
    %705 = vmatprep.subr.mxu0 0.0
    %706 = vmatpush1.msra.mxu0 %v161
    %707 = vmatprep.subr.mxu0 0.0
    %708 = vmatpush1.msra.mxu0 %v162
    %709 = vmatprep.subr.mxu0 0.0
    %710 = vmatpush1.msra.mxu0 %v163
    %711 = vmatprep.subr.mxu0 0.0
    %712 = vmatpush1.msra.mxu0 0.0
    %713 = vmatprep.subr.mxu0 0.0
    %714 = vmatpush1.msra.mxu0 0.0
    %715 = vmatprep.subr.mxu0 0.0
    %716 = vmatpush1.msra.mxu0 0.0
    %717 = vmatprep.subr.mxu0 0.0
    %718 = vmatpush1.msra.mxu0 0.0
    %719 = vmatprep.subr.mxu0 0.0
    %720 = vmatpush1.msra.mxu0 0.0
    %721 = vmatprep.subr.mxu0 0.0
    %722 = vmatpush1.msra.mxu0 0.0
    %723 = vmatprep.subr.mxu0 0.0
    %724 = vmatpush1.msra.mxu0 0.0
    %725 = vmatprep.subr.mxu0 0.0
    %726 = vmatpush1.msra.mxu0 0.0
    %727 = vmatprep.subr.mxu0 0.0
    %728 = vmatpush1.msra.mxu0 0.0
    %729 = vmatprep.subr.mxu0 0.0
    %730 = vmatpush1.msra.mxu0 0.0
    %731 = vmatprep.subr.mxu0 0.0
    %732 = vmatpush1.msra.mxu0 0.0
    %733 = vmatprep.subr.mxu0 0.0
    %734 = vmatpush1.msra.mxu0 0.0
    %735 = vmatprep.subr.mxu0 0.0
    %736 = vmatpush1.msra.mxu0 0.0
    %737 = vmatprep.subr.mxu0 0.0
    %738 = vmatpush1.msra.mxu0 0.0
    %739 = vmatprep.subr.mxu0 0.0
    %740 = vmatpush1.msra.mxu0 0.0
    %741 = vmatprep.subr.mxu0 0.0
    %742 = vmatpush1.msra.mxu0 0.0
    %743 = vmatprep.subr.mxu0 0.0
    %744 = vmatpush1.msra.mxu0 0.0
    %745 = vmatprep.subr.mxu0 0.0
    %746 = vmatpush1.msra.mxu0 0.0
    %747 = vmatprep.subr.mxu0 0.0
    %748 = vmatpush1.msra.mxu0 0.0
    %749 = vmatprep.subr.mxu0 0.0
    %750 = vmatpush1.msra.mxu0 0.0
    %751 = vmatprep.subr.mxu0 0.0
    %752 = vmatpush1.msra.mxu0 0.0
    %753 = vmatprep.subr.mxu0 0.0
    %754 = vmatpush1.msra.mxu0 0.0
    %755 = vmatprep.subr.mxu0 0.0
    %756 = vmatpush1.msra.mxu0 0.0
    %757 = vmatprep.subr.mxu0 0.0
    %758 = vmatpush1.msra.mxu0 0.0
    %759 = vmatprep.subr.mxu0 0.0
    %760 = vmatpush1.msra.mxu0 0.0
    %761 = vmatprep.subr.mxu0 0.0
    %762 = vmatpush1.msra.mxu0 0.0
    %763 = vmatprep.subr.mxu0 0.0
    %764 = vmatpush1.msra.mxu0 0.0
    %765 = vmatprep.subr.mxu0 0.0
    %766 = vmatpush1.msra.mxu0 0.0
    %767 = vmatprep.mubr.f32.mxu0 0.0
    %768 = vmatmul.mubr.f32.gmra.mrb[0].mxu0 %v701
    %v769 = vpop.f32.mrb[0].mxu0
    %v770 = vadd.f32 0.0, %v769
    %v771 = vpop.f32.mrb[0].mxu0
    %772 = vdwg.mxu0
    %v774 = vrot.slane %v770, 4
    %v776 = vadd.f32 %v152, %v774
    %v777 = vxor.u32 %v776, 2147483648
    %v778 = vmul.f32 %v777, 1.442695
    %v779 = vpow.pop %v778
    %v780 = vadd.f32 %v779, 1.0
    %v781 = vrcp.pop %v780
    %v782 = vmul.f32 1.0, %v781
    %v783 = vadd.f32 %v770, %v252
    %v785 = vrot.slane %v783, 4
    %786 = vrot.lane.b32.xlu0 %v785, 64
    %v787 = vpop.permute.xlu0 %786
    %v789 = vmul.f32 %v782, %v787
    %791 = vrot.lane.b32.xlu0 %v789, 64
    %v792 = vpop.permute.xlu0 %791
    %v794 = vadd.f32 %v152, %v792
    %v795 = vtanh.pop %v794
    %v796 = vsub.f32 1.0, %v782
    %798 = vrot.lane.b32.xlu0 %v795, 96
    %v799 = vpop.permute.xlu0 %798
    %v801 = vmul.f32 %v796, %v799
    %v802 = vrot.slane %v697, 4
    %v804 = vmul.f32 %v782, %v802
    %v805 = vadd.f32 %v801, %v804
    %v807 = vrot.slane %v805, 4
    %808 = vrot.lane.b32.xlu0 %v807, 96
    %v809 = vpop.permute.xlu0 %808
    %v810 = vsel %vm169, %v809, 0
    %812 = vmatprep.subr.mxu0 0.0
    %813 = vmatpush1.msra.mxu0 %v160
    %814 = vmatprep.subr.mxu0 0.0
    %815 = vmatpush1.msra.mxu0 %v161
    %816 = vmatprep.subr.mxu0 0.0
    %817 = vmatpush1.msra.mxu0 %v162
    %818 = vmatprep.subr.mxu0 0.0
    %819 = vmatpush1.msra.mxu0 %v163
    %820 = vmatprep.subr.mxu0 0.0
    %821 = vmatpush1.msra.mxu0 0.0
    %822 = vmatprep.subr.mxu0 0.0
    %823 = vmatpush1.msra.mxu0 0.0
    %824 = vmatprep.subr.mxu0 0.0
    %825 = vmatpush1.msra.mxu0 0.0
    %826 = vmatprep.subr.mxu0 0.0
    %827 = vmatpush1.msra.mxu0 0.0
    %828 = vmatprep.subr.mxu0 0.0
    %829 = vmatpush1.msra.mxu0 0.0
    %830 = vmatprep.subr.mxu0 0.0
    %831 = vmatpush1.msra.mxu0 0.0
    %832 = vmatprep.subr.mxu0 0.0
    %833 = vmatpush1.msra.mxu0 0.0
    %834 = vmatprep.subr.mxu0 0.0
    %835 = vmatpush1.msra.mxu0 0.0
    %836 = vmatprep.subr.mxu0 0.0
    %837 = vmatpush1.msra.mxu0 0.0
    %838 = vmatprep.subr.mxu0 0.0
    %839 = vmatpush1.msra.mxu0 0.0
    %840 = vmatprep.subr.mxu0 0.0
    %841 = vmatpush1.msra.mxu0 0.0
    %842 = vmatprep.subr.mxu0 0.0
    %843 = vmatpush1.msra.mxu0 0.0
    %844 = vmatprep.subr.mxu0 0.0
    %845 = vmatpush1.msra.mxu0 0.0
    %846 = vmatprep.subr.mxu0 0.0
    %847 = vmatpush1.msra.mxu0 0.0
    %848 = vmatprep.subr.mxu0 0.0
    %849 = vmatpush1.msra.mxu0 0.0
    %850 = vmatprep.subr.mxu0 0.0
    %851 = vmatpush1.msra.mxu0 0.0
    %852 = vmatprep.subr.mxu0 0.0
    %853 = vmatpush1.msra.mxu0 0.0
    %854 = vmatprep.subr.mxu0 0.0
    %855 = vmatpush1.msra.mxu0 0.0
    %856 = vmatprep.subr.mxu0 0.0
    %857 = vmatpush1.msra.mxu0 0.0
    %858 = vmatprep.subr.mxu0 0.0
    %859 = vmatpush1.msra.mxu0 0.0
    %860 = vmatprep.subr.mxu0 0.0
    %861 = vmatpush1.msra.mxu0 0.0
    %862 = vmatprep.subr.mxu0 0.0
    %863 = vmatpush1.msra.mxu0 0.0
    %864 = vmatprep.subr.mxu0 0.0
    %865 = vmatpush1.msra.mxu0 0.0
    %866 = vmatprep.subr.mxu0 0.0
    %867 = vmatpush1.msra.mxu0 0.0
    %868 = vmatprep.subr.mxu0 0.0
    %869 = vmatpush1.msra.mxu0 0.0
    %870 = vmatprep.subr.mxu0 0.0
    %871 = vmatpush1.msra.mxu0 0.0
    %872 = vmatprep.subr.mxu0 0.0
    %873 = vmatpush1.msra.mxu0 0.0
    %874 = vmatprep.subr.mxu0 0.0
    %875 = vmatpush1.msra.mxu0 0.0
    %876 = vmatprep.mubr.f32.mxu0 0.0
    %877 = vmatmul.mubr.f32.gmra.mrb[0].mxu0 %v810
    %v878 = vpop.f32.mrb[0].mxu0
    %v879 = vadd.f32 0.0, %v878
    %v880 = vpop.f32.mrb[0].mxu0
    %881 = vdwg.mxu0
    %v882 = vadd.f32 %v157, %v879
    %v883 = vxor.u32 %v882, 2147483648
    %v884 = vmul.f32 %v883, 1.442695
    %v885 = vpow.pop %v884
    %v886 = vadd.f32 %v885, 1.0
    %v887 = vrcp.pop %v886
    %v888 = vmul.f32 1.0, %v887
    %v889 = vadd.f32 %v879, %v252
    %891 = vrot.lane.b32.xlu0 %v889, 64
    %v892 = vpop.permute.xlu0 %891
    %v894 = vmul.f32 %v888, %v892
    %896 = vrot.lane.b32.xlu0 %v894, 64
    %v897 = vpop.permute.xlu0 %896
    %v899 = vadd.f32 %v157, %v897
    %v900 = vtanh.pop %v899
    %v901 = vsub.f32 1.0, %v888
    %903 = vrot.lane.b32.xlu0 %v900, 96
    %v904 = vpop.permute.xlu0 %903
    %v906 = vmul.f32 %v901, %v904
    %v908 = vmul.f32 %v888, %v807
    %v909 = vadd.f32 %v906, %v908
    %911 = vrot.lane.b32.xlu0 %v909, 96
    %v912 = vpop.permute.xlu0 %911
    %v913 = vsel %vm169, %v912, 0
    %915 = vmatprep.subr.mxu0 0.0
    %916 = vmatpush1.msra.mxu0 %v160
    %917 = vmatprep.subr.mxu0 0.0
    %918 = vmatpush1.msra.mxu0 %v161
    %919 = vmatprep.subr.mxu0 0.0
    %920 = vmatpush1.msra.mxu0 %v162
    %921 = vmatprep.subr.mxu0 0.0
    %922 = vmatpush1.msra.mxu0 %v163
    %923 = vmatprep.subr.mxu0 0.0
    %924 = vmatpush1.msra.mxu0 0.0
    %925 = vmatprep.subr.mxu0 0.0
    %926 = vmatpush1.msra.mxu0 0.0
    %927 = vmatprep.subr.mxu0 0.0
    %928 = vmatpush1.msra.mxu0 0.0
    %929 = vmatprep.subr.mxu0 0.0
    %930 = vmatpush1.msra.mxu0 0.0
    %931 = vmatprep.subr.mxu0 0.0
    %932 = vmatpush1.msra.mxu0 0.0
    %933 = vmatprep.subr.mxu0 0.0
    %934 = vmatpush1.msra.mxu0 0.0
    %935 = vmatprep.subr.mxu0 0.0
    %936 = vmatpush1.msra.mxu0 0.0
    %937 = vmatprep.subr.mxu0 0.0
    %938 = vmatpush1.msra.mxu0 0.0
    %939 = vmatprep.subr.mxu0 0.0
    %940 = vmatpush1.msra.mxu0 0.0
    %941 = vmatprep.subr.mxu0 0.0
    %942 = vmatpush1.msra.mxu0 0.0
    %943 = vmatprep.subr.mxu0 0.0
    %944 = vmatpush1.msra.mxu0 0.0
    %945 = vmatprep.subr.mxu0 0.0
    %946 = vmatpush1.msra.mxu0 0.0
    %947 = vmatprep.subr.mxu0 0.0
    %948 = vmatpush1.msra.mxu0 0.0
    %949 = vmatprep.subr.mxu0 0.0
    %950 = vmatpush1.msra.mxu0 0.0
    %951 = vmatprep.subr.mxu0 0.0
    %952 = vmatpush1.msra.mxu0 0.0
    %953 = vmatprep.subr.mxu0 0.0
    %954 = vmatpush1.msra.mxu0 0.0
    %955 = vmatprep.subr.mxu0 0.0
    %956 = vmatpush1.msra.mxu0 0.0
    %957 = vmatprep.subr.mxu0 0.0
    %958 = vmatpush1.msra.mxu0 0.0
    %959 = vmatprep.subr.mxu0 0.0
    %960 = vmatpush1.msra.mxu0 0.0
    %961 = vmatprep.subr.mxu0 0.0
    %962 = vmatpush1.msra.mxu0 0.0
    %963 = vmatprep.subr.mxu0 0.0
    %964 = vmatpush1.msra.mxu0 0.0
    %965 = vmatprep.subr.mxu0 0.0
    %966 = vmatpush1.msra.mxu0 0.0
    %967 = vmatprep.subr.mxu0 0.0
    %968 = vmatpush1.msra.mxu0 0.0
    %969 = vmatprep.subr.mxu0 0.0
    %970 = vmatpush1.msra.mxu0 0.0
    %971 = vmatprep.subr.mxu0 0.0
    %972 = vmatpush1.msra.mxu0 0.0
    %973 = vmatprep.subr.mxu0 0.0
    %974 = vmatpush1.msra.mxu0 0.0
    %975 = vmatprep.subr.mxu0 0.0
    %976 = vmatpush1.msra.mxu0 0.0
    %977 = vmatprep.subr.mxu0 0.0
    %978 = vmatpush1.msra.mxu0 0.0
    %979 = vmatprep.mubr.f32.mxu0 0.0
    %980 = vmatmul.mubr.f32.gmra.mrb[0].mxu0 %v913
    %v981 = vpop.f32.mrb[0].mxu0
    %v982 = vadd.f32 0.0, %v981
    %v983 = vpop.f32.mrb[0].mxu0
    %984 = vdwg.mxu0
    %v986 = vrot.slane %v982, 4
    %v988 = vadd.f32 %v157, %v986
    %v989 = vxor.u32 %v988, 2147483648
    %v990 = vmul.f32 %v989, 1.442695
    %v991 = vpow.pop %v990
    %v992 = vadd.f32 %v991, 1.0
    %v993 = vrcp.pop %v992
    %v994 = vmul.f32 1.0, %v993
    %v995 = vadd.f32 %v982, %v252
    %v997 = vrot.slane %v995, 4
    %998 = vrot.lane.b32.xlu0 %v997, 64
    %v999 = vpop.permute.xlu0 %998
    %v1001 = vmul.f32 %v994, %v999
    %1003 = vrot.lane.b32.xlu0 %v1001, 64
    %v1004 = vpop.permute.xlu0 %1003
    %v1006 = vadd.f32 %v157, %v1004
    %v1007 = vtanh.pop %v1006
    %v1008 = vsub.f32 1.0, %v994
    %1010 = vrot.lane.b32.xlu0 %v1007, 96
    %v1011 = vpop.permute.xlu0 %1010
    %v1013 = vmul.f32 %v1008, %v1011
    %v1014 = vrot.slane %v909, 4
    %v1016 = vmul.f32 %v994, %v1014
    %v1017 = vadd.f32 %v1013, %v1016
    %v1018 = vld [vmem:[%s4] sm:$0xff]
    %v1019 = vld [vmem:[%s4 + $0x8] sm:$0xff]
    %v1020 = vld [vmem:[%s4 + $0x10] sm:$0xff]
    %v1021 = vld [vmem:[%s4 + $0x18] sm:$0xff]
    %v1022 = vld [vmem:[%s12 + $0x2] sm:$0x1]
    %v1023 = vlaneseq
    %v1024 = vshrl.u32 %v1023, 7
    %v1025 = vsub.s32 0, %v1024
    %v1026 = vrot.slane %v1022, %v1025
    %v1028 = vrot.slane %v1017, 4
    %1029 = vrot.lane.b32.xlu0 %v1028, 96
    %v1030 = vpop.permute.xlu0 %1029
    %v1031 = vsel %vm169, %v1030, 0
    %1033 = vmatprep.subr.mxu0 0.0
    %1034 = vmatpush1.msra.mxu0 %v1018
    %1035 = vmatprep.subr.mxu0 0.0
    %1036 = vmatpush1.msra.mxu0 %v1019
    %1037 = vmatprep.subr.mxu0 0.0
    %1038 = vmatpush1.msra.mxu0 %v1020
    %1039 = vmatprep.subr.mxu0 0.0
    %1040 = vmatpush1.msra.mxu0 %v1021
    %1041 = vmatprep.subr.mxu0 0.0
    %1042 = vmatpush1.msra.mxu0 0.0
    %1043 = vmatprep.subr.mxu0 0.0
    %1044 = vmatpush1.msra.mxu0 0.0
    %1045 = vmatprep.subr.mxu0 0.0
    %1046 = vmatpush1.msra.mxu0 0.0
    %1047 = vmatprep.subr.mxu0 0.0
    %1048 = vmatpush1.msra.mxu0 0.0
    %1049 = vmatprep.subr.mxu0 0.0
    %1050 = vmatpush1.msra.mxu0 0.0
    %1051 = vmatprep.subr.mxu0 0.0
    %1052 = vmatpush1.msra.mxu0 0.0
    %1053 = vmatprep.subr.mxu0 0.0
    %1054 = vmatpush1.msra.mxu0 0.0
    %1055 = vmatprep.subr.mxu0 0.0
    %1056 = vmatpush1.msra.mxu0 0.0
    %1057 = vmatprep.subr.mxu0 0.0
    %1058 = vmatpush1.msra.mxu0 0.0
    %1059 = vmatprep.subr.mxu0 0.0
    %1060 = vmatpush1.msra.mxu0 0.0
    %1061 = vmatprep.subr.mxu0 0.0
    %1062 = vmatpush1.msra.mxu0 0.0
    %1063 = vmatprep.subr.mxu0 0.0
    %1064 = vmatpush1.msra.mxu0 0.0
    %1065 = vmatprep.subr.mxu0 0.0
    %1066 = vmatpush1.msra.mxu0 0.0
    %1067 = vmatprep.subr.mxu0 0.0
    %1068 = vmatpush1.msra.mxu0 0.0
    %1069 = vmatprep.subr.mxu0 0.0
    %1070 = vmatpush1.msra.mxu0 0.0
    %1071 = vmatprep.subr.mxu0 0.0
    %1072 = vmatpush1.msra.mxu0 0.0
    %1073 = vmatprep.subr.mxu0 0.0
    %1074 = vmatpush1.msra.mxu0 0.0
    %1075 = vmatprep.subr.mxu0 0.0
    %1076 = vmatpush1.msra.mxu0 0.0
    %1077 = vmatprep.subr.mxu0 0.0
    %1078 = vmatpush1.msra.mxu0 0.0
    %1079 = vmatprep.subr.mxu0 0.0
    %1080 = vmatpush1.msra.mxu0 0.0
    %1081 = vmatprep.subr.mxu0 0.0
    %1082 = vmatpush1.msra.mxu0 0.0
    %1083 = vmatprep.subr.mxu0 0.0
    %1084 = vmatpush1.msra.mxu0 0.0
    %1085 = vmatprep.subr.mxu0 0.0
    %1086 = vmatpush1.msra.mxu0 0.0
    %1087 = vmatprep.subr.mxu0 0.0
    %1088 = vmatpush1.msra.mxu0 0.0
    %1089 = vmatprep.subr.mxu0 0.0
    %1090 = vmatpush1.msra.mxu0 0.0
    %1091 = vmatprep.subr.mxu0 0.0
    %1092 = vmatpush1.msra.mxu0 0.0
    %1093 = vmatprep.subr.mxu0 0.0
    %1094 = vmatpush1.msra.mxu0 0.0
    %1095 = vmatprep.subr.mxu0 0.0
    %1096 = vmatpush1.msra.mxu0 0.0
    %1097 = vmatprep.mubr.f32.mxu0 0.0
    %1098 = vmatmul.mubr.f32.gmra.mrb[0].mxu0 %v1031
    %v1099 = vpop.f32.mrb[0].mxu0
    %v1100 = vadd.f32 %v1026, %v1099
    %v1101 = vpop.f32.mrb[0].mxu0
    %1102 = vdwg.mxu0
    %v1103 = vld [vmem:[%s1] sm:$0xf]
    %v1104 = vmul.f32 %v1100, 0.5
    %v1105 = vmul.f32 %v1104, 1.442695
    %v1106 = vpow.pop %v1105
    %1108 = vrot.lane.b32.xlu0 %v1106, 96
    %v1109 = vpop.permute.xlu0 %1108
    %v1111 = vmul.f32 %v1103, %v1109
    %v1112 = vadd.f32 %v1100, %v1111
    %vm1113 = vcmask 257024
    %1114 = vst.msk [vmem:[#allocation7] sm:$0xf] %vm1113, %v1100
    %1116 = vrot.lane.b32.xlu0 %v1100, 96
    %v1117 = vpop.permute.xlu0 %1116
    %1119 = vst.msk [vmem:[#allocation8] sm:$0xf] %vm1113, %v1117
    %1120 = vst.msk [vmem:[#allocation5] sm:$0xf] %vm1113, %v1112
    %v1121 = vld [vmem:[%s5] sm:$0xff]
    %v1122 = vld [vmem:[%s5 + $0x8] sm:$0xff]
    %v1123 = vld [vmem:[%s5 + $0x10] sm:$0xff]
    %v1124 = vld [vmem:[%s5 + $0x18] sm:$0xff]
    %v1125 = vld [vmem:[%s6] sm:$0xff]
    %v1126 = vld [vmem:[%s6 + $0x8] sm:$0xff]
    %v1127 = vld [vmem:[%s6 + $0x10] sm:$0xff]
    %v1128 = vld [vmem:[%s6 + $0x18] sm:$0xff]
    %v1129 = vld [vmem:[%s6 + $0x20] sm:$0xff]
    %v1130 = vld [vmem:[%s6 + $0x28] sm:$0xff]
    %v1131 = vld [vmem:[%s6 + $0x30] sm:$0xff]
    %v1132 = vld [vmem:[%s6 + $0x38] sm:$0xff]
    %v1133 = vld [vmem:[%s6 + $0x40] sm:$0xff]
    %v1134 = vld [vmem:[%s6 + $0x48] sm:$0xff]
    %v1135 = vld [vmem:[%s6 + $0x50] sm:$0xff]
    %v1136 = vld [vmem:[%s6 + $0x58] sm:$0xff]
    %v1137 = vld [vmem:[%s6 + $0x60] sm:$0xff]
    %v1138 = vld [vmem:[%s6 + $0x68] sm:$0xff]
    %v1139 = vld [vmem:[%s6 + $0x70] sm:$0xff]
    %v1140 = vld [vmem:[%s6 + $0x78] sm:$0xff]
    %v1141 = vld [vmem:[%s12 + $0x3] sm:$0x1]
    %v1142 = vlaneseq
    %v1143 = vshrl.u32 %v1142, 7
    %v1144 = vsub.s32 0, %v1143
    %v1145 = vrot.slane %v1141, %v1144
    %v1146 = vld [vmem:[%s12 + $0x4] sm:$0x1]
    %v1147 = vlaneseq
    %v1148 = vshrl.u32 %v1147, 7
    %v1149 = vsub.s32 0, %v1148
    %v1150 = vrot.slane %v1146, %v1149
    %v1152 = vsel %vm169, %v1112, 0
    %1154 = vmatprep.subr.mxu0 0.0
    %1155 = vmatpush1.msra.mxu0 %v1121
    %1156 = vmatprep.subr.mxu0 0.0
    %1157 = vmatpush1.msra.mxu0 %v1122
    %1158 = vmatprep.subr.mxu0 0.0
    %1159 = vmatpush1.msra.mxu0 %v1123
    %1160 = vmatprep.subr.mxu0 0.0
    %1161 = vmatpush1.msra.mxu0 %v1124
    %1162 = vmatprep.subr.mxu0 0.0
    %1163 = vmatpush1.msra.mxu0 0.0
    %1164 = vmatprep.subr.mxu0 0.0
    %1165 = vmatpush1.msra.mxu0 0.0
    %1166 = vmatprep.subr.mxu0 0.0
    %1167 = vmatpush1.msra.mxu0 0.0
    %1168 = vmatprep.subr.mxu0 0.0
    %1169 = vmatpush1.msra.mxu0 0.0
    %1170 = vmatprep.subr.mxu0 0.0
    %1171 = vmatpush1.msra.mxu0 0.0
    %1172 = vmatprep.subr.mxu0 0.0
    %1173 = vmatpush1.msra.mxu0 0.0
    %1174 = vmatprep.subr.mxu0 0.0
    %1175 = vmatpush1.msra.mxu0 0.0
    %1176 = vmatprep.subr.mxu0 0.0
    %1177 = vmatpush1.msra.mxu0 0.0
    %1178 = vmatprep.subr.mxu0 0.0
    %1179 = vmatpush1.msra.mxu0 0.0
    %1180 = vmatprep.subr.mxu0 0.0
    %1181 = vmatpush1.msra.mxu0 0.0
    %1182 = vmatprep.subr.mxu0 0.0
    %1183 = vmatpush1.msra.mxu0 0.0
    %1184 = vmatprep.subr.mxu0 0.0
    %1185 = vmatpush1.msra.mxu0 0.0
    %1186 = vmatprep.subr.mxu0 0.0
    %1187 = vmatpush1.msra.mxu0 0.0
    %1188 = vmatprep.subr.mxu0 0.0
    %1189 = vmatpush1.msra.mxu0 0.0
    %1190 = vmatprep.subr.mxu0 0.0
    %1191 = vmatpush1.msra.mxu0 0.0
    %1192 = vmatprep.subr.mxu0 0.0
    %1193 = vmatpush1.msra.mxu0 0.0
    %1194 = vmatprep.subr.mxu0 0.0
    %1195 = vmatpush1.msra.mxu0 0.0
    %1196 = vmatprep.subr.mxu0 0.0
    %1197 = vmatpush1.msra.mxu0 0.0
    %1198 = vmatprep.subr.mxu0 0.0
    %1199 = vmatpush1.msra.mxu0 0.0
    %1200 = vmatprep.subr.mxu0 0.0
    %1201 = vmatpush1.msra.mxu0 0.0
    %1202 = vmatprep.subr.mxu0 0.0
    %1203 = vmatpush1.msra.mxu0 0.0
    %1204 = vmatprep.subr.mxu0 0.0
    %1205 = vmatpush1.msra.mxu0 0.0
    %1206 = vmatprep.subr.mxu0 0.0
    %1207 = vmatpush1.msra.mxu0 0.0
    %1208 = vmatprep.subr.mxu0 0.0
    %1209 = vmatpush1.msra.mxu0 0.0
    %1210 = vmatprep.subr.mxu0 0.0
    %1211 = vmatpush1.msra.mxu0 0.0
    %1212 = vmatprep.subr.mxu0 0.0
    %1213 = vmatpush1.msra.mxu0 0.0
    %1214 = vmatprep.subr.mxu0 0.0
    %1215 = vmatpush1.msra.mxu0 0.0
    %1216 = vmatprep.subr.mxu0 0.0
    %1217 = vmatpush1.msra.mxu0 0.0
    %1218 = vmatprep.mubr.f32.mxu0 0.0
    %1219 = vmatmul.mubr.f32.gmra.mrb[0].mxu0 %v1152
    %v1220 = vpop.f32.mrb[0].mxu0
    %v1221 = vadd.f32 %v1145, %v1220
    %v1222 = vpop.f32.mrb[0].mxu0
    %1223 = vdwg.mxu0
    %vm1224 = vcmp.gt.f32.partialorder %v1221, 0.0
    %v1225 = vmin.f32 %v1221, 0.0
    %v1226 = vmul.f32 %v1225, 1.442695
    %v1227 = vpow.pop %v1226
    %v1228 = vsub.f32 %v1227, 1.0
    %v1229 = vsel %vm1224, %v1221, %v1228
    %1230 = vmatprep.subr.mxu0 0.0
    %1231 = vmatpush1.msra.mxu0 %v1125
    %1232 = vmatprep.subr.mxu0 0.0
    %1233 = vmatpush1.msra.mxu0 %v1126
    %1234 = vmatprep.subr.mxu0 0.0
    %1235 = vmatpush1.msra.mxu0 %v1127
    %1236 = vmatprep.subr.mxu0 0.0
    %1237 = vmatpush1.msra.mxu0 %v1128
    %1238 = vmatprep.subr.mxu0 0.0
    %1239 = vmatpush1.msra.mxu0 %v1129
    %1240 = vmatprep.subr.mxu0 0.0
    %1241 = vmatpush1.msra.mxu0 %v1130
    %1242 = vmatprep.subr.mxu0 0.0
    %1243 = vmatpush1.msra.mxu0 %v1131
    %1244 = vmatprep.subr.mxu0 0.0
    %1245 = vmatpush1.msra.mxu0 %v1132
    %1246 = vmatprep.subr.mxu0 0.0
    %1247 = vmatpush1.msra.mxu0 %v1133
    %1248 = vmatprep.subr.mxu0 0.0
    %1249 = vmatpush1.msra.mxu0 %v1134
    %1250 = vmatprep.subr.mxu0 0.0
    %1251 = vmatpush1.msra.mxu0 %v1135
    %1252 = vmatprep.subr.mxu0 0.0
    %1253 = vmatpush1.msra.mxu0 %v1136
    %1254 = vmatprep.subr.mxu0 0.0
    %1255 = vmatpush1.msra.mxu0 %v1137
    %1256 = vmatprep.subr.mxu0 0.0
    %1257 = vmatpush1.msra.mxu0 %v1138
    %1258 = vmatprep.subr.mxu0 0.0
    %1259 = vmatpush1.msra.mxu0 %v1139
    %1260 = vmatprep.subr.mxu0 0.0
    %1261 = vmatpush1.msra.mxu0 %v1140
    %1262 = vmatprep.subr.mxu0 0.0
    %1263 = vmatpush1.msra.mxu0 0.0
    %1264 = vmatprep.subr.mxu0 0.0
    %1265 = vmatpush1.msra.mxu0 0.0
    %1266 = vmatprep.subr.mxu0 0.0
    %1267 = vmatpush1.msra.mxu0 0.0
    %1268 = vmatprep.subr.mxu0 0.0
    %1269 = vmatpush1.msra.mxu0 0.0
    %1270 = vmatprep.subr.mxu0 0.0
    %1271 = vmatpush1.msra.mxu0 0.0
    %1272 = vmatprep.subr.mxu0 0.0
    %1273 = vmatpush1.msra.mxu0 0.0
    %1274 = vmatprep.subr.mxu0 0.0
    %1275 = vmatpush1.msra.mxu0 0.0
    %1276 = vmatprep.subr.mxu0 0.0
    %1277 = vmatpush1.msra.mxu0 0.0
    %1278 = vmatprep.subr.mxu0 0.0
    %1279 = vmatpush1.msra.mxu0 0.0
    %1280 = vmatprep.subr.mxu0 0.0
    %1281 = vmatpush1.msra.mxu0 0.0
    %1282 = vmatprep.subr.mxu0 0.0
    %1283 = vmatpush1.msra.mxu0 0.0
    %1284 = vmatprep.subr.mxu0 0.0
    %1285 = vmatpush1.msra.mxu0 0.0
    %1286 = vmatprep.subr.mxu0 0.0
    %1287 = vmatpush1.msra.mxu0 0.0
    %1288 = vmatprep.subr.mxu0 0.0
    %1289 = vmatpush1.msra.mxu0 0.0
    %1290 = vmatprep.subr.mxu0 0.0
    %1291 = vmatpush1.msra.mxu0 0.0
    %1292 = vmatprep.subr.mxu0 0.0
    %1293 = vmatpush1.msra.mxu0 0.0
    %1294 = vmatprep.mubr.f32.mxu0 0.0
    %1295 = vmatmul.mubr.f32.gmra.mrb[0].mxu0 %v1229
    %v1296 = vpop.f32.mrb[0].mxu0
    %v1297 = vadd.f32 %v1150, %v1296
    %v1298 = vpop.f32.mrb[0].mxu0
    %1299 = vdwg.mxu0
    %v1300 = vmul.f32 %v1297, 0.071428575
    %v1301 = vadd.f32 %v1112, %v1300
    %v1303 = vsel %vm169, %v1301, 0
    %1305 = vmatprep.subr.mxu0 0.0
    %1306 = vmatpush1.msra.mxu0 %v1121
    %1307 = vmatprep.subr.mxu0 0.0
    %1308 = vmatpush1.msra.mxu0 %v1122
    %1309 = vmatprep.subr.mxu0 0.0
    %1310 = vmatpush1.msra.mxu0 %v1123
    %1311 = vmatprep.subr.mxu0 0.0
    %1312 = vmatpush1.msra.mxu0 %v1124
    %1313 = vmatprep.subr.mxu0 0.0
    %1314 = vmatpush1.msra.mxu0 0.0
    %1315 = vmatprep.subr.mxu0 0.0
    %1316 = vmatpush1.msra.mxu0 0.0
    %1317 = vmatprep.subr.mxu0 0.0
    %1318 = vmatpush1.msra.mxu0 0.0
    %1319 = vmatprep.subr.mxu0 0.0
    %1320 = vmatpush1.msra.mxu0 0.0
    %1321 = vmatprep.subr.mxu0 0.0
    %1322 = vmatpush1.msra.mxu0 0.0
    %1323 = vmatprep.subr.mxu0 0.0
    %1324 = vmatpush1.msra.mxu0 0.0
    %1325 = vmatprep.subr.mxu0 0.0
    %1326 = vmatpush1.msra.mxu0 0.0
    %1327 = vmatprep.subr.mxu0 0.0
    %1328 = vmatpush1.msra.mxu0 0.0
    %1329 = vmatprep.subr.mxu0 0.0
    %1330 = vmatpush1.msra.mxu0 0.0
    %1331 = vmatprep.subr.mxu0 0.0
    %1332 = vmatpush1.msra.mxu0 0.0
    %1333 = vmatprep.subr.mxu0 0.0
    %1334 = vmatpush1.msra.mxu0 0.0
    %1335 = vmatprep.subr.mxu0 0.0
    %1336 = vmatpush1.msra.mxu0 0.0
    %1337 = vmatprep.subr.mxu0 0.0
    %1338 = vmatpush1.msra.mxu0 0.0
    %1339 = vmatprep.subr.mxu0 0.0
    %1340 = vmatpush1.msra.mxu0 0.0
    %1341 = vmatprep.subr.mxu0 0.0
    %1342 = vmatpush1.msra.mxu0 0.0
    %1343 = vmatprep.subr.mxu0 0.0
    %1344 = vmatpush1.msra.mxu0 0.0
    %1345 = vmatprep.subr.mxu0 0.0
    %1346 = vmatpush1.msra.mxu0 0.0
    %1347 = vmatprep.subr.mxu0 0.0
    %1348 = vmatpush1.msra.mxu0 0.0
    %1349 = vmatprep.subr.mxu0 0.0
    %1350 = vmatpush1.msra.mxu0 0.0
    %1351 = vmatprep.subr.mxu0 0.0
    %1352 = vmatpush1.msra.mxu0 0.0
    %1353 = vmatprep.subr.mxu0 0.0
    %1354 = vmatpush1.msra.mxu0 0.0
    %1355 = vmatprep.subr.mxu0 0.0
    %1356 = vmatpush1.msra.mxu0 0.0
    %1357 = vmatprep.subr.mxu0 0.0
    %1358 = vmatpush1.msra.mxu0 0.0
    %1359 = vmatprep.subr.mxu0 0.0
    %1360 = vmatpush1.msra.mxu0 0.0
    %1361 = vmatprep.subr.mxu0 0.0
    %1362 = vmatpush1.msra.mxu0 0.0
    %1363 = vmatprep.subr.mxu0 0.0
    %1364 = vmatpush1.msra.mxu0 0.0
    %1365 = vmatprep.subr.mxu0 0.0
    %1366 = vmatpush1.msra.mxu0 0.0
    %1367 = vmatprep.subr.mxu0 0.0
    %1368 = vmatpush1.msra.mxu0 0.0
    %1369 = vmatprep.mubr.f32.mxu0 0.0
    %1370 = vmatmul.mubr.f32.gmra.mrb[0].mxu0 %v1303
    %v1371 = vpop.f32.mrb[0].mxu0
    %v1372 = vadd.f32 %v1145, %v1371
    %v1373 = vpop.f32.mrb[0].mxu0
    %1374 = vdwg.mxu0
    %vm1375 = vcmp.gt.f32.partialorder %v1372, 0.0
    %v1376 = vmin.f32 %v1372, 0.0
    %v1377 = vmul.f32 %v1376, 1.442695
    %v1378 = vpow.pop %v1377
    %v1379 = vsub.f32 %v1378, 1.0
    %v1380 = vsel %vm1375, %v1372, %v1379
    %1381 = vmatprep.subr.mxu0 0.0
    %1382 = vmatpush1.msra.mxu0 %v1125
    %1383 = vmatprep.subr.mxu0 0.0
    %1384 = vmatpush1.msra.mxu0 %v1126
    %1385 = vmatprep.subr.mxu0 0.0
    %1386 = vmatpush1.msra.mxu0 %v1127
    %1387 = vmatprep.subr.mxu0 0.0
    %1388 = vmatpush1.msra.mxu0 %v1128
    %1389 = vmatprep.subr.mxu0 0.0
    %1390 = vmatpush1.msra.mxu0 %v1129
    %1391 = vmatprep.subr.mxu0 0.0
    %1392 = vmatpush1.msra.mxu0 %v1130
    %1393 = vmatprep.subr.mxu0 0.0
    %1394 = vmatpush1.msra.mxu0 %v1131
    %1395 = vmatprep.subr.mxu0 0.0
    %1396 = vmatpush1.msra.mxu0 %v1132
    %1397 = vmatprep.subr.mxu0 0.0
    %1398 = vmatpush1.msra.mxu0 %v1133
    %1399 = vmatprep.subr.mxu0 0.0
    %1400 = vmatpush1.msra.mxu0 %v1134
    %1401 = vmatprep.subr.mxu0 0.0
    %1402 = vmatpush1.msra.mxu0 %v1135
    %1403 = vmatprep.subr.mxu0 0.0
    %1404 = vmatpush1.msra.mxu0 %v1136
    %1405 = vmatprep.subr.mxu0 0.0
    %1406 = vmatpush1.msra.mxu0 %v1137
    %1407 = vmatprep.subr.mxu0 0.0
    %1408 = vmatpush1.msra.mxu0 %v1138
    %1409 = vmatprep.subr.mxu0 0.0
    %1410 = vmatpush1.msra.mxu0 %v1139
    %1411 = vmatprep.subr.mxu0 0.0
    %1412 = vmatpush1.msra.mxu0 %v1140
    %1413 = vmatprep.subr.mxu0 0.0
    %1414 = vmatpush1.msra.mxu0 0.0
    %1415 = vmatprep.subr.mxu0 0.0
    %1416 = vmatpush1.msra.mxu0 0.0
    %1417 = vmatprep.subr.mxu0 0.0
    %1418 = vmatpush1.msra.mxu0 0.0
    %1419 = vmatprep.subr.mxu0 0.0
    %1420 = vmatpush1.msra.mxu0 0.0
    %1421 = vmatprep.subr.mxu0 0.0
    %1422 = vmatpush1.msra.mxu0 0.0
    %1423 = vmatprep.subr.mxu0 0.0
    %1424 = vmatpush1.msra.mxu0 0.0
    %1425 = vmatprep.subr.mxu0 0.0
    %1426 = vmatpush1.msra.mxu0 0.0
    %1427 = vmatprep.subr.mxu0 0.0
    %1428 = vmatpush1.msra.mxu0 0.0
    %1429 = vmatprep.subr.mxu0 0.0
    %1430 = vmatpush1.msra.mxu0 0.0
    %1431 = vmatprep.subr.mxu0 0.0
    %1432 = vmatpush1.msra.mxu0 0.0
    %1433 = vmatprep.subr.mxu0 0.0
    %1434 = vmatpush1.msra.mxu0 0.0
    %1435 = vmatprep.subr.mxu0 0.0
    %1436 = vmatpush1.msra.mxu0 0.0
    %1437 = vmatprep.subr.mxu0 0.0
    %1438 = vmatpush1.msra.mxu0 0.0
    %1439 = vmatprep.subr.mxu0 0.0
    %1440 = vmatpush1.msra.mxu0 0.0
    %1441 = vmatprep.subr.mxu0 0.0
    %1442 = vmatpush1.msra.mxu0 0.0
    %1443 = vmatprep.subr.mxu0 0.0
    %1444 = vmatpush1.msra.mxu0 0.0
    %1445 = vmatprep.mubr.f32.mxu0 0.0
    %1446 = vmatmul.mubr.f32.gmra.mrb[0].mxu0 %v1380
    %v1447 = vpop.f32.mrb[0].mxu0
    %v1448 = vadd.f32 %v1150, %v1447
    %v1449 = vpop.f32.mrb[0].mxu0
    %1450 = vdwg.mxu0
    %v1451 = vmul.f32 %v1448, 0.071428575
    %v1452 = vadd.f32 %v1112, %v1451
    %v1454 = vsel %vm169, %v1452, 0
    %1456 = vmatprep.subr.mxu0 0.0
    %1457 = vmatpush1.msra.mxu0 %v1121
    %1458 = vmatprep.subr.mxu0 0.0
    %1459 = vmatpush1.msra.mxu0 %v1122
    %1460 = vmatprep.subr.mxu0 0.0
    %1461 = vmatpush1.msra.mxu0 %v1123
    %1462 = vmatprep.subr.mxu0 0.0
    %1463 = vmatpush1.msra.mxu0 %v1124
    %1464 = vmatprep.subr.mxu0 0.0
    %1465 = vmatpush1.msra.mxu0 0.0
    %1466 = vmatprep.subr.mxu0 0.0
    %1467 = vmatpush1.msra.mxu0 0.0
    %1468 = vmatprep.subr.mxu0 0.0
    %1469 = vmatpush1.msra.mxu0 0.0
    %1470 = vmatprep.subr.mxu0 0.0
    %1471 = vmatpush1.msra.mxu0 0.0
    %1472 = vmatprep.subr.mxu0 0.0
    %1473 = vmatpush1.msra.mxu0 0.0
    %1474 = vmatprep.subr.mxu0 0.0
    %1475 = vmatpush1.msra.mxu0 0.0
    %1476 = vmatprep.subr.mxu0 0.0
    %1477 = vmatpush1.msra.mxu0 0.0
    %1478 = vmatprep.subr.mxu0 0.0
    %1479 = vmatpush1.msra.mxu0 0.0
    %1480 = vmatprep.subr.mxu0 0.0
    %1481 = vmatpush1.msra.mxu0 0.0
    %1482 = vmatprep.subr.mxu0 0.0
    %1483 = vmatpush1.msra.mxu0 0.0
    %1484 = vmatprep.subr.mxu0 0.0
    %1485 = vmatpush1.msra.mxu0 0.0
    %1486 = vmatprep.subr.mxu0 0.0
    %1487 = vmatpush1.msra.mxu0 0.0
    %1488 = vmatprep.subr.mxu0 0.0
    %1489 = vmatpush1.msra.mxu0 0.0
    %1490 = vmatprep.subr.mxu0 0.0
    %1491 = vmatpush1.msra.mxu0 0.0
    %1492 = vmatprep.subr.mxu0 0.0
    %1493 = vmatpush1.msra.mxu0 0.0
    %1494 = vmatprep.subr.mxu0 0.0
    %1495 = vmatpush1.msra.mxu0 0.0
    %1496 = vmatprep.subr.mxu0 0.0
    %1497 = vmatpush1.msra.mxu0 0.0
    %1498 = vmatprep.subr.mxu0 0.0
    %1499 = vmatpush1.msra.mxu0 0.0
    %1500 = vmatprep.subr.mxu0 0.0
    %1501 = vmatpush1.msra.mxu0 0.0
    %1502 = vmatprep.subr.mxu0 0.0
    %1503 = vmatpush1.msra.mxu0 0.0
    %1504 = vmatprep.subr.mxu0 0.0
    %1505 = vmatpush1.msra.mxu0 0.0
    %1506 = vmatprep.subr.mxu0 0.0
    %1507 = vmatpush1.msra.mxu0 0.0
    %1508 = vmatprep.subr.mxu0 0.0
    %1509 = vmatpush1.msra.mxu0 0.0
    %1510 = vmatprep.subr.mxu0 0.0
    %1511 = vmatpush1.msra.mxu0 0.0
    %1512 = vmatprep.subr.mxu0 0.0
    %1513 = vmatpush1.msra.mxu0 0.0
    %1514 = vmatprep.subr.mxu0 0.0
    %1515 = vmatpush1.msra.mxu0 0.0
    %1516 = vmatprep.subr.mxu0 0.0
    %1517 = vmatpush1.msra.mxu0 0.0
    %1518 = vmatprep.subr.mxu0 0.0
    %1519 = vmatpush1.msra.mxu0 0.0
    %1520 = vmatprep.mubr.f32.mxu0 0.0
    %1521 = vmatmul.mubr.f32.gmra.mrb[0].mxu0 %v1454
    %v1522 = vpop.f32.mrb[0].mxu0
    %v1523 = vadd.f32 %v1145, %v1522
    %v1524 = vpop.f32.mrb[0].mxu0
    %1525 = vdwg.mxu0
    %vm1526 = vcmp.gt.f32.partialorder %v1523, 0.0
    %v1527 = vmin.f32 %v1523, 0.0
    %v1528 = vmul.f32 %v1527, 1.442695
    %v1529 = vpow.pop %v1528
    %v1530 = vsub.f32 %v1529, 1.0
    %v1531 = vsel %vm1526, %v1523, %v1530
    %1532 = vmatprep.subr.mxu0 0.0
    %1533 = vmatpush1.msra.mxu0 %v1125
    %1534 = vmatprep.subr.mxu0 0.0
    %1535 = vmatpush1.msra.mxu0 %v1126
    %1536 = vmatprep.subr.mxu0 0.0
    %1537 = vmatpush1.msra.mxu0 %v1127
    %1538 = vmatprep.subr.mxu0 0.0
    %1539 = vmatpush1.msra.mxu0 %v1128
    %1540 = vmatprep.subr.mxu0 0.0
    %1541 = vmatpush1.msra.mxu0 %v1129
    %1542 = vmatprep.subr.mxu0 0.0
    %1543 = vmatpush1.msra.mxu0 %v1130
    %1544 = vmatprep.subr.mxu0 0.0
    %1545 = vmatpush1.msra.mxu0 %v1131
    %1546 = vmatprep.subr.mxu0 0.0
    %1547 = vmatpush1.msra.mxu0 %v1132
    %1548 = vmatprep.subr.mxu0 0.0
    %1549 = vmatpush1.msra.mxu0 %v1133
    %1550 = vmatprep.subr.mxu0 0.0
    %1551 = vmatpush1.msra.mxu0 %v1134
    %1552 = vmatprep.subr.mxu0 0.0
    %1553 = vmatpush1.msra.mxu0 %v1135
    %1554 = vmatprep.subr.mxu0 0.0
    %1555 = vmatpush1.msra.mxu0 %v1136
    %1556 = vmatprep.subr.mxu0 0.0
    %1557 = vmatpush1.msra.mxu0 %v1137
    %1558 = vmatprep.subr.mxu0 0.0
    %1559 = vmatpush1.msra.mxu0 %v1138
    %1560 = vmatprep.subr.mxu0 0.0
    %1561 = vmatpush1.msra.mxu0 %v1139
    %1562 = vmatprep.subr.mxu0 0.0
    %1563 = vmatpush1.msra.mxu0 %v1140
    %1564 = vmatprep.subr.mxu0 0.0
    %1565 = vmatpush1.msra.mxu0 0.0
    %1566 = vmatprep.subr.mxu0 0.0
    %1567 = vmatpush1.msra.mxu0 0.0
    %1568 = vmatprep.subr.mxu0 0.0
    %1569 = vmatpush1.msra.mxu0 0.0
    %1570 = vmatprep.subr.mxu0 0.0
    %1571 = vmatpush1.msra.mxu0 0.0
    %1572 = vmatprep.subr.mxu0 0.0
    %1573 = vmatpush1.msra.mxu0 0.0
    %1574 = vmatprep.subr.mxu0 0.0
    %1575 = vmatpush1.msra.mxu0 0.0
    %1576 = vmatprep.subr.mxu0 0.0
    %1577 = vmatpush1.msra.mxu0 0.0
    %1578 = vmatprep.subr.mxu0 0.0
    %1579 = vmatpush1.msra.mxu0 0.0
    %1580 = vmatprep.subr.mxu0 0.0
    %1581 = vmatpush1.msra.mxu0 0.0
    %1582 = vmatprep.subr.mxu0 0.0
    %1583 = vmatpush1.msra.mxu0 0.0
    %1584 = vmatprep.subr.mxu0 0.0
    %1585 = vmatpush1.msra.mxu0 0.0
    %1586 = vmatprep.subr.mxu0 0.0
    %1587 = vmatpush1.msra.mxu0 0.0
    %1588 = vmatprep.subr.mxu0 0.0
    %1589 = vmatpush1.msra.mxu0 0.0
    %1590 = vmatprep.subr.mxu0 0.0
    %1591 = vmatpush1.msra.mxu0 0.0
    %1592 = vmatprep.subr.mxu0 0.0
    %1593 = vmatpush1.msra.mxu0 0.0
    %1594 = vmatprep.subr.mxu0 0.0
    %1595 = vmatpush1.msra.mxu0 0.0
    %1596 = vmatprep.mubr.f32.mxu0 0.0
    %1597 = vmatmul.mubr.f32.gmra.mrb[0].mxu0 %v1531
    %v1598 = vpop.f32.mrb[0].mxu0
    %v1599 = vadd.f32 %v1150, %v1598
    %v1600 = vpop.f32.mrb[0].mxu0
    %1601 = vdwg.mxu0
    %v1602 = vmul.f32 %v1599, 0.14285715
    %v1603 = vadd.f32 %v1112, %v1602
    %v1605 = vsel %vm169, %v1603, 0
    %1607 = vmatprep.subr.mxu0 0.0
    %1608 = vmatpush1.msra.mxu0 %v1121
    %1609 = vmatprep.subr.mxu0 0.0
    %1610 = vmatpush1.msra.mxu0 %v1122
    %1611 = vmatprep.subr.mxu0 0.0
    %1612 = vmatpush1.msra.mxu0 %v1123
    %1613 = vmatprep.subr.mxu0 0.0
    %1614 = vmatpush1.msra.mxu0 %v1124
    %1615 = vmatprep.subr.mxu0 0.0
    %1616 = vmatpush1.msra.mxu0 0.0
    %1617 = vmatprep.subr.mxu0 0.0
    %1618 = vmatpush1.msra.mxu0 0.0
    %1619 = vmatprep.subr.mxu0 0.0
    %1620 = vmatpush1.msra.mxu0 0.0
    %1621 = vmatprep.subr.mxu0 0.0
    %1622 = vmatpush1.msra.mxu0 0.0
    %1623 = vmatprep.subr.mxu0 0.0
    %1624 = vmatpush1.msra.mxu0 0.0
    %1625 = vmatprep.subr.mxu0 0.0
    %1626 = vmatpush1.msra.mxu0 0.0
    %1627 = vmatprep.subr.mxu0 0.0
    %1628 = vmatpush1.msra.mxu0 0.0
    %1629 = vmatprep.subr.mxu0 0.0
    %1630 = vmatpush1.msra.mxu0 0.0
    %1631 = vmatprep.subr.mxu0 0.0
    %1632 = vmatpush1.msra.mxu0 0.0
    %1633 = vmatprep.subr.mxu0 0.0
    %1634 = vmatpush1.msra.mxu0 0.0
    %1635 = vmatprep.subr.mxu0 0.0
    %1636 = vmatpush1.msra.mxu0 0.0
    %1637 = vmatprep.subr.mxu0 0.0
    %1638 = vmatpush1.msra.mxu0 0.0
    %1639 = vmatprep.subr.mxu0 0.0
    %1640 = vmatpush1.msra.mxu0 0.0
    %1641 = vmatprep.subr.mxu0 0.0
    %1642 = vmatpush1.msra.mxu0 0.0
    %1643 = vmatprep.subr.mxu0 0.0
    %1644 = vmatpush1.msra.mxu0 0.0
    %1645 = vmatprep.subr.mxu0 0.0
    %1646 = vmatpush1.msra.mxu0 0.0
    %1647 = vmatprep.subr.mxu0 0.0
    %1648 = vmatpush1.msra.mxu0 0.0
    %1649 = vmatprep.subr.mxu0 0.0
    %1650 = vmatpush1.msra.mxu0 0.0
    %1651 = vmatprep.subr.mxu0 0.0
    %1652 = vmatpush1.msra.mxu0 0.0
    %1653 = vmatprep.subr.mxu0 0.0
    %1654 = vmatpush1.msra.mxu0 0.0
    %1655 = vmatprep.subr.mxu0 0.0
    %1656 = vmatpush1.msra.mxu0 0.0
    %1657 = vmatprep.subr.mxu0 0.0
    %1658 = vmatpush1.msra.mxu0 0.0
    %1659 = vmatprep.subr.mxu0 0.0
    %1660 = vmatpush1.msra.mxu0 0.0
    %1661 = vmatprep.subr.mxu0 0.0
    %1662 = vmatpush1.msra.mxu0 0.0
    %1663 = vmatprep.subr.mxu0 0.0
    %1664 = vmatpush1.msra.mxu0 0.0
    %1665 = vmatprep.subr.mxu0 0.0
    %1666 = vmatpush1.msra.mxu0 0.0
    %1667 = vmatprep.subr.mxu0 0.0
    %1668 = vmatpush1.msra.mxu0 0.0
    %1669 = vmatprep.subr.mxu0 0.0
    %1670 = vmatpush1.msra.mxu0 0.0
    %1671 = vmatprep.mubr.f32.mxu0 0.0
    %1672 = vmatmul.mubr.f32.gmra.mrb[0].mxu0 %v1605
    %v1673 = vpop.f32.mrb[0].mxu0
    %v1674 = vadd.f32 %v1145, %v1673
    %v1675 = vpop.f32.mrb[0].mxu0
    %1676 = vdwg.mxu0
    %vm1677 = vcmp.gt.f32.partialorder %v1674, 0.0
    %v1678 = vmin.f32 %v1674, 0.0
    %v1679 = vmul.f32 %v1678, 1.442695
    %v1680 = vpow.pop %v1679
    %v1681 = vsub.f32 %v1680, 1.0
    %v1682 = vsel %vm1677, %v1674, %v1681
    %1683 = vmatprep.subr.mxu0 0.0
    %1684 = vmatpush1.msra.mxu0 %v1125
    %1685 = vmatprep.subr.mxu0 0.0
    %1686 = vmatpush1.msra.mxu0 %v1126
    %1687 = vmatprep.subr.mxu0 0.0
    %1688 = vmatpush1.msra.mxu0 %v1127
    %1689 = vmatprep.subr.mxu0 0.0
    %1690 = vmatpush1.msra.mxu0 %v1128
    %1691 = vmatprep.subr.mxu0 0.0
    %1692 = vmatpush1.msra.mxu0 %v1129
    %1693 = vmatprep.subr.mxu0 0.0
    %1694 = vmatpush1.msra.mxu0 %v1130
    %1695 = vmatprep.subr.mxu0 0.0
    %1696 = vmatpush1.msra.mxu0 %v1131
    %1697 = vmatprep.subr.mxu0 0.0
    %1698 = vmatpush1.msra.mxu0 %v1132
    %1699 = vmatprep.subr.mxu0 0.0
    %1700 = vmatpush1.msra.mxu0 %v1133
    %1701 = vmatprep.subr.mxu0 0.0
    %1702 = vmatpush1.msra.mxu0 %v1134
    %1703 = vmatprep.subr.mxu0 0.0
    %1704 = vmatpush1.msra.mxu0 %v1135
    %1705 = vmatprep.subr.mxu0 0.0
    %1706 = vmatpush1.msra.mxu0 %v1136
    %1707 = vmatprep.subr.mxu0 0.0
    %1708 = vmatpush1.msra.mxu0 %v1137
    %1709 = vmatprep.subr.mxu0 0.0
    %1710 = vmatpush1.msra.mxu0 %v1138
    %1711 = vmatprep.subr.mxu0 0.0
    %1712 = vmatpush1.msra.mxu0 %v1139
    %1713 = vmatprep.subr.mxu0 0.0
    %1714 = vmatpush1.msra.mxu0 %v1140
    %1715 = vmatprep.subr.mxu0 0.0
    %1716 = vmatpush1.msra.mxu0 0.0
    %1717 = vmatprep.subr.mxu0 0.0
    %1718 = vmatpush1.msra.mxu0 0.0
    %1719 = vmatprep.subr.mxu0 0.0
    %1720 = vmatpush1.msra.mxu0 0.0
    %1721 = vmatprep.subr.mxu0 0.0
    %1722 = vmatpush1.msra.mxu0 0.0
    %1723 = vmatprep.subr.mxu0 0.0
    %1724 = vmatpush1.msra.mxu0 0.0
    %1725 = vmatprep.subr.mxu0 0.0
    %1726 = vmatpush1.msra.mxu0 0.0
    %1727 = vmatprep.subr.mxu0 0.0
    %1728 = vmatpush1.msra.mxu0 0.0
    %1729 = vmatprep.subr.mxu0 0.0
    %1730 = vmatpush1.msra.mxu0 0.0
    %1731 = vmatprep.subr.mxu0 0.0
    %1732 = vmatpush1.msra.mxu0 0.0
    %1733 = vmatprep.subr.mxu0 0.0
    %1734 = vmatpush1.msra.mxu0 0.0
    %1735 = vmatprep.subr.mxu0 0.0
    %1736 = vmatpush1.msra.mxu0 0.0
    %1737 = vmatprep.subr.mxu0 0.0
    %1738 = vmatpush1.msra.mxu0 0.0
    %1739 = vmatprep.subr.mxu0 0.0
    %1740 = vmatpush1.msra.mxu0 0.0
    %1741 = vmatprep.subr.mxu0 0.0
    %1742 = vmatpush1.msra.mxu0 0.0
    %1743 = vmatprep.subr.mxu0 0.0
    %1744 = vmatpush1.msra.mxu0 0.0
    %1745 = vmatprep.subr.mxu0 0.0
    %1746 = vmatpush1.msra.mxu0 0.0
    %1747 = vmatprep.mubr.f32.mxu0 0.0
    %1748 = vmatmul.mubr.f32.gmra.mrb[0].mxu0 %v1682
    %v1749 = vpop.f32.mrb[0].mxu0
    %v1750 = vadd.f32 %v1150, %v1749
    %v1751 = vpop.f32.mrb[0].mxu0
    %1752 = vdwg.mxu0
    %v1753 = vadd.f32 %v1448, %v1599
    %v1754 = vmul.f32 %v1753, 2.0
    %v1755 = vadd.f32 %v1297, %v1754
    %v1756 = vadd.f32 %v1755, %v1750
    %v1757 = vmul.f32 %v1756, 0.023809524
    %v1758 = vadd.f32 %v1112, %v1757
    %v1760 = vsel %vm169, %v1758, 0
    %1762 = vmatprep.subr.mxu0 0.0
    %1763 = vmatpush1.msra.mxu0 %v1121
    %1764 = vmatprep.subr.mxu0 0.0
    %1765 = vmatpush1.msra.mxu0 %v1122
    %1766 = vmatprep.subr.mxu0 0.0
    %1767 = vmatpush1.msra.mxu0 %v1123
    %1768 = vmatprep.subr.mxu0 0.0
    %1769 = vmatpush1.msra.mxu0 %v1124
    %1770 = vmatprep.subr.mxu0 0.0
    %1771 = vmatpush1.msra.mxu0 0.0
    %1772 = vmatprep.subr.mxu0 0.0
    %1773 = vmatpush1.msra.mxu0 0.0
    %1774 = vmatprep.subr.mxu0 0.0
    %1775 = vmatpush1.msra.mxu0 0.0
    %1776 = vmatprep.subr.mxu0 0.0
    %1777 = vmatpush1.msra.mxu0 0.0
    %1778 = vmatprep.subr.mxu0 0.0
    %1779 = vmatpush1.msra.mxu0 0.0
    %1780 = vmatprep.subr.mxu0 0.0
    %1781 = vmatpush1.msra.mxu0 0.0
    %1782 = vmatprep.subr.mxu0 0.0
    %1783 = vmatpush1.msra.mxu0 0.0
    %1784 = vmatprep.subr.mxu0 0.0
    %1785 = vmatpush1.msra.mxu0 0.0
    %1786 = vmatprep.subr.mxu0 0.0
    %1787 = vmatpush1.msra.mxu0 0.0
    %1788 = vmatprep.subr.mxu0 0.0
    %1789 = vmatpush1.msra.mxu0 0.0
    %1790 = vmatprep.subr.mxu0 0.0
    %1791 = vmatpush1.msra.mxu0 0.0
    %1792 = vmatprep.subr.mxu0 0.0
    %1793 = vmatpush1.msra.mxu0 0.0
    %1794 = vmatprep.subr.mxu0 0.0
    %1795 = vmatpush1.msra.mxu0 0.0
    %1796 = vmatprep.subr.mxu0 0.0
    %1797 = vmatpush1.msra.mxu0 0.0
    %1798 = vmatprep.subr.mxu0 0.0
    %1799 = vmatpush1.msra.mxu0 0.0
    %1800 = vmatprep.subr.mxu0 0.0
    %1801 = vmatpush1.msra.mxu0 0.0
    %1802 = vmatprep.subr.mxu0 0.0
    %1803 = vmatpush1.msra.mxu0 0.0
    %1804 = vmatprep.subr.mxu0 0.0
    %1805 = vmatpush1.msra.mxu0 0.0
    %1806 = vmatprep.subr.mxu0 0.0
    %1807 = vmatpush1.msra.mxu0 0.0
    %1808 = vmatprep.subr.mxu0 0.0
    %1809 = vmatpush1.msra.mxu0 0.0
    %1810 = vmatprep.subr.mxu0 0.0
    %1811 = vmatpush1.msra.mxu0 0.0
    %1812 = vmatprep.subr.mxu0 0.0
    %1813 = vmatpush1.msra.mxu0 0.0
    %1814 = vmatprep.subr.mxu0 0.0
    %1815 = vmatpush1.msra.mxu0 0.0
    %1816 = vmatprep.subr.mxu0 0.0
    %1817 = vmatpush1.msra.mxu0 0.0
    %1818 = vmatprep.subr.mxu0 0.0
    %1819 = vmatpush1.msra.mxu0 0.0
    %1820 = vmatprep.subr.mxu0 0.0
    %1821 = vmatpush1.msra.mxu0 0.0
    %1822 = vmatprep.subr.mxu0 0.0
    %1823 = vmatpush1.msra.mxu0 0.0
    %1824 = vmatprep.subr.mxu0 0.0
    %1825 = vmatpush1.msra.mxu0 0.0
    %1826 = vmatprep.mubr.f32.mxu0 0.0
    %1827 = vmatmul.mubr.f32.gmra.mrb[0].mxu0 %v1760
    %v1828 = vpop.f32.mrb[0].mxu0
    %v1829 = vadd.f32 %v1145, %v1828
    %v1830 = vpop.f32.mrb[0].mxu0
    %1831 = vdwg.mxu0
    %vm1832 = vcmp.gt.f32.partialorder %v1829, 0.0
    %v1833 = vmin.f32 %v1829, 0.0
    %v1834 = vmul.f32 %v1833, 1.442695
    %v1835 = vpow.pop %v1834
    %v1836 = vsub.f32 %v1835, 1.0
    %v1837 = vsel %vm1832, %v1829, %v1836
    %1838 = vmatprep.subr.mxu0 0.0
    %1839 = vmatpush1.msra.mxu0 %v1125
    %1840 = vmatprep.subr.mxu0 0.0
    %1841 = vmatpush1.msra.mxu0 %v1126
    %1842 = vmatprep.subr.mxu0 0.0
    %1843 = vmatpush1.msra.mxu0 %v1127
    %1844 = vmatprep.subr.mxu0 0.0
    %1845 = vmatpush1.msra.mxu0 %v1128
    %1846 = vmatprep.subr.mxu0 0.0
    %1847 = vmatpush1.msra.mxu0 %v1129
    %1848 = vmatprep.subr.mxu0 0.0
    %1849 = vmatpush1.msra.mxu0 %v1130
    %1850 = vmatprep.subr.mxu0 0.0
    %1851 = vmatpush1.msra.mxu0 %v1131
    %1852 = vmatprep.subr.mxu0 0.0
    %1853 = vmatpush1.msra.mxu0 %v1132
    %1854 = vmatprep.subr.mxu0 0.0
    %1855 = vmatpush1.msra.mxu0 %v1133
    %1856 = vmatprep.subr.mxu0 0.0
    %1857 = vmatpush1.msra.mxu0 %v1134
    %1858 = vmatprep.subr.mxu0 0.0
    %1859 = vmatpush1.msra.mxu0 %v1135
    %1860 = vmatprep.subr.mxu0 0.0
    %1861 = vmatpush1.msra.mxu0 %v1136
    %1862 = vmatprep.subr.mxu0 0.0
    %1863 = vmatpush1.msra.mxu0 %v1137
    %1864 = vmatprep.subr.mxu0 0.0
    %1865 = vmatpush1.msra.mxu0 %v1138
    %1866 = vmatprep.subr.mxu0 0.0
    %1867 = vmatpush1.msra.mxu0 %v1139
    %1868 = vmatprep.subr.mxu0 0.0
    %1869 = vmatpush1.msra.mxu0 %v1140
    %1870 = vmatprep.subr.mxu0 0.0
    %1871 = vmatpush1.msra.mxu0 0.0
    %1872 = vmatprep.subr.mxu0 0.0
    %1873 = vmatpush1.msra.mxu0 0.0
    %1874 = vmatprep.subr.mxu0 0.0
    %1875 = vmatpush1.msra.mxu0 0.0
    %1876 = vmatprep.subr.mxu0 0.0
    %1877 = vmatpush1.msra.mxu0 0.0
    %1878 = vmatprep.subr.mxu0 0.0
    %1879 = vmatpush1.msra.mxu0 0.0
    %1880 = vmatprep.subr.mxu0 0.0
    %1881 = vmatpush1.msra.mxu0 0.0
    %1882 = vmatprep.subr.mxu0 0.0
    %1883 = vmatpush1.msra.mxu0 0.0
    %1884 = vmatprep.subr.mxu0 0.0
    %1885 = vmatpush1.msra.mxu0 0.0
    %1886 = vmatprep.subr.mxu0 0.0
    %1887 = vmatpush1.msra.mxu0 0.0
    %1888 = vmatprep.subr.mxu0 0.0
    %1889 = vmatpush1.msra.mxu0 0.0
    %1890 = vmatprep.subr.mxu0 0.0
    %1891 = vmatpush1.msra.mxu0 0.0
    %1892 = vmatprep.subr.mxu0 0.0
    %1893 = vmatpush1.msra.mxu0 0.0
    %1894 = vmatprep.subr.mxu0 0.0
    %1895 = vmatpush1.msra.mxu0 0.0
    %1896 = vmatprep.subr.mxu0 0.0
    %1897 = vmatpush1.msra.mxu0 0.0
    %1898 = vmatprep.subr.mxu0 0.0
    %1899 = vmatpush1.msra.mxu0 0.0
    %1900 = vmatprep.subr.mxu0 0.0
    %1901 = vmatpush1.msra.mxu0 0.0
    %1902 = vmatprep.mubr.f32.mxu0 0.0
    %1903 = vmatmul.mubr.f32.gmra.mrb[0].mxu0 %v1837
    %v1904 = vpop.f32.mrb[0].mxu0
    %v1905 = vadd.f32 %v1150, %v1904
    %v1906 = vpop.f32.mrb[0].mxu0
    %1907 = vdwg.mxu0
    %v1908 = vmul.f32 %v1905, 0.071428575
    %v1909 = vadd.f32 %v1758, %v1908
    %v1911 = vsel %vm169, %v1909, 0
    %1913 = vmatprep.subr.mxu0 0.0
    %1914 = vmatpush1.msra.mxu0 %v1121
    %1915 = vmatprep.subr.mxu0 0.0
    %1916 = vmatpush1.msra.mxu0 %v1122
    %1917 = vmatprep.subr.mxu0 0.0
    %1918 = vmatpush1.msra.mxu0 %v1123
    %1919 = vmatprep.subr.mxu0 0.0
    %1920 = vmatpush1.msra.mxu0 %v1124
    %1921 = vmatprep.subr.mxu0 0.0
    %1922 = vmatpush1.msra.mxu0 0.0
    %1923 = vmatprep.subr.mxu0 0.0
    %1924 = vmatpush1.msra.mxu0 0.0
    %1925 = vmatprep.subr.mxu0 0.0
    %1926 = vmatpush1.msra.mxu0 0.0
    %1927 = vmatprep.subr.mxu0 0.0
    %1928 = vmatpush1.msra.mxu0 0.0
    %1929 = vmatprep.subr.mxu0 0.0
    %1930 = vmatpush1.msra.mxu0 0.0
    %1931 = vmatprep.subr.mxu0 0.0
    %1932 = vmatpush1.msra.mxu0 0.0
    %1933 = vmatprep.subr.mxu0 0.0
    %1934 = vmatpush1.msra.mxu0 0.0
    %1935 = vmatprep.subr.mxu0 0.0
    %1936 = vmatpush1.msra.mxu0 0.0
    %1937 = vmatprep.subr.mxu0 0.0
    %1938 = vmatpush1.msra.mxu0 0.0
    %1939 = vmatprep.subr.mxu0 0.0
    %1940 = vmatpush1.msra.mxu0 0.0
    %1941 = vmatprep.subr.mxu0 0.0
    %1942 = vmatpush1.msra.mxu0 0.0
    %1943 = vmatprep.subr.mxu0 0.0
    %1944 = vmatpush1.msra.mxu0 0.0
    %1945 = vmatprep.subr.mxu0 0.0
    %1946 = vmatpush1.msra.mxu0 0.0
    %1947 = vmatprep.subr.mxu0 0.0
    %1948 = vmatpush1.msra.mxu0 0.0
    %1949 = vmatprep.subr.mxu0 0.0
    %1950 = vmatpush1.msra.mxu0 0.0
    %1951 = vmatprep.subr.mxu0 0.0
    %1952 = vmatpush1.msra.mxu0 0.0
    %1953 = vmatprep.subr.mxu0 0.0
    %1954 = vmatpush1.msra.mxu0 0.0
    %1955 = vmatprep.subr.mxu0 0.0
    %1956 = vmatpush1.msra.mxu0 0.0
    %1957 = vmatprep.subr.mxu0 0.0
    %1958 = vmatpush1.msra.mxu0 0.0
    %1959 = vmatprep.subr.mxu0 0.0
    %1960 = vmatpush1.msra.mxu0 0.0
    %1961 = vmatprep.subr.mxu0 0.0
    %1962 = vmatpush1.msra.mxu0 0.0
    %1963 = vmatprep.subr.mxu0 0.0
    %1964 = vmatpush1.msra.mxu0 0.0
    %1965 = vmatprep.subr.mxu0 0.0
    %1966 = vmatpush1.msra.mxu0 0.0
    %1967 = vmatprep.subr.mxu0 0.0
    %1968 = vmatpush1.msra.mxu0 0.0
    %1969 = vmatprep.subr.mxu0 0.0
    %1970 = vmatpush1.msra.mxu0 0.0
    %1971 = vmatprep.subr.mxu0 0.0
    %1972 = vmatpush1.msra.mxu0 0.0
    %1973 = vmatprep.subr.mxu0 0.0
    %1974 = vmatpush1.msra.mxu0 0.0
    %1975 = vmatprep.subr.mxu0 0.0
    %1976 = vmatpush1.msra.mxu0 0.0
    %1977 = vmatprep.mubr.f32.mxu0 0.0
    %1978 = vmatmul.mubr.f32.gmra.mrb[0].mxu0 %v1911
    %v1979 = vpop.f32.mrb[0].mxu0
    %v1980 = vadd.f32 %v1145, %v1979
    %v1981 = vpop.f32.mrb[0].mxu0
    %1982 = vdwg.mxu0
    %vm1983 = vcmp.gt.f32.partialorder %v1980, 0.0
    %v1984 = vmin.f32 %v1980, 0.0
    %v1985 = vmul.f32 %v1984, 1.442695
    %v1986 = vpow.pop %v1985
    %v1987 = vsub.f32 %v1986, 1.0
    %v1988 = vsel %vm1983, %v1980, %v1987
    %1989 = vmatprep.subr.mxu0 0.0
    %1990 = vmatpush1.msra.mxu0 %v1125
    %1991 = vmatprep.subr.mxu0 0.0
    %1992 = vmatpush1.msra.mxu0 %v1126
    %1993 = vmatprep.subr.mxu0 0.0
    %1994 = vmatpush1.msra.mxu0 %v1127
    %1995 = vmatprep.subr.mxu0 0.0
    %1996 = vmatpush1.msra.mxu0 %v1128
    %1997 = vmatprep.subr.mxu0 0.0
    %1998 = vmatpush1.msra.mxu0 %v1129
    %1999 = vmatprep.subr.mxu0 0.0
    %2000 = vmatpush1.msra.mxu0 %v1130
    %2001 = vmatprep.subr.mxu0 0.0
    %2002 = vmatpush1.msra.mxu0 %v1131
    %2003 = vmatprep.subr.mxu0 0.0
    %2004 = vmatpush1.msra.mxu0 %v1132
    %2005 = vmatprep.subr.mxu0 0.0
    %2006 = vmatpush1.msra.mxu0 %v1133
    %2007 = vmatprep.subr.mxu0 0.0
    %2008 = vmatpush1.msra.mxu0 %v1134
    %2009 = vmatprep.subr.mxu0 0.0
    %2010 = vmatpush1.msra.mxu0 %v1135
    %2011 = vmatprep.subr.mxu0 0.0
    %2012 = vmatpush1.msra.mxu0 %v1136
    %2013 = vmatprep.subr.mxu0 0.0
    %2014 = vmatpush1.msra.mxu0 %v1137
    %2015 = vmatprep.subr.mxu0 0.0
    %2016 = vmatpush1.msra.mxu0 %v1138
    %2017 = vmatprep.subr.mxu0 0.0
    %2018 = vmatpush1.msra.mxu0 %v1139
    %2019 = vmatprep.subr.mxu0 0.0
    %2020 = vmatpush1.msra.mxu0 %v1140
    %2021 = vmatprep.subr.mxu0 0.0
    %2022 = vmatpush1.msra.mxu0 0.0
    %2023 = vmatprep.subr.mxu0 0.0
    %2024 = vmatpush1.msra.mxu0 0.0
    %2025 = vmatprep.subr.mxu0 0.0
    %2026 = vmatpush1.msra.mxu0 0.0
    %2027 = vmatprep.subr.mxu0 0.0
    %2028 = vmatpush1.msra.mxu0 0.0
    %2029 = vmatprep.subr.mxu0 0.0
    %2030 = vmatpush1.msra.mxu0 0.0
    %2031 = vmatprep.subr.mxu0 0.0
    %2032 = vmatpush1.msra.mxu0 0.0
    %2033 = vmatprep.subr.mxu0 0.0
    %2034 = vmatpush1.msra.mxu0 0.0
    %2035 = vmatprep.subr.mxu0 0.0
    %2036 = vmatpush1.msra.mxu0 0.0
    %2037 = vmatprep.subr.mxu0 0.0
    %2038 = vmatpush1.msra.mxu0 0.0
    %2039 = vmatprep.subr.mxu0 0.0
    %2040 = vmatpush1.msra.mxu0 0.0
    %2041 = vmatprep.subr.mxu0 0.0
    %2042 = vmatpush1.msra.mxu0 0.0
    %2043 = vmatprep.subr.mxu0 0.0
    %2044 = vmatpush1.msra.mxu0 0.0
    %2045 = vmatprep.subr.mxu0 0.0
    %2046 = vmatpush1.msra.mxu0 0.0
    %2047 = vmatprep.subr.mxu0 0.0
    %2048 = vmatpush1.msra.mxu0 0.0
    %2049 = vmatprep.subr.mxu0 0.0
    %2050 = vmatpush1.msra.mxu0 0.0
    %2051 = vmatprep.subr.mxu0 0.0
    %2052 = vmatpush1.msra.mxu0 0.0
    %2053 = vmatprep.mubr.f32.mxu0 0.0
    %2054 = vmatmul.mubr.f32.gmra.mrb[0].mxu0 %v1988
    %v2055 = vpop.f32.mrb[0].mxu0
    %v2056 = vadd.f32 %v1150, %v2055
    %v2057 = vpop.f32.mrb[0].mxu0
    %2058 = vdwg.mxu0
    %v2059 = vmul.f32 %v2056, 0.071428575
    %v2060 = vadd.f32 %v1758, %v2059
    %v2062 = vsel %vm169, %v2060, 0
    %2064 = vmatprep.subr.mxu0 0.0
    %2065 = vmatpush1.msra.mxu0 %v1121
    %2066 = vmatprep.subr.mxu0 0.0
    %2067 = vmatpush1.msra.mxu0 %v1122
    %2068 = vmatprep.subr.mxu0 0.0
    %2069 = vmatpush1.msra.mxu0 %v1123
    %2070 = vmatprep.subr.mxu0 0.0
    %2071 = vmatpush1.msra.mxu0 %v1124
    %2072 = vmatprep.subr.mxu0 0.0
    %2073 = vmatpush1.msra.mxu0 0.0
    %2074 = vmatprep.subr.mxu0 0.0
    %2075 = vmatpush1.msra.mxu0 0.0
    %2076 = vmatprep.subr.mxu0 0.0
    %2077 = vmatpush1.msra.mxu0 0.0
    %2078 = vmatprep.subr.mxu0 0.0
    %2079 = vmatpush1.msra.mxu0 0.0
    %2080 = vmatprep.subr.mxu0 0.0
    %2081 = vmatpush1.msra.mxu0 0.0
    %2082 = vmatprep.subr.mxu0 0.0
    %2083 = vmatpush1.msra.mxu0 0.0
    %2084 = vmatprep.subr.mxu0 0.0
    %2085 = vmatpush1.msra.mxu0 0.0
    %2086 = vmatprep.subr.mxu0 0.0
    %2087 = vmatpush1.msra.mxu0 0.0
    %2088 = vmatprep.subr.mxu0 0.0
    %2089 = vmatpush1.msra.mxu0 0.0
    %2090 = vmatprep.subr.mxu0 0.0
    %2091 = vmatpush1.msra.mxu0 0.0
    %2092 = vmatprep.subr.mxu0 0.0
    %2093 = vmatpush1.msra.mxu0 0.0
    %2094 = vmatprep.subr.mxu0 0.0
    %2095 = vmatpush1.msra.mxu0 0.0
    %2096 = vmatprep.subr.mxu0 0.0
    %2097 = vmatpush1.msra.mxu0 0.0
    %2098 = vmatprep.subr.mxu0 0.0
    %2099 = vmatpush1.msra.mxu0 0.0
    %2100 = vmatprep.subr.mxu0 0.0
    %2101 = vmatpush1.msra.mxu0 0.0
    %2102 = vmatprep.subr.mxu0 0.0
    %2103 = vmatpush1.msra.mxu0 0.0
    %2104 = vmatprep.subr.mxu0 0.0
    %2105 = vmatpush1.msra.mxu0 0.0
    %2106 = vmatprep.subr.mxu0 0.0
    %2107 = vmatpush1.msra.mxu0 0.0
    %2108 = vmatprep.subr.mxu0 0.0
    %2109 = vmatpush1.msra.mxu0 0.0
    %2110 = vmatprep.subr.mxu0 0.0
    %2111 = vmatpush1.msra.mxu0 0.0
    %2112 = vmatprep.subr.mxu0 0.0
    %2113 = vmatpush1.msra.mxu0 0.0
    %2114 = vmatprep.subr.mxu0 0.0
    %2115 = vmatpush1.msra.mxu0 0.0
    %2116 = vmatprep.subr.mxu0 0.0
    %2117 = vmatpush1.msra.mxu0 0.0
    %2118 = vmatprep.subr.mxu0 0.0
    %2119 = vmatpush1.msra.mxu0 0.0
    %2120 = vmatprep.subr.mxu0 0.0
    %2121 = vmatpush1.msra.mxu0 0.0
    %2122 = vmatprep.subr.mxu0 0.0
    %2123 = vmatpush1.msra.mxu0 0.0
    %2124 = vmatprep.subr.mxu0 0.0
    %2125 = vmatpush1.msra.mxu0 0.0
    %2126 = vmatprep.subr.mxu0 0.0
    %2127 = vmatpush1.msra.mxu0 0.0
    %2128 = vmatprep.mubr.f32.mxu0 0.0
    %2129 = vmatmul.mubr.f32.gmra.mrb[0].mxu0 %v2062
    %v2130 = vpop.f32.mrb[0].mxu0
    %v2131 = vadd.f32 %v1145, %v2130
    %v2132 = vpop.f32.mrb[0].mxu0
    %2133 = vdwg.mxu0
    %vm2134 = vcmp.gt.f32.partialorder %v2131, 0.0
    %v2135 = vmin.f32 %v2131, 0.0
    %v2136 = vmul.f32 %v2135, 1.442695
    %v2137 = vpow.pop %v2136
    %v2138 = vsub.f32 %v2137, 1.0
    %v2139 = vsel %vm2134, %v2131, %v2138
    %2140 = vmatprep.subr.mxu0 0.0
    %2141 = vmatpush1.msra.mxu0 %v1125
    %2142 = vmatprep.subr.mxu0 0.0
    %2143 = vmatpush1.msra.mxu0 %v1126
    %2144 = vmatprep.subr.mxu0 0.0
    %2145 = vmatpush1.msra.mxu0 %v1127
    %2146 = vmatprep.subr.mxu0 0.0
    %2147 = vmatpush1.msra.mxu0 %v1128
    %2148 = vmatprep.subr.mxu0 0.0
    %2149 = vmatpush1.msra.mxu0 %v1129
    %2150 = vmatprep.subr.mxu0 0.0
    %2151 = vmatpush1.msra.mxu0 %v1130
    %2152 = vmatprep.subr.mxu0 0.0
    %2153 = vmatpush1.msra.mxu0 %v1131
    %2154 = vmatprep.subr.mxu0 0.0
    %2155 = vmatpush1.msra.mxu0 %v1132
    %2156 = vmatprep.subr.mxu0 0.0
    %2157 = vmatpush1.msra.mxu0 %v1133
    %2158 = vmatprep.subr.mxu0 0.0
    %2159 = vmatpush1.msra.mxu0 %v1134
    %2160 = vmatprep.subr.mxu0 0.0
    %2161 = vmatpush1.msra.mxu0 %v1135
    %2162 = vmatprep.subr.mxu0 0.0
    %2163 = vmatpush1.msra.mxu0 %v1136
    %2164 = vmatprep.subr.mxu0 0.0
    %2165 = vmatpush1.msra.mxu0 %v1137
    %2166 = vmatprep.subr.mxu0 0.0
    %2167 = vmatpush1.msra.mxu0 %v1138
    %2168 = vmatprep.subr.mxu0 0.0
    %2169 = vmatpush1.msra.mxu0 %v1139
    %2170 = vmatprep.subr.mxu0 0.0
    %2171 = vmatpush1.msra.mxu0 %v1140
    %2172 = vmatprep.subr.mxu0 0.0
    %2173 = vmatpush1.msra.mxu0 0.0
    %2174 = vmatprep.subr.mxu0 0.0
    %2175 = vmatpush1.msra.mxu0 0.0
    %2176 = vmatprep.subr.mxu0 0.0
    %2177 = vmatpush1.msra.mxu0 0.0
    %2178 = vmatprep.subr.mxu0 0.0
    %2179 = vmatpush1.msra.mxu0 0.0
    %2180 = vmatprep.subr.mxu0 0.0
    %2181 = vmatpush1.msra.mxu0 0.0
    %2182 = vmatprep.subr.mxu0 0.0
    %2183 = vmatpush1.msra.mxu0 0.0
    %2184 = vmatprep.subr.mxu0 0.0
    %2185 = vmatpush1.msra.mxu0 0.0
    %2186 = vmatprep.subr.mxu0 0.0
    %2187 = vmatpush1.msra.mxu0 0.0
    %2188 = vmatprep.subr.mxu0 0.0
    %2189 = vmatpush1.msra.mxu0 0.0
    %2190 = vmatprep.subr.mxu0 0.0
    %2191 = vmatpush1.msra.mxu0 0.0
    %2192 = vmatprep.subr.mxu0 0.0
    %2193 = vmatpush1.msra.mxu0 0.0
    %2194 = vmatprep.subr.mxu0 0.0
    %2195 = vmatpush1.msra.mxu0 0.0
    %2196 = vmatprep.subr.mxu0 0.0
    %2197 = vmatpush1.msra.mxu0 0.0
    %2198 = vmatprep.subr.mxu0 0.0
    %2199 = vmatpush1.msra.mxu0 0.0
    %2200 = vmatprep.subr.mxu0 0.0
    %2201 = vmatpush1.msra.mxu0 0.0
    %2202 = vmatprep.subr.mxu0 0.0
    %2203 = vmatpush1.msra.mxu0 0.0
    %2204 = vmatprep.mubr.f32.mxu0 0.0
    %2205 = vmatmul.mubr.f32.gmra.mrb[0].mxu0 %v2139
    %v2206 = vpop.f32.mrb[0].mxu0
    %v2207 = vadd.f32 %v1150, %v2206
    %v2208 = vpop.f32.mrb[0].mxu0
    %2209 = vdwg.mxu0
    %v2210 = vmul.f32 %v2207, 0.14285715
    %v2211 = vadd.f32 %v1758, %v2210
    %v2213 = vsel %vm169, %v2211, 0
    %2215 = vmatprep.subr.mxu0 0.0
    %2216 = vmatpush1.msra.mxu0 %v1121
    %2217 = vmatprep.subr.mxu0 0.0
    %2218 = vmatpush1.msra.mxu0 %v1122
    %2219 = vmatprep.subr.mxu0 0.0
    %2220 = vmatpush1.msra.mxu0 %v1123
    %2221 = vmatprep.subr.mxu0 0.0
    %2222 = vmatpush1.msra.mxu0 %v1124
    %2223 = vmatprep.subr.mxu0 0.0
    %2224 = vmatpush1.msra.mxu0 0.0
    %2225 = vmatprep.subr.mxu0 0.0
    %2226 = vmatpush1.msra.mxu0 0.0
    %2227 = vmatprep.subr.mxu0 0.0
    %2228 = vmatpush1.msra.mxu0 0.0
    %2229 = vmatprep.subr.mxu0 0.0
    %2230 = vmatpush1.msra.mxu0 0.0
    %2231 = vmatprep.subr.mxu0 0.0
    %2232 = vmatpush1.msra.mxu0 0.0
    %2233 = vmatprep.subr.mxu0 0.0
    %2234 = vmatpush1.msra.mxu0 0.0
    %2235 = vmatprep.subr.mxu0 0.0
    %2236 = vmatpush1.msra.mxu0 0.0
    %2237 = vmatprep.subr.mxu0 0.0
    %2238 = vmatpush1.msra.mxu0 0.0
    %2239 = vmatprep.subr.mxu0 0.0
    %2240 = vmatpush1.msra.mxu0 0.0
    %2241 = vmatprep.subr.mxu0 0.0
    %2242 = vmatpush1.msra.mxu0 0.0
    %2243 = vmatprep.subr.mxu0 0.0
    %2244 = vmatpush1.msra.mxu0 0.0
    %2245 = vmatprep.subr.mxu0 0.0
    %2246 = vmatpush1.msra.mxu0 0.0
    %2247 = vmatprep.subr.mxu0 0.0
    %2248 = vmatpush1.msra.mxu0 0.0
    %2249 = vmatprep.subr.mxu0 0.0
    %2250 = vmatpush1.msra.mxu0 0.0
    %2251 = vmatprep.subr.mxu0 0.0
    %2252 = vmatpush1.msra.mxu0 0.0
    %2253 = vmatprep.subr.mxu0 0.0
    %2254 = vmatpush1.msra.mxu0 0.0
    %2255 = vmatprep.subr.mxu0 0.0
    %2256 = vmatpush1.msra.mxu0 0.0
    %2257 = vmatprep.subr.mxu0 0.0
    %2258 = vmatpush1.msra.mxu0 0.0
    %2259 = vmatprep.subr.mxu0 0.0
    %2260 = vmatpush1.msra.mxu0 0.0
    %2261 = vmatprep.subr.mxu0 0.0
    %2262 = vmatpush1.msra.mxu0 0.0
    %2263 = vmatprep.subr.mxu0 0.0
    %2264 = vmatpush1.msra.mxu0 0.0
    %2265 = vmatprep.subr.mxu0 0.0
    %2266 = vmatpush1.msra.mxu0 0.0
    %2267 = vmatprep.subr.mxu0 0.0
    %2268 = vmatpush1.msra.mxu0 0.0
    %2269 = vmatprep.subr.mxu0 0.0
    %2270 = vmatpush1.msra.mxu0 0.0
    %2271 = vmatprep.subr.mxu0 0.0
    %2272 = vmatpush1.msra.mxu0 0.0
    %2273 = vmatprep.subr.mxu0 0.0
    %2274 = vmatpush1.msra.mxu0 0.0
    %2275 = vmatprep.subr.mxu0 0.0
    %2276 = vmatpush1.msra.mxu0 0.0
    %2277 = vmatprep.subr.mxu0 0.0
    %2278 = vmatpush1.msra.mxu0 0.0
    %2279 = vmatprep.mubr.f32.mxu0 0.0
    %2280 = vmatmul.mubr.f32.gmra.mrb[0].mxu0 %v2213
    %v2281 = vpop.f32.mrb[0].mxu0
    %v2282 = vadd.f32 %v1145, %v2281
    %v2283 = vpop.f32.mrb[0].mxu0
    %2284 = vdwg.mxu0
    %vm2285 = vcmp.gt.f32.partialorder %v2282, 0.0
    %v2286 = vmin.f32 %v2282, 0.0
    %v2287 = vmul.f32 %v2286, 1.442695
    %v2288 = vpow.pop %v2287
    %v2289 = vsub.f32 %v2288, 1.0
    %v2290 = vsel %vm2285, %v2282, %v2289
    %2291 = vmatprep.subr.mxu0 0.0
    %2292 = vmatpush1.msra.mxu0 %v1125
    %2293 = vmatprep.subr.mxu0 0.0
    %2294 = vmatpush1.msra.mxu0 %v1126
    %2295 = vmatprep.subr.mxu0 0.0
    %2296 = vmatpush1.msra.mxu0 %v1127
    %2297 = vmatprep.subr.mxu0 0.0
    %2298 = vmatpush1.msra.mxu0 %v1128
    %2299 = vmatprep.subr.mxu0 0.0
    %2300 = vmatpush1.msra.mxu0 %v1129
    %2301 = vmatprep.subr.mxu0 0.0
    %2302 = vmatpush1.msra.mxu0 %v1130
    %2303 = vmatprep.subr.mxu0 0.0
    %2304 = vmatpush1.msra.mxu0 %v1131
    %2305 = vmatprep.subr.mxu0 0.0
    %2306 = vmatpush1.msra.mxu0 %v1132
    %2307 = vmatprep.subr.mxu0 0.0
    %2308 = vmatpush1.msra.mxu0 %v1133
    %2309 = vmatprep.subr.mxu0 0.0
    %2310 = vmatpush1.msra.mxu0 %v1134
    %2311 = vmatprep.subr.mxu0 0.0
    %2312 = vmatpush1.msra.mxu0 %v1135
    %2313 = vmatprep.subr.mxu0 0.0
    %2314 = vmatpush1.msra.mxu0 %v1136
    %2315 = vmatprep.subr.mxu0 0.0
    %2316 = vmatpush1.msra.mxu0 %v1137
    %2317 = vmatprep.subr.mxu0 0.0
    %2318 = vmatpush1.msra.mxu0 %v1138
    %2319 = vmatprep.subr.mxu0 0.0
    %2320 = vmatpush1.msra.mxu0 %v1139
    %2321 = vmatprep.subr.mxu0 0.0
    %2322 = vmatpush1.msra.mxu0 %v1140
    %2323 = vmatprep.subr.mxu0 0.0
    %2324 = vmatpush1.msra.mxu0 0.0
    %2325 = vmatprep.subr.mxu0 0.0
    %2326 = vmatpush1.msra.mxu0 0.0
    %2327 = vmatprep.subr.mxu0 0.0
    %2328 = vmatpush1.msra.mxu0 0.0
    %2329 = vmatprep.subr.mxu0 0.0
    %2330 = vmatpush1.msra.mxu0 0.0
    %2331 = vmatprep.subr.mxu0 0.0
    %2332 = vmatpush1.msra.mxu0 0.0
    %2333 = vmatprep.subr.mxu0 0.0
    %2334 = vmatpush1.msra.mxu0 0.0
    %2335 = vmatprep.subr.mxu0 0.0
    %2336 = vmatpush1.msra.mxu0 0.0
    %2337 = vmatprep.subr.mxu0 0.0
    %2338 = vmatpush1.msra.mxu0 0.0
    %2339 = vmatprep.subr.mxu0 0.0
    %2340 = vmatpush1.msra.mxu0 0.0
    %2341 = vmatprep.subr.mxu0 0.0
    %2342 = vmatpush1.msra.mxu0 0.0
    %2343 = vmatprep.subr.mxu0 0.0
    %2344 = vmatpush1.msra.mxu0 0.0
    %2345 = vmatprep.subr.mxu0 0.0
    %2346 = vmatpush1.msra.mxu0 0.0
    %2347 = vmatprep.subr.mxu0 0.0
    %2348 = vmatpush1.msra.mxu0 0.0
    %2349 = vmatprep.subr.mxu0 0.0
    %2350 = vmatpush1.msra.mxu0 0.0
    %2351 = vmatprep.subr.mxu0 0.0
    %2352 = vmatpush1.msra.mxu0 0.0
    %2353 = vmatprep.subr.mxu0 0.0
    %2354 = vmatpush1.msra.mxu0 0.0
    %2355 = vmatprep.mubr.f32.mxu0 0.0
    %2356 = vmatmul.mubr.f32.gmra.mrb[0].mxu0 %v2290
    %v2357 = vpop.f32.mrb[0].mxu0
    %v2358 = vadd.f32 %v1150, %v2357
    %v2359 = vpop.f32.mrb[0].mxu0
    %2360 = vdwg.mxu0
    %v2361 = vadd.f32 %v2056, %v2207
    %v2362 = vmul.f32 %v2361, 2.0
    %v2363 = vadd.f32 %v1905, %v2362
    %v2364 = vadd.f32 %v2363, %v2358
    %v2365 = vmul.f32 %v2364, 0.023809524
    %v2366 = vadd.f32 %v1758, %v2365
    %v2368 = vsel %vm169, %v2366, 0
    %2370 = vmatprep.subr.mxu0 0.0
    %2371 = vmatpush1.msra.mxu0 %v1121
    %2372 = vmatprep.subr.mxu0 0.0
    %2373 = vmatpush1.msra.mxu0 %v1122
    %2374 = vmatprep.subr.mxu0 0.0
    %2375 = vmatpush1.msra.mxu0 %v1123
    %2376 = vmatprep.subr.mxu0 0.0
    %2377 = vmatpush1.msra.mxu0 %v1124
    %2378 = vmatprep.subr.mxu0 0.0
    %2379 = vmatpush1.msra.mxu0 0.0
    %2380 = vmatprep.subr.mxu0 0.0
    %2381 = vmatpush1.msra.mxu0 0.0
    %2382 = vmatprep.subr.mxu0 0.0
    %2383 = vmatpush1.msra.mxu0 0.0
    %2384 = vmatprep.subr.mxu0 0.0
    %2385 = vmatpush1.msra.mxu0 0.0
    %2386 = vmatprep.subr.mxu0 0.0
    %2387 = vmatpush1.msra.mxu0 0.0
    %2388 = vmatprep.subr.mxu0 0.0
    %2389 = vmatpush1.msra.mxu0 0.0
    %2390 = vmatprep.subr.mxu0 0.0
    %2391 = vmatpush1.msra.mxu0 0.0
    %2392 = vmatprep.subr.mxu0 0.0
    %2393 = vmatpush1.msra.mxu0 0.0
    %2394 = vmatprep.subr.mxu0 0.0
    %2395 = vmatpush1.msra.mxu0 0.0
    %2396 = vmatprep.subr.mxu0 0.0
    %2397 = vmatpush1.msra.mxu0 0.0
    %2398 = vmatprep.subr.mxu0 0.0
    %2399 = vmatpush1.msra.mxu0 0.0
    %2400 = vmatprep.subr.mxu0 0.0
    %2401 = vmatpush1.msra.mxu0 0.0
    %2402 = vmatprep.subr.mxu0 0.0
    %2403 = vmatpush1.msra.mxu0 0.0
    %2404 = vmatprep.subr.mxu0 0.0
    %2405 = vmatpush1.msra.mxu0 0.0
    %2406 = vmatprep.subr.mxu0 0.0
    %2407 = vmatpush1.msra.mxu0 0.0
    %2408 = vmatprep.subr.mxu0 0.0
    %2409 = vmatpush1.msra.mxu0 0.0
    %2410 = vmatprep.subr.mxu0 0.0
    %2411 = vmatpush1.msra.mxu0 0.0
    %2412 = vmatprep.subr.mxu0 0.0
    %2413 = vmatpush1.msra.mxu0 0.0
    %2414 = vmatprep.subr.mxu0 0.0
    %2415 = vmatpush1.msra.mxu0 0.0
    %2416 = vmatprep.subr.mxu0 0.0
    %2417 = vmatpush1.msra.mxu0 0.0
    %2418 = vmatprep.subr.mxu0 0.0
    %2419 = vmatpush1.msra.mxu0 0.0
    %2420 = vmatprep.subr.mxu0 0.0
    %2421 = vmatpush1.msra.mxu0 0.0
    %2422 = vmatprep.subr.mxu0 0.0
    %2423 = vmatpush1.msra.mxu0 0.0
    %2424 = vmatprep.subr.mxu0 0.0
    %2425 = vmatpush1.msra.mxu0 0.0
    %2426 = vmatprep.subr.mxu0 0.0
    %2427 = vmatpush1.msra.mxu0 0.0
    %2428 = vmatprep.subr.mxu0 0.0
    %2429 = vmatpush1.msra.mxu0 0.0
    %2430 = vmatprep.subr.mxu0 0.0
    %2431 = vmatpush1.msra.mxu0 0.0
    %2432 = vmatprep.subr.mxu0 0.0
    %2433 = vmatpush1.msra.mxu0 0.0
    %2434 = vmatprep.mubr.f32.mxu0 0.0
    %2435 = vmatmul.mubr.f32.gmra.mrb[0].mxu0 %v2368
    %v2436 = vpop.f32.mrb[0].mxu0
    %v2437 = vadd.f32 %v1145, %v2436
    %v2438 = vpop.f32.mrb[0].mxu0
    %2439 = vdwg.mxu0
    %vm2440 = vcmp.gt.f32.partialorder %v2437, 0.0
    %v2441 = vmin.f32 %v2437, 0.0
    %v2442 = vmul.f32 %v2441, 1.442695
    %v2443 = vpow.pop %v2442
    %v2444 = vsub.f32 %v2443, 1.0
    %v2445 = vsel %vm2440, %v2437, %v2444
    %2446 = vmatprep.subr.mxu0 0.0
    %2447 = vmatpush1.msra.mxu0 %v1125
    %2448 = vmatprep.subr.mxu0 0.0
    %2449 = vmatpush1.msra.mxu0 %v1126
    %2450 = vmatprep.subr.mxu0 0.0
    %2451 = vmatpush1.msra.mxu0 %v1127
    %2452 = vmatprep.subr.mxu0 0.0
    %2453 = vmatpush1.msra.mxu0 %v1128
    %2454 = vmatprep.subr.mxu0 0.0
    %2455 = vmatpush1.msra.mxu0 %v1129
    %2456 = vmatprep.subr.mxu0 0.0
    %2457 = vmatpush1.msra.mxu0 %v1130
    %2458 = vmatprep.subr.mxu0 0.0
    %2459 = vmatpush1.msra.mxu0 %v1131
    %2460 = vmatprep.subr.mxu0 0.0
    %2461 = vmatpush1.msra.mxu0 %v1132
    %2462 = vmatprep.subr.mxu0 0.0
    %2463 = vmatpush1.msra.mxu0 %v1133
    %2464 = vmatprep.subr.mxu0 0.0
    %2465 = vmatpush1.msra.mxu0 %v1134
    %2466 = vmatprep.subr.mxu0 0.0
    %2467 = vmatpush1.msra.mxu0 %v1135
    %2468 = vmatprep.subr.mxu0 0.0
    %2469 = vmatpush1.msra.mxu0 %v1136
    %2470 = vmatprep.subr.mxu0 0.0
    %2471 = vmatpush1.msra.mxu0 %v1137
    %2472 = vmatprep.subr.mxu0 0.0
    %2473 = vmatpush1.msra.mxu0 %v1138
    %2474 = vmatprep.subr.mxu0 0.0
    %2475 = vmatpush1.msra.mxu0 %v1139
    %2476 = vmatprep.subr.mxu0 0.0
    %2477 = vmatpush1.msra.mxu0 %v1140
    %2478 = vmatprep.subr.mxu0 0.0
    %2479 = vmatpush1.msra.mxu0 0.0
    %2480 = vmatprep.subr.mxu0 0.0
    %2481 = vmatpush1.msra.mxu0 0.0
    %2482 = vmatprep.subr.mxu0 0.0
    %2483 = vmatpush1.msra.mxu0 0.0
    %2484 = vmatprep.subr.mxu0 0.0
    %2485 = vmatpush1.msra.mxu0 0.0
    %2486 = vmatprep.subr.mxu0 0.0
    %2487 = vmatpush1.msra.mxu0 0.0
    %2488 = vmatprep.subr.mxu0 0.0
    %2489 = vmatpush1.msra.mxu0 0.0
    %2490 = vmatprep.subr.mxu0 0.0
    %2491 = vmatpush1.msra.mxu0 0.0
    %2492 = vmatprep.subr.mxu0 0.0
    %2493 = vmatpush1.msra.mxu0 0.0
    %2494 = vmatprep.subr.mxu0 0.0
    %2495 = vmatpush1.msra.mxu0 0.0
    %2496 = vmatprep.subr.mxu0 0.0
    %2497 = vmatpush1.msra.mxu0 0.0
    %2498 = vmatprep.subr.mxu0 0.0
    %2499 = vmatpush1.msra.mxu0 0.0
    %2500 = vmatprep.subr.mxu0 0.0
    %2501 = vmatpush1.msra.mxu0 0.0
    %2502 = vmatprep.subr.mxu0 0.0
    %2503 = vmatpush1.msra.mxu0 0.0
    %2504 = vmatprep.subr.mxu0 0.0
    %2505 = vmatpush1.msra.mxu0 0.0
    %2506 = vmatprep.subr.mxu0 0.0
    %2507 = vmatpush1.msra.mxu0 0.0
    %2508 = vmatprep.subr.mxu0 0.0
    %2509 = vmatpush1.msra.mxu0 0.0
    %2510 = vmatprep.mubr.f32.mxu0 0.0
    %2511 = vmatmul.mubr.f32.gmra.mrb[0].mxu0 %v2445
    %v2512 = vpop.f32.mrb[0].mxu0
    %v2513 = vadd.f32 %v1150, %v2512
    %v2514 = vpop.f32.mrb[0].mxu0
    %2515 = vdwg.mxu0
    %v2516 = vmul.f32 %v2513, 0.071428575
    %v2517 = vadd.f32 %v2366, %v2516
    %v2519 = vsel %vm169, %v2517, 0
    %2521 = vmatprep.subr.mxu0 0.0
    %2522 = vmatpush1.msra.mxu0 %v1121
    %2523 = vmatprep.subr.mxu0 0.0
    %2524 = vmatpush1.msra.mxu0 %v1122
    %2525 = vmatprep.subr.mxu0 0.0
    %2526 = vmatpush1.msra.mxu0 %v1123
    %2527 = vmatprep.subr.mxu0 0.0
    %2528 = vmatpush1.msra.mxu0 %v1124
    %2529 = vmatprep.subr.mxu0 0.0
    %2530 = vmatpush1.msra.mxu0 0.0
    %2531 = vmatprep.subr.mxu0 0.0
    %2532 = vmatpush1.msra.mxu0 0.0
    %2533 = vmatprep.subr.mxu0 0.0
    %2534 = vmatpush1.msra.mxu0 0.0
    %2535 = vmatprep.subr.mxu0 0.0
    %2536 = vmatpush1.msra.mxu0 0.0
    %2537 = vmatprep.subr.mxu0 0.0
    %2538 = vmatpush1.msra.mxu0 0.0
    %2539 = vmatprep.subr.mxu0 0.0
    %2540 = vmatpush1.msra.mxu0 0.0
    %2541 = vmatprep.subr.mxu0 0.0
    %2542 = vmatpush1.msra.mxu0 0.0
    %2543 = vmatprep.subr.mxu0 0.0
    %2544 = vmatpush1.msra.mxu0 0.0
    %2545 = vmatprep.subr.mxu0 0.0
    %2546 = vmatpush1.msra.mxu0 0.0
    %2547 = vmatprep.subr.mxu0 0.0
    %2548 = vmatpush1.msra.mxu0 0.0
    %2549 = vmatprep.subr.mxu0 0.0
    %2550 = vmatpush1.msra.mxu0 0.0
    %2551 = vmatprep.subr.mxu0 0.0
    %2552 = vmatpush1.msra.mxu0 0.0
    %2553 = vmatprep.subr.mxu0 0.0
    %2554 = vmatpush1.msra.mxu0 0.0
    %2555 = vmatprep.subr.mxu0 0.0
    %2556 = vmatpush1.msra.mxu0 0.0
    %2557 = vmatprep.subr.mxu0 0.0
    %2558 = vmatpush1.msra.mxu0 0.0
    %2559 = vmatprep.subr.mxu0 0.0
    %2560 = vmatpush1.msra.mxu0 0.0
    %2561 = vmatprep.subr.mxu0 0.0
    %2562 = vmatpush1.msra.mxu0 0.0
    %2563 = vmatprep.subr.mxu0 0.0
    %2564 = vmatpush1.msra.mxu0 0.0
    %2565 = vmatprep.subr.mxu0 0.0
    %2566 = vmatpush1.msra.mxu0 0.0
    %2567 = vmatprep.subr.mxu0 0.0
    %2568 = vmatpush1.msra.mxu0 0.0
    %2569 = vmatprep.subr.mxu0 0.0
    %2570 = vmatpush1.msra.mxu0 0.0
    %2571 = vmatprep.subr.mxu0 0.0
    %2572 = vmatpush1.msra.mxu0 0.0
    %2573 = vmatprep.subr.mxu0 0.0
    %2574 = vmatpush1.msra.mxu0 0.0
    %2575 = vmatprep.subr.mxu0 0.0
    %2576 = vmatpush1.msra.mxu0 0.0
    %2577 = vmatprep.subr.mxu0 0.0
    %2578 = vmatpush1.msra.mxu0 0.0
    %2579 = vmatprep.subr.mxu0 0.0
    %2580 = vmatpush1.msra.mxu0 0.0
    %2581 = vmatprep.subr.mxu0 0.0
    %2582 = vmatpush1.msra.mxu0 0.0
    %2583 = vmatprep.subr.mxu0 0.0
    %2584 = vmatpush1.msra.mxu0 0.0
    %2585 = vmatprep.mubr.f32.mxu0 0.0
    %2586 = vmatmul.mubr.f32.gmra.mrb[0].mxu0 %v2519
    %v2587 = vpop.f32.mrb[0].mxu0
    %v2588 = vadd.f32 %v1145, %v2587
    %v2589 = vpop.f32.mrb[0].mxu0
    %2590 = vdwg.mxu0
    %vm2591 = vcmp.gt.f32.partialorder %v2588, 0.0
    %v2592 = vmin.f32 %v2588, 0.0
    %v2593 = vmul.f32 %v2592, 1.442695
    %v2594 = vpow.pop %v2593
    %v2595 = vsub.f32 %v2594, 1.0
    %v2596 = vsel %vm2591, %v2588, %v2595
    %2597 = vmatprep.subr.mxu0 0.0
    %2598 = vmatpush1.msra.mxu0 %v1125
    %2599 = vmatprep.subr.mxu0 0.0
    %2600 = vmatpush1.msra.mxu0 %v1126
    %2601 = vmatprep.subr.mxu0 0.0
    %2602 = vmatpush1.msra.mxu0 %v1127
    %2603 = vmatprep.subr.mxu0 0.0
    %2604 = vmatpush1.msra.mxu0 %v1128
    %2605 = vmatprep.subr.mxu0 0.0
    %2606 = vmatpush1.msra.mxu0 %v1129
    %2607 = vmatprep.subr.mxu0 0.0
    %2608 = vmatpush1.msra.mxu0 %v1130
    %2609 = vmatprep.subr.mxu0 0.0
    %2610 = vmatpush1.msra.mxu0 %v1131
    %2611 = vmatprep.subr.mxu0 0.0
    %2612 = vmatpush1.msra.mxu0 %v1132
    %2613 = vmatprep.subr.mxu0 0.0
    %2614 = vmatpush1.msra.mxu0 %v1133
    %2615 = vmatprep.subr.mxu0 0.0
    %2616 = vmatpush1.msra.mxu0 %v1134
    %2617 = vmatprep.subr.mxu0 0.0
    %2618 = vmatpush1.msra.mxu0 %v1135
    %2619 = vmatprep.subr.mxu0 0.0
    %2620 = vmatpush1.msra.mxu0 %v1136
    %2621 = vmatprep.subr.mxu0 0.0
    %2622 = vmatpush1.msra.mxu0 %v1137
    %2623 = vmatprep.subr.mxu0 0.0
    %2624 = vmatpush1.msra.mxu0 %v1138
    %2625 = vmatprep.subr.mxu0 0.0
    %2626 = vmatpush1.msra.mxu0 %v1139
    %2627 = vmatprep.subr.mxu0 0.0
    %2628 = vmatpush1.msra.mxu0 %v1140
    %2629 = vmatprep.subr.mxu0 0.0
    %2630 = vmatpush1.msra.mxu0 0.0
    %2631 = vmatprep.subr.mxu0 0.0
    %2632 = vmatpush1.msra.mxu0 0.0
    %2633 = vmatprep.subr.mxu0 0.0
    %2634 = vmatpush1.msra.mxu0 0.0
    %2635 = vmatprep.subr.mxu0 0.0
    %2636 = vmatpush1.msra.mxu0 0.0
    %2637 = vmatprep.subr.mxu0 0.0
    %2638 = vmatpush1.msra.mxu0 0.0
    %2639 = vmatprep.subr.mxu0 0.0
    %2640 = vmatpush1.msra.mxu0 0.0
    %2641 = vmatprep.subr.mxu0 0.0
    %2642 = vmatpush1.msra.mxu0 0.0
    %2643 = vmatprep.subr.mxu0 0.0
    %2644 = vmatpush1.msra.mxu0 0.0
    %2645 = vmatprep.subr.mxu0 0.0
    %2646 = vmatpush1.msra.mxu0 0.0
    %2647 = vmatprep.subr.mxu0 0.0
    %2648 = vmatpush1.msra.mxu0 0.0
    %2649 = vmatprep.subr.mxu0 0.0
    %2650 = vmatpush1.msra.mxu0 0.0
    %2651 = vmatprep.subr.mxu0 0.0
    %2652 = vmatpush1.msra.mxu0 0.0
    %2653 = vmatprep.subr.mxu0 0.0
    %2654 = vmatpush1.msra.mxu0 0.0
    %2655 = vmatprep.subr.mxu0 0.0
    %2656 = vmatpush1.msra.mxu0 0.0
    %2657 = vmatprep.subr.mxu0 0.0
    %2658 = vmatpush1.msra.mxu0 0.0
    %2659 = vmatprep.subr.mxu0 0.0
    %2660 = vmatpush1.msra.mxu0 0.0
    %2661 = vmatprep.mubr.f32.mxu0 0.0
    %2662 = vmatmul.mubr.f32.gmra.mrb[0].mxu0 %v2596
    %v2663 = vpop.f32.mrb[0].mxu0
    %v2664 = vadd.f32 %v1150, %v2663
    %v2665 = vpop.f32.mrb[0].mxu0
    %2666 = vdwg.mxu0
    %v2667 = vmul.f32 %v2664, 0.071428575
    %v2668 = vadd.f32 %v2366, %v2667
    %v2670 = vsel %vm169, %v2668, 0
    %2672 = vmatprep.subr.mxu0 0.0
    %2673 = vmatpush1.msra.mxu0 %v1121
    %2674 = vmatprep.subr.mxu0 0.0
    %2675 = vmatpush1.msra.mxu0 %v1122
    %2676 = vmatprep.subr.mxu0 0.0
    %2677 = vmatpush1.msra.mxu0 %v1123
    %2678 = vmatprep.subr.mxu0 0.0
    %2679 = vmatpush1.msra.mxu0 %v1124
    %2680 = vmatprep.subr.mxu0 0.0
    %2681 = vmatpush1.msra.mxu0 0.0
    %2682 = vmatprep.subr.mxu0 0.0
    %2683 = vmatpush1.msra.mxu0 0.0
    %2684 = vmatprep.subr.mxu0 0.0
    %2685 = vmatpush1.msra.mxu0 0.0
    %2686 = vmatprep.subr.mxu0 0.0
    %2687 = vmatpush1.msra.mxu0 0.0
    %2688 = vmatprep.subr.mxu0 0.0
    %2689 = vmatpush1.msra.mxu0 0.0
    %2690 = vmatprep.subr.mxu0 0.0
    %2691 = vmatpush1.msra.mxu0 0.0
    %2692 = vmatprep.subr.mxu0 0.0
    %2693 = vmatpush1.msra.mxu0 0.0
    %2694 = vmatprep.subr.mxu0 0.0
    %2695 = vmatpush1.msra.mxu0 0.0
    %2696 = vmatprep.subr.mxu0 0.0
    %2697 = vmatpush1.msra.mxu0 0.0
    %2698 = vmatprep.subr.mxu0 0.0
    %2699 = vmatpush1.msra.mxu0 0.0
    %2700 = vmatprep.subr.mxu0 0.0
    %2701 = vmatpush1.msra.mxu0 0.0
    %2702 = vmatprep.subr.mxu0 0.0
    %2703 = vmatpush1.msra.mxu0 0.0
    %2704 = vmatprep.subr.mxu0 0.0
    %2705 = vmatpush1.msra.mxu0 0.0
    %2706 = vmatprep.subr.mxu0 0.0
    %2707 = vmatpush1.msra.mxu0 0.0
    %2708 = vmatprep.subr.mxu0 0.0
    %2709 = vmatpush1.msra.mxu0 0.0
    %2710 = vmatprep.subr.mxu0 0.0
    %2711 = vmatpush1.msra.mxu0 0.0
    %2712 = vmatprep.subr.mxu0 0.0
    %2713 = vmatpush1.msra.mxu0 0.0
    %2714 = vmatprep.subr.mxu0 0.0
    %2715 = vmatpush1.msra.mxu0 0.0
    %2716 = vmatprep.subr.mxu0 0.0
    %2717 = vmatpush1.msra.mxu0 0.0
    %2718 = vmatprep.subr.mxu0 0.0
    %2719 = vmatpush1.msra.mxu0 0.0
    %2720 = vmatprep.subr.mxu0 0.0
    %2721 = vmatpush1.msra.mxu0 0.0
    %2722 = vmatprep.subr.mxu0 0.0
    %2723 = vmatpush1.msra.mxu0 0.0
    %2724 = vmatprep.subr.mxu0 0.0
    %2725 = vmatpush1.msra.mxu0 0.0
    %2726 = vmatprep.subr.mxu0 0.0
    %2727 = vmatpush1.msra.mxu0 0.0
    %2728 = vmatprep.subr.mxu0 0.0
    %2729 = vmatpush1.msra.mxu0 0.0
    %2730 = vmatprep.subr.mxu0 0.0
    %2731 = vmatpush1.msra.mxu0 0.0
    %2732 = vmatprep.subr.mxu0 0.0
    %2733 = vmatpush1.msra.mxu0 0.0
    %2734 = vmatprep.subr.mxu0 0.0
    %2735 = vmatpush1.msra.mxu0 0.0
    %2736 = vmatprep.mubr.f32.mxu0 0.0
    %2737 = vmatmul.mubr.f32.gmra.mrb[0].mxu0 %v2670
    %v2738 = vpop.f32.mrb[0].mxu0
    %v2739 = vadd.f32 %v1145, %v2738
    %v2740 = vpop.f32.mrb[0].mxu0
    %2741 = vdwg.mxu0
    %vm2742 = vcmp.gt.f32.partialorder %v2739, 0.0
    %v2743 = vmin.f32 %v2739, 0.0
    %v2744 = vmul.f32 %v2743, 1.442695
    %v2745 = vpow.pop %v2744
    %v2746 = vsub.f32 %v2745, 1.0
    %v2747 = vsel %vm2742, %v2739, %v2746
    %2748 = vmatprep.subr.mxu0 0.0
    %2749 = vmatpush1.msra.mxu0 %v1125
    %2750 = vmatprep.subr.mxu0 0.0
    %2751 = vmatpush1.msra.mxu0 %v1126
    %2752 = vmatprep.subr.mxu0 0.0
    %2753 = vmatpush1.msra.mxu0 %v1127
    %2754 = vmatprep.subr.mxu0 0.0
    %2755 = vmatpush1.msra.mxu0 %v1128
    %2756 = vmatprep.subr.mxu0 0.0
    %2757 = vmatpush1.msra.mxu0 %v1129
    %2758 = vmatprep.subr.mxu0 0.0
    %2759 = vmatpush1.msra.mxu0 %v1130
    %2760 = vmatprep.subr.mxu0 0.0
    %2761 = vmatpush1.msra.mxu0 %v1131
    %2762 = vmatprep.subr.mxu0 0.0
    %2763 = vmatpush1.msra.mxu0 %v1132
    %2764 = vmatprep.subr.mxu0 0.0
    %2765 = vmatpush1.msra.mxu0 %v1133
    %2766 = vmatprep.subr.mxu0 0.0
    %2767 = vmatpush1.msra.mxu0 %v1134
    %2768 = vmatprep.subr.mxu0 0.0
    %2769 = vmatpush1.msra.mxu0 %v1135
    %2770 = vmatprep.subr.mxu0 0.0
    %2771 = vmatpush1.msra.mxu0 %v1136
    %2772 = vmatprep.subr.mxu0 0.0
    %2773 = vmatpush1.msra.mxu0 %v1137
    %2774 = vmatprep.subr.mxu0 0.0
    %2775 = vmatpush1.msra.mxu0 %v1138
    %2776 = vmatprep.subr.mxu0 0.0
    %2777 = vmatpush1.msra.mxu0 %v1139
    %2778 = vmatprep.subr.mxu0 0.0
    %2779 = vmatpush1.msra.mxu0 %v1140
    %2780 = vmatprep.subr.mxu0 0.0
    %2781 = vmatpush1.msra.mxu0 0.0
    %2782 = vmatprep.subr.mxu0 0.0
    %2783 = vmatpush1.msra.mxu0 0.0
    %2784 = vmatprep.subr.mxu0 0.0
    %2785 = vmatpush1.msra.mxu0 0.0
    %2786 = vmatprep.subr.mxu0 0.0
    %2787 = vmatpush1.msra.mxu0 0.0
    %2788 = vmatprep.subr.mxu0 0.0
    %2789 = vmatpush1.msra.mxu0 0.0
    %2790 = vmatprep.subr.mxu0 0.0
    %2791 = vmatpush1.msra.mxu0 0.0
    %2792 = vmatprep.subr.mxu0 0.0
    %2793 = vmatpush1.msra.mxu0 0.0
    %2794 = vmatprep.subr.mxu0 0.0
    %2795 = vmatpush1.msra.mxu0 0.0
    %2796 = vmatprep.subr.mxu0 0.0
    %2797 = vmatpush1.msra.mxu0 0.0
    %2798 = vmatprep.subr.mxu0 0.0
    %2799 = vmatpush1.msra.mxu0 0.0
    %2800 = vmatprep.subr.mxu0 0.0
    %2801 = vmatpush1.msra.mxu0 0.0
    %2802 = vmatprep.subr.mxu0 0.0
    %2803 = vmatpush1.msra.mxu0 0.0
    %2804 = vmatprep.subr.mxu0 0.0
    %2805 = vmatpush1.msra.mxu0 0.0
    %2806 = vmatprep.subr.mxu0 0.0
    %2807 = vmatpush1.msra.mxu0 0.0
    %2808 = vmatprep.subr.mxu0 0.0
    %2809 = vmatpush1.msra.mxu0 0.0
    %2810 = vmatprep.subr.mxu0 0.0
    %2811 = vmatpush1.msra.mxu0 0.0
    %2812 = vmatprep.mubr.f32.mxu0 0.0
    %2813 = vmatmul.mubr.f32.gmra.mrb[0].mxu0 %v2747
    %v2814 = vpop.f32.mrb[0].mxu0
    %v2815 = vadd.f32 %v1150, %v2814
    %v2816 = vpop.f32.mrb[0].mxu0
    %2817 = vdwg.mxu0
    %v2818 = vmul.f32 %v2815, 0.14285715
    %v2819 = vadd.f32 %v2366, %v2818
    %v2821 = vsel %vm169, %v2819, 0
    %2823 = vmatprep.subr.mxu0 0.0
    %2824 = vmatpush1.msra.mxu0 %v1121
    %2825 = vmatprep.subr.mxu0 0.0
    %2826 = vmatpush1.msra.mxu0 %v1122
    %2827 = vmatprep.subr.mxu0 0.0
    %2828 = vmatpush1.msra.mxu0 %v1123
    %2829 = vmatprep.subr.mxu0 0.0
    %2830 = vmatpush1.msra.mxu0 %v1124
    %2831 = vmatprep.subr.mxu0 0.0
    %2832 = vmatpush1.msra.mxu0 0.0
    %2833 = vmatprep.subr.mxu0 0.0
    %2834 = vmatpush1.msra.mxu0 0.0
    %2835 = vmatprep.subr.mxu0 0.0
    %2836 = vmatpush1.msra.mxu0 0.0
    %2837 = vmatprep.subr.mxu0 0.0
    %2838 = vmatpush1.msra.mxu0 0.0
    %2839 = vmatprep.subr.mxu0 0.0
    %2840 = vmatpush1.msra.mxu0 0.0
    %2841 = vmatprep.subr.mxu0 0.0
    %2842 = vmatpush1.msra.mxu0 0.0
    %2843 = vmatprep.subr.mxu0 0.0
    %2844 = vmatpush1.msra.mxu0 0.0
    %2845 = vmatprep.subr.mxu0 0.0
    %2846 = vmatpush1.msra.mxu0 0.0
    %2847 = vmatprep.subr.mxu0 0.0
    %2848 = vmatpush1.msra.mxu0 0.0
    %2849 = vmatprep.subr.mxu0 0.0
    %2850 = vmatpush1.msra.mxu0 0.0
    %2851 = vmatprep.subr.mxu0 0.0
    %2852 = vmatpush1.msra.mxu0 0.0
    %2853 = vmatprep.subr.mxu0 0.0
    %2854 = vmatpush1.msra.mxu0 0.0
    %2855 = vmatprep.subr.mxu0 0.0
    %2856 = vmatpush1.msra.mxu0 0.0
    %2857 = vmatprep.subr.mxu0 0.0
    %2858 = vmatpush1.msra.mxu0 0.0
    %2859 = vmatprep.subr.mxu0 0.0
    %2860 = vmatpush1.msra.mxu0 0.0
    %2861 = vmatprep.subr.mxu0 0.0
    %2862 = vmatpush1.msra.mxu0 0.0
    %2863 = vmatprep.subr.mxu0 0.0
    %2864 = vmatpush1.msra.mxu0 0.0
    %2865 = vmatprep.subr.mxu0 0.0
    %2866 = vmatpush1.msra.mxu0 0.0
    %2867 = vmatprep.subr.mxu0 0.0
    %2868 = vmatpush1.msra.mxu0 0.0
    %2869 = vmatprep.subr.mxu0 0.0
    %2870 = vmatpush1.msra.mxu0 0.0
    %2871 = vmatprep.subr.mxu0 0.0
    %2872 = vmatpush1.msra.mxu0 0.0
    %2873 = vmatprep.subr.mxu0 0.0
    %2874 = vmatpush1.msra.mxu0 0.0
    %2875 = vmatprep.subr.mxu0 0.0
    %2876 = vmatpush1.msra.mxu0 0.0
    %2877 = vmatprep.subr.mxu0 0.0
    %2878 = vmatpush1.msra.mxu0 0.0
    %2879 = vmatprep.subr.mxu0 0.0
    %2880 = vmatpush1.msra.mxu0 0.0
    %2881 = vmatprep.subr.mxu0 0.0
    %2882 = vmatpush1.msra.mxu0 0.0
    %2883 = vmatprep.subr.mxu0 0.0
    %2884 = vmatpush1.msra.mxu0 0.0
    %2885 = vmatprep.subr.mxu0 0.0
    %2886 = vmatpush1.msra.mxu0 0.0
    %2887 = vmatprep.mubr.f32.mxu0 0.0
    %2888 = vmatmul.mubr.f32.gmra.mrb[0].mxu0 %v2821
    %v2889 = vpop.f32.mrb[0].mxu0
    %v2890 = vadd.f32 %v1145, %v2889
    %v2891 = vpop.f32.mrb[0].mxu0
    %2892 = vdwg.mxu0
    %vm2893 = vcmp.gt.f32.partialorder %v2890, 0.0
    %v2894 = vmin.f32 %v2890, 0.0
    %v2895 = vmul.f32 %v2894, 1.442695
    %v2896 = vpow.pop %v2895
    %v2897 = vsub.f32 %v2896, 1.0
    %v2898 = vsel %vm2893, %v2890, %v2897
    %2899 = vmatprep.subr.mxu0 0.0
    %2900 = vmatpush1.msra.mxu0 %v1125
    %2901 = vmatprep.subr.mxu0 0.0
    %2902 = vmatpush1.msra.mxu0 %v1126
    %2903 = vmatprep.subr.mxu0 0.0
    %2904 = vmatpush1.msra.mxu0 %v1127
    %2905 = vmatprep.subr.mxu0 0.0
    %2906 = vmatpush1.msra.mxu0 %v1128
    %2907 = vmatprep.subr.mxu0 0.0
    %2908 = vmatpush1.msra.mxu0 %v1129
    %2909 = vmatprep.subr.mxu0 0.0
    %2910 = vmatpush1.msra.mxu0 %v1130
    %2911 = vmatprep.subr.mxu0 0.0
    %2912 = vmatpush1.msra.mxu0 %v1131
    %2913 = vmatprep.subr.mxu0 0.0
    %2914 = vmatpush1.msra.mxu0 %v1132
    %2915 = vmatprep.subr.mxu0 0.0
    %2916 = vmatpush1.msra.mxu0 %v1133
    %2917 = vmatprep.subr.mxu0 0.0
    %2918 = vmatpush1.msra.mxu0 %v1134
    %2919 = vmatprep.subr.mxu0 0.0
    %2920 = vmatpush1.msra.mxu0 %v1135
    %2921 = vmatprep.subr.mxu0 0.0
    %2922 = vmatpush1.msra.mxu0 %v1136
    %2923 = vmatprep.subr.mxu0 0.0
    %2924 = vmatpush1.msra.mxu0 %v1137
    %2925 = vmatprep.subr.mxu0 0.0
    %2926 = vmatpush1.msra.mxu0 %v1138
    %2927 = vmatprep.subr.mxu0 0.0
    %2928 = vmatpush1.msra.mxu0 %v1139
    %2929 = vmatprep.subr.mxu0 0.0
    %2930 = vmatpush1.msra.mxu0 %v1140
    %2931 = vmatprep.subr.mxu0 0.0
    %2932 = vmatpush1.msra.mxu0 0.0
    %2933 = vmatprep.subr.mxu0 0.0
    %2934 = vmatpush1.msra.mxu0 0.0
    %2935 = vmatprep.subr.mxu0 0.0
    %2936 = vmatpush1.msra.mxu0 0.0
    %2937 = vmatprep.subr.mxu0 0.0
    %2938 = vmatpush1.msra.mxu0 0.0
    %2939 = vmatprep.subr.mxu0 0.0
    %2940 = vmatpush1.msra.mxu0 0.0
    %2941 = vmatprep.subr.mxu0 0.0
    %2942 = vmatpush1.msra.mxu0 0.0
    %2943 = vmatprep.subr.mxu0 0.0
    %2944 = vmatpush1.msra.mxu0 0.0
    %2945 = vmatprep.subr.mxu0 0.0
    %2946 = vmatpush1.msra.mxu0 0.0
    %2947 = vmatprep.subr.mxu0 0.0
    %2948 = vmatpush1.msra.mxu0 0.0
    %2949 = vmatprep.subr.mxu0 0.0
    %2950 = vmatpush1.msra.mxu0 0.0
    %2951 = vmatprep.subr.mxu0 0.0
    %2952 = vmatpush1.msra.mxu0 0.0
    %2953 = vmatprep.subr.mxu0 0.0
    %2954 = vmatpush1.msra.mxu0 0.0
    %2955 = vmatprep.subr.mxu0 0.0
    %2956 = vmatpush1.msra.mxu0 0.0
    %2957 = vmatprep.subr.mxu0 0.0
    %2958 = vmatpush1.msra.mxu0 0.0
    %2959 = vmatprep.subr.mxu0 0.0
    %2960 = vmatpush1.msra.mxu0 0.0
    %2961 = vmatprep.subr.mxu0 0.0
    %2962 = vmatpush1.msra.mxu0 0.0
    %2963 = vmatprep.mubr.f32.mxu0 0.0
    %2964 = vmatmul.mubr.f32.gmra.mrb[0].mxu0 %v2898
    %v2965 = vpop.f32.mrb[0].mxu0
    %v2966 = vadd.f32 %v1150, %v2965
    %v2967 = vpop.f32.mrb[0].mxu0
    %2968 = vdwg.mxu0
    %v2969 = vadd.f32 %v2664, %v2815
    %v2970 = vmul.f32 %v2969, 2.0
    %v2971 = vadd.f32 %v2513, %v2970
    %v2972 = vadd.f32 %v2971, %v2966
    %v2973 = vmul.f32 %v2972, 0.023809524
    %v2974 = vadd.f32 %v2366, %v2973
    %v2976 = vsel %vm169, %v2974, 0
    %2978 = vmatprep.subr.mxu0 0.0
    %2979 = vmatpush1.msra.mxu0 %v1121
    %2980 = vmatprep.subr.mxu0 0.0
    %2981 = vmatpush1.msra.mxu0 %v1122
    %2982 = vmatprep.subr.mxu0 0.0
    %2983 = vmatpush1.msra.mxu0 %v1123
    %2984 = vmatprep.subr.mxu0 0.0
    %2985 = vmatpush1.msra.mxu0 %v1124
    %2986 = vmatprep.subr.mxu0 0.0
    %2987 = vmatpush1.msra.mxu0 0.0
    %2988 = vmatprep.subr.mxu0 0.0
    %2989 = vmatpush1.msra.mxu0 0.0
    %2990 = vmatprep.subr.mxu0 0.0
    %2991 = vmatpush1.msra.mxu0 0.0
    %2992 = vmatprep.subr.mxu0 0.0
    %2993 = vmatpush1.msra.mxu0 0.0
    %2994 = vmatprep.subr.mxu0 0.0
    %2995 = vmatpush1.msra.mxu0 0.0
    %2996 = vmatprep.subr.mxu0 0.0
    %2997 = vmatpush1.msra.mxu0 0.0
    %2998 = vmatprep.subr.mxu0 0.0
    %2999 = vmatpush1.msra.mxu0 0.0
    %3000 = vmatprep.subr.mxu0 0.0
    %3001 = vmatpush1.msra.mxu0 0.0
    %3002 = vmatprep.subr.mxu0 0.0
    %3003 = vmatpush1.msra.mxu0 0.0
    %3004 = vmatprep.subr.mxu0 0.0
    %3005 = vmatpush1.msra.mxu0 0.0
    %3006 = vmatprep.subr.mxu0 0.0
    %3007 = vmatpush1.msra.mxu0 0.0
    %3008 = vmatprep.subr.mxu0 0.0
    %3009 = vmatpush1.msra.mxu0 0.0
    %3010 = vmatprep.subr.mxu0 0.0
    %3011 = vmatpush1.msra.mxu0 0.0
    %3012 = vmatprep.subr.mxu0 0.0
    %3013 = vmatpush1.msra.mxu0 0.0
    %3014 = vmatprep.subr.mxu0 0.0
    %3015 = vmatpush1.msra.mxu0 0.0
    %3016 = vmatprep.subr.mxu0 0.0
    %3017 = vmatpush1.msra.mxu0 0.0
    %3018 = vmatprep.subr.mxu0 0.0
    %3019 = vmatpush1.msra.mxu0 0.0
    %3020 = vmatprep.subr.mxu0 0.0
    %3021 = vmatpush1.msra.mxu0 0.0
    %3022 = vmatprep.subr.mxu0 0.0
    %3023 = vmatpush1.msra.mxu0 0.0
    %3024 = vmatprep.subr.mxu0 0.0
    %3025 = vmatpush1.msra.mxu0 0.0
    %3026 = vmatprep.subr.mxu0 0.0
    %3027 = vmatpush1.msra.mxu0 0.0
    %3028 = vmatprep.subr.mxu0 0.0
    %3029 = vmatpush1.msra.mxu0 0.0
    %3030 = vmatprep.subr.mxu0 0.0
    %3031 = vmatpush1.msra.mxu0 0.0
    %3032 = vmatprep.subr.mxu0 0.0
    %3033 = vmatpush1.msra.mxu0 0.0
    %3034 = vmatprep.subr.mxu0 0.0
    %3035 = vmatpush1.msra.mxu0 0.0
    %3036 = vmatprep.subr.mxu0 0.0
    %3037 = vmatpush1.msra.mxu0 0.0
    %3038 = vmatprep.subr.mxu0 0.0
    %3039 = vmatpush1.msra.mxu0 0.0
    %3040 = vmatprep.subr.mxu0 0.0
    %3041 = vmatpush1.msra.mxu0 0.0
    %3042 = vmatprep.mubr.f32.mxu0 0.0
    %3043 = vmatmul.mubr.f32.gmra.mrb[0].mxu0 %v2976
    %v3044 = vpop.f32.mrb[0].mxu0
    %v3045 = vadd.f32 %v1145, %v3044
    %v3046 = vpop.f32.mrb[0].mxu0
    %3047 = vdwg.mxu0
    %vm3048 = vcmp.gt.f32.partialorder %v3045, 0.0
    %v3049 = vmin.f32 %v3045, 0.0
    %v3050 = vmul.f32 %v3049, 1.442695
    %v3051 = vpow.pop %v3050
    %v3052 = vsub.f32 %v3051, 1.0
    %v3053 = vsel %vm3048, %v3045, %v3052
    %3054 = vmatprep.subr.mxu0 0.0
    %3055 = vmatpush1.msra.mxu0 %v1125
    %3056 = vmatprep.subr.mxu0 0.0
    %3057 = vmatpush1.msra.mxu0 %v1126
    %3058 = vmatprep.subr.mxu0 0.0
    %3059 = vmatpush1.msra.mxu0 %v1127
    %3060 = vmatprep.subr.mxu0 0.0
    %3061 = vmatpush1.msra.mxu0 %v1128
    %3062 = vmatprep.subr.mxu0 0.0
    %3063 = vmatpush1.msra.mxu0 %v1129
    %3064 = vmatprep.subr.mxu0 0.0
    %3065 = vmatpush1.msra.mxu0 %v1130
    %3066 = vmatprep.subr.mxu0 0.0
    %3067 = vmatpush1.msra.mxu0 %v1131
    %3068 = vmatprep.subr.mxu0 0.0
    %3069 = vmatpush1.msra.mxu0 %v1132
    %3070 = vmatprep.subr.mxu0 0.0
    %3071 = vmatpush1.msra.mxu0 %v1133
    %3072 = vmatprep.subr.mxu0 0.0
    %3073 = vmatpush1.msra.mxu0 %v1134
    %3074 = vmatprep.subr.mxu0 0.0
    %3075 = vmatpush1.msra.mxu0 %v1135
    %3076 = vmatprep.subr.mxu0 0.0
    %3077 = vmatpush1.msra.mxu0 %v1136
    %3078 = vmatprep.subr.mxu0 0.0
    %3079 = vmatpush1.msra.mxu0 %v1137
    %3080 = vmatprep.subr.mxu0 0.0
    %3081 = vmatpush1.msra.mxu0 %v1138
    %3082 = vmatprep.subr.mxu0 0.0
    %3083 = vmatpush1.msra.mxu0 %v1139
    %3084 = vmatprep.subr.mxu0 0.0
    %3085 = vmatpush1.msra.mxu0 %v1140
    %3086 = vmatprep.subr.mxu0 0.0
    %3087 = vmatpush1.msra.mxu0 0.0
    %3088 = vmatprep.subr.mxu0 0.0
    %3089 = vmatpush1.msra.mxu0 0.0
    %3090 = vmatprep.subr.mxu0 0.0
    %3091 = vmatpush1.msra.mxu0 0.0
    %3092 = vmatprep.subr.mxu0 0.0
    %3093 = vmatpush1.msra.mxu0 0.0
    %3094 = vmatprep.subr.mxu0 0.0
    %3095 = vmatpush1.msra.mxu0 0.0
    %3096 = vmatprep.subr.mxu0 0.0
    %3097 = vmatpush1.msra.mxu0 0.0
    %3098 = vmatprep.subr.mxu0 0.0
    %3099 = vmatpush1.msra.mxu0 0.0
    %3100 = vmatprep.subr.mxu0 0.0
    %3101 = vmatpush1.msra.mxu0 0.0
    %3102 = vmatprep.subr.mxu0 0.0
    %3103 = vmatpush1.msra.mxu0 0.0
    %3104 = vmatprep.subr.mxu0 0.0
    %3105 = vmatpush1.msra.mxu0 0.0
    %3106 = vmatprep.subr.mxu0 0.0
    %3107 = vmatpush1.msra.mxu0 0.0
    %3108 = vmatprep.subr.mxu0 0.0
    %3109 = vmatpush1.msra.mxu0 0.0
    %3110 = vmatprep.subr.mxu0 0.0
    %3111 = vmatpush1.msra.mxu0 0.0
    %3112 = vmatprep.subr.mxu0 0.0
    %3113 = vmatpush1.msra.mxu0 0.0
    %3114 = vmatprep.subr.mxu0 0.0
    %3115 = vmatpush1.msra.mxu0 0.0
    %3116 = vmatprep.subr.mxu0 0.0
    %3117 = vmatpush1.msra.mxu0 0.0
    %3118 = vmatprep.mubr.f32.mxu0 0.0
    %3119 = vmatmul.mubr.f32.gmra.mrb[0].mxu0 %v3053
    %v3120 = vpop.f32.mrb[0].mxu0
    %v3121 = vadd.f32 %v1150, %v3120
    %v3122 = vpop.f32.mrb[0].mxu0
    %3123 = vdwg.mxu0
    %v3124 = vmul.f32 %v3121, 0.071428575
    %v3125 = vadd.f32 %v2974, %v3124
    %v3127 = vsel %vm169, %v3125, 0
    %3129 = vmatprep.subr.mxu0 0.0
    %3130 = vmatpush1.msra.mxu0 %v1121
    %3131 = vmatprep.subr.mxu0 0.0
    %3132 = vmatpush1.msra.mxu0 %v1122
    %3133 = vmatprep.subr.mxu0 0.0
    %3134 = vmatpush1.msra.mxu0 %v1123
    %3135 = vmatprep.subr.mxu0 0.0
    %3136 = vmatpush1.msra.mxu0 %v1124
    %3137 = vmatprep.subr.mxu0 0.0
    %3138 = vmatpush1.msra.mxu0 0.0
    %3139 = vmatprep.subr.mxu0 0.0
    %3140 = vmatpush1.msra.mxu0 0.0
    %3141 = vmatprep.subr.mxu0 0.0
    %3142 = vmatpush1.msra.mxu0 0.0
    %3143 = vmatprep.subr.mxu0 0.0
    %3144 = vmatpush1.msra.mxu0 0.0
    %3145 = vmatprep.subr.mxu0 0.0
    %3146 = vmatpush1.msra.mxu0 0.0
    %3147 = vmatprep.subr.mxu0 0.0
    %3148 = vmatpush1.msra.mxu0 0.0
    %3149 = vmatprep.subr.mxu0 0.0
    %3150 = vmatpush1.msra.mxu0 0.0
    %3151 = vmatprep.subr.mxu0 0.0
    %3152 = vmatpush1.msra.mxu0 0.0
    %3153 = vmatprep.subr.mxu0 0.0
    %3154 = vmatpush1.msra.mxu0 0.0
    %3155 = vmatprep.subr.mxu0 0.0
    %3156 = vmatpush1.msra.mxu0 0.0
    %3157 = vmatprep.subr.mxu0 0.0
    %3158 = vmatpush1.msra.mxu0 0.0
    %3159 = vmatprep.subr.mxu0 0.0
    %3160 = vmatpush1.msra.mxu0 0.0
    %3161 = vmatprep.subr.mxu0 0.0
    %3162 = vmatpush1.msra.mxu0 0.0
    %3163 = vmatprep.subr.mxu0 0.0
    %3164 = vmatpush1.msra.mxu0 0.0
    %3165 = vmatprep.subr.mxu0 0.0
    %3166 = vmatpush1.msra.mxu0 0.0
    %3167 = vmatprep.subr.mxu0 0.0
    %3168 = vmatpush1.msra.mxu0 0.0
    %3169 = vmatprep.subr.mxu0 0.0
    %3170 = vmatpush1.msra.mxu0 0.0
    %3171 = vmatprep.subr.mxu0 0.0
    %3172 = vmatpush1.msra.mxu0 0.0
    %3173 = vmatprep.subr.mxu0 0.0
    %3174 = vmatpush1.msra.mxu0 0.0
    %3175 = vmatprep.subr.mxu0 0.0
    %3176 = vmatpush1.msra.mxu0 0.0
    %3177 = vmatprep.subr.mxu0 0.0
    %3178 = vmatpush1.msra.mxu0 0.0
    %3179 = vmatprep.subr.mxu0 0.0
    %3180 = vmatpush1.msra.mxu0 0.0
    %3181 = vmatprep.subr.mxu0 0.0
    %3182 = vmatpush1.msra.mxu0 0.0
    %3183 = vmatprep.subr.mxu0 0.0
    %3184 = vmatpush1.msra.mxu0 0.0
    %3185 = vmatprep.subr.mxu0 0.0
    %3186 = vmatpush1.msra.mxu0 0.0
    %3187 = vmatprep.subr.mxu0 0.0
    %3188 = vmatpush1.msra.mxu0 0.0
    %3189 = vmatprep.subr.mxu0 0.0
    %3190 = vmatpush1.msra.mxu0 0.0
    %3191 = vmatprep.subr.mxu0 0.0
    %3192 = vmatpush1.msra.mxu0 0.0
    %3193 = vmatprep.mubr.f32.mxu0 0.0
    %3194 = vmatmul.mubr.f32.gmra.mrb[0].mxu0 %v3127
    %v3195 = vpop.f32.mrb[0].mxu0
    %v3196 = vadd.f32 %v1145, %v3195
    %v3197 = vpop.f32.mrb[0].mxu0
    %3198 = vdwg.mxu0
    %vm3199 = vcmp.gt.f32.partialorder %v3196, 0.0
    %v3200 = vmin.f32 %v3196, 0.0
    %v3201 = vmul.f32 %v3200, 1.442695
    %v3202 = vpow.pop %v3201
    %v3203 = vsub.f32 %v3202, 1.0
    %v3204 = vsel %vm3199, %v3196, %v3203
    %3205 = vmatprep.subr.mxu0 0.0
    %3206 = vmatpush1.msra.mxu0 %v1125
    %3207 = vmatprep.subr.mxu0 0.0
    %3208 = vmatpush1.msra.mxu0 %v1126
    %3209 = vmatprep.subr.mxu0 0.0
    %3210 = vmatpush1.msra.mxu0 %v1127
    %3211 = vmatprep.subr.mxu0 0.0
    %3212 = vmatpush1.msra.mxu0 %v1128
    %3213 = vmatprep.subr.mxu0 0.0
    %3214 = vmatpush1.msra.mxu0 %v1129
    %3215 = vmatprep.subr.mxu0 0.0
    %3216 = vmatpush1.msra.mxu0 %v1130
    %3217 = vmatprep.subr.mxu0 0.0
    %3218 = vmatpush1.msra.mxu0 %v1131
    %3219 = vmatprep.subr.mxu0 0.0
    %3220 = vmatpush1.msra.mxu0 %v1132
    %3221 = vmatprep.subr.mxu0 0.0
    %3222 = vmatpush1.msra.mxu0 %v1133
    %3223 = vmatprep.subr.mxu0 0.0
    %3224 = vmatpush1.msra.mxu0 %v1134
    %3225 = vmatprep.subr.mxu0 0.0
    %3226 = vmatpush1.msra.mxu0 %v1135
    %3227 = vmatprep.subr.mxu0 0.0
    %3228 = vmatpush1.msra.mxu0 %v1136
    %3229 = vmatprep.subr.mxu0 0.0
    %3230 = vmatpush1.msra.mxu0 %v1137
    %3231 = vmatprep.subr.mxu0 0.0
    %3232 = vmatpush1.msra.mxu0 %v1138
    %3233 = vmatprep.subr.mxu0 0.0
    %3234 = vmatpush1.msra.mxu0 %v1139
    %3235 = vmatprep.subr.mxu0 0.0
    %3236 = vmatpush1.msra.mxu0 %v1140
    %3237 = vmatprep.subr.mxu0 0.0
    %3238 = vmatpush1.msra.mxu0 0.0
    %3239 = vmatprep.subr.mxu0 0.0
    %3240 = vmatpush1.msra.mxu0 0.0
    %3241 = vmatprep.subr.mxu0 0.0
    %3242 = vmatpush1.msra.mxu0 0.0
    %3243 = vmatprep.subr.mxu0 0.0
    %3244 = vmatpush1.msra.mxu0 0.0
    %3245 = vmatprep.subr.mxu0 0.0
    %3246 = vmatpush1.msra.mxu0 0.0
    %3247 = vmatprep.subr.mxu0 0.0
    %3248 = vmatpush1.msra.mxu0 0.0
    %3249 = vmatprep.subr.mxu0 0.0
    %3250 = vmatpush1.msra.mxu0 0.0
    %3251 = vmatprep.subr.mxu0 0.0
    %3252 = vmatpush1.msra.mxu0 0.0
    %3253 = vmatprep.subr.mxu0 0.0
    %3254 = vmatpush1.msra.mxu0 0.0
    %3255 = vmatprep.subr.mxu0 0.0
    %3256 = vmatpush1.msra.mxu0 0.0
    %3257 = vmatprep.subr.mxu0 0.0
    %3258 = vmatpush1.msra.mxu0 0.0
    %3259 = vmatprep.subr.mxu0 0.0
    %3260 = vmatpush1.msra.mxu0 0.0
    %3261 = vmatprep.subr.mxu0 0.0
    %3262 = vmatpush1.msra.mxu0 0.0
    %3263 = vmatprep.subr.mxu0 0.0
    %3264 = vmatpush1.msra.mxu0 0.0
    %3265 = vmatprep.subr.mxu0 0.0
    %3266 = vmatpush1.msra.mxu0 0.0
    %3267 = vmatprep.subr.mxu0 0.0
    %3268 = vmatpush1.msra.mxu0 0.0
    %3269 = vmatprep.mubr.f32.mxu0 0.0
    %3270 = vmatmul.mubr.f32.gmra.mrb[0].mxu0 %v3204
    %v3271 = vpop.f32.mrb[0].mxu0
    %v3272 = vadd.f32 %v1150, %v3271
    %v3273 = vpop.f32.mrb[0].mxu0
    %3274 = vdwg.mxu0
    %v3275 = vmul.f32 %v3272, 0.071428575
    %v3276 = vadd.f32 %v2974, %v3275
    %v3278 = vsel %vm169, %v3276, 0
    %3280 = vmatprep.subr.mxu0 0.0
    %3281 = vmatpush1.msra.mxu0 %v1121
    %3282 = vmatprep.subr.mxu0 0.0
    %3283 = vmatpush1.msra.mxu0 %v1122
    %3284 = vmatprep.subr.mxu0 0.0
    %3285 = vmatpush1.msra.mxu0 %v1123
    %3286 = vmatprep.subr.mxu0 0.0
    %3287 = vmatpush1.msra.mxu0 %v1124
    %3288 = vmatprep.subr.mxu0 0.0
    %3289 = vmatpush1.msra.mxu0 0.0
    %3290 = vmatprep.subr.mxu0 0.0
    %3291 = vmatpush1.msra.mxu0 0.0
    %3292 = vmatprep.subr.mxu0 0.0
    %3293 = vmatpush1.msra.mxu0 0.0
    %3294 = vmatprep.subr.mxu0 0.0
    %3295 = vmatpush1.msra.mxu0 0.0
    %3296 = vmatprep.subr.mxu0 0.0
    %3297 = vmatpush1.msra.mxu0 0.0
    %3298 = vmatprep.subr.mxu0 0.0
    %3299 = vmatpush1.msra.mxu0 0.0
    %3300 = vmatprep.subr.mxu0 0.0
    %3301 = vmatpush1.msra.mxu0 0.0
    %3302 = vmatprep.subr.mxu0 0.0
    %3303 = vmatpush1.msra.mxu0 0.0
    %3304 = vmatprep.subr.mxu0 0.0
    %3305 = vmatpush1.msra.mxu0 0.0
    %3306 = vmatprep.subr.mxu0 0.0
    %3307 = vmatpush1.msra.mxu0 0.0
    %3308 = vmatprep.subr.mxu0 0.0
    %3309 = vmatpush1.msra.mxu0 0.0
    %3310 = vmatprep.subr.mxu0 0.0
    %3311 = vmatpush1.msra.mxu0 0.0
    %3312 = vmatprep.subr.mxu0 0.0
    %3313 = vmatpush1.msra.mxu0 0.0
    %3314 = vmatprep.subr.mxu0 0.0
    %3315 = vmatpush1.msra.mxu0 0.0
    %3316 = vmatprep.subr.mxu0 0.0
    %3317 = vmatpush1.msra.mxu0 0.0
    %3318 = vmatprep.subr.mxu0 0.0
    %3319 = vmatpush1.msra.mxu0 0.0
    %3320 = vmatprep.subr.mxu0 0.0
    %3321 = vmatpush1.msra.mxu0 0.0
    %3322 = vmatprep.subr.mxu0 0.0
    %3323 = vmatpush1.msra.mxu0 0.0
    %3324 = vmatprep.subr.mxu0 0.0
    %3325 = vmatpush1.msra.mxu0 0.0
    %3326 = vmatprep.subr.mxu0 0.0
    %3327 = vmatpush1.msra.mxu0 0.0
    %3328 = vmatprep.subr.mxu0 0.0
    %3329 = vmatpush1.msra.mxu0 0.0
    %3330 = vmatprep.subr.mxu0 0.0
    %3331 = vmatpush1.msra.mxu0 0.0
    %3332 = vmatprep.subr.mxu0 0.0
    %3333 = vmatpush1.msra.mxu0 0.0
    %3334 = vmatprep.subr.mxu0 0.0
    %3335 = vmatpush1.msra.mxu0 0.0
    %3336 = vmatprep.subr.mxu0 0.0
    %3337 = vmatpush1.msra.mxu0 0.0
    %3338 = vmatprep.subr.mxu0 0.0
    %3339 = vmatpush1.msra.mxu0 0.0
    %3340 = vmatprep.subr.mxu0 0.0
    %3341 = vmatpush1.msra.mxu0 0.0
    %3342 = vmatprep.subr.mxu0 0.0
    %3343 = vmatpush1.msra.mxu0 0.0
    %3344 = vmatprep.mubr.f32.mxu0 0.0
    %3345 = vmatmul.mubr.f32.gmra.mrb[0].mxu0 %v3278
    %v3346 = vpop.f32.mrb[0].mxu0
    %v3347 = vadd.f32 %v1145, %v3346
    %v3348 = vpop.f32.mrb[0].mxu0
    %3349 = vdwg.mxu0
    %vm3350 = vcmp.gt.f32.partialorder %v3347, 0.0
    %v3351 = vmin.f32 %v3347, 0.0
    %v3352 = vmul.f32 %v3351, 1.442695
    %v3353 = vpow.pop %v3352
    %v3354 = vsub.f32 %v3353, 1.0
    %v3355 = vsel %vm3350, %v3347, %v3354
    %3356 = vmatprep.subr.mxu0 0.0
    %3357 = vmatpush1.msra.mxu0 %v1125
    %3358 = vmatprep.subr.mxu0 0.0
    %3359 = vmatpush1.msra.mxu0 %v1126
    %3360 = vmatprep.subr.mxu0 0.0
    %3361 = vmatpush1.msra.mxu0 %v1127
    %3362 = vmatprep.subr.mxu0 0.0
    %3363 = vmatpush1.msra.mxu0 %v1128
    %3364 = vmatprep.subr.mxu0 0.0
    %3365 = vmatpush1.msra.mxu0 %v1129
    %3366 = vmatprep.subr.mxu0 0.0
    %3367 = vmatpush1.msra.mxu0 %v1130
    %3368 = vmatprep.subr.mxu0 0.0
    %3369 = vmatpush1.msra.mxu0 %v1131
    %3370 = vmatprep.subr.mxu0 0.0
    %3371 = vmatpush1.msra.mxu0 %v1132
    %3372 = vmatprep.subr.mxu0 0.0
    %3373 = vmatpush1.msra.mxu0 %v1133
    %3374 = vmatprep.subr.mxu0 0.0
    %3375 = vmatpush1.msra.mxu0 %v1134
    %3376 = vmatprep.subr.mxu0 0.0
    %3377 = vmatpush1.msra.mxu0 %v1135
    %3378 = vmatprep.subr.mxu0 0.0
    %3379 = vmatpush1.msra.mxu0 %v1136
    %3380 = vmatprep.subr.mxu0 0.0
    %3381 = vmatpush1.msra.mxu0 %v1137
    %3382 = vmatprep.subr.mxu0 0.0
    %3383 = vmatpush1.msra.mxu0 %v1138
    %3384 = vmatprep.subr.mxu0 0.0
    %3385 = vmatpush1.msra.mxu0 %v1139
    %3386 = vmatprep.subr.mxu0 0.0
    %3387 = vmatpush1.msra.mxu0 %v1140
    %3388 = vmatprep.subr.mxu0 0.0
    %3389 = vmatpush1.msra.mxu0 0.0
    %3390 = vmatprep.subr.mxu0 0.0
    %3391 = vmatpush1.msra.mxu0 0.0
    %3392 = vmatprep.subr.mxu0 0.0
    %3393 = vmatpush1.msra.mxu0 0.0
    %3394 = vmatprep.subr.mxu0 0.0
    %3395 = vmatpush1.msra.mxu0 0.0
    %3396 = vmatprep.subr.mxu0 0.0
    %3397 = vmatpush1.msra.mxu0 0.0
    %3398 = vmatprep.subr.mxu0 0.0
    %3399 = vmatpush1.msra.mxu0 0.0
    %3400 = vmatprep.subr.mxu0 0.0
    %3401 = vmatpush1.msra.mxu0 0.0
    %3402 = vmatprep.subr.mxu0 0.0
    %3403 = vmatpush1.msra.mxu0 0.0
    %3404 = vmatprep.subr.mxu0 0.0
    %3405 = vmatpush1.msra.mxu0 0.0
    %3406 = vmatprep.subr.mxu0 0.0
    %3407 = vmatpush1.msra.mxu0 0.0
    %3408 = vmatprep.subr.mxu0 0.0
    %3409 = vmatpush1.msra.mxu0 0.0
    %3410 = vmatprep.subr.mxu0 0.0
    %3411 = vmatpush1.msra.mxu0 0.0
    %3412 = vmatprep.subr.mxu0 0.0
    %3413 = vmatpush1.msra.mxu0 0.0
    %3414 = vmatprep.subr.mxu0 0.0
    %3415 = vmatpush1.msra.mxu0 0.0
    %3416 = vmatprep.subr.mxu0 0.0
    %3417 = vmatpush1.msra.mxu0 0.0
    %3418 = vmatprep.subr.mxu0 0.0
    %3419 = vmatpush1.msra.mxu0 0.0
    %3420 = vmatprep.mubr.f32.mxu0 0.0
    %3421 = vmatmul.mubr.f32.gmra.mrb[0].mxu0 %v3355
    %v3422 = vpop.f32.mrb[0].mxu0
    %v3423 = vadd.f32 %v1150, %v3422
    %v3424 = vpop.f32.mrb[0].mxu0
    %3425 = vdwg.mxu0
    %v3426 = vmul.f32 %v3423, 0.14285715
    %v3427 = vadd.f32 %v2974, %v3426
    %v3429 = vsel %vm169, %v3427, 0
    %3431 = vmatprep.subr.mxu0 0.0
    %3432 = vmatpush1.msra.mxu0 %v1121
    %3433 = vmatprep.subr.mxu0 0.0
    %3434 = vmatpush1.msra.mxu0 %v1122
    %3435 = vmatprep.subr.mxu0 0.0
    %3436 = vmatpush1.msra.mxu0 %v1123
    %3437 = vmatprep.subr.mxu0 0.0
    %3438 = vmatpush1.msra.mxu0 %v1124
    %3439 = vmatprep.subr.mxu0 0.0
    %3440 = vmatpush1.msra.mxu0 0.0
    %3441 = vmatprep.subr.mxu0 0.0
    %3442 = vmatpush1.msra.mxu0 0.0
    %3443 = vmatprep.subr.mxu0 0.0
    %3444 = vmatpush1.msra.mxu0 0.0
    %3445 = vmatprep.subr.mxu0 0.0
    %3446 = vmatpush1.msra.mxu0 0.0
    %3447 = vmatprep.subr.mxu0 0.0
    %3448 = vmatpush1.msra.mxu0 0.0
    %3449 = vmatprep.subr.mxu0 0.0
    %3450 = vmatpush1.msra.mxu0 0.0
    %3451 = vmatprep.subr.mxu0 0.0
    %3452 = vmatpush1.msra.mxu0 0.0
    %3453 = vmatprep.subr.mxu0 0.0
    %3454 = vmatpush1.msra.mxu0 0.0
    %3455 = vmatprep.subr.mxu0 0.0
    %3456 = vmatpush1.msra.mxu0 0.0
    %3457 = vmatprep.subr.mxu0 0.0
    %3458 = vmatpush1.msra.mxu0 0.0
    %3459 = vmatprep.subr.mxu0 0.0
    %3460 = vmatpush1.msra.mxu0 0.0
    %3461 = vmatprep.subr.mxu0 0.0
    %3462 = vmatpush1.msra.mxu0 0.0
    %3463 = vmatprep.subr.mxu0 0.0
    %3464 = vmatpush1.msra.mxu0 0.0
    %3465 = vmatprep.subr.mxu0 0.0
    %3466 = vmatpush1.msra.mxu0 0.0
    %3467 = vmatprep.subr.mxu0 0.0
    %3468 = vmatpush1.msra.mxu0 0.0
    %3469 = vmatprep.subr.mxu0 0.0
    %3470 = vmatpush1.msra.mxu0 0.0
    %3471 = vmatprep.subr.mxu0 0.0
    %3472 = vmatpush1.msra.mxu0 0.0
    %3473 = vmatprep.subr.mxu0 0.0
    %3474 = vmatpush1.msra.mxu0 0.0
    %3475 = vmatprep.subr.mxu0 0.0
    %3476 = vmatpush1.msra.mxu0 0.0
    %3477 = vmatprep.subr.mxu0 0.0
    %3478 = vmatpush1.msra.mxu0 0.0
    %3479 = vmatprep.subr.mxu0 0.0
    %3480 = vmatpush1.msra.mxu0 0.0
    %3481 = vmatprep.subr.mxu0 0.0
    %3482 = vmatpush1.msra.mxu0 0.0
    %3483 = vmatprep.subr.mxu0 0.0
    %3484 = vmatpush1.msra.mxu0 0.0
    %3485 = vmatprep.subr.mxu0 0.0
    %3486 = vmatpush1.msra.mxu0 0.0
    %3487 = vmatprep.subr.mxu0 0.0
    %3488 = vmatpush1.msra.mxu0 0.0
    %3489 = vmatprep.subr.mxu0 0.0
    %3490 = vmatpush1.msra.mxu0 0.0
    %3491 = vmatprep.subr.mxu0 0.0
    %3492 = vmatpush1.msra.mxu0 0.0
    %3493 = vmatprep.subr.mxu0 0.0
    %3494 = vmatpush1.msra.mxu0 0.0
    %3495 = vmatprep.mubr.f32.mxu0 0.0
    %3496 = vmatmul.mubr.f32.gmra.mrb[0].mxu0 %v3429
    %v3497 = vpop.f32.mrb[0].mxu0
    %v3498 = vadd.f32 %v1145, %v3497
    %v3499 = vpop.f32.mrb[0].mxu0
    %3500 = vdwg.mxu0
    %vm3501 = vcmp.gt.f32.partialorder %v3498, 0.0
    %v3502 = vmin.f32 %v3498, 0.0
    %v3503 = vmul.f32 %v3502, 1.442695
    %v3504 = vpow.pop %v3503
    %v3505 = vsub.f32 %v3504, 1.0
    %v3506 = vsel %vm3501, %v3498, %v3505
    %3507 = vmatprep.subr.mxu0 0.0
    %3508 = vmatpush1.msra.mxu0 %v1125
    %3509 = vmatprep.subr.mxu0 0.0
    %3510 = vmatpush1.msra.mxu0 %v1126
    %3511 = vmatprep.subr.mxu0 0.0
    %3512 = vmatpush1.msra.mxu0 %v1127
    %3513 = vmatprep.subr.mxu0 0.0
    %3514 = vmatpush1.msra.mxu0 %v1128
    %3515 = vmatprep.subr.mxu0 0.0
    %3516 = vmatpush1.msra.mxu0 %v1129
    %3517 = vmatprep.subr.mxu0 0.0
    %3518 = vmatpush1.msra.mxu0 %v1130
    %3519 = vmatprep.subr.mxu0 0.0
    %3520 = vmatpush1.msra.mxu0 %v1131
    %3521 = vmatprep.subr.mxu0 0.0
    %3522 = vmatpush1.msra.mxu0 %v1132
    %3523 = vmatprep.subr.mxu0 0.0
    %3524 = vmatpush1.msra.mxu0 %v1133
    %3525 = vmatprep.subr.mxu0 0.0
    %3526 = vmatpush1.msra.mxu0 %v1134
    %3527 = vmatprep.subr.mxu0 0.0
    %3528 = vmatpush1.msra.mxu0 %v1135
    %3529 = vmatprep.subr.mxu0 0.0
    %3530 = vmatpush1.msra.mxu0 %v1136
    %3531 = vmatprep.subr.mxu0 0.0
    %3532 = vmatpush1.msra.mxu0 %v1137
    %3533 = vmatprep.subr.mxu0 0.0
    %3534 = vmatpush1.msra.mxu0 %v1138
    %3535 = vmatprep.subr.mxu0 0.0
    %3536 = vmatpush1.msra.mxu0 %v1139
    %3537 = vmatprep.subr.mxu0 0.0
    %3538 = vmatpush1.msra.mxu0 %v1140
    %3539 = vmatprep.subr.mxu0 0.0
    %3540 = vmatpush1.msra.mxu0 0.0
    %3541 = vmatprep.subr.mxu0 0.0
    %3542 = vmatpush1.msra.mxu0 0.0
    %3543 = vmatprep.subr.mxu0 0.0
    %3544 = vmatpush1.msra.mxu0 0.0
    %3545 = vmatprep.subr.mxu0 0.0
    %3546 = vmatpush1.msra.mxu0 0.0
    %3547 = vmatprep.subr.mxu0 0.0
    %3548 = vmatpush1.msra.mxu0 0.0
    %3549 = vmatprep.subr.mxu0 0.0
    %3550 = vmatpush1.msra.mxu0 0.0
    %3551 = vmatprep.subr.mxu0 0.0
    %3552 = vmatpush1.msra.mxu0 0.0
    %3553 = vmatprep.subr.mxu0 0.0
    %3554 = vmatpush1.msra.mxu0 0.0
    %3555 = vmatprep.subr.mxu0 0.0
    %3556 = vmatpush1.msra.mxu0 0.0
    %3557 = vmatprep.subr.mxu0 0.0
    %3558 = vmatpush1.msra.mxu0 0.0
    %3559 = vmatprep.subr.mxu0 0.0
    %3560 = vmatpush1.msra.mxu0 0.0
    %3561 = vmatprep.subr.mxu0 0.0
    %3562 = vmatpush1.msra.mxu0 0.0
    %3563 = vmatprep.subr.mxu0 0.0
    %3564 = vmatpush1.msra.mxu0 0.0
    %3565 = vmatprep.subr.mxu0 0.0
    %3566 = vmatpush1.msra.mxu0 0.0
    %3567 = vmatprep.subr.mxu0 0.0
    %3568 = vmatpush1.msra.mxu0 0.0
    %3569 = vmatprep.subr.mxu0 0.0
    %3570 = vmatpush1.msra.mxu0 0.0
    %3571 = vmatprep.mubr.f32.mxu0 0.0
    %3572 = vmatmul.mubr.f32.gmra.mrb[0].mxu0 %v3506
    %v3573 = vpop.f32.mrb[0].mxu0
    %v3574 = vadd.f32 %v1150, %v3573
    %v3575 = vpop.f32.mrb[0].mxu0
    %3576 = vdwg.mxu0
    %v3577 = vadd.f32 %v3272, %v3423
    %v3578 = vmul.f32 %v3577, 2.0
    %v3579 = vadd.f32 %v3121, %v3578
    %v3580 = vadd.f32 %v3579, %v3574
    %v3581 = vmul.f32 %v3580, 0.023809524
    %v3582 = vadd.f32 %v2974, %v3581
    %v3584 = vsel %vm169, %v3582, 0
    %3586 = vmatprep.subr.mxu0 0.0
    %3587 = vmatpush1.msra.mxu0 %v1121
    %3588 = vmatprep.subr.mxu0 0.0
    %3589 = vmatpush1.msra.mxu0 %v1122
    %3590 = vmatprep.subr.mxu0 0.0
    %3591 = vmatpush1.msra.mxu0 %v1123
    %3592 = vmatprep.subr.mxu0 0.0
    %3593 = vmatpush1.msra.mxu0 %v1124
    %3594 = vmatprep.subr.mxu0 0.0
    %3595 = vmatpush1.msra.mxu0 0.0
    %3596 = vmatprep.subr.mxu0 0.0
    %3597 = vmatpush1.msra.mxu0 0.0
    %3598 = vmatprep.subr.mxu0 0.0
    %3599 = vmatpush1.msra.mxu0 0.0
    %3600 = vmatprep.subr.mxu0 0.0
    %3601 = vmatpush1.msra.mxu0 0.0
    %3602 = vmatprep.subr.mxu0 0.0
    %3603 = vmatpush1.msra.mxu0 0.0
    %3604 = vmatprep.subr.mxu0 0.0
    %3605 = vmatpush1.msra.mxu0 0.0
    %3606 = vmatprep.subr.mxu0 0.0
    %3607 = vmatpush1.msra.mxu0 0.0
    %3608 = vmatprep.subr.mxu0 0.0
    %3609 = vmatpush1.msra.mxu0 0.0
    %3610 = vmatprep.subr.mxu0 0.0
    %3611 = vmatpush1.msra.mxu0 0.0
    %3612 = vmatprep.subr.mxu0 0.0
    %3613 = vmatpush1.msra.mxu0 0.0
    %3614 = vmatprep.subr.mxu0 0.0
    %3615 = vmatpush1.msra.mxu0 0.0
    %3616 = vmatprep.subr.mxu0 0.0
    %3617 = vmatpush1.msra.mxu0 0.0
    %3618 = vmatprep.subr.mxu0 0.0
    %3619 = vmatpush1.msra.mxu0 0.0
    %3620 = vmatprep.subr.mxu0 0.0
    %3621 = vmatpush1.msra.mxu0 0.0
    %3622 = vmatprep.subr.mxu0 0.0
    %3623 = vmatpush1.msra.mxu0 0.0
    %3624 = vmatprep.subr.mxu0 0.0
    %3625 = vmatpush1.msra.mxu0 0.0
    %3626 = vmatprep.subr.mxu0 0.0
    %3627 = vmatpush1.msra.mxu0 0.0
    %3628 = vmatprep.subr.mxu0 0.0
    %3629 = vmatpush1.msra.mxu0 0.0
    %3630 = vmatprep.subr.mxu0 0.0
    %3631 = vmatpush1.msra.mxu0 0.0
    %3632 = vmatprep.subr.mxu0 0.0
    %3633 = vmatpush1.msra.mxu0 0.0
    %3634 = vmatprep.subr.mxu0 0.0
    %3635 = vmatpush1.msra.mxu0 0.0
    %3636 = vmatprep.subr.mxu0 0.0
    %3637 = vmatpush1.msra.mxu0 0.0
    %3638 = vmatprep.subr.mxu0 0.0
    %3639 = vmatpush1.msra.mxu0 0.0
    %3640 = vmatprep.subr.mxu0 0.0
    %3641 = vmatpush1.msra.mxu0 0.0
    %3642 = vmatprep.subr.mxu0 0.0
    %3643 = vmatpush1.msra.mxu0 0.0
    %3644 = vmatprep.subr.mxu0 0.0
    %3645 = vmatpush1.msra.mxu0 0.0
    %3646 = vmatprep.subr.mxu0 0.0
    %3647 = vmatpush1.msra.mxu0 0.0
    %3648 = vmatprep.subr.mxu0 0.0
    %3649 = vmatpush1.msra.mxu0 0.0
    %3650 = vmatprep.mubr.f32.mxu0 0.0
    %3651 = vmatmul.mubr.f32.gmra.mrb[0].mxu0 %v3584
    %v3652 = vpop.f32.mrb[0].mxu0
    %v3653 = vadd.f32 %v1145, %v3652
    %v3654 = vpop.f32.mrb[0].mxu0
    %3655 = vdwg.mxu0
    %vm3656 = vcmp.gt.f32.partialorder %v3653, 0.0
    %v3657 = vmin.f32 %v3653, 0.0
    %v3658 = vmul.f32 %v3657, 1.442695
    %v3659 = vpow.pop %v3658
    %v3660 = vsub.f32 %v3659, 1.0
    %v3661 = vsel %vm3656, %v3653, %v3660
    %3662 = vmatprep.subr.mxu0 0.0
    %3663 = vmatpush1.msra.mxu0 %v1125
    %3664 = vmatprep.subr.mxu0 0.0
    %3665 = vmatpush1.msra.mxu0 %v1126
    %3666 = vmatprep.subr.mxu0 0.0
    %3667 = vmatpush1.msra.mxu0 %v1127
    %3668 = vmatprep.subr.mxu0 0.0
    %3669 = vmatpush1.msra.mxu0 %v1128
    %3670 = vmatprep.subr.mxu0 0.0
    %3671 = vmatpush1.msra.mxu0 %v1129
    %3672 = vmatprep.subr.mxu0 0.0
    %3673 = vmatpush1.msra.mxu0 %v1130
    %3674 = vmatprep.subr.mxu0 0.0
    %3675 = vmatpush1.msra.mxu0 %v1131
    %3676 = vmatprep.subr.mxu0 0.0
    %3677 = vmatpush1.msra.mxu0 %v1132
    %3678 = vmatprep.subr.mxu0 0.0
    %3679 = vmatpush1.msra.mxu0 %v1133
    %3680 = vmatprep.subr.mxu0 0.0
    %3681 = vmatpush1.msra.mxu0 %v1134
    %3682 = vmatprep.subr.mxu0 0.0
    %3683 = vmatpush1.msra.mxu0 %v1135
    %3684 = vmatprep.subr.mxu0 0.0
    %3685 = vmatpush1.msra.mxu0 %v1136
    %3686 = vmatprep.subr.mxu0 0.0
    %3687 = vmatpush1.msra.mxu0 %v1137
    %3688 = vmatprep.subr.mxu0 0.0
    %3689 = vmatpush1.msra.mxu0 %v1138
    %3690 = vmatprep.subr.mxu0 0.0
    %3691 = vmatpush1.msra.mxu0 %v1139
    %3692 = vmatprep.subr.mxu0 0.0
    %3693 = vmatpush1.msra.mxu0 %v1140
    %3694 = vmatprep.subr.mxu0 0.0
    %3695 = vmatpush1.msra.mxu0 0.0
    %3696 = vmatprep.subr.mxu0 0.0
    %3697 = vmatpush1.msra.mxu0 0.0
    %3698 = vmatprep.subr.mxu0 0.0
    %3699 = vmatpush1.msra.mxu0 0.0
    %3700 = vmatprep.subr.mxu0 0.0
    %3701 = vmatpush1.msra.mxu0 0.0
    %3702 = vmatprep.subr.mxu0 0.0
    %3703 = vmatpush1.msra.mxu0 0.0
    %3704 = vmatprep.subr.mxu0 0.0
    %3705 = vmatpush1.msra.mxu0 0.0
    %3706 = vmatprep.subr.mxu0 0.0
    %3707 = vmatpush1.msra.mxu0 0.0
    %3708 = vmatprep.subr.mxu0 0.0
    %3709 = vmatpush1.msra.mxu0 0.0
    %3710 = vmatprep.subr.mxu0 0.0
    %3711 = vmatpush1.msra.mxu0 0.0
    %3712 = vmatprep.subr.mxu0 0.0
    %3713 = vmatpush1.msra.mxu0 0.0
    %3714 = vmatprep.subr.mxu0 0.0
    %3715 = vmatpush1.msra.mxu0 0.0
    %3716 = vmatprep.subr.mxu0 0.0
    %3717 = vmatpush1.msra.mxu0 0.0
    %3718 = vmatprep.subr.mxu0 0.0
    %3719 = vmatpush1.msra.mxu0 0.0
    %3720 = vmatprep.subr.mxu0 0.0
    %3721 = vmatpush1.msra.mxu0 0.0
    %3722 = vmatprep.subr.mxu0 0.0
    %3723 = vmatpush1.msra.mxu0 0.0
    %3724 = vmatprep.subr.mxu0 0.0
    %3725 = vmatpush1.msra.mxu0 0.0
    %3726 = vmatprep.mubr.f32.mxu0 0.0
    %3727 = vmatmul.mubr.f32.gmra.mrb[0].mxu0 %v3661
    %v3728 = vpop.f32.mrb[0].mxu0
    %v3729 = vadd.f32 %v1150, %v3728
    %v3730 = vpop.f32.mrb[0].mxu0
    %3731 = vdwg.mxu0
    %v3732 = vmul.f32 %v3729, 0.071428575
    %v3733 = vadd.f32 %v3582, %v3732
    %v3735 = vsel %vm169, %v3733, 0
    %3737 = vmatprep.subr.mxu0 0.0
    %3738 = vmatpush1.msra.mxu0 %v1121
    %3739 = vmatprep.subr.mxu0 0.0
    %3740 = vmatpush1.msra.mxu0 %v1122
    %3741 = vmatprep.subr.mxu0 0.0
    %3742 = vmatpush1.msra.mxu0 %v1123
    %3743 = vmatprep.subr.mxu0 0.0
    %3744 = vmatpush1.msra.mxu0 %v1124
    %3745 = vmatprep.subr.mxu0 0.0
    %3746 = vmatpush1.msra.mxu0 0.0
    %3747 = vmatprep.subr.mxu0 0.0
    %3748 = vmatpush1.msra.mxu0 0.0
    %3749 = vmatprep.subr.mxu0 0.0
    %3750 = vmatpush1.msra.mxu0 0.0
    %3751 = vmatprep.subr.mxu0 0.0
    %3752 = vmatpush1.msra.mxu0 0.0
    %3753 = vmatprep.subr.mxu0 0.0
    %3754 = vmatpush1.msra.mxu0 0.0
    %3755 = vmatprep.subr.mxu0 0.0
    %3756 = vmatpush1.msra.mxu0 0.0
    %3757 = vmatprep.subr.mxu0 0.0
    %3758 = vmatpush1.msra.mxu0 0.0
    %3759 = vmatprep.subr.mxu0 0.0
    %3760 = vmatpush1.msra.mxu0 0.0
    %3761 = vmatprep.subr.mxu0 0.0
    %3762 = vmatpush1.msra.mxu0 0.0
    %3763 = vmatprep.subr.mxu0 0.0
    %3764 = vmatpush1.msra.mxu0 0.0
    %3765 = vmatprep.subr.mxu0 0.0
    %3766 = vmatpush1.msra.mxu0 0.0
    %3767 = vmatprep.subr.mxu0 0.0
    %3768 = vmatpush1.msra.mxu0 0.0
    %3769 = vmatprep.subr.mxu0 0.0
    %3770 = vmatpush1.msra.mxu0 0.0
    %3771 = vmatprep.subr.mxu0 0.0
    %3772 = vmatpush1.msra.mxu0 0.0
    %3773 = vmatprep.subr.mxu0 0.0
    %3774 = vmatpush1.msra.mxu0 0.0
    %3775 = vmatprep.subr.mxu0 0.0
    %3776 = vmatpush1.msra.mxu0 0.0
    %3777 = vmatprep.subr.mxu0 0.0
    %3778 = vmatpush1.msra.mxu0 0.0
    %3779 = vmatprep.subr.mxu0 0.0
    %3780 = vmatpush1.msra.mxu0 0.0
    %3781 = vmatprep.subr.mxu0 0.0
    %3782 = vmatpush1.msra.mxu0 0.0
    %3783 = vmatprep.subr.mxu0 0.0
    %3784 = vmatpush1.msra.mxu0 0.0
    %3785 = vmatprep.subr.mxu0 0.0
    %3786 = vmatpush1.msra.mxu0 0.0
    %3787 = vmatprep.subr.mxu0 0.0
    %3788 = vmatpush1.msra.mxu0 0.0
    %3789 = vmatprep.subr.mxu0 0.0
    %3790 = vmatpush1.msra.mxu0 0.0
    %3791 = vmatprep.subr.mxu0 0.0
    %3792 = vmatpush1.msra.mxu0 0.0
    %3793 = vmatprep.subr.mxu0 0.0
    %3794 = vmatpush1.msra.mxu0 0.0
    %3795 = vmatprep.subr.mxu0 0.0
    %3796 = vmatpush1.msra.mxu0 0.0
    %3797 = vmatprep.subr.mxu0 0.0
    %3798 = vmatpush1.msra.mxu0 0.0
    %3799 = vmatprep.subr.mxu0 0.0
    %3800 = vmatpush1.msra.mxu0 0.0
    %3801 = vmatprep.mubr.f32.mxu0 0.0
    %3802 = vmatmul.mubr.f32.gmra.mrb[0].mxu0 %v3735
    %v3803 = vpop.f32.mrb[0].mxu0
    %v3804 = vadd.f32 %v1145, %v3803
    %v3805 = vpop.f32.mrb[0].mxu0
    %3806 = vdwg.mxu0
    %vm3807 = vcmp.gt.f32.partialorder %v3804, 0.0
    %v3808 = vmin.f32 %v3804, 0.0
    %v3809 = vmul.f32 %v3808, 1.442695
    %v3810 = vpow.pop %v3809
    %v3811 = vsub.f32 %v3810, 1.0
    %v3812 = vsel %vm3807, %v3804, %v3811
    %3813 = vmatprep.subr.mxu0 0.0
    %3814 = vmatpush1.msra.mxu0 %v1125
    %3815 = vmatprep.subr.mxu0 0.0
    %3816 = vmatpush1.msra.mxu0 %v1126
    %3817 = vmatprep.subr.mxu0 0.0
    %3818 = vmatpush1.msra.mxu0 %v1127
    %3819 = vmatprep.subr.mxu0 0.0
    %3820 = vmatpush1.msra.mxu0 %v1128
    %3821 = vmatprep.subr.mxu0 0.0
    %3822 = vmatpush1.msra.mxu0 %v1129
    %3823 = vmatprep.subr.mxu0 0.0
    %3824 = vmatpush1.msra.mxu0 %v1130
    %3825 = vmatprep.subr.mxu0 0.0
    %3826 = vmatpush1.msra.mxu0 %v1131
    %3827 = vmatprep.subr.mxu0 0.0
    %3828 = vmatpush1.msra.mxu0 %v1132
    %3829 = vmatprep.subr.mxu0 0.0
    %3830 = vmatpush1.msra.mxu0 %v1133
    %3831 = vmatprep.subr.mxu0 0.0
    %3832 = vmatpush1.msra.mxu0 %v1134
    %3833 = vmatprep.subr.mxu0 0.0
    %3834 = vmatpush1.msra.mxu0 %v1135
    %3835 = vmatprep.subr.mxu0 0.0
    %3836 = vmatpush1.msra.mxu0 %v1136
    %3837 = vmatprep.subr.mxu0 0.0
    %3838 = vmatpush1.msra.mxu0 %v1137
    %3839 = vmatprep.subr.mxu0 0.0
    %3840 = vmatpush1.msra.mxu0 %v1138
    %3841 = vmatprep.subr.mxu0 0.0
    %3842 = vmatpush1.msra.mxu0 %v1139
    %3843 = vmatprep.subr.mxu0 0.0
    %3844 = vmatpush1.msra.mxu0 %v1140
    %3845 = vmatprep.subr.mxu0 0.0
    %3846 = vmatpush1.msra.mxu0 0.0
    %3847 = vmatprep.subr.mxu0 0.0
    %3848 = vmatpush1.msra.mxu0 0.0
    %3849 = vmatprep.subr.mxu0 0.0
    %3850 = vmatpush1.msra.mxu0 0.0
    %3851 = vmatprep.subr.mxu0 0.0
    %3852 = vmatpush1.msra.mxu0 0.0
    %3853 = vmatprep.subr.mxu0 0.0
    %3854 = vmatpush1.msra.mxu0 0.0
    %3855 = vmatprep.subr.mxu0 0.0
    %3856 = vmatpush1.msra.mxu0 0.0
    %3857 = vmatprep.subr.mxu0 0.0
    %3858 = vmatpush1.msra.mxu0 0.0
    %3859 = vmatprep.subr.mxu0 0.0
    %3860 = vmatpush1.msra.mxu0 0.0
    %3861 = vmatprep.subr.mxu0 0.0
    %3862 = vmatpush1.msra.mxu0 0.0
    %3863 = vmatprep.subr.mxu0 0.0
    %3864 = vmatpush1.msra.mxu0 0.0
    %3865 = vmatprep.subr.mxu0 0.0
    %3866 = vmatpush1.msra.mxu0 0.0
    %3867 = vmatprep.subr.mxu0 0.0
    %3868 = vmatpush1.msra.mxu0 0.0
    %3869 = vmatprep.subr.mxu0 0.0
    %3870 = vmatpush1.msra.mxu0 0.0
    %3871 = vmatprep.subr.mxu0 0.0
    %3872 = vmatpush1.msra.mxu0 0.0
    %3873 = vmatprep.subr.mxu0 0.0
    %3874 = vmatpush1.msra.mxu0 0.0
    %3875 = vmatprep.subr.mxu0 0.0
    %3876 = vmatpush1.msra.mxu0 0.0
    %3877 = vmatprep.mubr.f32.mxu0 0.0
    %3878 = vmatmul.mubr.f32.gmra.mrb[0].mxu0 %v3812
    %v3879 = vpop.f32.mrb[0].mxu0
    %v3880 = vadd.f32 %v1150, %v3879
    %v3881 = vpop.f32.mrb[0].mxu0
    %3882 = vdwg.mxu0
    %v3883 = vmul.f32 %v3880, 0.071428575
    %v3884 = vadd.f32 %v3582, %v3883
    %v3886 = vsel %vm169, %v3884, 0
    %3888 = vmatprep.subr.mxu0 0.0
    %3889 = vmatpush1.msra.mxu0 %v1121
    %3890 = vmatprep.subr.mxu0 0.0
    %3891 = vmatpush1.msra.mxu0 %v1122
    %3892 = vmatprep.subr.mxu0 0.0
    %3893 = vmatpush1.msra.mxu0 %v1123
    %3894 = vmatprep.subr.mxu0 0.0
    %3895 = vmatpush1.msra.mxu0 %v1124
    %3896 = vmatprep.subr.mxu0 0.0
    %3897 = vmatpush1.msra.mxu0 0.0
    %3898 = vmatprep.subr.mxu0 0.0
    %3899 = vmatpush1.msra.mxu0 0.0
    %3900 = vmatprep.subr.mxu0 0.0
    %3901 = vmatpush1.msra.mxu0 0.0
    %3902 = vmatprep.subr.mxu0 0.0
    %3903 = vmatpush1.msra.mxu0 0.0
    %3904 = vmatprep.subr.mxu0 0.0
    %3905 = vmatpush1.msra.mxu0 0.0
    %3906 = vmatprep.subr.mxu0 0.0
    %3907 = vmatpush1.msra.mxu0 0.0
    %3908 = vmatprep.subr.mxu0 0.0
    %3909 = vmatpush1.msra.mxu0 0.0
    %3910 = vmatprep.subr.mxu0 0.0
    %3911 = vmatpush1.msra.mxu0 0.0
    %3912 = vmatprep.subr.mxu0 0.0
    %3913 = vmatpush1.msra.mxu0 0.0
    %3914 = vmatprep.subr.mxu0 0.0
    %3915 = vmatpush1.msra.mxu0 0.0
    %3916 = vmatprep.subr.mxu0 0.0
    %3917 = vmatpush1.msra.mxu0 0.0
    %3918 = vmatprep.subr.mxu0 0.0
    %3919 = vmatpush1.msra.mxu0 0.0
    %3920 = vmatprep.subr.mxu0 0.0
    %3921 = vmatpush1.msra.mxu0 0.0
    %3922 = vmatprep.subr.mxu0 0.0
    %3923 = vmatpush1.msra.mxu0 0.0
    %3924 = vmatprep.subr.mxu0 0.0
    %3925 = vmatpush1.msra.mxu0 0.0
    %3926 = vmatprep.subr.mxu0 0.0
    %3927 = vmatpush1.msra.mxu0 0.0
    %3928 = vmatprep.subr.mxu0 0.0
    %3929 = vmatpush1.msra.mxu0 0.0
    %3930 = vmatprep.subr.mxu0 0.0
    %3931 = vmatpush1.msra.mxu0 0.0
    %3932 = vmatprep.subr.mxu0 0.0
    %3933 = vmatpush1.msra.mxu0 0.0
    %3934 = vmatprep.subr.mxu0 0.0
    %3935 = vmatpush1.msra.mxu0 0.0
    %3936 = vmatprep.subr.mxu0 0.0
    %3937 = vmatpush1.msra.mxu0 0.0
    %3938 = vmatprep.subr.mxu0 0.0
    %3939 = vmatpush1.msra.mxu0 0.0
    %3940 = vmatprep.subr.mxu0 0.0
    %3941 = vmatpush1.msra.mxu0 0.0
    %3942 = vmatprep.subr.mxu0 0.0
    %3943 = vmatpush1.msra.mxu0 0.0
    %3944 = vmatprep.subr.mxu0 0.0
    %3945 = vmatpush1.msra.mxu0 0.0
    %3946 = vmatprep.subr.mxu0 0.0
    %3947 = vmatpush1.msra.mxu0 0.0
    %3948 = vmatprep.subr.mxu0 0.0
    %3949 = vmatpush1.msra.mxu0 0.0
    %3950 = vmatprep.subr.mxu0 0.0
    %3951 = vmatpush1.msra.mxu0 0.0
    %3952 = vmatprep.mubr.f32.mxu0 0.0
    %3953 = vmatmul.mubr.f32.gmra.mrb[0].mxu0 %v3886
    %v3954 = vpop.f32.mrb[0].mxu0
    %v3955 = vadd.f32 %v1145, %v3954
    %v3956 = vpop.f32.mrb[0].mxu0
    %3957 = vdwg.mxu0
    %vm3958 = vcmp.gt.f32.partialorder %v3955, 0.0
    %v3959 = vmin.f32 %v3955, 0.0
    %v3960 = vmul.f32 %v3959, 1.442695
    %v3961 = vpow.pop %v3960
    %v3962 = vsub.f32 %v3961, 1.0
    %v3963 = vsel %vm3958, %v3955, %v3962
    %3964 = vmatprep.subr.mxu0 0.0
    %3965 = vmatpush1.msra.mxu0 %v1125
    %3966 = vmatprep.subr.mxu0 0.0
    %3967 = vmatpush1.msra.mxu0 %v1126
    %3968 = vmatprep.subr.mxu0 0.0
    %3969 = vmatpush1.msra.mxu0 %v1127
    %3970 = vmatprep.subr.mxu0 0.0
    %3971 = vmatpush1.msra.mxu0 %v1128
    %3972 = vmatprep.subr.mxu0 0.0
    %3973 = vmatpush1.msra.mxu0 %v1129
    %3974 = vmatprep.subr.mxu0 0.0
    %3975 = vmatpush1.msra.mxu0 %v1130
    %3976 = vmatprep.subr.mxu0 0.0
    %3977 = vmatpush1.msra.mxu0 %v1131
    %3978 = vmatprep.subr.mxu0 0.0
    %3979 = vmatpush1.msra.mxu0 %v1132
    %3980 = vmatprep.subr.mxu0 0.0
    %3981 = vmatpush1.msra.mxu0 %v1133
    %3982 = vmatprep.subr.mxu0 0.0
    %3983 = vmatpush1.msra.mxu0 %v1134
    %3984 = vmatprep.subr.mxu0 0.0
    %3985 = vmatpush1.msra.mxu0 %v1135
    %3986 = vmatprep.subr.mxu0 0.0
    %3987 = vmatpush1.msra.mxu0 %v1136
    %3988 = vmatprep.subr.mxu0 0.0
    %3989 = vmatpush1.msra.mxu0 %v1137
    %3990 = vmatprep.subr.mxu0 0.0
    %3991 = vmatpush1.msra.mxu0 %v1138
    %3992 = vmatprep.subr.mxu0 0.0
    %3993 = vmatpush1.msra.mxu0 %v1139
    %3994 = vmatprep.subr.mxu0 0.0
    %3995 = vmatpush1.msra.mxu0 %v1140
    %3996 = vmatprep.subr.mxu0 0.0
    %3997 = vmatpush1.msra.mxu0 0.0
    %3998 = vmatprep.subr.mxu0 0.0
    %3999 = vmatpush1.msra.mxu0 0.0
    %4000 = vmatprep.subr.mxu0 0.0
    %4001 = vmatpush1.msra.mxu0 0.0
    %4002 = vmatprep.subr.mxu0 0.0
    %4003 = vmatpush1.msra.mxu0 0.0
    %4004 = vmatprep.subr.mxu0 0.0
    %4005 = vmatpush1.msra.mxu0 0.0
    %4006 = vmatprep.subr.mxu0 0.0
    %4007 = vmatpush1.msra.mxu0 0.0
    %4008 = vmatprep.subr.mxu0 0.0
    %4009 = vmatpush1.msra.mxu0 0.0
    %4010 = vmatprep.subr.mxu0 0.0
    %4011 = vmatpush1.msra.mxu0 0.0
    %4012 = vmatprep.subr.mxu0 0.0
    %4013 = vmatpush1.msra.mxu0 0.0
    %4014 = vmatprep.subr.mxu0 0.0
    %4015 = vmatpush1.msra.mxu0 0.0
    %4016 = vmatprep.subr.mxu0 0.0
    %4017 = vmatpush1.msra.mxu0 0.0
    %4018 = vmatprep.subr.mxu0 0.0
    %4019 = vmatpush1.msra.mxu0 0.0
    %4020 = vmatprep.subr.mxu0 0.0
    %4021 = vmatpush1.msra.mxu0 0.0
    %4022 = vmatprep.subr.mxu0 0.0
    %4023 = vmatpush1.msra.mxu0 0.0
    %4024 = vmatprep.subr.mxu0 0.0
    %4025 = vmatpush1.msra.mxu0 0.0
    %4026 = vmatprep.subr.mxu0 0.0
    %4027 = vmatpush1.msra.mxu0 0.0
    %4028 = vmatprep.mubr.f32.mxu0 0.0
    %4029 = vmatmul.mubr.f32.gmra.mrb[0].mxu0 %v3963
    %v4030 = vpop.f32.mrb[0].mxu0
    %v4031 = vadd.f32 %v1150, %v4030
    %v4032 = vpop.f32.mrb[0].mxu0
    %4033 = vdwg.mxu0
    %v4034 = vmul.f32 %v4031, 0.14285715
    %v4035 = vadd.f32 %v3582, %v4034
    %v4037 = vsel %vm169, %v4035, 0
    %4039 = vmatprep.subr.mxu0 0.0
    %4040 = vmatpush1.msra.mxu0 %v1121
    %4041 = vmatprep.subr.mxu0 0.0
    %4042 = vmatpush1.msra.mxu0 %v1122
    %4043 = vmatprep.subr.mxu0 0.0
    %4044 = vmatpush1.msra.mxu0 %v1123
    %4045 = vmatprep.subr.mxu0 0.0
    %4046 = vmatpush1.msra.mxu0 %v1124
    %4047 = vmatprep.subr.mxu0 0.0
    %4048 = vmatpush1.msra.mxu0 0.0
    %4049 = vmatprep.subr.mxu0 0.0
    %4050 = vmatpush1.msra.mxu0 0.0
    %4051 = vmatprep.subr.mxu0 0.0
    %4052 = vmatpush1.msra.mxu0 0.0
    %4053 = vmatprep.subr.mxu0 0.0
    %4054 = vmatpush1.msra.mxu0 0.0
    %4055 = vmatprep.subr.mxu0 0.0
    %4056 = vmatpush1.msra.mxu0 0.0
    %4057 = vmatprep.subr.mxu0 0.0
    %4058 = vmatpush1.msra.mxu0 0.0
    %4059 = vmatprep.subr.mxu0 0.0
    %4060 = vmatpush1.msra.mxu0 0.0
    %4061 = vmatprep.subr.mxu0 0.0
    %4062 = vmatpush1.msra.mxu0 0.0
    %4063 = vmatprep.subr.mxu0 0.0
    %4064 = vmatpush1.msra.mxu0 0.0
    %4065 = vmatprep.subr.mxu0 0.0
    %4066 = vmatpush1.msra.mxu0 0.0
    %4067 = vmatprep.subr.mxu0 0.0
    %4068 = vmatpush1.msra.mxu0 0.0
    %4069 = vmatprep.subr.mxu0 0.0
    %4070 = vmatpush1.msra.mxu0 0.0
    %4071 = vmatprep.subr.mxu0 0.0
    %4072 = vmatpush1.msra.mxu0 0.0
    %4073 = vmatprep.subr.mxu0 0.0
    %4074 = vmatpush1.msra.mxu0 0.0
    %4075 = vmatprep.subr.mxu0 0.0
    %4076 = vmatpush1.msra.mxu0 0.0
    %4077 = vmatprep.subr.mxu0 0.0
    %4078 = vmatpush1.msra.mxu0 0.0
    %4079 = vmatprep.subr.mxu0 0.0
    %4080 = vmatpush1.msra.mxu0 0.0
    %4081 = vmatprep.subr.mxu0 0.0
    %4082 = vmatpush1.msra.mxu0 0.0
    %4083 = vmatprep.subr.mxu0 0.0
    %4084 = vmatpush1.msra.mxu0 0.0
    %4085 = vmatprep.subr.mxu0 0.0
    %4086 = vmatpush1.msra.mxu0 0.0
    %4087 = vmatprep.subr.mxu0 0.0
    %4088 = vmatpush1.msra.mxu0 0.0
    %4089 = vmatprep.subr.mxu0 0.0
    %4090 = vmatpush1.msra.mxu0 0.0
    %4091 = vmatprep.subr.mxu0 0.0
    %4092 = vmatpush1.msra.mxu0 0.0
    %4093 = vmatprep.subr.mxu0 0.0
    %4094 = vmatpush1.msra.mxu0 0.0
    %4095 = vmatprep.subr.mxu0 0.0
    %4096 = vmatpush1.msra.mxu0 0.0
    %4097 = vmatprep.subr.mxu0 0.0
    %4098 = vmatpush1.msra.mxu0 0.0
    %4099 = vmatprep.subr.mxu0 0.0
    %4100 = vmatpush1.msra.mxu0 0.0
    %4101 = vmatprep.subr.mxu0 0.0
    %4102 = vmatpush1.msra.mxu0 0.0
    %4103 = vmatprep.mubr.f32.mxu0 0.0
    %4104 = vmatmul.mubr.f32.gmra.mrb[0].mxu0 %v4037
    %v4105 = vpop.f32.mrb[0].mxu0
    %v4106 = vadd.f32 %v1145, %v4105
    %v4107 = vpop.f32.mrb[0].mxu0
    %4108 = vdwg.mxu0
    %vm4109 = vcmp.gt.f32.partialorder %v4106, 0.0
    %v4110 = vmin.f32 %v4106, 0.0
    %v4111 = vmul.f32 %v4110, 1.442695
    %v4112 = vpow.pop %v4111
    %v4113 = vsub.f32 %v4112, 1.0
    %v4114 = vsel %vm4109, %v4106, %v4113
    %4115 = vmatprep.subr.mxu0 0.0
    %4116 = vmatpush1.msra.mxu0 %v1125
    %4117 = vmatprep.subr.mxu0 0.0
    %4118 = vmatpush1.msra.mxu0 %v1126
    %4119 = vmatprep.subr.mxu0 0.0
    %4120 = vmatpush1.msra.mxu0 %v1127
    %4121 = vmatprep.subr.mxu0 0.0
    %4122 = vmatpush1.msra.mxu0 %v1128
    %4123 = vmatprep.subr.mxu0 0.0
    %4124 = vmatpush1.msra.mxu0 %v1129
    %4125 = vmatprep.subr.mxu0 0.0
    %4126 = vmatpush1.msra.mxu0 %v1130
    %4127 = vmatprep.subr.mxu0 0.0
    %4128 = vmatpush1.msra.mxu0 %v1131
    %4129 = vmatprep.subr.mxu0 0.0
    %4130 = vmatpush1.msra.mxu0 %v1132
    %4131 = vmatprep.subr.mxu0 0.0
    %4132 = vmatpush1.msra.mxu0 %v1133
    %4133 = vmatprep.subr.mxu0 0.0
    %4134 = vmatpush1.msra.mxu0 %v1134
    %4135 = vmatprep.subr.mxu0 0.0
    %4136 = vmatpush1.msra.mxu0 %v1135
    %4137 = vmatprep.subr.mxu0 0.0
    %4138 = vmatpush1.msra.mxu0 %v1136
    %4139 = vmatprep.subr.mxu0 0.0
    %4140 = vmatpush1.msra.mxu0 %v1137
    %4141 = vmatprep.subr.mxu0 0.0
    %4142 = vmatpush1.msra.mxu0 %v1138
    %4143 = vmatprep.subr.mxu0 0.0
    %4144 = vmatpush1.msra.mxu0 %v1139
    %4145 = vmatprep.subr.mxu0 0.0
    %4146 = vmatpush1.msra.mxu0 %v1140
    %4147 = vmatprep.subr.mxu0 0.0
    %4148 = vmatpush1.msra.mxu0 0.0
    %4149 = vmatprep.subr.mxu0 0.0
    %4150 = vmatpush1.msra.mxu0 0.0
    %4151 = vmatprep.subr.mxu0 0.0
    %4152 = vmatpush1.msra.mxu0 0.0
    %4153 = vmatprep.subr.mxu0 0.0
    %4154 = vmatpush1.msra.mxu0 0.0
    %4155 = vmatprep.subr.mxu0 0.0
    %4156 = vmatpush1.msra.mxu0 0.0
    %4157 = vmatprep.subr.mxu0 0.0
    %4158 = vmatpush1.msra.mxu0 0.0
    %4159 = vmatprep.subr.mxu0 0.0
    %4160 = vmatpush1.msra.mxu0 0.0
    %4161 = vmatprep.subr.mxu0 0.0
    %4162 = vmatpush1.msra.mxu0 0.0
    %4163 = vmatprep.subr.mxu0 0.0
    %4164 = vmatpush1.msra.mxu0 0.0
    %4165 = vmatprep.subr.mxu0 0.0
    %4166 = vmatpush1.msra.mxu0 0.0
    %4167 = vmatprep.subr.mxu0 0.0
    %4168 = vmatpush1.msra.mxu0 0.0
    %4169 = vmatprep.subr.mxu0 0.0
    %4170 = vmatpush1.msra.mxu0 0.0
    %4171 = vmatprep.subr.mxu0 0.0
    %4172 = vmatpush1.msra.mxu0 0.0
    %4173 = vmatprep.subr.mxu0 0.0
    %4174 = vmatpush1.msra.mxu0 0.0
    %4175 = vmatprep.subr.mxu0 0.0
    %4176 = vmatpush1.msra.mxu0 0.0
    %4177 = vmatprep.subr.mxu0 0.0
    %4178 = vmatpush1.msra.mxu0 0.0
    %4179 = vmatprep.mubr.f32.mxu0 0.0
    %4180 = vmatmul.mubr.f32.gmra.mrb[0].mxu0 %v4114
    %v4181 = vpop.f32.mrb[0].mxu0
    %v4182 = vadd.f32 %v1150, %v4181
    %v4183 = vpop.f32.mrb[0].mxu0
    %4184 = vdwg.mxu0
    %v4185 = vadd.f32 %v3880, %v4031
    %v4186 = vmul.f32 %v4185, 2.0
    %v4187 = vadd.f32 %v3729, %v4186
    %v4188 = vadd.f32 %v4187, %v4182
    %v4189 = vmul.f32 %v4188, 0.023809524
    %v4190 = vadd.f32 %v3582, %v4189
    %v4192 = vsel %vm169, %v4190, 0
    %4194 = vmatprep.subr.mxu0 0.0
    %4195 = vmatpush1.msra.mxu0 %v1121
    %4196 = vmatprep.subr.mxu0 0.0
    %4197 = vmatpush1.msra.mxu0 %v1122
    %4198 = vmatprep.subr.mxu0 0.0
    %4199 = vmatpush1.msra.mxu0 %v1123
    %4200 = vmatprep.subr.mxu0 0.0
    %4201 = vmatpush1.msra.mxu0 %v1124
    %4202 = vmatprep.subr.mxu0 0.0
    %4203 = vmatpush1.msra.mxu0 0.0
    %4204 = vmatprep.subr.mxu0 0.0
    %4205 = vmatpush1.msra.mxu0 0.0
    %4206 = vmatprep.subr.mxu0 0.0
    %4207 = vmatpush1.msra.mxu0 0.0
    %4208 = vmatprep.subr.mxu0 0.0
    %4209 = vmatpush1.msra.mxu0 0.0
    %4210 = vmatprep.subr.mxu0 0.0
    %4211 = vmatpush1.msra.mxu0 0.0
    %4212 = vmatprep.subr.mxu0 0.0
    %4213 = vmatpush1.msra.mxu0 0.0
    %4214 = vmatprep.subr.mxu0 0.0
    %4215 = vmatpush1.msra.mxu0 0.0
    %4216 = vmatprep.subr.mxu0 0.0
    %4217 = vmatpush1.msra.mxu0 0.0
    %4218 = vmatprep.subr.mxu0 0.0
    %4219 = vmatpush1.msra.mxu0 0.0
    %4220 = vmatprep.subr.mxu0 0.0
    %4221 = vmatpush1.msra.mxu0 0.0
    %4222 = vmatprep.subr.mxu0 0.0
    %4223 = vmatpush1.msra.mxu0 0.0
    %4224 = vmatprep.subr.mxu0 0.0
    %4225 = vmatpush1.msra.mxu0 0.0
    %4226 = vmatprep.subr.mxu0 0.0
    %4227 = vmatpush1.msra.mxu0 0.0
    %4228 = vmatprep.subr.mxu0 0.0
    %4229 = vmatpush1.msra.mxu0 0.0
    %4230 = vmatprep.subr.mxu0 0.0
    %4231 = vmatpush1.msra.mxu0 0.0
    %4232 = vmatprep.subr.mxu0 0.0
    %4233 = vmatpush1.msra.mxu0 0.0
    %4234 = vmatprep.subr.mxu0 0.0
    %4235 = vmatpush1.msra.mxu0 0.0
    %4236 = vmatprep.subr.mxu0 0.0
    %4237 = vmatpush1.msra.mxu0 0.0
    %4238 = vmatprep.subr.mxu0 0.0
    %4239 = vmatpush1.msra.mxu0 0.0
    %4240 = vmatprep.subr.mxu0 0.0
    %4241 = vmatpush1.msra.mxu0 0.0
    %4242 = vmatprep.subr.mxu0 0.0
    %4243 = vmatpush1.msra.mxu0 0.0
    %4244 = vmatprep.subr.mxu0 0.0
    %4245 = vmatpush1.msra.mxu0 0.0
    %4246 = vmatprep.subr.mxu0 0.0
    %4247 = vmatpush1.msra.mxu0 0.0
    %4248 = vmatprep.subr.mxu0 0.0
    %4249 = vmatpush1.msra.mxu0 0.0
    %4250 = vmatprep.subr.mxu0 0.0
    %4251 = vmatpush1.msra.mxu0 0.0
    %4252 = vmatprep.subr.mxu0 0.0
    %4253 = vmatpush1.msra.mxu0 0.0
    %4254 = vmatprep.subr.mxu0 0.0
    %4255 = vmatpush1.msra.mxu0 0.0
    %4256 = vmatprep.subr.mxu0 0.0
    %4257 = vmatpush1.msra.mxu0 0.0
    %4258 = vmatprep.mubr.f32.mxu0 0.0
    %4259 = vmatmul.mubr.f32.gmra.mrb[0].mxu0 %v4192
    %v4260 = vpop.f32.mrb[0].mxu0
    %v4261 = vadd.f32 %v1145, %v4260
    %v4262 = vpop.f32.mrb[0].mxu0
    %4263 = vdwg.mxu0
    %vm4264 = vcmp.gt.f32.partialorder %v4261, 0.0
    %v4265 = vmin.f32 %v4261, 0.0
    %v4266 = vmul.f32 %v4265, 1.442695
    %v4267 = vpow.pop %v4266
    %v4268 = vsub.f32 %v4267, 1.0
    %v4269 = vsel %vm4264, %v4261, %v4268
    %4270 = vmatprep.subr.mxu0 0.0
    %4271 = vmatpush1.msra.mxu0 %v1125
    %4272 = vmatprep.subr.mxu0 0.0
    %4273 = vmatpush1.msra.mxu0 %v1126
    %4274 = vmatprep.subr.mxu0 0.0
    %4275 = vmatpush1.msra.mxu0 %v1127
    %4276 = vmatprep.subr.mxu0 0.0
    %4277 = vmatpush1.msra.mxu0 %v1128
    %4278 = vmatprep.subr.mxu0 0.0
    %4279 = vmatpush1.msra.mxu0 %v1129
    %4280 = vmatprep.subr.mxu0 0.0
    %4281 = vmatpush1.msra.mxu0 %v1130
    %4282 = vmatprep.subr.mxu0 0.0
    %4283 = vmatpush1.msra.mxu0 %v1131
    %4284 = vmatprep.subr.mxu0 0.0
    %4285 = vmatpush1.msra.mxu0 %v1132
    %4286 = vmatprep.subr.mxu0 0.0
    %4287 = vmatpush1.msra.mxu0 %v1133
    %4288 = vmatprep.subr.mxu0 0.0
    %4289 = vmatpush1.msra.mxu0 %v1134
    %4290 = vmatprep.subr.mxu0 0.0
    %4291 = vmatpush1.msra.mxu0 %v1135
    %4292 = vmatprep.subr.mxu0 0.0
    %4293 = vmatpush1.msra.mxu0 %v1136
    %4294 = vmatprep.subr.mxu0 0.0
    %4295 = vmatpush1.msra.mxu0 %v1137
    %4296 = vmatprep.subr.mxu0 0.0
    %4297 = vmatpush1.msra.mxu0 %v1138
    %4298 = vmatprep.subr.mxu0 0.0
    %4299 = vmatpush1.msra.mxu0 %v1139
    %4300 = vmatprep.subr.mxu0 0.0
    %4301 = vmatpush1.msra.mxu0 %v1140
    %4302 = vmatprep.subr.mxu0 0.0
    %4303 = vmatpush1.msra.mxu0 0.0
    %4304 = vmatprep.subr.mxu0 0.0
    %4305 = vmatpush1.msra.mxu0 0.0
    %4306 = vmatprep.subr.mxu0 0.0
    %4307 = vmatpush1.msra.mxu0 0.0
    %4308 = vmatprep.subr.mxu0 0.0
    %4309 = vmatpush1.msra.mxu0 0.0
    %4310 = vmatprep.subr.mxu0 0.0
    %4311 = vmatpush1.msra.mxu0 0.0
    %4312 = vmatprep.subr.mxu0 0.0
    %4313 = vmatpush1.msra.mxu0 0.0
    %4314 = vmatprep.subr.mxu0 0.0
    %4315 = vmatpush1.msra.mxu0 0.0
    %4316 = vmatprep.subr.mxu0 0.0
    %4317 = vmatpush1.msra.mxu0 0.0
    %4318 = vmatprep.subr.mxu0 0.0
    %4319 = vmatpush1.msra.mxu0 0.0
    %4320 = vmatprep.subr.mxu0 0.0
    %4321 = vmatpush1.msra.mxu0 0.0
    %4322 = vmatprep.subr.mxu0 0.0
    %4323 = vmatpush1.msra.mxu0 0.0
    %4324 = vmatprep.subr.mxu0 0.0
    %4325 = vmatpush1.msra.mxu0 0.0
    %4326 = vmatprep.subr.mxu0 0.0
    %4327 = vmatpush1.msra.mxu0 0.0
    %4328 = vmatprep.subr.mxu0 0.0
    %4329 = vmatpush1.msra.mxu0 0.0
    %4330 = vmatprep.subr.mxu0 0.0
    %4331 = vmatpush1.msra.mxu0 0.0
    %4332 = vmatprep.subr.mxu0 0.0
    %4333 = vmatpush1.msra.mxu0 0.0
    %4334 = vmatprep.mubr.f32.mxu0 0.0
    %4335 = vmatmul.mubr.f32.gmra.mrb[0].mxu0 %v4269
    %v4336 = vpop.f32.mrb[0].mxu0
    %v4337 = vadd.f32 %v1150, %v4336
    %v4338 = vpop.f32.mrb[0].mxu0
    %4339 = vdwg.mxu0
    %v4340 = vmul.f32 %v4337, 0.071428575
    %v4341 = vadd.f32 %v4190, %v4340
    %v4343 = vsel %vm169, %v4341, 0
    %4345 = vmatprep.subr.mxu0 0.0
    %4346 = vmatpush1.msra.mxu0 %v1121
    %4347 = vmatprep.subr.mxu0 0.0
    %4348 = vmatpush1.msra.mxu0 %v1122
    %4349 = vmatprep.subr.mxu0 0.0
    %4350 = vmatpush1.msra.mxu0 %v1123
    %4351 = vmatprep.subr.mxu0 0.0
    %4352 = vmatpush1.msra.mxu0 %v1124
    %4353 = vmatprep.subr.mxu0 0.0
    %4354 = vmatpush1.msra.mxu0 0.0
    %4355 = vmatprep.subr.mxu0 0.0
    %4356 = vmatpush1.msra.mxu0 0.0
    %4357 = vmatprep.subr.mxu0 0.0
    %4358 = vmatpush1.msra.mxu0 0.0
    %4359 = vmatprep.subr.mxu0 0.0
    %4360 = vmatpush1.msra.mxu0 0.0
    %4361 = vmatprep.subr.mxu0 0.0
    %4362 = vmatpush1.msra.mxu0 0.0
    %4363 = vmatprep.subr.mxu0 0.0
    %4364 = vmatpush1.msra.mxu0 0.0
    %4365 = vmatprep.subr.mxu0 0.0
    %4366 = vmatpush1.msra.mxu0 0.0
    %4367 = vmatprep.subr.mxu0 0.0
    %4368 = vmatpush1.msra.mxu0 0.0
    %4369 = vmatprep.subr.mxu0 0.0
    %4370 = vmatpush1.msra.mxu0 0.0
    %4371 = vmatprep.subr.mxu0 0.0
    %4372 = vmatpush1.msra.mxu0 0.0
    %4373 = vmatprep.subr.mxu0 0.0
    %4374 = vmatpush1.msra.mxu0 0.0
    %4375 = vmatprep.subr.mxu0 0.0
    %4376 = vmatpush1.msra.mxu0 0.0
    %4377 = vmatprep.subr.mxu0 0.0
    %4378 = vmatpush1.msra.mxu0 0.0
    %4379 = vmatprep.subr.mxu0 0.0
    %4380 = vmatpush1.msra.mxu0 0.0
    %4381 = vmatprep.subr.mxu0 0.0
    %4382 = vmatpush1.msra.mxu0 0.0
    %4383 = vmatprep.subr.mxu0 0.0
    %4384 = vmatpush1.msra.mxu0 0.0
    %4385 = vmatprep.subr.mxu0 0.0
    %4386 = vmatpush1.msra.mxu0 0.0
    %4387 = vmatprep.subr.mxu0 0.0
    %4388 = vmatpush1.msra.mxu0 0.0
    %4389 = vmatprep.subr.mxu0 0.0
    %4390 = vmatpush1.msra.mxu0 0.0
    %4391 = vmatprep.subr.mxu0 0.0
    %4392 = vmatpush1.msra.mxu0 0.0
    %4393 = vmatprep.subr.mxu0 0.0
    %4394 = vmatpush1.msra.mxu0 0.0
    %4395 = vmatprep.subr.mxu0 0.0
    %4396 = vmatpush1.msra.mxu0 0.0
    %4397 = vmatprep.subr.mxu0 0.0
    %4398 = vmatpush1.msra.mxu0 0.0
    %4399 = vmatprep.subr.mxu0 0.0
    %4400 = vmatpush1.msra.mxu0 0.0
    %4401 = vmatprep.subr.mxu0 0.0
    %4402 = vmatpush1.msra.mxu0 0.0
    %4403 = vmatprep.subr.mxu0 0.0
    %4404 = vmatpush1.msra.mxu0 0.0
    %4405 = vmatprep.subr.mxu0 0.0
    %4406 = vmatpush1.msra.mxu0 0.0
    %4407 = vmatprep.subr.mxu0 0.0
    %4408 = vmatpush1.msra.mxu0 0.0
    %4409 = vmatprep.mubr.f32.mxu0 0.0
    %4410 = vmatmul.mubr.f32.gmra.mrb[0].mxu0 %v4343
    %v4411 = vpop.f32.mrb[0].mxu0
    %v4412 = vadd.f32 %v1145, %v4411
    %v4413 = vpop.f32.mrb[0].mxu0
    %4414 = vdwg.mxu0
    %vm4415 = vcmp.gt.f32.partialorder %v4412, 0.0
    %v4416 = vmin.f32 %v4412, 0.0
    %v4417 = vmul.f32 %v4416, 1.442695
    %v4418 = vpow.pop %v4417
    %v4419 = vsub.f32 %v4418, 1.0
    %v4420 = vsel %vm4415, %v4412, %v4419
    %4421 = vmatprep.subr.mxu0 0.0
    %4422 = vmatpush1.msra.mxu0 %v1125
    %4423 = vmatprep.subr.mxu0 0.0
    %4424 = vmatpush1.msra.mxu0 %v1126
    %4425 = vmatprep.subr.mxu0 0.0
    %4426 = vmatpush1.msra.mxu0 %v1127
    %4427 = vmatprep.subr.mxu0 0.0
    %4428 = vmatpush1.msra.mxu0 %v1128
    %4429 = vmatprep.subr.mxu0 0.0
    %4430 = vmatpush1.msra.mxu0 %v1129
    %4431 = vmatprep.subr.mxu0 0.0
    %4432 = vmatpush1.msra.mxu0 %v1130
    %4433 = vmatprep.subr.mxu0 0.0
    %4434 = vmatpush1.msra.mxu0 %v1131
    %4435 = vmatprep.subr.mxu0 0.0
    %4436 = vmatpush1.msra.mxu0 %v1132
    %4437 = vmatprep.subr.mxu0 0.0
    %4438 = vmatpush1.msra.mxu0 %v1133
    %4439 = vmatprep.subr.mxu0 0.0
    %4440 = vmatpush1.msra.mxu0 %v1134
    %4441 = vmatprep.subr.mxu0 0.0
    %4442 = vmatpush1.msra.mxu0 %v1135
    %4443 = vmatprep.subr.mxu0 0.0
    %4444 = vmatpush1.msra.mxu0 %v1136
    %4445 = vmatprep.subr.mxu0 0.0
    %4446 = vmatpush1.msra.mxu0 %v1137
    %4447 = vmatprep.subr.mxu0 0.0
    %4448 = vmatpush1.msra.mxu0 %v1138
    %4449 = vmatprep.subr.mxu0 0.0
    %4450 = vmatpush1.msra.mxu0 %v1139
    %4451 = vmatprep.subr.mxu0 0.0
    %4452 = vmatpush1.msra.mxu0 %v1140
    %4453 = vmatprep.subr.mxu0 0.0
    %4454 = vmatpush1.msra.mxu0 0.0
    %4455 = vmatprep.subr.mxu0 0.0
    %4456 = vmatpush1.msra.mxu0 0.0
    %4457 = vmatprep.subr.mxu0 0.0
    %4458 = vmatpush1.msra.mxu0 0.0
    %4459 = vmatprep.subr.mxu0 0.0
    %4460 = vmatpush1.msra.mxu0 0.0
    %4461 = vmatprep.subr.mxu0 0.0
    %4462 = vmatpush1.msra.mxu0 0.0
    %4463 = vmatprep.subr.mxu0 0.0
    %4464 = vmatpush1.msra.mxu0 0.0
    %4465 = vmatprep.subr.mxu0 0.0
    %4466 = vmatpush1.msra.mxu0 0.0
    %4467 = vmatprep.subr.mxu0 0.0
    %4468 = vmatpush1.msra.mxu0 0.0
    %4469 = vmatprep.subr.mxu0 0.0
    %4470 = vmatpush1.msra.mxu0 0.0
    %4471 = vmatprep.subr.mxu0 0.0
    %4472 = vmatpush1.msra.mxu0 0.0
    %4473 = vmatprep.subr.mxu0 0.0
    %4474 = vmatpush1.msra.mxu0 0.0
    %4475 = vmatprep.subr.mxu0 0.0
    %4476 = vmatpush1.msra.mxu0 0.0
    %4477 = vmatprep.subr.mxu0 0.0
    %4478 = vmatpush1.msra.mxu0 0.0
    %4479 = vmatprep.subr.mxu0 0.0
    %4480 = vmatpush1.msra.mxu0 0.0
    %4481 = vmatprep.subr.mxu0 0.0
    %4482 = vmatpush1.msra.mxu0 0.0
    %4483 = vmatprep.subr.mxu0 0.0
    %4484 = vmatpush1.msra.mxu0 0.0
    %4485 = vmatprep.mubr.f32.mxu0 0.0
    %4486 = vmatmul.mubr.f32.gmra.mrb[0].mxu0 %v4420
    %v4487 = vpop.f32.mrb[0].mxu0
    %v4488 = vadd.f32 %v1150, %v4487
    %v4489 = vpop.f32.mrb[0].mxu0
    %4490 = vdwg.mxu0
    %v4491 = vmul.f32 %v4488, 0.071428575
    %v4492 = vadd.f32 %v4190, %v4491
    %v4494 = vsel %vm169, %v4492, 0
    %4496 = vmatprep.subr.mxu0 0.0
    %4497 = vmatpush1.msra.mxu0 %v1121
    %4498 = vmatprep.subr.mxu0 0.0
    %4499 = vmatpush1.msra.mxu0 %v1122
    %4500 = vmatprep.subr.mxu0 0.0
    %4501 = vmatpush1.msra.mxu0 %v1123
    %4502 = vmatprep.subr.mxu0 0.0
    %4503 = vmatpush1.msra.mxu0 %v1124
    %4504 = vmatprep.subr.mxu0 0.0
    %4505 = vmatpush1.msra.mxu0 0.0
    %4506 = vmatprep.subr.mxu0 0.0
    %4507 = vmatpush1.msra.mxu0 0.0
    %4508 = vmatprep.subr.mxu0 0.0
    %4509 = vmatpush1.msra.mxu0 0.0
    %4510 = vmatprep.subr.mxu0 0.0
    %4511 = vmatpush1.msra.mxu0 0.0
    %4512 = vmatprep.subr.mxu0 0.0
    %4513 = vmatpush1.msra.mxu0 0.0
    %4514 = vmatprep.subr.mxu0 0.0
    %4515 = vmatpush1.msra.mxu0 0.0
    %4516 = vmatprep.subr.mxu0 0.0
    %4517 = vmatpush1.msra.mxu0 0.0
    %4518 = vmatprep.subr.mxu0 0.0
    %4519 = vmatpush1.msra.mxu0 0.0
    %4520 = vmatprep.subr.mxu0 0.0
    %4521 = vmatpush1.msra.mxu0 0.0
    %4522 = vmatprep.subr.mxu0 0.0
    %4523 = vmatpush1.msra.mxu0 0.0
    %4524 = vmatprep.subr.mxu0 0.0
    %4525 = vmatpush1.msra.mxu0 0.0
    %4526 = vmatprep.subr.mxu0 0.0
    %4527 = vmatpush1.msra.mxu0 0.0
    %4528 = vmatprep.subr.mxu0 0.0
    %4529 = vmatpush1.msra.mxu0 0.0
    %4530 = vmatprep.subr.mxu0 0.0
    %4531 = vmatpush1.msra.mxu0 0.0
    %4532 = vmatprep.subr.mxu0 0.0
    %4533 = vmatpush1.msra.mxu0 0.0
    %4534 = vmatprep.subr.mxu0 0.0
    %4535 = vmatpush1.msra.mxu0 0.0
    %4536 = vmatprep.subr.mxu0 0.0
    %4537 = vmatpush1.msra.mxu0 0.0
    %4538 = vmatprep.subr.mxu0 0.0
    %4539 = vmatpush1.msra.mxu0 0.0
    %4540 = vmatprep.subr.mxu0 0.0
    %4541 = vmatpush1.msra.mxu0 0.0
    %4542 = vmatprep.subr.mxu0 0.0
    %4543 = vmatpush1.msra.mxu0 0.0
    %4544 = vmatprep.subr.mxu0 0.0
    %4545 = vmatpush1.msra.mxu0 0.0
    %4546 = vmatprep.subr.mxu0 0.0
    %4547 = vmatpush1.msra.mxu0 0.0
    %4548 = vmatprep.subr.mxu0 0.0
    %4549 = vmatpush1.msra.mxu0 0.0
    %4550 = vmatprep.subr.mxu0 0.0
    %4551 = vmatpush1.msra.mxu0 0.0
    %4552 = vmatprep.subr.mxu0 0.0
    %4553 = vmatpush1.msra.mxu0 0.0
    %4554 = vmatprep.subr.mxu0 0.0
    %4555 = vmatpush1.msra.mxu0 0.0
    %4556 = vmatprep.subr.mxu0 0.0
    %4557 = vmatpush1.msra.mxu0 0.0
    %4558 = vmatprep.subr.mxu0 0.0
    %4559 = vmatpush1.msra.mxu0 0.0
    %4560 = vmatprep.mubr.f32.mxu0 0.0
    %4561 = vmatmul.mubr.f32.gmra.mrb[0].mxu0 %v4494
    %v4562 = vpop.f32.mrb[0].mxu0
    %v4563 = vadd.f32 %v1145, %v4562
    %v4564 = vpop.f32.mrb[0].mxu0
    %4565 = vdwg.mxu0
    %vm4566 = vcmp.gt.f32.partialorder %v4563, 0.0
    %v4567 = vmin.f32 %v4563, 0.0
    %v4568 = vmul.f32 %v4567, 1.442695
    %v4569 = vpow.pop %v4568
    %v4570 = vsub.f32 %v4569, 1.0
    %v4571 = vsel %vm4566, %v4563, %v4570
    %4572 = vmatprep.subr.mxu0 0.0
    %4573 = vmatpush1.msra.mxu0 %v1125
    %4574 = vmatprep.subr.mxu0 0.0
    %4575 = vmatpush1.msra.mxu0 %v1126
    %4576 = vmatprep.subr.mxu0 0.0
    %4577 = vmatpush1.msra.mxu0 %v1127
    %4578 = vmatprep.subr.mxu0 0.0
    %4579 = vmatpush1.msra.mxu0 %v1128
    %4580 = vmatprep.subr.mxu0 0.0
    %4581 = vmatpush1.msra.mxu0 %v1129
    %4582 = vmatprep.subr.mxu0 0.0
    %4583 = vmatpush1.msra.mxu0 %v1130
    %4584 = vmatprep.subr.mxu0 0.0
    %4585 = vmatpush1.msra.mxu0 %v1131
    %4586 = vmatprep.subr.mxu0 0.0
    %4587 = vmatpush1.msra.mxu0 %v1132
    %4588 = vmatprep.subr.mxu0 0.0
    %4589 = vmatpush1.msra.mxu0 %v1133
    %4590 = vmatprep.subr.mxu0 0.0
    %4591 = vmatpush1.msra.mxu0 %v1134
    %4592 = vmatprep.subr.mxu0 0.0
    %4593 = vmatpush1.msra.mxu0 %v1135
    %4594 = vmatprep.subr.mxu0 0.0
    %4595 = vmatpush1.msra.mxu0 %v1136
    %4596 = vmatprep.subr.mxu0 0.0
    %4597 = vmatpush1.msra.mxu0 %v1137
    %4598 = vmatprep.subr.mxu0 0.0
    %4599 = vmatpush1.msra.mxu0 %v1138
    %4600 = vmatprep.subr.mxu0 0.0
    %4601 = vmatpush1.msra.mxu0 %v1139
    %4602 = vmatprep.subr.mxu0 0.0
    %4603 = vmatpush1.msra.mxu0 %v1140
    %4604 = vmatprep.subr.mxu0 0.0
    %4605 = vmatpush1.msra.mxu0 0.0
    %4606 = vmatprep.subr.mxu0 0.0
    %4607 = vmatpush1.msra.mxu0 0.0
    %4608 = vmatprep.subr.mxu0 0.0
    %4609 = vmatpush1.msra.mxu0 0.0
    %4610 = vmatprep.subr.mxu0 0.0
    %4611 = vmatpush1.msra.mxu0 0.0
    %4612 = vmatprep.subr.mxu0 0.0
    %4613 = vmatpush1.msra.mxu0 0.0
    %4614 = vmatprep.subr.mxu0 0.0
    %4615 = vmatpush1.msra.mxu0 0.0
    %4616 = vmatprep.subr.mxu0 0.0
    %4617 = vmatpush1.msra.mxu0 0.0
    %4618 = vmatprep.subr.mxu0 0.0
    %4619 = vmatpush1.msra.mxu0 0.0
    %4620 = vmatprep.subr.mxu0 0.0
    %4621 = vmatpush1.msra.mxu0 0.0
    %4622 = vmatprep.subr.mxu0 0.0
    %4623 = vmatpush1.msra.mxu0 0.0
    %4624 = vmatprep.subr.mxu0 0.0
    %4625 = vmatpush1.msra.mxu0 0.0
    %4626 = vmatprep.subr.mxu0 0.0
    %4627 = vmatpush1.msra.mxu0 0.0
    %4628 = vmatprep.subr.mxu0 0.0
    %4629 = vmatpush1.msra.mxu0 0.0
    %4630 = vmatprep.subr.mxu0 0.0
    %4631 = vmatpush1.msra.mxu0 0.0
    %4632 = vmatprep.subr.mxu0 0.0
    %4633 = vmatpush1.msra.mxu0 0.0
    %4634 = vmatprep.subr.mxu0 0.0
    %4635 = vmatpush1.msra.mxu0 0.0
    %4636 = vmatprep.mubr.f32.mxu0 0.0
    %4637 = vmatmul.mubr.f32.gmra.mrb[0].mxu0 %v4571
    %v4638 = vpop.f32.mrb[0].mxu0
    %v4639 = vadd.f32 %v1150, %v4638
    %v4640 = vpop.f32.mrb[0].mxu0
    %4641 = vdwg.mxu0
    %v4642 = vmul.f32 %v4639, 0.14285715
    %v4643 = vadd.f32 %v4190, %v4642
    %v4645 = vsel %vm169, %v4643, 0
    %4647 = vmatprep.subr.mxu0 0.0
    %4648 = vmatpush1.msra.mxu0 %v1121
    %4649 = vmatprep.subr.mxu0 0.0
    %4650 = vmatpush1.msra.mxu0 %v1122
    %4651 = vmatprep.subr.mxu0 0.0
    %4652 = vmatpush1.msra.mxu0 %v1123
    %4653 = vmatprep.subr.mxu0 0.0
    %4654 = vmatpush1.msra.mxu0 %v1124
    %4655 = vmatprep.subr.mxu0 0.0
    %4656 = vmatpush1.msra.mxu0 0.0
    %4657 = vmatprep.subr.mxu0 0.0
    %4658 = vmatpush1.msra.mxu0 0.0
    %4659 = vmatprep.subr.mxu0 0.0
    %4660 = vmatpush1.msra.mxu0 0.0
    %4661 = vmatprep.subr.mxu0 0.0
    %4662 = vmatpush1.msra.mxu0 0.0
    %4663 = vmatprep.subr.mxu0 0.0
    %4664 = vmatpush1.msra.mxu0 0.0
    %4665 = vmatprep.subr.mxu0 0.0
    %4666 = vmatpush1.msra.mxu0 0.0
    %4667 = vmatprep.subr.mxu0 0.0
    %4668 = vmatpush1.msra.mxu0 0.0
    %4669 = vmatprep.subr.mxu0 0.0
    %4670 = vmatpush1.msra.mxu0 0.0
    %4671 = vmatprep.subr.mxu0 0.0
    %4672 = vmatpush1.msra.mxu0 0.0
    %4673 = vmatprep.subr.mxu0 0.0
    %4674 = vmatpush1.msra.mxu0 0.0
    %4675 = vmatprep.subr.mxu0 0.0
    %4676 = vmatpush1.msra.mxu0 0.0
    %4677 = vmatprep.subr.mxu0 0.0
    %4678 = vmatpush1.msra.mxu0 0.0
    %4679 = vmatprep.subr.mxu0 0.0
    %4680 = vmatpush1.msra.mxu0 0.0
    %4681 = vmatprep.subr.mxu0 0.0
    %4682 = vmatpush1.msra.mxu0 0.0
    %4683 = vmatprep.subr.mxu0 0.0
    %4684 = vmatpush1.msra.mxu0 0.0
    %4685 = vmatprep.subr.mxu0 0.0
    %4686 = vmatpush1.msra.mxu0 0.0
    %4687 = vmatprep.subr.mxu0 0.0
    %4688 = vmatpush1.msra.mxu0 0.0
    %4689 = vmatprep.subr.mxu0 0.0
    %4690 = vmatpush1.msra.mxu0 0.0
    %4691 = vmatprep.subr.mxu0 0.0
    %4692 = vmatpush1.msra.mxu0 0.0
    %4693 = vmatprep.subr.mxu0 0.0
    %4694 = vmatpush1.msra.mxu0 0.0
    %4695 = vmatprep.subr.mxu0 0.0
    %4696 = vmatpush1.msra.mxu0 0.0
    %4697 = vmatprep.subr.mxu0 0.0
    %4698 = vmatpush1.msra.mxu0 0.0
    %4699 = vmatprep.subr.mxu0 0.0
    %4700 = vmatpush1.msra.mxu0 0.0
    %4701 = vmatprep.subr.mxu0 0.0
    %4702 = vmatpush1.msra.mxu0 0.0
    %4703 = vmatprep.subr.mxu0 0.0
    %4704 = vmatpush1.msra.mxu0 0.0
    %4705 = vmatprep.subr.mxu0 0.0
    %4706 = vmatpush1.msra.mxu0 0.0
    %4707 = vmatprep.subr.mxu0 0.0
    %4708 = vmatpush1.msra.mxu0 0.0
    %4709 = vmatprep.subr.mxu0 0.0
    %4710 = vmatpush1.msra.mxu0 0.0
    %4711 = vmatprep.mubr.f32.mxu0 0.0
    %4712 = vmatmul.mubr.f32.gmra.mrb[0].mxu0 %v4645
    %v4713 = vpop.f32.mrb[0].mxu0
    %v4714 = vadd.f32 %v1145, %v4713
    %v4715 = vpop.f32.mrb[0].mxu0
    %4716 = vdwg.mxu0
    %vm4717 = vcmp.gt.f32.partialorder %v4714, 0.0
    %v4718 = vmin.f32 %v4714, 0.0
    %v4719 = vmul.f32 %v4718, 1.442695
    %v4720 = vpow.pop %v4719
    %v4721 = vsub.f32 %v4720, 1.0
    %v4722 = vsel %vm4717, %v4714, %v4721
    %4723 = vmatprep.subr.mxu0 0.0
    %4724 = vmatpush1.msra.mxu0 %v1125
    %4725 = vmatprep.subr.mxu0 0.0
    %4726 = vmatpush1.msra.mxu0 %v1126
    %4727 = vmatprep.subr.mxu0 0.0
    %4728 = vmatpush1.msra.mxu0 %v1127
    %4729 = vmatprep.subr.mxu0 0.0
    %4730 = vmatpush1.msra.mxu0 %v1128
    %4731 = vmatprep.subr.mxu0 0.0
    %4732 = vmatpush1.msra.mxu0 %v1129
    %4733 = vmatprep.subr.mxu0 0.0
    %4734 = vmatpush1.msra.mxu0 %v1130
    %4735 = vmatprep.subr.mxu0 0.0
    %4736 = vmatpush1.msra.mxu0 %v1131
    %4737 = vmatprep.subr.mxu0 0.0
    %4738 = vmatpush1.msra.mxu0 %v1132
    %4739 = vmatprep.subr.mxu0 0.0
    %4740 = vmatpush1.msra.mxu0 %v1133
    %4741 = vmatprep.subr.mxu0 0.0
    %4742 = vmatpush1.msra.mxu0 %v1134
    %4743 = vmatprep.subr.mxu0 0.0
    %4744 = vmatpush1.msra.mxu0 %v1135
    %4745 = vmatprep.subr.mxu0 0.0
    %4746 = vmatpush1.msra.mxu0 %v1136
    %4747 = vmatprep.subr.mxu0 0.0
    %4748 = vmatpush1.msra.mxu0 %v1137
    %4749 = vmatprep.subr.mxu0 0.0
    %4750 = vmatpush1.msra.mxu0 %v1138
    %4751 = vmatprep.subr.mxu0 0.0
    %4752 = vmatpush1.msra.mxu0 %v1139
    %4753 = vmatprep.subr.mxu0 0.0
    %4754 = vmatpush1.msra.mxu0 %v1140
    %4755 = vmatprep.subr.mxu0 0.0
    %4756 = vmatpush1.msra.mxu0 0.0
    %4757 = vmatprep.subr.mxu0 0.0
    %4758 = vmatpush1.msra.mxu0 0.0
    %4759 = vmatprep.subr.mxu0 0.0
    %4760 = vmatpush1.msra.mxu0 0.0
    %4761 = vmatprep.subr.mxu0 0.0
    %4762 = vmatpush1.msra.mxu0 0.0
    %4763 = vmatprep.subr.mxu0 0.0
    %4764 = vmatpush1.msra.mxu0 0.0
    %4765 = vmatprep.subr.mxu0 0.0
    %4766 = vmatpush1.msra.mxu0 0.0
    %4767 = vmatprep.subr.mxu0 0.0
    %4768 = vmatpush1.msra.mxu0 0.0
    %4769 = vmatprep.subr.mxu0 0.0
    %4770 = vmatpush1.msra.mxu0 0.0
    %4771 = vmatprep.subr.mxu0 0.0
    %4772 = vmatpush1.msra.mxu0 0.0
    %4773 = vmatprep.subr.mxu0 0.0
    %4774 = vmatpush1.msra.mxu0 0.0
    %4775 = vmatprep.subr.mxu0 0.0
    %4776 = vmatpush1.msra.mxu0 0.0
    %4777 = vmatprep.subr.mxu0 0.0
    %4778 = vmatpush1.msra.mxu0 0.0
    %4779 = vmatprep.subr.mxu0 0.0
    %4780 = vmatpush1.msra.mxu0 0.0
    %4781 = vmatprep.subr.mxu0 0.0
    %4782 = vmatpush1.msra.mxu0 0.0
    %4783 = vmatprep.subr.mxu0 0.0
    %4784 = vmatpush1.msra.mxu0 0.0
    %4785 = vmatprep.subr.mxu0 0.0
    %4786 = vmatpush1.msra.mxu0 0.0
    %4787 = vmatprep.mubr.f32.mxu0 0.0
    %4788 = vmatmul.mubr.f32.gmra.mrb[0].mxu0 %v4722
    %v4789 = vpop.f32.mrb[0].mxu0
    %v4790 = vadd.f32 %v1150, %v4789
    %v4791 = vpop.f32.mrb[0].mxu0
    %4792 = vdwg.mxu0
    %v4793 = vadd.f32 %v4488, %v4639
    %v4794 = vmul.f32 %v4793, 2.0
    %v4795 = vadd.f32 %v4337, %v4794
    %v4796 = vadd.f32 %v4795, %v4790
    %v4797 = vmul.f32 %v4796, 0.023809524
    %v4798 = vadd.f32 %v4190, %v4797
    %v4800 = vsel %vm169, %v4798, 0
    %4802 = vmatprep.subr.mxu0 0.0
    %4803 = vmatpush1.msra.mxu0 %v1121
    %4804 = vmatprep.subr.mxu0 0.0
    %4805 = vmatpush1.msra.mxu0 %v1122
    %4806 = vmatprep.subr.mxu0 0.0
    %4807 = vmatpush1.msra.mxu0 %v1123
    %4808 = vmatprep.subr.mxu0 0.0
    %4809 = vmatpush1.msra.mxu0 %v1124
    %4810 = vmatprep.subr.mxu0 0.0
    %4811 = vmatpush1.msra.mxu0 0.0
    %4812 = vmatprep.subr.mxu0 0.0
    %4813 = vmatpush1.msra.mxu0 0.0
    %4814 = vmatprep.subr.mxu0 0.0
    %4815 = vmatpush1.msra.mxu0 0.0
    %4816 = vmatprep.subr.mxu0 0.0
    %4817 = vmatpush1.msra.mxu0 0.0
    %4818 = vmatprep.subr.mxu0 0.0
    %4819 = vmatpush1.msra.mxu0 0.0
    %4820 = vmatprep.subr.mxu0 0.0
    %4821 = vmatpush1.msra.mxu0 0.0
    %4822 = vmatprep.subr.mxu0 0.0
    %4823 = vmatpush1.msra.mxu0 0.0
    %4824 = vmatprep.subr.mxu0 0.0
    %4825 = vmatpush1.msra.mxu0 0.0
    %4826 = vmatprep.subr.mxu0 0.0
    %4827 = vmatpush1.msra.mxu0 0.0
    %4828 = vmatprep.subr.mxu0 0.0
    %4829 = vmatpush1.msra.mxu0 0.0
    %4830 = vmatprep.subr.mxu0 0.0
    %4831 = vmatpush1.msra.mxu0 0.0
    %4832 = vmatprep.subr.mxu0 0.0
    %4833 = vmatpush1.msra.mxu0 0.0
    %4834 = vmatprep.subr.mxu0 0.0
    %4835 = vmatpush1.msra.mxu0 0.0
    %4836 = vmatprep.subr.mxu0 0.0
    %4837 = vmatpush1.msra.mxu0 0.0
    %4838 = vmatprep.subr.mxu0 0.0
    %4839 = vmatpush1.msra.mxu0 0.0
    %4840 = vmatprep.subr.mxu0 0.0
    %4841 = vmatpush1.msra.mxu0 0.0
    %4842 = vmatprep.subr.mxu0 0.0
    %4843 = vmatpush1.msra.mxu0 0.0
    %4844 = vmatprep.subr.mxu0 0.0
    %4845 = vmatpush1.msra.mxu0 0.0
    %4846 = vmatprep.subr.mxu0 0.0
    %4847 = vmatpush1.msra.mxu0 0.0
    %4848 = vmatprep.subr.mxu0 0.0
    %4849 = vmatpush1.msra.mxu0 0.0
    %4850 = vmatprep.subr.mxu0 0.0
    %4851 = vmatpush1.msra.mxu0 0.0
    %4852 = vmatprep.subr.mxu0 0.0
    %4853 = vmatpush1.msra.mxu0 0.0
    %4854 = vmatprep.subr.mxu0 0.0
    %4855 = vmatpush1.msra.mxu0 0.0
    %4856 = vmatprep.subr.mxu0 0.0
    %4857 = vmatpush1.msra.mxu0 0.0
    %4858 = vmatprep.subr.mxu0 0.0
    %4859 = vmatpush1.msra.mxu0 0.0
    %4860 = vmatprep.subr.mxu0 0.0
    %4861 = vmatpush1.msra.mxu0 0.0
    %4862 = vmatprep.subr.mxu0 0.0
    %4863 = vmatpush1.msra.mxu0 0.0
    %4864 = vmatprep.subr.mxu0 0.0
    %4865 = vmatpush1.msra.mxu0 0.0
    %4866 = vmatprep.mubr.f32.mxu0 0.0
    %4867 = vmatmul.mubr.f32.gmra.mrb[0].mxu0 %v4800
    %v4868 = vpop.f32.mrb[0].mxu0
    %v4869 = vadd.f32 %v1145, %v4868
    %v4870 = vpop.f32.mrb[0].mxu0
    %4871 = vdwg.mxu0
    %vm4872 = vcmp.gt.f32.partialorder %v4869, 0.0
    %v4873 = vmin.f32 %v4869, 0.0
    %v4874 = vmul.f32 %v4873, 1.442695
    %v4875 = vpow.pop %v4874
    %v4876 = vsub.f32 %v4875, 1.0
    %v4877 = vsel %vm4872, %v4869, %v4876
    %4878 = vmatprep.subr.mxu0 0.0
    %4879 = vmatpush1.msra.mxu0 %v1125
    %4880 = vmatprep.subr.mxu0 0.0
    %4881 = vmatpush1.msra.mxu0 %v1126
    %4882 = vmatprep.subr.mxu0 0.0
    %4883 = vmatpush1.msra.mxu0 %v1127
    %4884 = vmatprep.subr.mxu0 0.0
    %4885 = vmatpush1.msra.mxu0 %v1128
    %4886 = vmatprep.subr.mxu0 0.0
    %4887 = vmatpush1.msra.mxu0 %v1129
    %4888 = vmatprep.subr.mxu0 0.0
    %4889 = vmatpush1.msra.mxu0 %v1130
    %4890 = vmatprep.subr.mxu0 0.0
    %4891 = vmatpush1.msra.mxu0 %v1131
    %4892 = vmatprep.subr.mxu0 0.0
    %4893 = vmatpush1.msra.mxu0 %v1132
    %4894 = vmatprep.subr.mxu0 0.0
    %4895 = vmatpush1.msra.mxu0 %v1133
    %4896 = vmatprep.subr.mxu0 0.0
    %4897 = vmatpush1.msra.mxu0 %v1134
    %4898 = vmatprep.subr.mxu0 0.0
    %4899 = vmatpush1.msra.mxu0 %v1135
    %4900 = vmatprep.subr.mxu0 0.0
    %4901 = vmatpush1.msra.mxu0 %v1136
    %4902 = vmatprep.subr.mxu0 0.0
    %4903 = vmatpush1.msra.mxu0 %v1137
    %4904 = vmatprep.subr.mxu0 0.0
    %4905 = vmatpush1.msra.mxu0 %v1138
    %4906 = vmatprep.subr.mxu0 0.0
    %4907 = vmatpush1.msra.mxu0 %v1139
    %4908 = vmatprep.subr.mxu0 0.0
    %4909 = vmatpush1.msra.mxu0 %v1140
    %4910 = vmatprep.subr.mxu0 0.0
    %4911 = vmatpush1.msra.mxu0 0.0
    %4912 = vmatprep.subr.mxu0 0.0
    %4913 = vmatpush1.msra.mxu0 0.0
    %4914 = vmatprep.subr.mxu0 0.0
    %4915 = vmatpush1.msra.mxu0 0.0
    %4916 = vmatprep.subr.mxu0 0.0
    %4917 = vmatpush1.msra.mxu0 0.0
    %4918 = vmatprep.subr.mxu0 0.0
    %4919 = vmatpush1.msra.mxu0 0.0
    %4920 = vmatprep.subr.mxu0 0.0
    %4921 = vmatpush1.msra.mxu0 0.0
    %4922 = vmatprep.subr.mxu0 0.0
    %4923 = vmatpush1.msra.mxu0 0.0
    %4924 = vmatprep.subr.mxu0 0.0
    %4925 = vmatpush1.msra.mxu0 0.0
    %4926 = vmatprep.subr.mxu0 0.0
    %4927 = vmatpush1.msra.mxu0 0.0
    %4928 = vmatprep.subr.mxu0 0.0
    %4929 = vmatpush1.msra.mxu0 0.0
    %4930 = vmatprep.subr.mxu0 0.0
    %4931 = vmatpush1.msra.mxu0 0.0
    %4932 = vmatprep.subr.mxu0 0.0
    %4933 = vmatpush1.msra.mxu0 0.0
    %4934 = vmatprep.subr.mxu0 0.0
    %4935 = vmatpush1.msra.mxu0 0.0
    %4936 = vmatprep.subr.mxu0 0.0
    %4937 = vmatpush1.msra.mxu0 0.0
    %4938 = vmatprep.subr.mxu0 0.0
    %4939 = vmatpush1.msra.mxu0 0.0
    %4940 = vmatprep.subr.mxu0 0.0
    %4941 = vmatpush1.msra.mxu0 0.0
    %4942 = vmatprep.mubr.f32.mxu0 0.0
    %4943 = vmatmul.mubr.f32.gmra.mrb[0].mxu0 %v4877
    %v4944 = vpop.f32.mrb[0].mxu0
    %v4945 = vadd.f32 %v1150, %v4944
    %v4946 = vpop.f32.mrb[0].mxu0
    %4947 = vdwg.mxu0
    %v4948 = vmul.f32 %v4945, 0.071428575
    %v4949 = vadd.f32 %v4798, %v4948
    %v4951 = vsel %vm169, %v4949, 0
    %4953 = vmatprep.subr.mxu0 0.0
    %4954 = vmatpush1.msra.mxu0 %v1121
    %4955 = vmatprep.subr.mxu0 0.0
    %4956 = vmatpush1.msra.mxu0 %v1122
    %4957 = vmatprep.subr.mxu0 0.0
    %4958 = vmatpush1.msra.mxu0 %v1123
    %4959 = vmatprep.subr.mxu0 0.0
    %4960 = vmatpush1.msra.mxu0 %v1124
    %4961 = vmatprep.subr.mxu0 0.0
    %4962 = vmatpush1.msra.mxu0 0.0
    %4963 = vmatprep.subr.mxu0 0.0
    %4964 = vmatpush1.msra.mxu0 0.0
    %4965 = vmatprep.subr.mxu0 0.0
    %4966 = vmatpush1.msra.mxu0 0.0
    %4967 = vmatprep.subr.mxu0 0.0
    %4968 = vmatpush1.msra.mxu0 0.0
    %4969 = vmatprep.subr.mxu0 0.0
    %4970 = vmatpush1.msra.mxu0 0.0
    %4971 = vmatprep.subr.mxu0 0.0
    %4972 = vmatpush1.msra.mxu0 0.0
    %4973 = vmatprep.subr.mxu0 0.0
    %4974 = vmatpush1.msra.mxu0 0.0
    %4975 = vmatprep.subr.mxu0 0.0
    %4976 = vmatpush1.msra.mxu0 0.0
    %4977 = vmatprep.subr.mxu0 0.0
    %4978 = vmatpush1.msra.mxu0 0.0
    %4979 = vmatprep.subr.mxu0 0.0
    %4980 = vmatpush1.msra.mxu0 0.0
    %4981 = vmatprep.subr.mxu0 0.0
    %4982 = vmatpush1.msra.mxu0 0.0
    %4983 = vmatprep.subr.mxu0 0.0
    %4984 = vmatpush1.msra.mxu0 0.0
    %4985 = vmatprep.subr.mxu0 0.0
    %4986 = vmatpush1.msra.mxu0 0.0
    %4987 = vmatprep.subr.mxu0 0.0
    %4988 = vmatpush1.msra.mxu0 0.0
    %4989 = vmatprep.subr.mxu0 0.0
    %4990 = vmatpush1.msra.mxu0 0.0
    %4991 = vmatprep.subr.mxu0 0.0
    %4992 = vmatpush1.msra.mxu0 0.0
    %4993 = vmatprep.subr.mxu0 0.0
    %4994 = vmatpush1.msra.mxu0 0.0
    %4995 = vmatprep.subr.mxu0 0.0
    %4996 = vmatpush1.msra.mxu0 0.0
    %4997 = vmatprep.subr.mxu0 0.0
    %4998 = vmatpush1.msra.mxu0 0.0
    %4999 = vmatprep.subr.mxu0 0.0
    %5000 = vmatpush1.msra.mxu0 0.0
    %5001 = vmatprep.subr.mxu0 0.0
    %5002 = vmatpush1.msra.mxu0 0.0
    %5003 = vmatprep.subr.mxu0 0.0
    %5004 = vmatpush1.msra.mxu0 0.0
    %5005 = vmatprep.subr.mxu0 0.0
    %5006 = vmatpush1.msra.mxu0 0.0
    %5007 = vmatprep.subr.mxu0 0.0
    %5008 = vmatpush1.msra.mxu0 0.0
    %5009 = vmatprep.subr.mxu0 0.0
    %5010 = vmatpush1.msra.mxu0 0.0
    %5011 = vmatprep.subr.mxu0 0.0
    %5012 = vmatpush1.msra.mxu0 0.0
    %5013 = vmatprep.subr.mxu0 0.0
    %5014 = vmatpush1.msra.mxu0 0.0
    %5015 = vmatprep.subr.mxu0 0.0
    %5016 = vmatpush1.msra.mxu0 0.0
    %5017 = vmatprep.mubr.f32.mxu0 0.0
    %5018 = vmatmul.mubr.f32.gmra.mrb[0].mxu0 %v4951
    %v5019 = vpop.f32.mrb[0].mxu0
    %v5020 = vadd.f32 %v1145, %v5019
    %v5021 = vpop.f32.mrb[0].mxu0
    %5022 = vdwg.mxu0
    %vm5023 = vcmp.gt.f32.partialorder %v5020, 0.0
    %v5024 = vmin.f32 %v5020, 0.0
    %v5025 = vmul.f32 %v5024, 1.442695
    %v5026 = vpow.pop %v5025
    %v5027 = vsub.f32 %v5026, 1.0
    %v5028 = vsel %vm5023, %v5020, %v5027
    %5029 = vmatprep.subr.mxu0 0.0
    %5030 = vmatpush1.msra.mxu0 %v1125
    %5031 = vmatprep.subr.mxu0 0.0
    %5032 = vmatpush1.msra.mxu0 %v1126
    %5033 = vmatprep.subr.mxu0 0.0
    %5034 = vmatpush1.msra.mxu0 %v1127
    %5035 = vmatprep.subr.mxu0 0.0
    %5036 = vmatpush1.msra.mxu0 %v1128
    %5037 = vmatprep.subr.mxu0 0.0
    %5038 = vmatpush1.msra.mxu0 %v1129
    %5039 = vmatprep.subr.mxu0 0.0
    %5040 = vmatpush1.msra.mxu0 %v1130
    %5041 = vmatprep.subr.mxu0 0.0
    %5042 = vmatpush1.msra.mxu0 %v1131
    %5043 = vmatprep.subr.mxu0 0.0
    %5044 = vmatpush1.msra.mxu0 %v1132
    %5045 = vmatprep.subr.mxu0 0.0
    %5046 = vmatpush1.msra.mxu0 %v1133
    %5047 = vmatprep.subr.mxu0 0.0
    %5048 = vmatpush1.msra.mxu0 %v1134
    %5049 = vmatprep.subr.mxu0 0.0
    %5050 = vmatpush1.msra.mxu0 %v1135
    %5051 = vmatprep.subr.mxu0 0.0
    %5052 = vmatpush1.msra.mxu0 %v1136
    %5053 = vmatprep.subr.mxu0 0.0
    %5054 = vmatpush1.msra.mxu0 %v1137
    %5055 = vmatprep.subr.mxu0 0.0
    %5056 = vmatpush1.msra.mxu0 %v1138
    %5057 = vmatprep.subr.mxu0 0.0
    %5058 = vmatpush1.msra.mxu0 %v1139
    %5059 = vmatprep.subr.mxu0 0.0
    %5060 = vmatpush1.msra.mxu0 %v1140
    %5061 = vmatprep.subr.mxu0 0.0
    %5062 = vmatpush1.msra.mxu0 0.0
    %5063 = vmatprep.subr.mxu0 0.0
    %5064 = vmatpush1.msra.mxu0 0.0
    %5065 = vmatprep.subr.mxu0 0.0
    %5066 = vmatpush1.msra.mxu0 0.0
    %5067 = vmatprep.subr.mxu0 0.0
    %5068 = vmatpush1.msra.mxu0 0.0
    %5069 = vmatprep.subr.mxu0 0.0
    %5070 = vmatpush1.msra.mxu0 0.0
    %5071 = vmatprep.subr.mxu0 0.0
    %5072 = vmatpush1.msra.mxu0 0.0
    %5073 = vmatprep.subr.mxu0 0.0
    %5074 = vmatpush1.msra.mxu0 0.0
    %5075 = vmatprep.subr.mxu0 0.0
    %5076 = vmatpush1.msra.mxu0 0.0
    %5077 = vmatprep.subr.mxu0 0.0
    %5078 = vmatpush1.msra.mxu0 0.0
    %5079 = vmatprep.subr.mxu0 0.0
    %5080 = vmatpush1.msra.mxu0 0.0
    %5081 = vmatprep.subr.mxu0 0.0
    %5082 = vmatpush1.msra.mxu0 0.0
    %5083 = vmatprep.subr.mxu0 0.0
    %5084 = vmatpush1.msra.mxu0 0.0
    %5085 = vmatprep.subr.mxu0 0.0
    %5086 = vmatpush1.msra.mxu0 0.0
    %5087 = vmatprep.subr.mxu0 0.0
    %5088 = vmatpush1.msra.mxu0 0.0
    %5089 = vmatprep.subr.mxu0 0.0
    %5090 = vmatpush1.msra.mxu0 0.0
    %5091 = vmatprep.subr.mxu0 0.0
    %5092 = vmatpush1.msra.mxu0 0.0
    %5093 = vmatprep.mubr.f32.mxu0 0.0
    %5094 = vmatmul.mubr.f32.gmra.mrb[0].mxu0 %v5028
    %v5095 = vpop.f32.mrb[0].mxu0
    %v5096 = vadd.f32 %v1150, %v5095
    %v5097 = vpop.f32.mrb[0].mxu0
    %5098 = vdwg.mxu0
    %v5099 = vmul.f32 %v5096, 0.071428575
    %v5100 = vadd.f32 %v4798, %v5099
    %v5102 = vsel %vm169, %v5100, 0
    %5104 = vmatprep.subr.mxu0 0.0
    %5105 = vmatpush1.msra.mxu0 %v1121
    %5106 = vmatprep.subr.mxu0 0.0
    %5107 = vmatpush1.msra.mxu0 %v1122
    %5108 = vmatprep.subr.mxu0 0.0
    %5109 = vmatpush1.msra.mxu0 %v1123
    %5110 = vmatprep.subr.mxu0 0.0
    %5111 = vmatpush1.msra.mxu0 %v1124
    %5112 = vmatprep.subr.mxu0 0.0
    %5113 = vmatpush1.msra.mxu0 0.0
    %5114 = vmatprep.subr.mxu0 0.0
    %5115 = vmatpush1.msra.mxu0 0.0
    %5116 = vmatprep.subr.mxu0 0.0
    %5117 = vmatpush1.msra.mxu0 0.0
    %5118 = vmatprep.subr.mxu0 0.0
    %5119 = vmatpush1.msra.mxu0 0.0
    %5120 = vmatprep.subr.mxu0 0.0
    %5121 = vmatpush1.msra.mxu0 0.0
    %5122 = vmatprep.subr.mxu0 0.0
    %5123 = vmatpush1.msra.mxu0 0.0
    %5124 = vmatprep.subr.mxu0 0.0
    %5125 = vmatpush1.msra.mxu0 0.0
    %5126 = vmatprep.subr.mxu0 0.0
    %5127 = vmatpush1.msra.mxu0 0.0
    %5128 = vmatprep.subr.mxu0 0.0
    %5129 = vmatpush1.msra.mxu0 0.0
    %5130 = vmatprep.subr.mxu0 0.0
    %5131 = vmatpush1.msra.mxu0 0.0
    %5132 = vmatprep.subr.mxu0 0.0
    %5133 = vmatpush1.msra.mxu0 0.0
    %5134 = vmatprep.subr.mxu0 0.0
    %5135 = vmatpush1.msra.mxu0 0.0
    %5136 = vmatprep.subr.mxu0 0.0
    %5137 = vmatpush1.msra.mxu0 0.0
    %5138 = vmatprep.subr.mxu0 0.0
    %5139 = vmatpush1.msra.mxu0 0.0
    %5140 = vmatprep.subr.mxu0 0.0
    %5141 = vmatpush1.msra.mxu0 0.0
    %5142 = vmatprep.subr.mxu0 0.0
    %5143 = vmatpush1.msra.mxu0 0.0
    %5144 = vmatprep.subr.mxu0 0.0
    %5145 = vmatpush1.msra.mxu0 0.0
    %5146 = vmatprep.subr.mxu0 0.0
    %5147 = vmatpush1.msra.mxu0 0.0
    %5148 = vmatprep.subr.mxu0 0.0
    %5149 = vmatpush1.msra.mxu0 0.0
    %5150 = vmatprep.subr.mxu0 0.0
    %5151 = vmatpush1.msra.mxu0 0.0
    %5152 = vmatprep.subr.mxu0 0.0
    %5153 = vmatpush1.msra.mxu0 0.0
    %5154 = vmatprep.subr.mxu0 0.0
    %5155 = vmatpush1.msra.mxu0 0.0
    %5156 = vmatprep.subr.mxu0 0.0
    %5157 = vmatpush1.msra.mxu0 0.0
    %5158 = vmatprep.subr.mxu0 0.0
    %5159 = vmatpush1.msra.mxu0 0.0
    %5160 = vmatprep.subr.mxu0 0.0
    %5161 = vmatpush1.msra.mxu0 0.0
    %5162 = vmatprep.subr.mxu0 0.0
    %5163 = vmatpush1.msra.mxu0 0.0
    %5164 = vmatprep.subr.mxu0 0.0
    %5165 = vmatpush1.msra.mxu0 0.0
    %5166 = vmatprep.subr.mxu0 0.0
    %5167 = vmatpush1.msra.mxu0 0.0
    %5168 = vmatprep.mubr.f32.mxu0 0.0
    %5169 = vmatmul.mubr.f32.gmra.mrb[0].mxu0 %v5102
    %v5170 = vpop.f32.mrb[0].mxu0
    %v5171 = vadd.f32 %v1145, %v5170
    %v5172 = vpop.f32.mrb[0].mxu0
    %5173 = vdwg.mxu0
    %vm5174 = vcmp.gt.f32.partialorder %v5171, 0.0
    %v5175 = vmin.f32 %v5171, 0.0
    %v5176 = vmul.f32 %v5175, 1.442695
    %v5177 = vpow.pop %v5176
    %v5178 = vsub.f32 %v5177, 1.0
    %v5179 = vsel %vm5174, %v5171, %v5178
    %5180 = vmatprep.subr.mxu0 0.0
    %5181 = vmatpush1.msra.mxu0 %v1125
    %5182 = vmatprep.subr.mxu0 0.0
    %5183 = vmatpush1.msra.mxu0 %v1126
    %5184 = vmatprep.subr.mxu0 0.0
    %5185 = vmatpush1.msra.mxu0 %v1127
    %5186 = vmatprep.subr.mxu0 0.0
    %5187 = vmatpush1.msra.mxu0 %v1128
    %5188 = vmatprep.subr.mxu0 0.0
    %5189 = vmatpush1.msra.mxu0 %v1129
    %5190 = vmatprep.subr.mxu0 0.0
    %5191 = vmatpush1.msra.mxu0 %v1130
    %5192 = vmatprep.subr.mxu0 0.0
    %5193 = vmatpush1.msra.mxu0 %v1131
    %5194 = vmatprep.subr.mxu0 0.0
    %5195 = vmatpush1.msra.mxu0 %v1132
    %5196 = vmatprep.subr.mxu0 0.0
    %5197 = vmatpush1.msra.mxu0 %v1133
    %5198 = vmatprep.subr.mxu0 0.0
    %5199 = vmatpush1.msra.mxu0 %v1134
    %5200 = vmatprep.subr.mxu0 0.0
    %5201 = vmatpush1.msra.mxu0 %v1135
    %5202 = vmatprep.subr.mxu0 0.0
    %5203 = vmatpush1.msra.mxu0 %v1136
    %5204 = vmatprep.subr.mxu0 0.0
    %5205 = vmatpush1.msra.mxu0 %v1137
    %5206 = vmatprep.subr.mxu0 0.0
    %5207 = vmatpush1.msra.mxu0 %v1138
    %5208 = vmatprep.subr.mxu0 0.0
    %5209 = vmatpush1.msra.mxu0 %v1139
    %5210 = vmatprep.subr.mxu0 0.0
    %5211 = vmatpush1.msra.mxu0 %v1140
    %5212 = vmatprep.subr.mxu0 0.0
    %5213 = vmatpush1.msra.mxu0 0.0
    %5214 = vmatprep.subr.mxu0 0.0
    %5215 = vmatpush1.msra.mxu0 0.0
    %5216 = vmatprep.subr.mxu0 0.0
    %5217 = vmatpush1.msra.mxu0 0.0
    %5218 = vmatprep.subr.mxu0 0.0
    %5219 = vmatpush1.msra.mxu0 0.0
    %5220 = vmatprep.subr.mxu0 0.0
    %5221 = vmatpush1.msra.mxu0 0.0
    %5222 = vmatprep.subr.mxu0 0.0
    %5223 = vmatpush1.msra.mxu0 0.0
    %5224 = vmatprep.subr.mxu0 0.0
    %5225 = vmatpush1.msra.mxu0 0.0
    %5226 = vmatprep.subr.mxu0 0.0
    %5227 = vmatpush1.msra.mxu0 0.0
    %5228 = vmatprep.subr.mxu0 0.0
    %5229 = vmatpush1.msra.mxu0 0.0
    %5230 = vmatprep.subr.mxu0 0.0
    %5231 = vmatpush1.msra.mxu0 0.0
    %5232 = vmatprep.subr.mxu0 0.0
    %5233 = vmatpush1.msra.mxu0 0.0
    %5234 = vmatprep.subr.mxu0 0.0
    %5235 = vmatpush1.msra.mxu0 0.0
    %5236 = vmatprep.subr.mxu0 0.0
    %5237 = vmatpush1.msra.mxu0 0.0
    %5238 = vmatprep.subr.mxu0 0.0
    %5239 = vmatpush1.msra.mxu0 0.0
    %5240 = vmatprep.subr.mxu0 0.0
    %5241 = vmatpush1.msra.mxu0 0.0
    %5242 = vmatprep.subr.mxu0 0.0
    %5243 = vmatpush1.msra.mxu0 0.0
    %5244 = vmatprep.mubr.f32.mxu0 0.0
    %5245 = vmatmul.mubr.f32.gmra.mrb[0].mxu0 %v5179
    %v5246 = vpop.f32.mrb[0].mxu0
    %v5247 = vadd.f32 %v1150, %v5246
    %v5248 = vpop.f32.mrb[0].mxu0
    %5249 = vdwg.mxu0
    %v5250 = vmul.f32 %v5247, 0.14285715
    %v5251 = vadd.f32 %v4798, %v5250
    %v5253 = vsel %vm169, %v5251, 0
    %5255 = vmatprep.subr.mxu0 0.0
    %5256 = vmatpush1.msra.mxu0 %v1121
    %5257 = vmatprep.subr.mxu0 0.0
    %5258 = vmatpush1.msra.mxu0 %v1122
    %5259 = vmatprep.subr.mxu0 0.0
    %5260 = vmatpush1.msra.mxu0 %v1123
    %5261 = vmatprep.subr.mxu0 0.0
    %5262 = vmatpush1.msra.mxu0 %v1124
    %5263 = vmatprep.subr.mxu0 0.0
    %5264 = vmatpush1.msra.mxu0 0.0
    %5265 = vmatprep.subr.mxu0 0.0
    %5266 = vmatpush1.msra.mxu0 0.0
    %5267 = vmatprep.subr.mxu0 0.0
    %5268 = vmatpush1.msra.mxu0 0.0
    %5269 = vmatprep.subr.mxu0 0.0
    %5270 = vmatpush1.msra.mxu0 0.0
    %5271 = vmatprep.subr.mxu0 0.0
    %5272 = vmatpush1.msra.mxu0 0.0
    %5273 = vmatprep.subr.mxu0 0.0
    %5274 = vmatpush1.msra.mxu0 0.0
    %5275 = vmatprep.subr.mxu0 0.0
    %5276 = vmatpush1.msra.mxu0 0.0
    %5277 = vmatprep.subr.mxu0 0.0
    %5278 = vmatpush1.msra.mxu0 0.0
    %5279 = vmatprep.subr.mxu0 0.0
    %5280 = vmatpush1.msra.mxu0 0.0
    %5281 = vmatprep.subr.mxu0 0.0
    %5282 = vmatpush1.msra.mxu0 0.0
    %5283 = vmatprep.subr.mxu0 0.0
    %5284 = vmatpush1.msra.mxu0 0.0
    %5285 = vmatprep.subr.mxu0 0.0
    %5286 = vmatpush1.msra.mxu0 0.0
    %5287 = vmatprep.subr.mxu0 0.0
    %5288 = vmatpush1.msra.mxu0 0.0
    %5289 = vmatprep.subr.mxu0 0.0
    %5290 = vmatpush1.msra.mxu0 0.0
    %5291 = vmatprep.subr.mxu0 0.0
    %5292 = vmatpush1.msra.mxu0 0.0
    %5293 = vmatprep.subr.mxu0 0.0
    %5294 = vmatpush1.msra.mxu0 0.0
    %5295 = vmatprep.subr.mxu0 0.0
    %5296 = vmatpush1.msra.mxu0 0.0
    %5297 = vmatprep.subr.mxu0 0.0
    %5298 = vmatpush1.msra.mxu0 0.0
    %5299 = vmatprep.subr.mxu0 0.0
    %5300 = vmatpush1.msra.mxu0 0.0
    %5301 = vmatprep.subr.mxu0 0.0
    %5302 = vmatpush1.msra.mxu0 0.0
    %5303 = vmatprep.subr.mxu0 0.0
    %5304 = vmatpush1.msra.mxu0 0.0
    %5305 = vmatprep.subr.mxu0 0.0
    %5306 = vmatpush1.msra.mxu0 0.0
    %5307 = vmatprep.subr.mxu0 0.0
    %5308 = vmatpush1.msra.mxu0 0.0
    %5309 = vmatprep.subr.mxu0 0.0
    %5310 = vmatpush1.msra.mxu0 0.0
    %5311 = vmatprep.subr.mxu0 0.0
    %5312 = vmatpush1.msra.mxu0 0.0
    %5313 = vmatprep.subr.mxu0 0.0
    %5314 = vmatpush1.msra.mxu0 0.0
    %5315 = vmatprep.subr.mxu0 0.0
    %5316 = vmatpush1.msra.mxu0 0.0
    %5317 = vmatprep.subr.mxu0 0.0
    %5318 = vmatpush1.msra.mxu0 0.0
    %5319 = vmatprep.mubr.f32.mxu0 0.0
    %5320 = vmatmul.mubr.f32.gmra.mrb[0].mxu0 %v5253
    %v5321 = vpop.f32.mrb[0].mxu0
    %v5322 = vadd.f32 %v1145, %v5321
    %v5323 = vpop.f32.mrb[0].mxu0
    %5324 = vdwg.mxu0
    %vm5325 = vcmp.gt.f32.partialorder %v5322, 0.0
    %v5326 = vmin.f32 %v5322, 0.0
    %v5327 = vmul.f32 %v5326, 1.442695
    %v5328 = vpow.pop %v5327
    %v5329 = vsub.f32 %v5328, 1.0
    %v5330 = vsel %vm5325, %v5322, %v5329
    %5331 = vmatprep.subr.mxu0 0.0
    %5332 = vmatpush1.msra.mxu0 %v1125
    %5333 = vmatprep.subr.mxu0 0.0
    %5334 = vmatpush1.msra.mxu0 %v1126
    %5335 = vmatprep.subr.mxu0 0.0
    %5336 = vmatpush1.msra.mxu0 %v1127
    %5337 = vmatprep.subr.mxu0 0.0
    %5338 = vmatpush1.msra.mxu0 %v1128
    %5339 = vmatprep.subr.mxu0 0.0
    %5340 = vmatpush1.msra.mxu0 %v1129
    %5341 = vmatprep.subr.mxu0 0.0
    %5342 = vmatpush1.msra.mxu0 %v1130
    %5343 = vmatprep.subr.mxu0 0.0
    %5344 = vmatpush1.msra.mxu0 %v1131
    %5345 = vmatprep.subr.mxu0 0.0
    %5346 = vmatpush1.msra.mxu0 %v1132
    %5347 = vmatprep.subr.mxu0 0.0
    %5348 = vmatpush1.msra.mxu0 %v1133
    %5349 = vmatprep.subr.mxu0 0.0
    %5350 = vmatpush1.msra.mxu0 %v1134
    %5351 = vmatprep.subr.mxu0 0.0
    %5352 = vmatpush1.msra.mxu0 %v1135
    %5353 = vmatprep.subr.mxu0 0.0
    %5354 = vmatpush1.msra.mxu0 %v1136
    %5355 = vmatprep.subr.mxu0 0.0
    %5356 = vmatpush1.msra.mxu0 %v1137
    %5357 = vmatprep.subr.mxu0 0.0
    %5358 = vmatpush1.msra.mxu0 %v1138
    %5359 = vmatprep.subr.mxu0 0.0
    %5360 = vmatpush1.msra.mxu0 %v1139
    %5361 = vmatprep.subr.mxu0 0.0
    %5362 = vmatpush1.msra.mxu0 %v1140
    %5363 = vmatprep.subr.mxu0 0.0
    %5364 = vmatpush1.msra.mxu0 0.0
    %5365 = vmatprep.subr.mxu0 0.0
    %5366 = vmatpush1.msra.mxu0 0.0
    %5367 = vmatprep.subr.mxu0 0.0
    %5368 = vmatpush1.msra.mxu0 0.0
    %5369 = vmatprep.subr.mxu0 0.0
    %5370 = vmatpush1.msra.mxu0 0.0
    %5371 = vmatprep.subr.mxu0 0.0
    %5372 = vmatpush1.msra.mxu0 0.0
    %5373 = vmatprep.subr.mxu0 0.0
    %5374 = vmatpush1.msra.mxu0 0.0
    %5375 = vmatprep.subr.mxu0 0.0
    %5376 = vmatpush1.msra.mxu0 0.0
    %5377 = vmatprep.subr.mxu0 0.0
    %5378 = vmatpush1.msra.mxu0 0.0
    %5379 = vmatprep.subr.mxu0 0.0
    %5380 = vmatpush1.msra.mxu0 0.0
    %5381 = vmatprep.subr.mxu0 0.0
    %5382 = vmatpush1.msra.mxu0 0.0
    %5383 = vmatprep.subr.mxu0 0.0
    %5384 = vmatpush1.msra.mxu0 0.0
    %5385 = vmatprep.subr.mxu0 0.0
    %5386 = vmatpush1.msra.mxu0 0.0
    %5387 = vmatprep.subr.mxu0 0.0
    %5388 = vmatpush1.msra.mxu0 0.0
    %5389 = vmatprep.subr.mxu0 0.0
    %5390 = vmatpush1.msra.mxu0 0.0
    %5391 = vmatprep.subr.mxu0 0.0
    %5392 = vmatpush1.msra.mxu0 0.0
    %5393 = vmatprep.subr.mxu0 0.0
    %5394 = vmatpush1.msra.mxu0 0.0
    %5395 = vmatprep.mubr.f32.mxu0 0.0
    %5396 = vmatmul.mubr.f32.gmra.mrb[0].mxu0 %v5330
    %v5397 = vpop.f32.mrb[0].mxu0
    %v5398 = vadd.f32 %v1150, %v5397
    %v5399 = vpop.f32.mrb[0].mxu0
    %5400 = vdwg.mxu0
    %v5401 = vadd.f32 %v5096, %v5247
    %v5402 = vmul.f32 %v5401, 2.0
    %v5403 = vadd.f32 %v4945, %v5402
    %v5404 = vadd.f32 %v5403, %v5398
    %v5405 = vmul.f32 %v5404, 0.023809524
    %v5406 = vadd.f32 %v4798, %v5405
    %v5407 = vrot.slane %v1758, 4
    %v5409 = vrot.slane %v2974, 4
    %v5411 = vrot.slane %v4190, 4
    %v5414 = vrot.slane %v5406, 4
    %vm5416 = vcmask 1043456
    %v5417 = vsel %vm5416, %v1112, %v5407
    %v5418 = vsel %vm5416, %v2366, %v5409
    %v5419 = vsel %vm5416, %v3582, %v5411
    %v5420 = vsel %vm5416, %v4798, %v5414
    %v5421 = vld [vmem:[%s7] sm:$0xff]
    %v5422 = vld [vmem:[%s7 + $0x8] sm:$0xff]
    %v5423 = vld [vmem:[%s7 + $0x10] sm:$0xff]
    %v5424 = vld [vmem:[%s7 + $0x18] sm:$0xff]
    %v5425 = vld [vmem:[%s12 + $0x5] sm:$0x1]
    %v5426 = vlaneseq
    %v5427 = vshrl.u32 %v5426, 7
    %v5428 = vsub.s32 0, %v5427
    %v5429 = vrot.slane %v5425, %v5428
    %v5431 = vsel %vm169, %v5417, 0
    %v5434 = vsel %vm169, %v5418, 0
    %v5437 = vsel %vm169, %v5419, 0
    %v5440 = vsel %vm169, %v5420, 0
    %5442 = vmatprep.subr.mxu0 0.0
    %5443 = vmatpush1.msra.mxu0 %v5421
    %5444 = vmatprep.subr.mxu0 0.0
    %5445 = vmatpush1.msra.mxu0 %v5422
    %5446 = vmatprep.subr.mxu0 0.0
    %5447 = vmatpush1.msra.mxu0 %v5423
    %5448 = vmatprep.subr.mxu0 0.0
    %5449 = vmatpush1.msra.mxu0 %v5424
    %5450 = vmatprep.subr.mxu0 0.0
    %5451 = vmatpush1.msra.mxu0 0.0
    %5452 = vmatprep.subr.mxu0 0.0
    %5453 = vmatpush1.msra.mxu0 0.0
    %5454 = vmatprep.subr.mxu0 0.0
    %5455 = vmatpush1.msra.mxu0 0.0
    %5456 = vmatprep.subr.mxu0 0.0
    %5457 = vmatpush1.msra.mxu0 0.0
    %5458 = vmatprep.subr.mxu0 0.0
    %5459 = vmatpush1.msra.mxu0 0.0
    %5460 = vmatprep.subr.mxu0 0.0
    %5461 = vmatpush1.msra.mxu0 0.0
    %5462 = vmatprep.subr.mxu0 0.0
    %5463 = vmatpush1.msra.mxu0 0.0
    %5464 = vmatprep.subr.mxu0 0.0
    %5465 = vmatpush1.msra.mxu0 0.0
    %5466 = vmatprep.subr.mxu0 0.0
    %5467 = vmatpush1.msra.mxu0 0.0
    %5468 = vmatprep.subr.mxu0 0.0
    %5469 = vmatpush1.msra.mxu0 0.0
    %5470 = vmatprep.subr.mxu0 0.0
    %5471 = vmatpush1.msra.mxu0 0.0
    %5472 = vmatprep.subr.mxu0 0.0
    %5473 = vmatpush1.msra.mxu0 0.0
    %5474 = vmatprep.subr.mxu0 0.0
    %5475 = vmatpush1.msra.mxu0 0.0
    %5476 = vmatprep.subr.mxu0 0.0
    %5477 = vmatpush1.msra.mxu0 0.0
    %5478 = vmatprep.subr.mxu0 0.0
    %5479 = vmatpush1.msra.mxu0 0.0
    %5480 = vmatprep.subr.mxu0 0.0
    %5481 = vmatpush1.msra.mxu0 0.0
    %5482 = vmatprep.subr.mxu0 0.0
    %5483 = vmatpush1.msra.mxu0 0.0
    %5484 = vmatprep.subr.mxu0 0.0
    %5485 = vmatpush1.msra.mxu0 0.0
    %5486 = vmatprep.subr.mxu0 0.0
    %5487 = vmatpush1.msra.mxu0 0.0
    %5488 = vmatprep.subr.mxu0 0.0
    %5489 = vmatpush1.msra.mxu0 0.0
    %5490 = vmatprep.subr.mxu0 0.0
    %5491 = vmatpush1.msra.mxu0 0.0
    %5492 = vmatprep.subr.mxu0 0.0
    %5493 = vmatpush1.msra.mxu0 0.0
    %5494 = vmatprep.subr.mxu0 0.0
    %5495 = vmatpush1.msra.mxu0 0.0
    %5496 = vmatprep.subr.mxu0 0.0
    %5497 = vmatpush1.msra.mxu0 0.0
    %5498 = vmatprep.subr.mxu0 0.0
    %5499 = vmatpush1.msra.mxu0 0.0
    %5500 = vmatprep.subr.mxu0 0.0
    %5501 = vmatpush1.msra.mxu0 0.0
    %5502 = vmatprep.subr.mxu0 0.0
    %5503 = vmatpush1.msra.mxu0 0.0
    %5504 = vmatprep.subr.mxu0 0.0
    %5505 = vmatpush1.msra.mxu0 0.0
    %5506 = vmatprep.mubr.f32.mxu0 0.0
    %5507 = vmatmul.mubr.f32.gmra.mrb[0].mxu0 %v5431
    %v5508 = vpop.f32.mrb[0].mxu0
    %v5509 = vadd.f32 %v5429, %v5508
    %v5510 = vpop.f32.mrb[0].mxu0
    %5511 = vmatprep.mubr.f32.mxu0 0.0
    %5512 = vmatmul.mubr.f32.gmra.mrb[0].mxu0 %v5434
    %v5513 = vpop.f32.mrb[0].mxu0
    %v5514 = vadd.f32 %v5429, %v5513
    %v5515 = vpop.f32.mrb[0].mxu0
    %5516 = vmatprep.mubr.f32.mxu0 0.0
    %5517 = vmatmul.mubr.f32.gmra.mrb[0].mxu0 %v5437
    %v5518 = vpop.f32.mrb[0].mxu0
    %v5519 = vadd.f32 %v5429, %v5518
    %v5520 = vpop.f32.mrb[0].mxu0
    %5521 = vmatprep.mubr.f32.mxu0 0.0
    %5522 = vmatmul.mubr.f32.gmra.mrb[0].mxu0 %v5440
    %v5523 = vpop.f32.mrb[0].mxu0
    %v5524 = vadd.f32 %v5429, %v5523
    %v5525 = vpop.f32.mrb[0].mxu0
    %5526 = vdwg.mxu0
    %v5527 = vld [vmem:[%s8] sm:$0xff]
    %v5528 = vld [vmem:[%s8 + $0x8] sm:$0xff]
    %v5529 = vld [vmem:[%s8 + $0x10] sm:$0xff]
    %v5530 = vld [vmem:[%s8 + $0x18] sm:$0xff]
    %v5531 = vld [vmem:[%s12 + $0x6] sm:$0x1]
    %v5532 = vlaneseq
    %v5533 = vshrl.u32 %v5532, 7
    %v5534 = vsub.s32 0, %v5533
    %v5535 = vrot.slane %v5531, %v5534
    %v5537 = vsel %vm169, %v5509, 0
    %v5540 = vsel %vm169, %v5514, 0
    %v5543 = vsel %vm169, %v5519, 0
    %v5546 = vsel %vm169, %v5524, 0
    %5548 = vmatprep.subr.mxu0 0.0
    %5549 = vmatpush1.msra.mxu0 %v5527
    %5550 = vmatprep.subr.mxu0 0.0
    %5551 = vmatpush1.msra.mxu0 %v5528
    %5552 = vmatprep.subr.mxu0 0.0
    %5553 = vmatpush1.msra.mxu0 %v5529
    %5554 = vmatprep.subr.mxu0 0.0
    %5555 = vmatpush1.msra.mxu0 %v5530
    %5556 = vmatprep.subr.mxu0 0.0
    %5557 = vmatpush1.msra.mxu0 0.0
    %5558 = vmatprep.subr.mxu0 0.0
    %5559 = vmatpush1.msra.mxu0 0.0
    %5560 = vmatprep.subr.mxu0 0.0
    %5561 = vmatpush1.msra.mxu0 0.0
    %5562 = vmatprep.subr.mxu0 0.0
    %5563 = vmatpush1.msra.mxu0 0.0
    %5564 = vmatprep.subr.mxu0 0.0
    %5565 = vmatpush1.msra.mxu0 0.0
    %5566 = vmatprep.subr.mxu0 0.0
    %5567 = vmatpush1.msra.mxu0 0.0
    %5568 = vmatprep.subr.mxu0 0.0
    %5569 = vmatpush1.msra.mxu0 0.0
    %5570 = vmatprep.subr.mxu0 0.0
    %5571 = vmatpush1.msra.mxu0 0.0
    %5572 = vmatprep.subr.mxu0 0.0
    %5573 = vmatpush1.msra.mxu0 0.0
    %5574 = vmatprep.subr.mxu0 0.0
    %5575 = vmatpush1.msra.mxu0 0.0
    %5576 = vmatprep.subr.mxu0 0.0
    %5577 = vmatpush1.msra.mxu0 0.0
    %5578 = vmatprep.subr.mxu0 0.0
    %5579 = vmatpush1.msra.mxu0 0.0
    %5580 = vmatprep.subr.mxu0 0.0
    %5581 = vmatpush1.msra.mxu0 0.0
    %5582 = vmatprep.subr.mxu0 0.0
    %5583 = vmatpush1.msra.mxu0 0.0
    %5584 = vmatprep.subr.mxu0 0.0
    %5585 = vmatpush1.msra.mxu0 0.0
    %5586 = vmatprep.subr.mxu0 0.0
    %5587 = vmatpush1.msra.mxu0 0.0
    %5588 = vmatprep.subr.mxu0 0.0
    %5589 = vmatpush1.msra.mxu0 0.0
    %5590 = vmatprep.subr.mxu0 0.0
    %5591 = vmatpush1.msra.mxu0 0.0
    %5592 = vmatprep.subr.mxu0 0.0
    %5593 = vmatpush1.msra.mxu0 0.0
    %5594 = vmatprep.subr.mxu0 0.0
    %5595 = vmatpush1.msra.mxu0 0.0
    %5596 = vmatprep.subr.mxu0 0.0
    %5597 = vmatpush1.msra.mxu0 0.0
    %5598 = vmatprep.subr.mxu0 0.0
    %5599 = vmatpush1.msra.mxu0 0.0
    %5600 = vmatprep.subr.mxu0 0.0
    %5601 = vmatpush1.msra.mxu0 0.0
    %5602 = vmatprep.subr.mxu0 0.0
    %5603 = vmatpush1.msra.mxu0 0.0
    %5604 = vmatprep.subr.mxu0 0.0
    %5605 = vmatpush1.msra.mxu0 0.0
    %5606 = vmatprep.subr.mxu0 0.0
    %5607 = vmatpush1.msra.mxu0 0.0
    %5608 = vmatprep.subr.mxu0 0.0
    %5609 = vmatpush1.msra.mxu0 0.0
    %5610 = vmatprep.subr.mxu0 0.0
    %5611 = vmatpush1.msra.mxu0 0.0
    %5612 = vmatprep.mubr.f32.mxu0 0.0
    %5613 = vmatmul.mubr.f32.gmra.mrb[0].mxu0 %v5537
    %v5614 = vpop.f32.mrb[0].mxu0
    %v5615 = vadd.f32 %v5535, %v5614
    %v5616 = vpop.f32.mrb[0].mxu0
    %5617 = vmatprep.mubr.f32.mxu0 0.0
    %5618 = vmatmul.mubr.f32.gmra.mrb[0].mxu0 %v5540
    %v5619 = vpop.f32.mrb[0].mxu0
    %v5620 = vadd.f32 %v5535, %v5619
    %v5621 = vpop.f32.mrb[0].mxu0
    %5622 = vmatprep.mubr.f32.mxu0 0.0
    %5623 = vmatmul.mubr.f32.gmra.mrb[0].mxu0 %v5543
    %v5624 = vpop.f32.mrb[0].mxu0
    %v5625 = vadd.f32 %v5535, %v5624
    %v5626 = vpop.f32.mrb[0].mxu0
    %5627 = vmatprep.mubr.f32.mxu0 0.0
    %5628 = vmatmul.mubr.f32.gmra.mrb[0].mxu0 %v5546
    %v5629 = vpop.f32.mrb[0].mxu0
    %v5630 = vadd.f32 %v5535, %v5629
    %v5631 = vpop.f32.mrb[0].mxu0
    %5632 = vdwg.mxu0
    %5633 = vst.msk [vmem:[#allocation3] sm:$0xff] %vm62, %v5615
    %5634 = vst.msk [vmem:[#allocation3 + $0x8] sm:$0xff] %vm62, %v5620
    %5635 = vst.msk [vmem:[#allocation3 + $0x10] sm:$0xff] %vm62, %v5625
    %5636 = vst.msk [vmem:[#allocation3 + $0x18] sm:$0xff] %vm62, %v5630
    %v5637 = vrot.slane %v1112, 4
    %v5639 = vrot.slane %v2366, 4
    %v5641 = vrot.slane %v3582, 4
    %v5643 = vrot.slane %v4798, 4
    %v5645 = vsel %vm5416, %v1112, %v5637
    %v5646 = vsel %vm5416, %v1758, %v5639
    %v5647 = vsel %vm5416, %v2974, %v5641
    %v5648 = vsel %vm5416, %v4190, %v5643
    %v5649 = vld [vmem:[%s9] sm:$0xff]
    %v5650 = vld [vmem:[%s9 + $0x8] sm:$0xff]
    %v5651 = vld [vmem:[%s9 + $0x10] sm:$0xff]
    %v5652 = vld [vmem:[%s9 + $0x18] sm:$0xff]
    %v5653 = vld [vmem:[%s12 + $0x7] sm:$0x1]
    %v5654 = vlaneseq
    %v5655 = vshrl.u32 %v5654, 7
    %v5656 = vsub.s32 0, %v5655
    %v5657 = vrot.slane %v5653, %v5656
    %v5659 = vsel %vm169, %v5645, 0
    %v5662 = vsel %vm169, %v5646, 0
    %v5665 = vsel %vm169, %v5647, 0
    %v5668 = vsel %vm169, %v5648, 0
    %v5670 = vsel %vm169, %v5406, 0
    %5672 = vmatprep.subr.mxu0 0.0
    %5673 = vmatpush1.msra.mxu0 %v5649
    %5674 = vmatprep.subr.mxu0 0.0
    %5675 = vmatpush1.msra.mxu0 %v5650
    %5676 = vmatprep.subr.mxu0 0.0
    %5677 = vmatpush1.msra.mxu0 %v5651
    %5678 = vmatprep.subr.mxu0 0.0
    %5679 = vmatpush1.msra.mxu0 %v5652
    %5680 = vmatprep.subr.mxu0 0.0
    %5681 = vmatpush1.msra.mxu0 0.0
    %5682 = vmatprep.subr.mxu0 0.0
    %5683 = vmatpush1.msra.mxu0 0.0
    %5684 = vmatprep.subr.mxu0 0.0
    %5685 = vmatpush1.msra.mxu0 0.0
    %5686 = vmatprep.subr.mxu0 0.0
    %5687 = vmatpush1.msra.mxu0 0.0
    %5688 = vmatprep.subr.mxu0 0.0
    %5689 = vmatpush1.msra.mxu0 0.0
    %5690 = vmatprep.subr.mxu0 0.0
    %5691 = vmatpush1.msra.mxu0 0.0
    %5692 = vmatprep.subr.mxu0 0.0
    %5693 = vmatpush1.msra.mxu0 0.0
    %5694 = vmatprep.subr.mxu0 0.0
    %5695 = vmatpush1.msra.mxu0 0.0
    %5696 = vmatprep.subr.mxu0 0.0
    %5697 = vmatpush1.msra.mxu0 0.0
    %5698 = vmatprep.subr.mxu0 0.0
    %5699 = vmatpush1.msra.mxu0 0.0
    %5700 = vmatprep.subr.mxu0 0.0
    %5701 = vmatpush1.msra.mxu0 0.0
    %5702 = vmatprep.subr.mxu0 0.0
    %5703 = vmatpush1.msra.mxu0 0.0
    %5704 = vmatprep.subr.mxu0 0.0
    %5705 = vmatpush1.msra.mxu0 0.0
    %5706 = vmatprep.subr.mxu0 0.0
    %5707 = vmatpush1.msra.mxu0 0.0
    %5708 = vmatprep.subr.mxu0 0.0
    %5709 = vmatpush1.msra.mxu0 0.0
    %5710 = vmatprep.subr.mxu0 0.0
    %5711 = vmatpush1.msra.mxu0 0.0
    %5712 = vmatprep.subr.mxu0 0.0
    %5713 = vmatpush1.msra.mxu0 0.0
    %5714 = vmatprep.subr.mxu0 0.0
    %5715 = vmatpush1.msra.mxu0 0.0
    %5716 = vmatprep.subr.mxu0 0.0
    %5717 = vmatpush1.msra.mxu0 0.0
    %5718 = vmatprep.subr.mxu0 0.0
    %5719 = vmatpush1.msra.mxu0 0.0
    %5720 = vmatprep.subr.mxu0 0.0
    %5721 = vmatpush1.msra.mxu0 0.0
    %5722 = vmatprep.subr.mxu0 0.0
    %5723 = vmatpush1.msra.mxu0 0.0
    %5724 = vmatprep.subr.mxu0 0.0
    %5725 = vmatpush1.msra.mxu0 0.0
    %5726 = vmatprep.subr.mxu0 0.0
    %5727 = vmatpush1.msra.mxu0 0.0
    %5728 = vmatprep.subr.mxu0 0.0
    %5729 = vmatpush1.msra.mxu0 0.0
    %5730 = vmatprep.subr.mxu0 0.0
    %5731 = vmatpush1.msra.mxu0 0.0
    %5732 = vmatprep.subr.mxu0 0.0
    %5733 = vmatpush1.msra.mxu0 0.0
    %5734 = vmatprep.subr.mxu0 0.0
    %5735 = vmatpush1.msra.mxu0 0.0
    %5736 = vmatprep.mubr.f32.mxu0 0.0
    %5737 = vmatmul.mubr.f32.gmra.mrb[0].mxu0 %v5659
    %v5738 = vpop.f32.mrb[0].mxu0
    %v5739 = vadd.f32 %v5657, %v5738
    %v5740 = vpop.f32.mrb[0].mxu0
    %5741 = vmatprep.mubr.f32.mxu0 0.0
    %5742 = vmatmul.mubr.f32.gmra.mrb[0].mxu0 %v5662
    %v5743 = vpop.f32.mrb[0].mxu0
    %v5744 = vadd.f32 %v5657, %v5743
    %v5745 = vpop.f32.mrb[0].mxu0
    %5746 = vmatprep.mubr.f32.mxu0 0.0
    %5747 = vmatmul.mubr.f32.gmra.mrb[0].mxu0 %v5665
    %v5748 = vpop.f32.mrb[0].mxu0
    %v5749 = vadd.f32 %v5657, %v5748
    %v5750 = vpop.f32.mrb[0].mxu0
    %5751 = vmatprep.mubr.f32.mxu0 0.0
    %5752 = vmatmul.mubr.f32.gmra.mrb[0].mxu0 %v5668
    %v5753 = vpop.f32.mrb[0].mxu0
    %v5754 = vadd.f32 %v5657, %v5753
    %v5755 = vpop.f32.mrb[0].mxu0
    %5756 = vmatprep.mubr.f32.mxu0 0.0
    %5757 = vmatmul.mubr.f32.gmra.mrb[0].mxu0 %v5670
    %v5758 = vpop.f32.mrb[0].mxu0
    %v5759 = vadd.f32 %v5657, %v5758
    %v5760 = vpop.f32.mrb[0].mxu0
    %5761 = vdwg.mxu0
    %v5764 = vunpack.c.l.s4 1966171168
    %v5765 = vunpack.c.0.s8 %v5764
    %v5766 = vlaneseq
    %v5767 = vshrl.u32 %v5766, 7
    %v5768 = vsub.s32 %v5765, %v5767
    %v5769 = vrot.slane %v5739, %v5768
    %v5770 = vcombine.high %v5769, %v5769
    %v5772 = vunpack.c.l.s4 1966171168
    %v5773 = vunpack.c.0.s8 %v5772
    %v5774 = vlaneseq
    %v5775 = vshrl.u32 %v5774, 7
    %v5776 = vsub.s32 %v5773, %v5775
    %v5777 = vrot.slane %v5769, %v5776
    %v5779 = vunpack.c.l.s4 1966171168
    %v5780 = vunpack.c.0.s8 %v5779
    %v5781 = vlaneseq
    %v5782 = vshrl.u32 %v5781, 7
    %v5783 = vsub.s32 %v5780, %v5782
    %v5784 = vrot.slane %v5770, %v5783
    %v5785 = vcombine.high %v5777, %v5777
    %v5786 = vcombine.high %v5784, %v5784
    %vm5791 = vcmask 516096
    %5792 = vst.msk [vmem:[#allocation2] sm:$0x1] %vm5791, %v5777
    %5793 = vst.msk [vmem:[#allocation2 + $0x10] sm:$0x1] %vm5791, %v5784
    %5794 = vst.msk [vmem:[#allocation2 + $0x20] sm:$0x1] %vm5791, %v5785
    %5795 = vst.msk [vmem:[#allocation2 + $0x30] sm:$0x1] %vm5791, %v5786
    %v5796 = vcombine.high %v5739, %v5739
    %v5798 = vunpack.c.l.s4 1966171168
    %v5799 = vunpack.c.0.s8 %v5798
    %v5800 = vlaneseq
    %v5801 = vshrl.u32 %v5800, 7
    %v5802 = vsub.s32 %v5799, %v5801
    %v5803 = vrot.slane %v5796, %v5802
    %v5804 = vcombine.high %v5803, %v5803
    %v5806 = vunpack.c.l.s4 1966171168
    %v5807 = vunpack.c.0.s8 %v5806
    %v5808 = vlaneseq
    %v5809 = vshrl.u32 %v5808, 7
    %v5810 = vsub.s32 %v5807, %v5809
    %v5811 = vrot.slane %v5803, %v5810
    %v5813 = vunpack.c.l.s4 1966171168
    %v5814 = vunpack.c.0.s8 %v5813
    %v5815 = vlaneseq
    %v5816 = vshrl.u32 %v5815, 7
    %v5817 = vsub.s32 %v5814, %v5816
    %v5818 = vrot.slane %v5804, %v5817
    %v5819 = vcombine.high %v5811, %v5811
    %v5820 = vcombine.high %v5818, %v5818
    %5825 = vst.msk [vmem:[#allocation2 + $0x1] sm:$0x1] %vm5791, %v5811
    %5826 = vst.msk [vmem:[#allocation2 + $0x11] sm:$0x1] %vm5791, %v5818
    %5827 = vst.msk [vmem:[#allocation2 + $0x21] sm:$0x1] %vm5791, %v5819
    %5828 = vst.msk [vmem:[#allocation2 + $0x31] sm:$0x1] %vm5791, %v5820
    %v5831 = vunpack.c.l.s4 1966171168
    %v5832 = vunpack.c.0.s8 %v5831
    %v5833 = vlaneseq
    %v5834 = vshrl.u32 %v5833, 7
    %v5835 = vsub.s32 %v5832, %v5834
    %v5836 = vrot.slane %v5744, %v5835
    %v5837 = vcombine.high %v5836, %v5836
    %v5839 = vunpack.c.l.s4 1966171168
    %v5840 = vunpack.c.0.s8 %v5839
    %v5841 = vlaneseq
    %v5842 = vshrl.u32 %v5841, 7
    %v5843 = vsub.s32 %v5840, %v5842
    %v5844 = vrot.slane %v5836, %v5843
    %v5846 = vunpack.c.l.s4 1966171168
    %v5847 = vunpack.c.0.s8 %v5846
    %v5848 = vlaneseq
    %v5849 = vshrl.u32 %v5848, 7
    %v5850 = vsub.s32 %v5847, %v5849
    %v5851 = vrot.slane %v5837, %v5850
    %v5852 = vcombine.high %v5844, %v5844
    %v5853 = vcombine.high %v5851, %v5851
    %5858 = vst.msk [vmem:[#allocation2 + $0x2] sm:$0x1] %vm5791, %v5844
    %5859 = vst.msk [vmem:[#allocation2 + $0x12] sm:$0x1] %vm5791, %v5851
    %5860 = vst.msk [vmem:[#allocation2 + $0x22] sm:$0x1] %vm5791, %v5852
    %5861 = vst.msk [vmem:[#allocation2 + $0x32] sm:$0x1] %vm5791, %v5853
    %v5862 = vcombine.high %v5744, %v5744
    %v5864 = vunpack.c.l.s4 1966171168
    %v5865 = vunpack.c.0.s8 %v5864
    %v5866 = vlaneseq
    %v5867 = vshrl.u32 %v5866, 7
    %v5868 = vsub.s32 %v5865, %v5867
    %v5869 = vrot.slane %v5862, %v5868
    %v5870 = vcombine.high %v5869, %v5869
    %v5872 = vunpack.c.l.s4 1966171168
    %v5873 = vunpack.c.0.s8 %v5872
    %v5874 = vlaneseq
    %v5875 = vshrl.u32 %v5874, 7
    %v5876 = vsub.s32 %v5873, %v5875
    %v5877 = vrot.slane %v5869, %v5876
    %v5879 = vunpack.c.l.s4 1966171168
    %v5880 = vunpack.c.0.s8 %v5879
    %v5881 = vlaneseq
    %v5882 = vshrl.u32 %v5881, 7
    %v5883 = vsub.s32 %v5880, %v5882
    %v5884 = vrot.slane %v5870, %v5883
    %v5885 = vcombine.high %v5877, %v5877
    %v5886 = vcombine.high %v5884, %v5884
    %5891 = vst.msk [vmem:[#allocation2 + $0x3] sm:$0x1] %vm5791, %v5877
    %5892 = vst.msk [vmem:[#allocation2 + $0x13] sm:$0x1] %vm5791, %v5884
    %5893 = vst.msk [vmem:[#allocation2 + $0x23] sm:$0x1] %vm5791, %v5885
    %5894 = vst.msk [vmem:[#allocation2 + $0x33] sm:$0x1] %vm5791, %v5886
    %v5897 = vunpack.c.l.s4 1966171168
    %v5898 = vunpack.c.0.s8 %v5897
    %v5899 = vlaneseq
    %v5900 = vshrl.u32 %v5899, 7
    %v5901 = vsub.s32 %v5898, %v5900
    %v5902 = vrot.slane %v5749, %v5901
    %v5903 = vcombine.high %v5902, %v5902
    %v5905 = vunpack.c.l.s4 1966171168
    %v5906 = vunpack.c.0.s8 %v5905
    %v5907 = vlaneseq
    %v5908 = vshrl.u32 %v5907, 7
    %v5909 = vsub.s32 %v5906, %v5908
    %v5910 = vrot.slane %v5902, %v5909
    %v5912 = vunpack.c.l.s4 1966171168
    %v5913 = vunpack.c.0.s8 %v5912
    %v5914 = vlaneseq
    %v5915 = vshrl.u32 %v5914, 7
    %v5916 = vsub.s32 %v5913, %v5915
    %v5917 = vrot.slane %v5903, %v5916
    %v5918 = vcombine.high %v5910, %v5910
    %v5919 = vcombine.high %v5917, %v5917
    %5924 = vst.msk [vmem:[#allocation2 + $0x4] sm:$0x1] %vm5791, %v5910
    %5925 = vst.msk [vmem:[#allocation2 + $0x14] sm:$0x1] %vm5791, %v5917
    %5926 = vst.msk [vmem:[#allocation2 + $0x24] sm:$0x1] %vm5791, %v5918
    %5927 = vst.msk [vmem:[#allocation2 + $0x34] sm:$0x1] %vm5791, %v5919
    %v5928 = vcombine.high %v5749, %v5749
    %v5930 = vunpack.c.l.s4 1966171168
    %v5931 = vunpack.c.0.s8 %v5930
    %v5932 = vlaneseq
    %v5933 = vshrl.u32 %v5932, 7
    %v5934 = vsub.s32 %v5931, %v5933
    %v5935 = vrot.slane %v5928, %v5934
    %v5936 = vcombine.high %v5935, %v5935
    %v5938 = vunpack.c.l.s4 1966171168
    %v5939 = vunpack.c.0.s8 %v5938
    %v5940 = vlaneseq
    %v5941 = vshrl.u32 %v5940, 7
    %v5942 = vsub.s32 %v5939, %v5941
    %v5943 = vrot.slane %v5935, %v5942
    %v5945 = vunpack.c.l.s4 1966171168
    %v5946 = vunpack.c.0.s8 %v5945
    %v5947 = vlaneseq
    %v5948 = vshrl.u32 %v5947, 7
    %v5949 = vsub.s32 %v5946, %v5948
    %v5950 = vrot.slane %v5936, %v5949
    %v5951 = vcombine.high %v5943, %v5943
    %v5952 = vcombine.high %v5950, %v5950
    %5957 = vst.msk [vmem:[#allocation2 + $0x5] sm:$0x1] %vm5791, %v5943
    %5958 = vst.msk [vmem:[#allocation2 + $0x15] sm:$0x1] %vm5791, %v5950
    %5959 = vst.msk [vmem:[#allocation2 + $0x25] sm:$0x1] %vm5791, %v5951
    %5960 = vst.msk [vmem:[#allocation2 + $0x35] sm:$0x1] %vm5791, %v5952
    %v5963 = vunpack.c.l.s4 1966171168
    %v5964 = vunpack.c.0.s8 %v5963
    %v5965 = vlaneseq
    %v5966 = vshrl.u32 %v5965, 7
    %v5967 = vsub.s32 %v5964, %v5966
    %v5968 = vrot.slane %v5754, %v5967
    %v5969 = vcombine.high %v5968, %v5968
    %v5971 = vunpack.c.l.s4 1966171168
    %v5972 = vunpack.c.0.s8 %v5971
    %v5973 = vlaneseq
    %v5974 = vshrl.u32 %v5973, 7
    %v5975 = vsub.s32 %v5972, %v5974
    %v5976 = vrot.slane %v5968, %v5975
    %v5978 = vunpack.c.l.s4 1966171168
    %v5979 = vunpack.c.0.s8 %v5978
    %v5980 = vlaneseq
    %v5981 = vshrl.u32 %v5980, 7
    %v5982 = vsub.s32 %v5979, %v5981
    %v5983 = vrot.slane %v5969, %v5982
    %v5984 = vcombine.high %v5976, %v5976
    %v5985 = vcombine.high %v5983, %v5983
    %5990 = vst.msk [vmem:[#allocation2 + $0x6] sm:$0x1] %vm5791, %v5976
    %5991 = vst.msk [vmem:[#allocation2 + $0x16] sm:$0x1] %vm5791, %v5983
    %5992 = vst.msk [vmem:[#allocation2 + $0x26] sm:$0x1] %vm5791, %v5984
    %5993 = vst.msk [vmem:[#allocation2 + $0x36] sm:$0x1] %vm5791, %v5985
    %v5994 = vcombine.high %v5754, %v5754
    %v5996 = vunpack.c.l.s4 1966171168
    %v5997 = vunpack.c.0.s8 %v5996
    %v5998 = vlaneseq
    %v5999 = vshrl.u32 %v5998, 7
    %v6000 = vsub.s32 %v5997, %v5999
    %v6001 = vrot.slane %v5994, %v6000
    %v6002 = vcombine.high %v6001, %v6001
    %v6004 = vunpack.c.l.s4 1966171168
    %v6005 = vunpack.c.0.s8 %v6004
    %v6006 = vlaneseq
    %v6007 = vshrl.u32 %v6006, 7
    %v6008 = vsub.s32 %v6005, %v6007
    %v6009 = vrot.slane %v6001, %v6008
    %v6011 = vunpack.c.l.s4 1966171168
    %v6012 = vunpack.c.0.s8 %v6011
    %v6013 = vlaneseq
    %v6014 = vshrl.u32 %v6013, 7
    %v6015 = vsub.s32 %v6012, %v6014
    %v6016 = vrot.slane %v6002, %v6015
    %v6017 = vcombine.high %v6009, %v6009
    %v6018 = vcombine.high %v6016, %v6016
    %6023 = vst.msk [vmem:[#allocation2 + $0x7] sm:$0x1] %vm5791, %v6009
    %6024 = vst.msk [vmem:[#allocation2 + $0x17] sm:$0x1] %vm5791, %v6016
    %6025 = vst.msk [vmem:[#allocation2 + $0x27] sm:$0x1] %vm5791, %v6017
    %6026 = vst.msk [vmem:[#allocation2 + $0x37] sm:$0x1] %vm5791, %v6018
    %v6029 = vunpack.c.l.s4 1966171168
    %v6030 = vunpack.c.0.s8 %v6029
    %v6031 = vlaneseq
    %v6032 = vshrl.u32 %v6031, 7
    %v6033 = vsub.s32 %v6030, %v6032
    %v6034 = vrot.slane %v5759, %v6033
    %v6035 = vcombine.high %v6034, %v6034
    %v6037 = vunpack.c.l.s4 1966171168
    %v6038 = vunpack.c.0.s8 %v6037
    %v6039 = vlaneseq
    %v6040 = vshrl.u32 %v6039, 7
    %v6041 = vsub.s32 %v6038, %v6040
    %v6042 = vrot.slane %v6034, %v6041
    %v6044 = vunpack.c.l.s4 1966171168
    %v6045 = vunpack.c.0.s8 %v6044
    %v6046 = vlaneseq
    %v6047 = vshrl.u32 %v6046, 7
    %v6048 = vsub.s32 %v6045, %v6047
    %v6049 = vrot.slane %v6035, %v6048
    %v6050 = vcombine.high %v6042, %v6042
    %v6051 = vcombine.high %v6049, %v6049
    %6056 = vst.msk [vmem:[#allocation2 + $0x8] sm:$0x1] %vm5791, %v6042
    %6057 = vst.msk [vmem:[#allocation2 + $0x18] sm:$0x1] %vm5791, %v6049
    %6058 = vst.msk [vmem:[#allocation2 + $0x28] sm:$0x1] %vm5791, %v6050
    %6059 = vst.msk [vmem:[#allocation2 + $0x38] sm:$0x1] %vm5791, %v6051
    %v6060 = vld [vmem:[%s10] sm:$0xff]
    %v6061 = vld [vmem:[%s10 + $0x8] sm:$0xff]
    %v6062 = vld [vmem:[#allocation2] sm:$0xff]
    %v6063 = vld [vmem:[#allocation2 + $0x8] sm:$0x1]
    %vm6064 = vcmask 130048
    %v6065 = vsel %vm6064, 0.0, 0
    %6067 = vmatprep.subr.mxu0 0.0
    %6068 = vmatpush1.msra.mxu0 %v6060
    %6069 = vmatprep.subr.mxu0 0.0
    %6070 = vmatpush1.msra.mxu0 %v6061
    %6071 = vmatprep.subr.mxu0 0.0
    %6072 = vmatpush1.msra.mxu0 0.0
    %6073 = vmatprep.subr.mxu0 0.0
    %6074 = vmatpush1.msra.mxu0 0.0
    %6075 = vmatprep.subr.mxu0 0.0
    %6076 = vmatpush1.msra.mxu0 0.0
    %6077 = vmatprep.subr.mxu0 0.0
    %6078 = vmatpush1.msra.mxu0 0.0
    %6079 = vmatprep.subr.mxu0 0.0
    %6080 = vmatpush1.msra.mxu0 0.0
    %6081 = vmatprep.subr.mxu0 0.0
    %6082 = vmatpush1.msra.mxu0 0.0
    %6083 = vmatprep.subr.mxu0 0.0
    %6084 = vmatpush1.msra.mxu0 0.0
    %6085 = vmatprep.subr.mxu0 0.0
    %6086 = vmatpush1.msra.mxu0 0.0
    %6087 = vmatprep.subr.mxu0 0.0
    %6088 = vmatpush1.msra.mxu0 0.0
    %6089 = vmatprep.subr.mxu0 0.0
    %6090 = vmatpush1.msra.mxu0 0.0
    %6091 = vmatprep.subr.mxu0 0.0
    %6092 = vmatpush1.msra.mxu0 0.0
    %6093 = vmatprep.subr.mxu0 0.0
    %6094 = vmatpush1.msra.mxu0 0.0
    %6095 = vmatprep.subr.mxu0 0.0
    %6096 = vmatpush1.msra.mxu0 0.0
    %6097 = vmatprep.subr.mxu0 0.0
    %6098 = vmatpush1.msra.mxu0 0.0
    %6099 = vmatprep.subr.mxu0 0.0
    %6100 = vmatpush1.msra.mxu0 0.0
    %6101 = vmatprep.subr.mxu0 0.0
    %6102 = vmatpush1.msra.mxu0 0.0
    %6103 = vmatprep.subr.mxu0 0.0
    %6104 = vmatpush1.msra.mxu0 0.0
    %6105 = vmatprep.subr.mxu0 0.0
    %6106 = vmatpush1.msra.mxu0 0.0
    %6107 = vmatprep.subr.mxu0 0.0
    %6108 = vmatpush1.msra.mxu0 0.0
    %6109 = vmatprep.subr.mxu0 0.0
    %6110 = vmatpush1.msra.mxu0 0.0
    %6111 = vmatprep.subr.mxu0 0.0
    %6112 = vmatpush1.msra.mxu0 0.0
    %6113 = vmatprep.subr.mxu0 0.0
    %6114 = vmatpush1.msra.mxu0 0.0
    %6115 = vmatprep.subr.mxu0 0.0
    %6116 = vmatpush1.msra.mxu0 0.0
    %6117 = vmatprep.subr.mxu0 0.0
    %6118 = vmatpush1.msra.mxu0 0.0
    %6119 = vmatprep.subr.mxu0 0.0
    %6120 = vmatpush1.msra.mxu0 0.0
    %6121 = vmatprep.subr.mxu0 0.0
    %6122 = vmatpush1.msra.mxu0 0.0
    %6123 = vmatprep.subr.mxu0 0.0
    %6124 = vmatpush1.msra.mxu0 0.0
    %6125 = vmatprep.subr.mxu0 0.0
    %6126 = vmatpush1.msra.mxu0 0.0
    %6127 = vmatprep.subr.mxu0 0.0
    %6128 = vmatpush1.msra.mxu0 0.0
    %6129 = vmatprep.subr.mxu0 0.0
    %6130 = vmatpush1.msra.mxu0 0.0
    %6131 = vmatprep.mubr.f32.mxu0 0.0
    %6132 = vmatmul.mubr.f32.gmra.mrb[0].mxu0 %v6065
    %v6133 = vpop.f32.mrb[0].mxu0
    %v6134 = vadd.f32 0.0, %v6133
    %v6135 = vpop.f32.mrb[0].mxu0
    %6136 = vmatprep.mubr.f32.mxu0 0.0
    %6137 = vmatmul.mubr.f32.gmra.mrb[0].mxu0 %v6065
    %v6138 = vpop.f32.mrb[0].mxu0
    %v6139 = vadd.f32 0.0, %v6138
    %v6140 = vpop.f32.mrb[0].mxu0
    %6141 = vdwg.mxu0
    %v6142 = vadd.f32 %v6062, %v6134
    %v6143 = vadd.f32 %v6063, %v6139
    %v6144 = vxor.u32 %v6142, 2147483648
    %v6145 = vxor.u32 %v6143, 2147483648
    %v6146 = vmul.f32 %v6144, 1.442695
    %v6147 = vpow.pop %v6146
    %v6148 = vmul.f32 %v6145, 1.442695
    %v6149 = vpow.pop %v6148
    %v6150 = vadd.f32 %v6147, 1.0
    %v6151 = vadd.f32 %v6149, 1.0
    %v6152 = vrcp.pop %v6150
    %v6153 = vmul.f32 1.0, %v6152
    %v6154 = vrcp.pop %v6151
    %v6155 = vmul.f32 1.0, %v6154
    %v6156 = vtanh.pop %v6142
    %v6157 = vtanh.pop %v6143
    %v6158 = vmul.f32 %v6153, 0.0
    %v6159 = vmul.f32 %v6155, 0.0
    %6162 = vrot.lane.b32.xlu0 %v6156, 96
    %v6163 = vpop.permute.xlu0 %6162
    %6164 = vrot.lane.b32.xlu0 %v6157, 96
    %v6165 = vpop.permute.xlu0 %6164
    %v6168 = vmul.f32 %v6153, %v6163
    %v6169 = vmul.f32 %v6155, %v6165
    %6172 = vrot.lane.b32.xlu0 %v6168, 16
    %v6173 = vpop.permute.xlu0 %6172
    %6174 = vrot.lane.b32.xlu0 %v6169, 16
    %v6175 = vpop.permute.xlu0 %6174
    %v6178 = vadd.f32 %v6158, %v6173
    %v6179 = vadd.f32 %v6159, %v6175
    %v6180 = vtanh.pop %v6178
    %v6181 = vtanh.pop %v6179
    %6184 = vrot.lane.b32.xlu0 %v6180, 32
    %v6185 = vpop.permute.xlu0 %6184
    %6186 = vrot.lane.b32.xlu0 %v6181, 32
    %v6187 = vpop.permute.xlu0 %6186
    %v6190 = vmul.f32 %v6153, %v6185
    %v6191 = vmul.f32 %v6155, %v6187
    %s6192 = scalar_lea.vmem [#allocation2], 16
    %v6193 = vld [vmem:[%s6192] sm:$0xff]
    %v6194 = vld [vmem:[%s6192 + $0x8] sm:$0x1]
    %6197 = vrot.lane.b32.xlu0 %v6190, 80
    %v6198 = vpop.permute.xlu0 %6197
    %6199 = vrot.lane.b32.xlu0 %v6191, 80
    %v6200 = vpop.permute.xlu0 %6199
    %v6201 = vsel %vm6064, %v6198, 0
    %v6203 = vsel %vm6064, %v6200, 0
    %6205 = vmatprep.subr.mxu0 0.0
    %6206 = vmatpush1.msra.mxu0 %v6060
    %6207 = vmatprep.subr.mxu0 0.0
    %6208 = vmatpush1.msra.mxu0 %v6061
    %6209 = vmatprep.subr.mxu0 0.0
    %6210 = vmatpush1.msra.mxu0 0.0
    %6211 = vmatprep.subr.mxu0 0.0
    %6212 = vmatpush1.msra.mxu0 0.0
    %6213 = vmatprep.subr.mxu0 0.0
    %6214 = vmatpush1.msra.mxu0 0.0
    %6215 = vmatprep.subr.mxu0 0.0
    %6216 = vmatpush1.msra.mxu0 0.0
    %6217 = vmatprep.subr.mxu0 0.0
    %6218 = vmatpush1.msra.mxu0 0.0
    %6219 = vmatprep.subr.mxu0 0.0
    %6220 = vmatpush1.msra.mxu0 0.0
    %6221 = vmatprep.subr.mxu0 0.0
    %6222 = vmatpush1.msra.mxu0 0.0
    %6223 = vmatprep.subr.mxu0 0.0
    %6224 = vmatpush1.msra.mxu0 0.0
    %6225 = vmatprep.subr.mxu0 0.0
    %6226 = vmatpush1.msra.mxu0 0.0
    %6227 = vmatprep.subr.mxu0 0.0
    %6228 = vmatpush1.msra.mxu0 0.0
    %6229 = vmatprep.subr.mxu0 0.0
    %6230 = vmatpush1.msra.mxu0 0.0
    %6231 = vmatprep.subr.mxu0 0.0
    %6232 = vmatpush1.msra.mxu0 0.0
    %6233 = vmatprep.subr.mxu0 0.0
    %6234 = vmatpush1.msra.mxu0 0.0
    %6235 = vmatprep.subr.mxu0 0.0
    %6236 = vmatpush1.msra.mxu0 0.0
    %6237 = vmatprep.subr.mxu0 0.0
    %6238 = vmatpush1.msra.mxu0 0.0
    %6239 = vmatprep.subr.mxu0 0.0
    %6240 = vmatpush1.msra.mxu0 0.0
    %6241 = vmatprep.subr.mxu0 0.0
    %6242 = vmatpush1.msra.mxu0 0.0
    %6243 = vmatprep.subr.mxu0 0.0
    %6244 = vmatpush1.msra.mxu0 0.0
    %6245 = vmatprep.subr.mxu0 0.0
    %6246 = vmatpush1.msra.mxu0 0.0
    %6247 = vmatprep.subr.mxu0 0.0
    %6248 = vmatpush1.msra.mxu0 0.0
    %6249 = vmatprep.subr.mxu0 0.0
    %6250 = vmatpush1.msra.mxu0 0.0
    %6251 = vmatprep.subr.mxu0 0.0
    %6252 = vmatpush1.msra.mxu0 0.0
    %6253 = vmatprep.subr.mxu0 0.0
    %6254 = vmatpush1.msra.mxu0 0.0
    %6255 = vmatprep.subr.mxu0 0.0
    %6256 = vmatpush1.msra.mxu0 0.0
    %6257 = vmatprep.subr.mxu0 0.0
    %6258 = vmatpush1.msra.mxu0 0.0
    %6259 = vmatprep.subr.mxu0 0.0
    %6260 = vmatpush1.msra.mxu0 0.0
    %6261 = vmatprep.subr.mxu0 0.0
    %6262 = vmatpush1.msra.mxu0 0.0
    %6263 = vmatprep.subr.mxu0 0.0
    %6264 = vmatpush1.msra.mxu0 0.0
    %6265 = vmatprep.subr.mxu0 0.0
    %6266 = vmatpush1.msra.mxu0 0.0
    %6267 = vmatprep.subr.mxu0 0.0
    %6268 = vmatpush1.msra.mxu0 0.0
    %6269 = vmatprep.mubr.f32.mxu0 0.0
    %6270 = vmatmul.mubr.f32.gmra.mrb[0].mxu0 %v6201
    %v6271 = vpop.f32.mrb[0].mxu0
    %v6272 = vadd.f32 0.0, %v6271
    %v6273 = vpop.f32.mrb[0].mxu0
    %6274 = vmatprep.mubr.f32.mxu0 0.0
    %6275 = vmatmul.mubr.f32.gmra.mrb[0].mxu0 %v6203
    %v6276 = vpop.f32.mrb[0].mxu0
    %v6277 = vadd.f32 0.0, %v6276
    %v6278 = vpop.f32.mrb[0].mxu0
    %6279 = vdwg.mxu0
    %v6280 = vadd.f32 %v6193, %v6272
    %v6281 = vadd.f32 %v6194, %v6277
    %v6282 = vxor.u32 %v6280, 2147483648
    %v6283 = vxor.u32 %v6281, 2147483648
    %v6284 = vmul.f32 %v6282, 1.442695
    %v6285 = vpow.pop %v6284
    %v6286 = vmul.f32 %v6283, 1.442695
    %v6287 = vpow.pop %v6286
    %v6288 = vadd.f32 %v6285, 1.0
    %v6289 = vadd.f32 %v6287, 1.0
    %v6290 = vrcp.pop %v6288
    %v6291 = vmul.f32 1.0, %v6290
    %v6292 = vrcp.pop %v6289
    %v6293 = vmul.f32 1.0, %v6292
    %v6294 = vtanh.pop %v6280
    %v6295 = vtanh.pop %v6281
    %v6296 = vmul.f32 %v6291, %v6178
    %v6297 = vmul.f32 %v6293, %v6179
    %6300 = vrot.lane.b32.xlu0 %v6294, 96
    %v6301 = vpop.permute.xlu0 %6300
    %6302 = vrot.lane.b32.xlu0 %v6295, 96
    %v6303 = vpop.permute.xlu0 %6302
    %v6306 = vmul.f32 %v6291, %v6301
    %v6307 = vmul.f32 %v6293, %v6303
    %6310 = vrot.lane.b32.xlu0 %v6306, 16
    %v6311 = vpop.permute.xlu0 %6310
    %6312 = vrot.lane.b32.xlu0 %v6307, 16
    %v6313 = vpop.permute.xlu0 %6312
    %v6316 = vadd.f32 %v6296, %v6311
    %v6317 = vadd.f32 %v6297, %v6313
    %v6318 = vtanh.pop %v6316
    %v6319 = vtanh.pop %v6317
    %6322 = vrot.lane.b32.xlu0 %v6318, 32
    %v6323 = vpop.permute.xlu0 %6322
    %6324 = vrot.lane.b32.xlu0 %v6319, 32
    %v6325 = vpop.permute.xlu0 %6324
    %v6328 = vmul.f32 %v6291, %v6323
    %v6329 = vmul.f32 %v6293, %v6325
    %s6330 = scalar_lea.vmem [#allocation2], 32
    %v6331 = vld [vmem:[%s6330] sm:$0xff]
    %v6332 = vld [vmem:[%s6330 + $0x8] sm:$0x1]
    %6335 = vrot.lane.b32.xlu0 %v6328, 80
    %v6336 = vpop.permute.xlu0 %6335
    %6337 = vrot.lane.b32.xlu0 %v6329, 80
    %v6338 = vpop.permute.xlu0 %6337
    %v6339 = vsel %vm6064, %v6336, 0
    %v6341 = vsel %vm6064, %v6338, 0
    %6343 = vmatprep.subr.mxu0 0.0
    %6344 = vmatpush1.msra.mxu0 %v6060
    %6345 = vmatprep.subr.mxu0 0.0
    %6346 = vmatpush1.msra.mxu0 %v6061
    %6347 = vmatprep.subr.mxu0 0.0
    %6348 = vmatpush1.msra.mxu0 0.0
    %6349 = vmatprep.subr.mxu0 0.0
    %6350 = vmatpush1.msra.mxu0 0.0
    %6351 = vmatprep.subr.mxu0 0.0
    %6352 = vmatpush1.msra.mxu0 0.0
    %6353 = vmatprep.subr.mxu0 0.0
    %6354 = vmatpush1.msra.mxu0 0.0
    %6355 = vmatprep.subr.mxu0 0.0
    %6356 = vmatpush1.msra.mxu0 0.0
    %6357 = vmatprep.subr.mxu0 0.0
    %6358 = vmatpush1.msra.mxu0 0.0
    %6359 = vmatprep.subr.mxu0 0.0
    %6360 = vmatpush1.msra.mxu0 0.0
    %6361 = vmatprep.subr.mxu0 0.0
    %6362 = vmatpush1.msra.mxu0 0.0
    %6363 = vmatprep.subr.mxu0 0.0
    %6364 = vmatpush1.msra.mxu0 0.0
    %6365 = vmatprep.subr.mxu0 0.0
    %6366 = vmatpush1.msra.mxu0 0.0
    %6367 = vmatprep.subr.mxu0 0.0
    %6368 = vmatpush1.msra.mxu0 0.0
    %6369 = vmatprep.subr.mxu0 0.0
    %6370 = vmatpush1.msra.mxu0 0.0
    %6371 = vmatprep.subr.mxu0 0.0
    %6372 = vmatpush1.msra.mxu0 0.0
    %6373 = vmatprep.subr.mxu0 0.0
    %6374 = vmatpush1.msra.mxu0 0.0
    %6375 = vmatprep.subr.mxu0 0.0
    %6376 = vmatpush1.msra.mxu0 0.0
    %6377 = vmatprep.subr.mxu0 0.0
    %6378 = vmatpush1.msra.mxu0 0.0
    %6379 = vmatprep.subr.mxu0 0.0
    %6380 = vmatpush1.msra.mxu0 0.0
    %6381 = vmatprep.subr.mxu0 0.0
    %6382 = vmatpush1.msra.mxu0 0.0
    %6383 = vmatprep.subr.mxu0 0.0
    %6384 = vmatpush1.msra.mxu0 0.0
    %6385 = vmatprep.subr.mxu0 0.0
    %6386 = vmatpush1.msra.mxu0 0.0
    %6387 = vmatprep.subr.mxu0 0.0
    %6388 = vmatpush1.msra.mxu0 0.0
    %6389 = vmatprep.subr.mxu0 0.0
    %6390 = vmatpush1.msra.mxu0 0.0
    %6391 = vmatprep.subr.mxu0 0.0
    %6392 = vmatpush1.msra.mxu0 0.0
    %6393 = vmatprep.subr.mxu0 0.0
    %6394 = vmatpush1.msra.mxu0 0.0
    %6395 = vmatprep.subr.mxu0 0.0
    %6396 = vmatpush1.msra.mxu0 0.0
    %6397 = vmatprep.subr.mxu0 0.0
    %6398 = vmatpush1.msra.mxu0 0.0
    %6399 = vmatprep.subr.mxu0 0.0
    %6400 = vmatpush1.msra.mxu0 0.0
    %6401 = vmatprep.subr.mxu0 0.0
    %6402 = vmatpush1.msra.mxu0 0.0
    %6403 = vmatprep.subr.mxu0 0.0
    %6404 = vmatpush1.msra.mxu0 0.0
    %6405 = vmatprep.subr.mxu0 0.0
    %6406 = vmatpush1.msra.mxu0 0.0
    %6407 = vmatprep.mubr.f32.mxu0 0.0
    %6408 = vmatmul.mubr.f32.gmra.mrb[0].mxu0 %v6339
    %v6409 = vpop.f32.mrb[0].mxu0
    %v6410 = vadd.f32 0.0, %v6409
    %v6411 = vpop.f32.mrb[0].mxu0
    %6412 = vmatprep.mubr.f32.mxu0 0.0
    %6413 = vmatmul.mubr.f32.gmra.mrb[0].mxu0 %v6341
    %v6414 = vpop.f32.mrb[0].mxu0
    %v6415 = vadd.f32 0.0, %v6414
    %v6416 = vpop.f32.mrb[0].mxu0
    %6417 = vdwg.mxu0
    %v6418 = vadd.f32 %v6331, %v6410
    %v6419 = vadd.f32 %v6332, %v6415
    %v6420 = vxor.u32 %v6418, 2147483648
    %v6421 = vxor.u32 %v6419, 2147483648
    %v6422 = vmul.f32 %v6420, 1.442695
    %v6423 = vpow.pop %v6422
    %v6424 = vmul.f32 %v6421, 1.442695
    %v6425 = vpow.pop %v6424
    %v6426 = vadd.f32 %v6423, 1.0
    %v6427 = vadd.f32 %v6425, 1.0
    %v6428 = vrcp.pop %v6426
    %v6429 = vmul.f32 1.0, %v6428
    %v6430 = vrcp.pop %v6427
    %v6431 = vmul.f32 1.0, %v6430
    %v6432 = vtanh.pop %v6418
    %v6433 = vtanh.pop %v6419
    %v6434 = vmul.f32 %v6429, %v6316
    %v6435 = vmul.f32 %v6431, %v6317
    %6438 = vrot.lane.b32.xlu0 %v6432, 96
    %v6439 = vpop.permute.xlu0 %6438
    %6440 = vrot.lane.b32.xlu0 %v6433, 96
    %v6441 = vpop.permute.xlu0 %6440
    %v6444 = vmul.f32 %v6429, %v6439
    %v6445 = vmul.f32 %v6431, %v6441
    %6448 = vrot.lane.b32.xlu0 %v6444, 16
    %v6449 = vpop.permute.xlu0 %6448
    %6450 = vrot.lane.b32.xlu0 %v6445, 16
    %v6451 = vpop.permute.xlu0 %6450
    %v6454 = vadd.f32 %v6434, %v6449
    %v6455 = vadd.f32 %v6435, %v6451
    %v6456 = vtanh.pop %v6454
    %v6457 = vtanh.pop %v6455
    %6460 = vrot.lane.b32.xlu0 %v6456, 32
    %v6461 = vpop.permute.xlu0 %6460
    %6462 = vrot.lane.b32.xlu0 %v6457, 32
    %v6463 = vpop.permute.xlu0 %6462
    %v6466 = vmul.f32 %v6429, %v6461
    %v6467 = vmul.f32 %v6431, %v6463
    %s6468 = scalar_lea.vmem [#allocation2], 48
    %v6469 = vld [vmem:[%s6468 + $0x8] sm:$0x1]
    %6472 = vrot.lane.b32.xlu0 %v6466, 80
    %v6473 = vpop.permute.xlu0 %6472
    %6474 = vrot.lane.b32.xlu0 %v6467, 80
    %v6475 = vpop.permute.xlu0 %6474
    %v6476 = vsel %vm6064, %v6473, 0
    %v6478 = vsel %vm6064, %v6475, 0
    %6480 = vmatprep.subr.mxu0 0.0
    %6481 = vmatpush1.msra.mxu0 %v6060
    %6482 = vmatprep.subr.mxu0 0.0
    %6483 = vmatpush1.msra.mxu0 %v6061
    %6484 = vmatprep.subr.mxu0 0.0
    %6485 = vmatpush1.msra.mxu0 0.0
    %6486 = vmatprep.subr.mxu0 0.0
    %6487 = vmatpush1.msra.mxu0 0.0
    %6488 = vmatprep.subr.mxu0 0.0
    %6489 = vmatpush1.msra.mxu0 0.0
    %6490 = vmatprep.subr.mxu0 0.0
    %6491 = vmatpush1.msra.mxu0 0.0
    %6492 = vmatprep.subr.mxu0 0.0
    %6493 = vmatpush1.msra.mxu0 0.0
    %6494 = vmatprep.subr.mxu0 0.0
    %6495 = vmatpush1.msra.mxu0 0.0
    %6496 = vmatprep.subr.mxu0 0.0
    %6497 = vmatpush1.msra.mxu0 0.0
    %6498 = vmatprep.subr.mxu0 0.0
    %6499 = vmatpush1.msra.mxu0 0.0
    %6500 = vmatprep.subr.mxu0 0.0
    %6501 = vmatpush1.msra.mxu0 0.0
    %6502 = vmatprep.subr.mxu0 0.0
    %6503 = vmatpush1.msra.mxu0 0.0
    %6504 = vmatprep.subr.mxu0 0.0
    %6505 = vmatpush1.msra.mxu0 0.0
    %6506 = vmatprep.subr.mxu0 0.0
    %6507 = vmatpush1.msra.mxu0 0.0
    %6508 = vmatprep.subr.mxu0 0.0
    %6509 = vmatpush1.msra.mxu0 0.0
    %6510 = vmatprep.subr.mxu0 0.0
    %6511 = vmatpush1.msra.mxu0 0.0
    %6512 = vmatprep.subr.mxu0 0.0
    %6513 = vmatpush1.msra.mxu0 0.0
    %6514 = vmatprep.subr.mxu0 0.0
    %6515 = vmatpush1.msra.mxu0 0.0
    %6516 = vmatprep.subr.mxu0 0.0
    %6517 = vmatpush1.msra.mxu0 0.0
    %6518 = vmatprep.subr.mxu0 0.0
    %6519 = vmatpush1.msra.mxu0 0.0
    %6520 = vmatprep.subr.mxu0 0.0
    %6521 = vmatpush1.msra.mxu0 0.0
    %6522 = vmatprep.subr.mxu0 0.0
    %6523 = vmatpush1.msra.mxu0 0.0
    %6524 = vmatprep.subr.mxu0 0.0
    %6525 = vmatpush1.msra.mxu0 0.0
    %6526 = vmatprep.subr.mxu0 0.0
    %6527 = vmatpush1.msra.mxu0 0.0
    %6528 = vmatprep.subr.mxu0 0.0
    %6529 = vmatpush1.msra.mxu0 0.0
    %6530 = vmatprep.subr.mxu0 0.0
    %6531 = vmatpush1.msra.mxu0 0.0
    %6532 = vmatprep.subr.mxu0 0.0
    %6533 = vmatpush1.msra.mxu0 0.0
    %6534 = vmatprep.subr.mxu0 0.0
    %6535 = vmatpush1.msra.mxu0 0.0
    %6536 = vmatprep.subr.mxu0 0.0
    %6537 = vmatpush1.msra.mxu0 0.0
    %6538 = vmatprep.subr.mxu0 0.0
    %6539 = vmatpush1.msra.mxu0 0.0
    %6540 = vmatprep.subr.mxu0 0.0
    %6541 = vmatpush1.msra.mxu0 0.0
    %6542 = vmatprep.subr.mxu0 0.0
    %6543 = vmatpush1.msra.mxu0 0.0
    %6544 = vmatprep.mubr.f32.mxu0 0.0
    %6545 = vmatmul.mubr.f32.gmra.mrb[0].mxu0 %v6476
    %v6546 = vpop.f32.mrb[0].mxu0
    %v6547 = vpop.f32.mrb[0].mxu0
    %6548 = vmatprep.mubr.f32.mxu0 0.0
    %6549 = vmatmul.mubr.f32.gmra.mrb[0].mxu0 %v6478
    %v6550 = vpop.f32.mrb[0].mxu0
    %v6551 = vadd.f32 0.0, %v6550
    %v6552 = vpop.f32.mrb[0].mxu0
    %6553 = vdwg.mxu0
    %v6554 = vadd.f32 %v6469, %v6551
    %v6555 = vxor.u32 %v6554, 2147483648
    %v6556 = vmul.f32 %v6555, 1.442695
    %v6557 = vpow.pop %v6556
    %v6558 = vadd.f32 %v6557, 1.0
    %v6559 = vrcp.pop %v6558
    %v6560 = vmul.f32 1.0, %v6559
    %v6561 = vtanh.pop %v6554
    %v6562 = vmul.f32 %v6560, %v6455
    %6564 = vrot.lane.b32.xlu0 %v6561, 96
    %v6565 = vpop.permute.xlu0 %6564
    %v6567 = vmul.f32 %v6560, %v6565
    %6569 = vrot.lane.b32.xlu0 %v6567, 16
    %v6570 = vpop.permute.xlu0 %6569
    %v6572 = vadd.f32 %v6562, %v6570
    %v6573 = vtanh.pop %v6572
    %6575 = vrot.lane.b32.xlu0 %v6573, 32
    %v6576 = vpop.permute.xlu0 %6575
    %v6578 = vmul.f32 %v6560, %v6576
    %v6579 = vrot.slane %v6329, 7
    %v6581 = vrot.slane %v6467, 6
    %v6584 = vrot.slane %v6578, 5
    %vm6586 = vcmask 1040384
    %v6587 = vsel %vm6586, %v6191, %v6579
    %vm6588 = vcmask 1041408
    %v6589 = vsel %vm6588, %v6587, %v6581
    %vm6590 = vcmask 1042432
    %v6591 = vsel %vm6590, %v6589, %v6584
    %v6592 = vld [vmem:[%s11] sm:$0xff]
    %v6593 = vld [vmem:[%s11 + $0x8] sm:$0xff]
    %v6594 = vld [vmem:[%s12 + $0x8] sm:$0x1]
    %v6595 = vlaneseq
    %v6596 = vshrl.u32 %v6595, 7
    %v6597 = vsub.s32 0, %v6596
    %v6598 = vrot.slane %v6594, %v6597
    %6600 = vrot.lane.b32.xlu0 %v6591, 80
    %v6601 = vpop.permute.xlu0 %6600
    %v6602 = vsel %vm6064, %v6601, 0
    %6604 = vmatprep.subr.mxu0 0.0
    %6605 = vmatpush1.msra.mxu0 %v6592
    %6606 = vmatprep.subr.mxu0 0.0
    %6607 = vmatpush1.msra.mxu0 %v6593
    %6608 = vmatprep.subr.mxu0 0.0
    %6609 = vmatpush1.msra.mxu0 0.0
    %6610 = vmatprep.subr.mxu0 0.0
    %6611 = vmatpush1.msra.mxu0 0.0
    %6612 = vmatprep.subr.mxu0 0.0
    %6613 = vmatpush1.msra.mxu0 0.0
    %6614 = vmatprep.subr.mxu0 0.0
    %6615 = vmatpush1.msra.mxu0 0.0
    %6616 = vmatprep.subr.mxu0 0.0
    %6617 = vmatpush1.msra.mxu0 0.0
    %6618 = vmatprep.subr.mxu0 0.0
    %6619 = vmatpush1.msra.mxu0 0.0
    %6620 = vmatprep.subr.mxu0 0.0
    %6621 = vmatpush1.msra.mxu0 0.0
    %6622 = vmatprep.subr.mxu0 0.0
    %6623 = vmatpush1.msra.mxu0 0.0
    %6624 = vmatprep.subr.mxu0 0.0
    %6625 = vmatpush1.msra.mxu0 0.0
    %6626 = vmatprep.subr.mxu0 0.0
    %6627 = vmatpush1.msra.mxu0 0.0
    %6628 = vmatprep.subr.mxu0 0.0
    %6629 = vmatpush1.msra.mxu0 0.0
    %6630 = vmatprep.subr.mxu0 0.0
    %6631 = vmatpush1.msra.mxu0 0.0
    %6632 = vmatprep.subr.mxu0 0.0
    %6633 = vmatpush1.msra.mxu0 0.0
    %6634 = vmatprep.subr.mxu0 0.0
    %6635 = vmatpush1.msra.mxu0 0.0
    %6636 = vmatprep.subr.mxu0 0.0
    %6637 = vmatpush1.msra.mxu0 0.0
    %6638 = vmatprep.subr.mxu0 0.0
    %6639 = vmatpush1.msra.mxu0 0.0
    %6640 = vmatprep.subr.mxu0 0.0
    %6641 = vmatpush1.msra.mxu0 0.0
    %6642 = vmatprep.subr.mxu0 0.0
    %6643 = vmatpush1.msra.mxu0 0.0
    %6644 = vmatprep.subr.mxu0 0.0
    %6645 = vmatpush1.msra.mxu0 0.0
    %6646 = vmatprep.subr.mxu0 0.0
    %6647 = vmatpush1.msra.mxu0 0.0
    %6648 = vmatprep.subr.mxu0 0.0
    %6649 = vmatpush1.msra.mxu0 0.0
    %6650 = vmatprep.subr.mxu0 0.0
    %6651 = vmatpush1.msra.mxu0 0.0
    %6652 = vmatprep.subr.mxu0 0.0
    %6653 = vmatpush1.msra.mxu0 0.0
    %6654 = vmatprep.subr.mxu0 0.0
    %6655 = vmatpush1.msra.mxu0 0.0
    %6656 = vmatprep.subr.mxu0 0.0
    %6657 = vmatpush1.msra.mxu0 0.0
    %6658 = vmatprep.subr.mxu0 0.0
    %6659 = vmatpush1.msra.mxu0 0.0
    %6660 = vmatprep.subr.mxu0 0.0
    %6661 = vmatpush1.msra.mxu0 0.0
    %6662 = vmatprep.subr.mxu0 0.0
    %6663 = vmatpush1.msra.mxu0 0.0
    %6664 = vmatprep.subr.mxu0 0.0
    %6665 = vmatpush1.msra.mxu0 0.0
    %6666 = vmatprep.subr.mxu0 0.0
    %6667 = vmatpush1.msra.mxu0 0.0
    %6668 = vmatprep.mubr.f32.mxu0 0.0
    %6669 = vmatmul.mubr.f32.gmra.mrb[0].mxu0 %v6602
    %v6670 = vpop.f32.mrb[0].mxu0
    %v6671 = vadd.f32 %v6598, %v6670
    %v6672 = vpop.f32.mrb[0].mxu0
    %6673 = vdwg.mxu0
    %vm6674 = vcmask 27648
    %6675 = vst.msk [vmem:[#allocation10] sm:$0xf] %vm6674, %v6671
    // Predicated region
    $region54: #{odevae_forward.1} parent=1 // pred_check
      _
    $region55: #{odevae_forward.1} parent=1 // pred_check_branch
      %6677 = sbr.rel (0) target = $region57
    $region56: #{odevae_forward.1} parent=1 // pred_region
      %s6679 = ssub.s32 512, 512
      %6680 = vsyncadd [#allocation4], %s6679
      %s6681 = sshll.u32 [#allocation3], 4
      %s6682 = int_to_ptr.vmem [resolvable:$true] %s6681
      %6687 = dma.vmem_to_hbm [thread:$0]  %s6682, 512, %s13, [#allocation4], 128, 128, 8
    $region57: #{odevae_forward.1} parent=1 // pred_fallthru
      _
    // Predicated region
    $region58: #{odevae_forward.1} parent=1 // pred_check
      _
    $region59: #{odevae_forward.1} parent=1 // pred_check_branch
      %6689 = sbr.rel (0) target = $region61
    $region60: #{odevae_forward.1} parent=1 // pred_region
      %s6691 = ssub.s32 64, 64
      %6692 = vsyncadd [#allocation6], %s6691
      %s6694 = sshll.u32 [#allocation5], 4
      %s6695 = int_to_ptr.vmem [resolvable:$true] %s6694
      %6697 = dma.vmem_to_hbm [thread:$0]  %s6695, 64, %s14, [#allocation6]
    $region61: #{odevae_forward.1} parent=1 // pred_fallthru
      _
    // Predicated region
    $region62: #{odevae_forward.1} parent=1 // pred_check
      _
    $region63: #{odevae_forward.1} parent=1 // pred_check_branch
      %6699 = sbr.rel (0) target = $region65
    $region64: #{odevae_forward.1} parent=1 // pred_region
      %s6701 = ssub.s32 64, 64
      %6702 = vsyncadd [#allocation6], %s6701
      %s6704 = sshll.u32 [#allocation7], 4
      %s6705 = int_to_ptr.vmem [resolvable:$true] %s6704
      %6707 = dma.vmem_to_hbm [thread:$0]  %s6705, 64, %s15, [#allocation6]
    $region65: #{odevae_forward.1} parent=1 // pred_fallthru
      _
    // Predicated region
    $region66: #{odevae_forward.1} parent=1 // pred_check
      _
    $region67: #{odevae_forward.1} parent=1 // pred_check_branch
      %6709 = sbr.rel (0) target = $region69
    $region68: #{odevae_forward.1} parent=1 // pred_region
      %s6711 = ssub.s32 64, 64
      %6712 = vsyncadd [#allocation9], %s6711
      %s6714 = sshll.u32 [#allocation8], 4
      %s6715 = int_to_ptr.vmem [resolvable:$true] %s6714
      %6717 = dma.vmem_to_hbm [thread:$0]  %s6715, 64, %s16, [#allocation9]
    $region69: #{odevae_forward.1} parent=1 // pred_fallthru
      _
    // Predicated region
    $region70: #{odevae_forward.1} parent=1 // pred_check
      _
    $region71: #{odevae_forward.1} parent=1 // pred_check_branch
      %6719 = sbr.rel (0) target = $region73
    $region72: #{odevae_forward.1} parent=1 // pred_region
      %s6721 = ssub.s32 64, 64
      %6722 = vsyncadd [#allocation9], %s6721
      %s6724 = sshll.u32 [#allocation10], 4
      %s6725 = int_to_ptr.vmem [resolvable:$true] %s6724
      %6727 = dma.vmem_to_hbm [thread:$0]  %s6725, 64, %s17, [#allocation9]
    $region73: #{odevae_forward.1} parent=1 // pred_fallthru
      _
    // Predicated region
    $region74: #{odevae_forward.1} parent=1 // pred_check
      _
    $region75: #{odevae_forward.1} parent=1 // pred_check_branch
      %6729 = sbr.rel (0) target = $region77
    $region76: #{odevae_forward.1} parent=1 // pred_region
      %6730 = dma.done [#allocation4], 512
    $region77: #{odevae_forward.1} parent=1 // pred_fallthru
      _
    // Predicated region
    $region78: #{odevae_forward.1} parent=1 // pred_check
      _
    $region79: #{odevae_forward.1} parent=1 // pred_check_branch
      %6732 = sbr.rel (0) target = $region81
    $region80: #{odevae_forward.1} parent=1 // pred_region
      %6733 = dma.done [#allocation6], 64
    $region81: #{odevae_forward.1} parent=1 // pred_fallthru
      _
    // Predicated region
    $region82: #{odevae_forward.1} parent=1 // pred_check
      _
    $region83: #{odevae_forward.1} parent=1 // pred_check_branch
      %6735 = sbr.rel (0) target = $region85
    $region84: #{odevae_forward.1} parent=1 // pred_region
      %6736 = dma.done [#allocation6], 64
    $region85: #{odevae_forward.1} parent=1 // pred_fallthru
      _
    // Predicated region
    $region86: #{odevae_forward.1} parent=1 // pred_check
      _
    $region87: #{odevae_forward.1} parent=1 // pred_check_branch
      %6738 = sbr.rel (0) target = $region89
    $region88: #{odevae_forward.1} parent=1 // pred_region
      %6739 = dma.done [#allocation9], 64
    $region89: #{odevae_forward.1} parent=1 // pred_fallthru
      _
    // Predicated region
    $region90: #{odevae_forward.1} parent=1 // pred_check
      _
    $region91: #{odevae_forward.1} parent=1 // pred_check_branch
      %6741 = sbr.rel (0) target = $region93
    $region92: #{odevae_forward.1} parent=1 // pred_region
      %6742 = dma.done [#allocation9], 64
    $region93: #{odevae_forward.1} parent=1 // pred_fallthru
      _
    %6743 = vsyncpa [#allocation4], 1
    %6744 = vsyncpa [#allocation6], 1
    %6745 = vsyncpa [#allocation9], 1

</llo_original>
